<compile_context>
chip_gen: v5e
topology: v5e:2x2
jax: 0.10.0
libtpu: 0.0.40
codegen_flags: <defaults>
</compile_context>

<pallas_src>
import functools

import jax
import jax.numpy as jnp
from jax import lax
from jax.experimental import pallas as pl
from jax.experimental.pallas import tpu as pltpu


# ----------------------------------------------------------------------------
# Pallas kernel: one (b, t) grid step of a fused ConvLSTM layer.
# ----------------------------------------------------------------------------
def _convlstm_layer_kernel(x_ref, w_ref, b_ref, y_ref, c_last_ref,
                           comb_scr, h_scr, c_scr,
                           *, H, W, Cin, Chid, KH, KW, WL):
    """
    x_ref      : (H, W, Cin)                 input frame x_t
    w_ref      : (KH*KW*Ctot, 4*Chid)        flattened HWIO conv weights (resident)
    b_ref      : (1, 4*Chid)                 conv bias (resident)
    y_ref      : (H*W, Chid)                 per-timestep hidden state output
    c_last_ref : (H*W, Chid)                 final cell state (written at t == T-1)
    comb_scr   : (H+2ph, WL+W+pw, Ctot)      zero-padded [x_t ; h_{t-1}] (persistent)
    h_scr      : (H, W, Chid)                h carry (persistent across t)
    c_scr      : (H*W, Chid)                 c carry (persistent across t)

    WL is the left column margin of comb_scr (pw rounded up to a multiple of 8)
    so that the interior store is sublane-aligned; buffer column q corresponds
    to SAME-padded column q - WL + pw.
    """
    t = pl.program_id(1)
    ph, pw = KH // 2, KW // 2
    Ctot = Cin + Chid

    # Zero the padding halo and the initial hidden/cell state once per batch
    # element (the halo never changes afterwards; only the interior is
    # rewritten each step).
    @pl.when(t == 0)
    def _init():
        comb_scr[...] = jnp.zeros_like(comb_scr)
        h_scr[...] = jnp.zeros_like(h_scr)
        c_scr[...] = jnp.zeros_like(c_scr)

    # combined = concat([x_t, h_{t-1}], channel) written into the interior of
    # the zero-padded scratch (full lane range, sublane-aligned offset).
    comb_scr[ph:ph + H, WL:WL + W, :] = jnp.concatenate(
        [x_ref[...], h_scr[...]], axis=-1)
    comb = comb_scr[...]                            # (Hp, WL+W+pw, Ctot)

    # im2col: one well-shaped MXU matmul over K = KH*KW*Ctot.
    pieces = []
    for kh in range(KH):
        for kw in range(KW):
            c0 = WL - pw + kw
            pieces.append(comb[kh:kh + H, c0:c0 + W, :].reshape(H * W, Ctot))
    patch = jnp.concatenate(pieces, axis=-1)        # (H*W, KH*KW*Ctot)

    acc = jnp.dot(patch, w_ref[...], preferred_element_type=jnp.float32)
    acc = acc + b_ref[...].astype(jnp.float32)      # (H*W, 4*Chid)

    # Gates, channel order (i, f, o, g) as in the PyTorch module: sigmoid on
    # the first 3*Chid output channels, tanh on the last Chid.  Evaluating
    # both activations on the full (H*W, 4*Chid) tile and selecting by lane
    # keeps the VPU/EUP at full 128-lane occupancy (4*Chid == 128 here).
    lane = lax.broadcasted_iota(jnp.int32, acc.shape, 1)
    act = jnp.where(lane < 3 * Chid, jax.nn.sigmoid(acc), jnp.tanh(acc))
    gi = act[:, 0 * Chid:1 * Chid]
    gf = act[:, 1 * Chid:2 * Chid]
    go = act[:, 2 * Chid:3 * Chid]
    gg = act[:, 3 * Chid:4 * Chid]

    c_prev = c_scr[...]                             # (H*W, Chid)
    c_next = gf * c_prev + gi * gg
    h_next = go * jnp.tanh(c_next)

    # Carries for step t+1 stay resident in VMEM.
    c_scr[...] = c_next
    h_scr[...] = h_next.reshape(H, W, Chid)

    # Per-timestep hidden-state output (contiguous 32 KB block per (b, t)).
    y_ref[...] = h_next.astype(y_ref.dtype)

    # Final cell state, written only on the last timestep (output block index
    # is constant across t, so it is written back once per batch element).
    @pl.when(t == pl.num_programs(1) - 1)
    def _finalize():
        c_last_ref[...] = c_next.astype(c_last_ref.dtype)


# ----------------------------------------------------------------------------
# One ConvLSTM layer over the full sequence with a single pallas_call.
# ----------------------------------------------------------------------------
def convlstm_layer(x, w, b, hidden_dim, kernel_size):
    """
    x : (B, T, H, W, Cin) float32 (channels-last per frame)
    w : (KH, KW, Cin + Chid, 4*Chid)  HWIO conv weights
    b : (4*Chid,)
    Returns layer_out (B,T,H,W,Chid), h_last (B,H,W,Chid), c_last (B,H,W,Chid).
    """
    B, T, H, W, Cin = x.shape
    Chid = hidden_dim
    KH, KW = kernel_size
    ph, pw = KH // 2, KW // 2
    Ctot = Cin + Chid
    WL = ((pw + 7) // 8) * 8                      # sublane-aligned left margin

    w_flat = w.reshape(KH * KW * Ctot, 4 * Chid)  # matches (kh, kw, c) order
    b2 = b.reshape(1, 4 * Chid)

    kernel = functools.partial(_convlstm_layer_kernel,
                               H=H, W=W, Cin=Cin, Chid=Chid,
                               KH=KH, KW=KW, WL=WL)

    y, c_last = pl.pallas_call(
        kernel,
        out_shape=(jax.ShapeDtypeStruct((B, T, H * W, Chid), jnp.float32),
                   jax.ShapeDtypeStruct((B, H * W, Chid), jnp.float32)),
        grid=(B, T),
        in_specs=[
            # x_t frame for this (b, t)
            pl.BlockSpec((None, None, H, W, Cin),
                         lambda bi, ti: (bi, ti, 0, 0, 0)),
            # weights / bias: constant index -> stay VMEM-resident
            pl.BlockSpec((KH * KW * Ctot, 4 * Chid), lambda bi, ti: (0, 0)),
            pl.BlockSpec((1, 4 * Chid), lambda bi, ti: (0, 0)),
        ],
        out_specs=(
            pl.BlockSpec((None, None, H * W, Chid),
                         lambda bi, ti: (bi, ti, 0, 0)),
            pl.BlockSpec((None, H * W, Chid), lambda bi, ti: (bi, 0, 0)),
        ),
        scratch_shapes=[
            pltpu.VMEM((H + 2 * ph, WL + W + pw, Ctot), jnp.float32),
            pltpu.VMEM((H, W, Chid), jnp.float32),
            pltpu.VMEM((H * W, Chid), jnp.float32),
        ],
        compiler_params=pltpu.CompilerParams(
            dimension_semantics=("parallel", "arbitrary")),
    )(x, w_flat, b2)

    layer_out = y.reshape(B, T, H, W, Chid)       # contiguous reshape
    h_last = layer_out[:, -1]
    c_last = c_last.reshape(B, H, W, Chid)
    return layer_out, h_last, c_last


# ----------------------------------------------------------------------------
# ConvLSTM forward (multi-layer) — one fused Pallas call per layer.
# ----------------------------------------------------------------------------
def convlstm_forward(x, params, hidden_dims, kernel_sizes,
                     batch_first=True, return_all_layers=False):
    """
    x: (B, T, C, H, W) if batch_first else (T, B, C, H, W)   (matches PyTorch)
    Returns (layer_output_list, last_state_list) with NCHW-convention tensors,
    same structure as the PyTorch module.
    """
    if not batch_first:
        x = jnp.transpose(x, (1, 0, 2, 3, 4))
    cur = jnp.transpose(x, (0, 1, 3, 4, 2))       # (B, T, H, W, C)

    layer_output_list = []
    last_state_list = []
    for li, (w, b) in enumerate(params):
        layer_out, h_last, c_last = convlstm_layer(
            cur, w, b, hidden_dims[li], kernel_sizes[li])
        cur = layer_out
        layer_output_list.append(layer_out)
        last_state_list.append((h_last, c_last))

    if not return_all_layers:
        layer_output_list = layer_output_list[-1:]
        last_state_list = last_state_list[-1:]

    # back to PyTorch's NCHW convention
    layer_output_list = [jnp.transpose(lo, (0, 1, 4, 2, 3))
                         for lo in layer_output_list]
    last_state_list = [(jnp.transpose(hh, (0, 3, 1, 2)),
                        jnp.transpose(cc, (0, 3, 1, 2)))
                       for hh, cc in last_state_list]
    return layer_output_list, last_state_list


# ----------------------------------------------------------------------------
# Pure-JAX reference (for the in-script correctness check).
# ----------------------------------------------------------------------------
def _ref_cell(x, h, c, w, b):
    combined = jnp.concatenate([x, h], axis=-1)
    cc = lax.conv_general_dilated(
        combined, w, window_strides=(1, 1), padding='SAME',
        dimension_numbers=('NHWC', 'HWIO', 'NHWC'),
        preferred_element_type=jnp.float32) + b
    Chid = h.shape[-1]
    i = jax.nn.sigmoid(cc[..., 0 * Chid:1 * Chid])
    f = jax.nn.sigmoid(cc[..., 1 * Chid:2 * Chid])
    o = jax.nn.sigmoid(cc[..., 2 * Chid:3 * Chid])
    g = jnp.tanh(cc[..., 3 * Chid:4 * Chid])
    c_next = f * c + i * g
    h_next = o * jnp.tanh(c_next)
    return h_next, c_next


def _ref_forward(x, params, hidden_dims):
    B, T, C, H, W = x.shape
    cur = jnp.transpose(x, (0, 1, 3, 4, 2))
    for li, (w, b) in enumerate(params):
        Chid = hidden_dims[li]
        h = jnp.zeros((B, H, W, Chid), jnp.float32)
        c = jnp.zeros((B, H, W, Chid), jnp.float32)
        outs = []
        for t in range(T):
            h, c = _ref_cell(cur[:, t], h, c, w, b)
            outs.append(h)
        cur = jnp.stack(outs, axis=1)
    return (jnp.transpose(cur, (0, 1, 4, 2, 3)),
            jnp.transpose(h, (0, 3, 1, 2)),
            jnp.transpose(c, (0, 3, 1, 2)))


# ----------------------------------------------------------------------------
def init_params(key, input_dim, hidden_dims, kernel_sizes):
    """Deterministic conv weights/biases (PyTorch Conv2d-style uniform init),
    stored directly in HWIO layout for the NHWC kernel."""
    params = []
    cur_in = input_dim
    for li, Chid in enumerate(hidden_dims):
        KH, KW = kernel_sizes[li]
        Ctot = cur_in + Chid
        Cout = 4 * Chid
        fan_in = Ctot * KH * KW
        bound = 1.0 / jnp.sqrt(float(fan_in))
        key, kw_, kb_ = jax.random.split(key, 3)
        w = jax.random.uniform(kw_, (KH, KW, Ctot, Cout), jnp.float32,
                               minval=-bound, maxval=bound)
        b = jax.random.uniform(kb_, (Cout,), jnp.float32,
                               minval=-bound, maxval=bound)
        params.append((w, b))
        cur_in = Chid
    return params


if __name__ == "__main__":
    # ConvLSTM(input_dim=4, hidden_dim=[32, 32], kernel_size=(3,3),
    #          num_layers=2, batch_first=True, bias=True,
    #          return_all_layers=False)
    B, T, Cin, H, W = 2, 8, 4, 16, 16
    hidden_dims = [32, 32]
    kernel_sizes = [(3, 3), (3, 3)]

    key = jax.random.PRNGKey(0)
    key, kx = jax.random.split(key)
    x = jax.random.normal(kx, (B, T, Cin, H, W), jnp.float32)  # (B,T,C,H,W)

    params = init_params(key, Cin, hidden_dims, kernel_sizes)

    run = jax.jit(functools.partial(
        convlstm_forward, hidden_dims=hidden_dims, kernel_sizes=kernel_sizes,
        batch_first=True, return_all_layers=False))
    layer_output_list, last_state_list = run(x, params)

    layer_out = jax.block_until_ready(layer_output_list[0])   # (B,T,32,H,W)
    h_last = jax.block_until_ready(last_state_list[0][0])     # (B,32,H,W)
    c_last = jax.block_until_ready(last_state_list[0][1])     # (B,32,H,W)

    assert layer_out.shape == (B, T, hidden_dims[-1], H, W)
    assert h_last.shape == (B, hidden_dims[-1], H, W)
    assert c_last.shape == (B, hidden_dims[-1], H, W)

    # correctness check against a pure-JAX reference
    ref_out, ref_h, ref_c = _ref_forward(x, params, hidden_dims)
    max_diff = max(float(jnp.max(jnp.abs(layer_out - ref_out))),
                   float(jnp.max(jnp.abs(h_last - ref_h))),
                   float(jnp.max(jnp.abs(c_last - ref_c))))
    assert max_diff < 5e-2, f"mismatch vs reference: {max_diff}"

    print("KERNEL_OK")
</pallas_src>

<mosaic_0001>
module attributes {stable_mosaic.version = 11 : i64} {
  func.func @_convlstm_layer_kernel(%arg0: i32, %arg1: i32, %arg2: memref<1x1x16x16x32xf32, #tpu.memory_space<vmem>>, %arg3: memref<576x128xf32, #tpu.memory_space<vmem>>, %arg4: memref<1x128xf32, #tpu.memory_space<vmem>>, %arg5: memref<1x1x256x32xf32, #tpu.memory_space<vmem>>, %arg6: memref<1x256x32xf32, #tpu.memory_space<vmem>>, %arg7: memref<18x25x64xf32, #tpu.memory_space<vmem>>, %arg8: memref<16x16x32xf32, #tpu.memory_space<vmem>>, %arg9: memref<256x32xf32, #tpu.memory_space<vmem>>) attributes {dimension_semantics = [#tpu.dimension_semantics<parallel>, #tpu.dimension_semantics<arbitrary>], iteration_bounds = array<i64: 2, 8>, scalar_prefetch = 0 : i64, scratch_operands = 3 : i64, tpu.core_type = #tpu.core_type<tc>, window_params = [{transform_indices = @transform_0, window_bounds = array<i64: 1, 1, 16, 16, 32>}, {pipeline_mode = #tpu.pipeline_mode<synchronous>, transform_indices = @transform_1, window_bounds = array<i64: 576, 128>}, {pipeline_mode = #tpu.pipeline_mode<synchronous>, transform_indices = @transform_2, window_bounds = array<i64: 1, 128>}, {transform_indices = @transform_3, window_bounds = array<i64: 1, 1, 256, 32>}, {transform_indices = @transform_4, window_bounds = array<i64: 1, 256, 32>}]} {
    %c0_i32 = arith.constant 0 : i32
    %0 = arith.cmpi eq, %arg1, %c0_i32 : i32
    %1 = arith.extui %0 : i1 to i32
    %c0_i32_0 = arith.constant 0 : i32
    %2 = arith.cmpi ne, %1, %c0_i32_0 : i32
    scf.if %2 {
      %cst_29 = arith.constant 0.000000e+00 : f32
      %62 = vector.broadcast %cst_29 : f32 to vector<18x25x64xf32>
      %c0_30 = arith.constant 0 : index
      %c0_31 = arith.constant 0 : index
      %c0_32 = arith.constant 0 : index
      %63 = vector.load %arg7[%c0_30, %c0_31, %c0_32] : memref<18x25x64xf32, #tpu.memory_space<vmem>>, vector<18x25x64xf32>
      tpu.vector_store %arg7[%c0_30, %c0_31, %c0_32], %62 {strides = array<i32>} : memref<18x25x64xf32, #tpu.memory_space<vmem>>, vector<18x25x64xf32>,
      %cst_33 = arith.constant 0.000000e+00 : f32
      %64 = vector.broadcast %cst_33 : f32 to vector<16x16x32xf32>
      %c0_34 = arith.constant 0 : index
      %c0_35 = arith.constant 0 : index
      %c0_36 = arith.constant 0 : index
      %65 = vector.load %arg8[%c0_34, %c0_35, %c0_36] : memref<16x16x32xf32, #tpu.memory_space<vmem>>, vector<16x16x32xf32>
      tpu.vector_store %arg8[%c0_34, %c0_35, %c0_36], %64 {strides = array<i32>} : memref<16x16x32xf32, #tpu.memory_space<vmem>>, vector<16x16x32xf32>,
      %cst_37 = arith.constant 0.000000e+00 : f32
      %66 = vector.broadcast %cst_37 : f32 to vector<256x32xf32>
      %c0_38 = arith.constant 0 : index
      %c0_39 = arith.constant 0 : index
      %67 = vector.load %arg9[%c0_38, %c0_39] : memref<256x32xf32, #tpu.memory_space<vmem>>, vector<256x32xf32>
      tpu.vector_store %arg9[%c0_38, %c0_39], %66 {strides = array<i32>} : memref<256x32xf32, #tpu.memory_space<vmem>>, vector<256x32xf32>,
    } else {
    }
    %c0 = arith.constant 0 : index
    %c0_1 = arith.constant 0 : index
    %c0_2 = arith.constant 0 : index
    %c0_3 = arith.constant 0 : index
    %c0_4 = arith.constant 0 : index
    %3 = vector.load %arg2[%c0, %c0_1, %c0_2, %c0_3, %c0_4] : memref<1x1x16x16x32xf32, #tpu.memory_space<vmem>>, vector<1x1x16x16x32xf32>
    %4 = vector.shape_cast %3 : vector<1x1x16x16x32xf32> to vector<16x16x32xf32>
    %c0_5 = arith.constant 0 : index
    %c0_6 = arith.constant 0 : index
    %c0_7 = arith.constant 0 : index
    %5 = vector.load %arg8[%c0_5, %c0_6, %c0_7] : memref<16x16x32xf32, #tpu.memory_space<vmem>>, vector<16x16x32xf32>
    %6 = tpu.concatenate %4, %5 in 2 : vector<16x16x32xf32>, vector<16x16x32xf32> -> vector<16x16x64xf32>
    %c1 = arith.constant 1 : index
    %c8 = arith.constant 8 : index
    %c0_8 = arith.constant 0 : index
    %7 = vector.load %arg7[%c1, %c8, %c0_8] : memref<18x25x64xf32, #tpu.memory_space<vmem>>, vector<16x16x64xf32>
    tpu.vector_store %arg7[%c1, %c8, %c0_8], %6 {strides = array<i32>} : memref<18x25x64xf32, #tpu.memory_space<vmem>>, vector<16x16x64xf32>,
    %c0_9 = arith.constant 0 : index
    %c0_10 = arith.constant 0 : index
    %c0_11 = arith.constant 0 : index
    %8 = vector.load %arg7[%c0_9, %c0_10, %c0_11] : memref<18x25x64xf32, #tpu.memory_space<vmem>>, vector<18x25x64xf32>
    %9 = vector.extract_strided_slice %8 {offsets = [0, 7, 0], sizes = [16, 16, 64], strides = [1, 1, 1]} : vector<18x25x64xf32> to vector<16x16x64xf32>
    %10 = vector.shape_cast %9 : vector<16x16x64xf32> to vector<256x64xf32>
    %11 = vector.extract_strided_slice %8 {offsets = [0, 8, 0], sizes = [16, 16, 64], strides = [1, 1, 1]} : vector<18x25x64xf32> to vector<16x16x64xf32>
    %12 = vector.shape_cast %11 : vector<16x16x64xf32> to vector<256x64xf32>
    %13 = vector.extract_strided_slice %8 {offsets = [0, 9, 0], sizes = [16, 16, 64], strides = [1, 1, 1]} : vector<18x25x64xf32> to vector<16x16x64xf32>
    %14 = vector.shape_cast %13 : vector<16x16x64xf32> to vector<256x64xf32>
    %15 = vector.extract_strided_slice %8 {offsets = [1, 7, 0], sizes = [16, 16, 64], strides = [1, 1, 1]} : vector<18x25x64xf32> to vector<16x16x64xf32>
    %16 = vector.shape_cast %15 : vector<16x16x64xf32> to vector<256x64xf32>
    %17 = vector.extract_strided_slice %8 {offsets = [1, 8, 0], sizes = [16, 16, 64], strides = [1, 1, 1]} : vector<18x25x64xf32> to vector<16x16x64xf32>
    %18 = vector.shape_cast %17 : vector<16x16x64xf32> to vector<256x64xf32>
    %19 = vector.extract_strided_slice %8 {offsets = [1, 9, 0], sizes = [16, 16, 64], strides = [1, 1, 1]} : vector<18x25x64xf32> to vector<16x16x64xf32>
    %20 = vector.shape_cast %19 : vector<16x16x64xf32> to vector<256x64xf32>
    %21 = vector.extract_strided_slice %8 {offsets = [2, 7, 0], sizes = [16, 16, 64], strides = [1, 1, 1]} : vector<18x25x64xf32> to vector<16x16x64xf32>
    %22 = vector.shape_cast %21 : vector<16x16x64xf32> to vector<256x64xf32>
    %23 = vector.extract_strided_slice %8 {offsets = [2, 8, 0], sizes = [16, 16, 64], strides = [1, 1, 1]} : vector<18x25x64xf32> to vector<16x16x64xf32>
    %24 = vector.shape_cast %23 : vector<16x16x64xf32> to vector<256x64xf32>
    %25 = vector.extract_strided_slice %8 {offsets = [2, 9, 0], sizes = [16, 16, 64], strides = [1, 1, 1]} : vector<18x25x64xf32> to vector<16x16x64xf32>
    %26 = vector.shape_cast %25 : vector<16x16x64xf32> to vector<256x64xf32>
    %27 = tpu.concatenate %10, %12, %14, %16, %18, %20, %22, %24, %26 in 1 : vector<256x64xf32>, vector<256x64xf32>, vector<256x64xf32>, vector<256x64xf32>, vector<256x64xf32>, vector<256x64xf32>, vector<256x64xf32>, vector<256x64xf32>, vector<256x64xf32> -> vector<256x576xf32>
    %c0_12 = arith.constant 0 : index
    %c0_13 = arith.constant 0 : index
    %28 = vector.load %arg3[%c0_12, %c0_13] : memref<576x128xf32, #tpu.memory_space<vmem>>, vector<576x128xf32>
    %cst = arith.constant dense<0.000000e+00> : vector<256x128xf32>
    %29 = tpu.matmul %27, %28, %cst {dimension_numbers = #tpu.dot_dimension_numbers<[1], [0], [0], [1], [0, 0, 1, 1], [], []>} : vector<256x576xf32>, vector<576x128xf32>, vector<256x128xf32> -> vector<256x128xf32>
    %c0_14 = arith.constant 0 : index
    %c0_15 = arith.constant 0 : index
    %30 = vector.load %arg4[%c0_14, %c0_15] : memref<1x128xf32, #tpu.memory_space<vmem>>, vector<1x128xf32>
    %31 = vector.broadcast %30 : vector<1x128xf32> to vector<256x128xf32>
    %32 = arith.addf %29, %31 : vector<256x128xf32>
    %33 = tpu.iota {dimensions = array<i32: 1>} : vector<256x128xi32>
    %c96_i32 = arith.constant 96 : i32
    %34 = vector.broadcast %c96_i32 : i32 to vector<256x128xi32>
    %35 = arith.cmpi slt, %33, %34 : vector<256x128xi32>
    %36 = arith.negf %32 : vector<256x128xf32>
    %37 = math.exp %36 : vector<256x128xf32>
    %cst_16 = arith.constant 1.000000e+00 : f32
    %38 = vector.broadcast %cst_16 : f32 to vector<256x128xf32>
    %39 = arith.addf %38, %37 : vector<256x128xf32>
    %40 = arith.divf %38, %39 : vector<256x128xf32>
    %41 = math.tanh %32 : vector<256x128xf32>
    %42 = arith.select %35, %40, %41 : vector<256x128xi1>, vector<256x128xf32>
    %43 = vector.extract_strided_slice %42 {offsets = [0, 0], sizes = [256, 32], strides = [1, 1]} : vector<256x128xf32> to vector<256x32xf32>
    %44 = vector.extract_strided_slice %42 {offsets = [0, 32], sizes = [256, 32], strides = [1, 1]} : vector<256x128xf32> to vector<256x32xf32>
    %45 = vector.extract_strided_slice %42 {offsets = [0, 64], sizes = [256, 32], strides = [1, 1]} : vector<256x128xf32> to vector<256x32xf32>
    %46 = vector.extract_strided_slice %42 {offsets = [0, 96], sizes = [256, 32], strides = [1, 1]} : vector<256x128xf32> to vector<256x32xf32>
    %c0_17 = arith.constant 0 : index
    %c0_18 = arith.constant 0 : index
    %47 = vector.load %arg9[%c0_17, %c0_18] : memref<256x32xf32, #tpu.memory_space<vmem>>, vector<256x32xf32>
    %48 = arith.mulf %44, %47 : vector<256x32xf32>
    %49 = arith.mulf %43, %46 : vector<256x32xf32>
    %50 = arith.addf %48, %49 : vector<256x32xf32>
    %51 = math.tanh %50 : vector<256x32xf32>
    %52 = arith.mulf %45, %51 : vector<256x32xf32>
    %c0_19 = arith.constant 0 : index
    %c0_20 = arith.constant 0 : index
    %53 = vector.load %arg9[%c0_19, %c0_20] : memref<256x32xf32, #tpu.memory_space<vmem>>, vector<256x32xf32>
    tpu.vector_store %arg9[%c0_19, %c0_20], %50 {strides = array<i32>} : memref<256x32xf32, #tpu.memory_space<vmem>>, vector<256x32xf32>,
    %54 = vector.shape_cast %52 : vector<256x32xf32> to vector<16x16x32xf32>
    %c0_21 = arith.constant 0 : index
    %c0_22 = arith.constant 0 : index
    %c0_23 = arith.constant 0 : index
    %55 = vector.load %arg8[%c0_21, %c0_22, %c0_23] : memref<16x16x32xf32, #tpu.memory_space<vmem>>, vector<16x16x32xf32>
    tpu.vector_store %arg8[%c0_21, %c0_22, %c0_23], %54 {strides = array<i32>} : memref<16x16x32xf32, #tpu.memory_space<vmem>>, vector<16x16x32xf32>,
    %c0_24 = arith.constant 0 : index
    %c0_25 = arith.constant 0 : index
    %c0_26 = arith.constant 0 : index
    %c0_27 = arith.constant 0 : index
    %56 = vector.load %arg5[%c0_24, %c0_25, %c0_26, %c0_27] : memref<1x1x256x32xf32, #tpu.memory_space<vmem>>, vector<1x1x256x32xf32>
    %57 = vector.shape_cast %56 : vector<1x1x256x32xf32> to vector<256x32xf32>
    %58 = vector.shape_cast %52 : vector<256x32xf32> to vector<1x1x256x32xf32>
    tpu.vector_store %arg5[%c0_24, %c0_25, %c0_26, %c0_27], %58 {strides = array<i32>} : memref<1x1x256x32xf32, #tpu.memory_space<vmem>>, vector<1x1x256x32xf32>,
    %c7_i32 = arith.constant 7 : i32
    %59 = arith.cmpi eq, %arg1, %c7_i32 : i32
    %60 = arith.extui %59 : i1 to i32
    %c0_i32_28 = arith.constant 0 : i32
    %61 = arith.cmpi ne, %60, %c0_i32_28 : i32
    scf.if %61 {
      %c0_29 = arith.constant 0 : index
      %c0_30 = arith.constant 0 : index
      %c0_31 = arith.constant 0 : index
      %62 = vector.load %arg6[%c0_29, %c0_30, %c0_31] : memref<1x256x32xf32, #tpu.memory_space<vmem>>, vector<1x256x32xf32>
      %63 = vector.shape_cast %62 : vector<1x256x32xf32> to vector<256x32xf32>
      %64 = vector.shape_cast %50 : vector<256x32xf32> to vector<1x256x32xf32>
      tpu.vector_store %arg6[%c0_29, %c0_30, %c0_31], %64 {strides = array<i32>} : memref<1x256x32xf32, #tpu.memory_space<vmem>>, vector<1x256x32xf32>,
    } else {
    }
    return
  }
  func.func @transform_0(%arg0: i32, %arg1: i32) -> (i32, i32, i32, i32, i32) {
    %c0_i32 = arith.constant 0 : i32
    %c0_i32_0 = arith.constant 0 : i32
    %c0_i32_1 = arith.constant 0 : i32
    %c0_i32_2 = arith.constant 0 : i32
    return %arg0, %arg1, %c0_i32, %c0_i32_0, %c0_i32_1 : i32, i32, i32, i32, i32
  }
  func.func @transform_1(%arg0: i32, %arg1: i32) -> (i32, i32) {
    %c0_i32 = arith.constant 0 : i32
    %c0_i32_0 = arith.constant 0 : i32
    %c0_i32_1 = arith.constant 0 : i32
    return %c0_i32, %c0_i32_0 : i32, i32
  }
  func.func @transform_2(%arg0: i32, %arg1: i32) -> (i32, i32) {
    %c0_i32 = arith.constant 0 : i32
    %c0_i32_0 = arith.constant 0 : i32
    %c0_i32_1 = arith.constant 0 : i32
    return %c0_i32, %c0_i32_0 : i32, i32
  }
  func.func @transform_3(%arg0: i32, %arg1: i32) -> (i32, i32, i32, i32) {
    %c0_i32 = arith.constant 0 : i32
    %c0_i32_0 = arith.constant 0 : i32
    %c0_i32_1 = arith.constant 0 : i32
    return %arg0, %arg1, %c0_i32, %c0_i32_0 : i32, i32, i32, i32
  }
  func.func @transform_4(%arg0: i32, %arg1: i32) -> (i32, i32, i32) {
    %c0_i32 = arith.constant 0 : i32
    %c0_i32_0 = arith.constant 0 : i32
    %c0_i32_1 = arith.constant 0 : i32
    return %arg0, %c0_i32, %c0_i32_0 : i32, i32, i32
  }
}

module attributes {stable_mosaic.version = 11 : i64} {
  func.func @_convlstm_layer_kernel(%arg0: i32, %arg1: i32, %arg2: memref<1x1x16x16x4xf32, #tpu.memory_space<vmem>>, %arg3: memref<324x128xf32, #tpu.memory_space<vmem>>, %arg4: memref<1x128xf32, #tpu.memory_space<vmem>>, %arg5: memref<1x1x256x32xf32, #tpu.memory_space<vmem>>, %arg6: memref<1x256x32xf32, #tpu.memory_space<vmem>>, %arg7: memref<18x25x36xf32, #tpu.memory_space<vmem>>, %arg8: memref<16x16x32xf32, #tpu.memory_space<vmem>>, %arg9: memref<256x32xf32, #tpu.memory_space<vmem>>) attributes {dimension_semantics = [#tpu.dimension_semantics<parallel>, #tpu.dimension_semantics<arbitrary>], iteration_bounds = array<i64: 2, 8>, scalar_prefetch = 0 : i64, scratch_operands = 3 : i64, tpu.core_type = #tpu.core_type<tc>, window_params = [{transform_indices = @transform_0, window_bounds = array<i64: 1, 1, 16, 16, 4>}, {pipeline_mode = #tpu.pipeline_mode<synchronous>, transform_indices = @transform_1, window_bounds = array<i64: 324, 128>}, {pipeline_mode = #tpu.pipeline_mode<synchronous>, transform_indices = @transform_2, window_bounds = array<i64: 1, 128>}, {transform_indices = @transform_3, window_bounds = array<i64: 1, 1, 256, 32>}, {transform_indices = @transform_4, window_bounds = array<i64: 1, 256, 32>}]} {
    %c0_i32 = arith.constant 0 : i32
    %0 = arith.cmpi eq, %arg1, %c0_i32 : i32
    %1 = arith.extui %0 : i1 to i32
    %c0_i32_0 = arith.constant 0 : i32
    %2 = arith.cmpi ne, %1, %c0_i32_0 : i32
    scf.if %2 {
      %cst_29 = arith.constant 0.000000e+00 : f32
      %62 = vector.broadcast %cst_29 : f32 to vector<18x25x36xf32>
      %c0_30 = arith.constant 0 : index
      %c0_31 = arith.constant 0 : index
      %c0_32 = arith.constant 0 : index
      %63 = vector.load %arg7[%c0_30, %c0_31, %c0_32] : memref<18x25x36xf32, #tpu.memory_space<vmem>>, vector<18x25x36xf32>
      tpu.vector_store %arg7[%c0_30, %c0_31, %c0_32], %62 {strides = array<i32>} : memref<18x25x36xf32, #tpu.memory_space<vmem>>, vector<18x25x36xf32>,
      %cst_33 = arith.constant 0.000000e+00 : f32
      %64 = vector.broadcast %cst_33 : f32 to vector<16x16x32xf32>
      %c0_34 = arith.constant 0 : index
      %c0_35 = arith.constant 0 : index
      %c0_36 = arith.constant 0 : index
      %65 = vector.load %arg8[%c0_34, %c0_35, %c0_36] : memref<16x16x32xf32, #tpu.memory_space<vmem>>, vector<16x16x32xf32>
      tpu.vector_store %arg8[%c0_34, %c0_35, %c0_36], %64 {strides = array<i32>} : memref<16x16x32xf32, #tpu.memory_space<vmem>>, vector<16x16x32xf32>,
      %cst_37 = arith.constant 0.000000e+00 : f32
      %66 = vector.broadcast %cst_37 : f32 to vector<256x32xf32>
      %c0_38 = arith.constant 0 : index
      %c0_39 = arith.constant 0 : index
      %67 = vector.load %arg9[%c0_38, %c0_39] : memref<256x32xf32, #tpu.memory_space<vmem>>, vector<256x32xf32>
      tpu.vector_store %arg9[%c0_38, %c0_39], %66 {strides = array<i32>} : memref<256x32xf32, #tpu.memory_space<vmem>>, vector<256x32xf32>,
    } else {
    }
    %c0 = arith.constant 0 : index
    %c0_1 = arith.constant 0 : index
    %c0_2 = arith.constant 0 : index
    %c0_3 = arith.constant 0 : index
    %c0_4 = arith.constant 0 : index
    %3 = vector.load %arg2[%c0, %c0_1, %c0_2, %c0_3, %c0_4] : memref<1x1x16x16x4xf32, #tpu.memory_space<vmem>>, vector<1x1x16x16x4xf32>
    %4 = vector.shape_cast %3 : vector<1x1x16x16x4xf32> to vector<16x16x4xf32>
    %c0_5 = arith.constant 0 : index
    %c0_6 = arith.constant 0 : index
    %c0_7 = arith.constant 0 : index
    %5 = vector.load %arg8[%c0_5, %c0_6, %c0_7] : memref<16x16x32xf32, #tpu.memory_space<vmem>>, vector<16x16x32xf32>
    %6 = tpu.concatenate %4, %5 in 2 : vector<16x16x4xf32>, vector<16x16x32xf32> -> vector<16x16x36xf32>
    %c1 = arith.constant 1 : index
    %c8 = arith.constant 8 : index
    %c0_8 = arith.constant 0 : index
    %7 = vector.load %arg7[%c1, %c8, %c0_8] : memref<18x25x36xf32, #tpu.memory_space<vmem>>, vector<16x16x36xf32>
    tpu.vector_store %arg7[%c1, %c8, %c0_8], %6 {strides = array<i32>} : memref<18x25x36xf32, #tpu.memory_space<vmem>>, vector<16x16x36xf32>,
    %c0_9 = arith.constant 0 : index
    %c0_10 = arith.constant 0 : index
    %c0_11 = arith.constant 0 : index
    %8 = vector.load %arg7[%c0_9, %c0_10, %c0_11] : memref<18x25x36xf32, #tpu.memory_space<vmem>>, vector<18x25x36xf32>
    %9 = vector.extract_strided_slice %8 {offsets = [0, 7, 0], sizes = [16, 16, 36], strides = [1, 1, 1]} : vector<18x25x36xf32> to vector<16x16x36xf32>
    %10 = vector.shape_cast %9 : vector<16x16x36xf32> to vector<256x36xf32>
    %11 = vector.extract_strided_slice %8 {offsets = [0, 8, 0], sizes = [16, 16, 36], strides = [1, 1, 1]} : vector<18x25x36xf32> to vector<16x16x36xf32>
    %12 = vector.shape_cast %11 : vector<16x16x36xf32> to vector<256x36xf32>
    %13 = vector.extract_strided_slice %8 {offsets = [0, 9, 0], sizes = [16, 16, 36], strides = [1, 1, 1]} : vector<18x25x36xf32> to vector<16x16x36xf32>
    %14 = vector.shape_cast %13 : vector<16x16x36xf32> to vector<256x36xf32>
    %15 = vector.extract_strided_slice %8 {offsets = [1, 7, 0], sizes = [16, 16, 36], strides = [1, 1, 1]} : vector<18x25x36xf32> to vector<16x16x36xf32>
    %16 = vector.shape_cast %15 : vector<16x16x36xf32> to vector<256x36xf32>
    %17 = vector.extract_strided_slice %8 {offsets = [1, 8, 0], sizes = [16, 16, 36], strides = [1, 1, 1]} : vector<18x25x36xf32> to vector<16x16x36xf32>
    %18 = vector.shape_cast %17 : vector<16x16x36xf32> to vector<256x36xf32>
    %19 = vector.extract_strided_slice %8 {offsets = [1, 9, 0], sizes = [16, 16, 36], strides = [1, 1, 1]} : vector<18x25x36xf32> to vector<16x16x36xf32>
    %20 = vector.shape_cast %19 : vector<16x16x36xf32> to vector<256x36xf32>
    %21 = vector.extract_strided_slice %8 {offsets = [2, 7, 0], sizes = [16, 16, 36], strides = [1, 1, 1]} : vector<18x25x36xf32> to vector<16x16x36xf32>
    %22 = vector.shape_cast %21 : vector<16x16x36xf32> to vector<256x36xf32>
    %23 = vector.extract_strided_slice %8 {offsets = [2, 8, 0], sizes = [16, 16, 36], strides = [1, 1, 1]} : vector<18x25x36xf32> to vector<16x16x36xf32>
    %24 = vector.shape_cast %23 : vector<16x16x36xf32> to vector<256x36xf32>
    %25 = vector.extract_strided_slice %8 {offsets = [2, 9, 0], sizes = [16, 16, 36], strides = [1, 1, 1]} : vector<18x25x36xf32> to vector<16x16x36xf32>
    %26 = vector.shape_cast %25 : vector<16x16x36xf32> to vector<256x36xf32>
    %27 = tpu.concatenate %10, %12, %14, %16, %18, %20, %22, %24, %26 in 1 : vector<256x36xf32>, vector<256x36xf32>, vector<256x36xf32>, vector<256x36xf32>, vector<256x36xf32>, vector<256x36xf32>, vector<256x36xf32>, vector<256x36xf32>, vector<256x36xf32> -> vector<256x324xf32>
    %c0_12 = arith.constant 0 : index
    %c0_13 = arith.constant 0 : index
    %28 = vector.load %arg3[%c0_12, %c0_13] : memref<324x128xf32, #tpu.memory_space<vmem>>, vector<324x128xf32>
    %cst = arith.constant dense<0.000000e+00> : vector<256x128xf32>
    %29 = tpu.matmul %27, %28, %cst {dimension_numbers = #tpu.dot_dimension_numbers<[1], [0], [0], [1], [0, 0, 1, 1], [], []>} : vector<256x324xf32>, vector<324x128xf32>, vector<256x128xf32> -> vector<256x128xf32>
    %c0_14 = arith.constant 0 : index
    %c0_15 = arith.constant 0 : index
    %30 = vector.load %arg4[%c0_14, %c0_15] : memref<1x128xf32, #tpu.memory_space<vmem>>, vector<1x128xf32>
    %31 = vector.broadcast %30 : vector<1x128xf32> to vector<256x128xf32>
    %32 = arith.addf %29, %31 : vector<256x128xf32>
    %33 = tpu.iota {dimensions = array<i32: 1>} : vector<256x128xi32>
    %c96_i32 = arith.constant 96 : i32
    %34 = vector.broadcast %c96_i32 : i32 to vector<256x128xi32>
    %35 = arith.cmpi slt, %33, %34 : vector<256x128xi32>
    %36 = arith.negf %32 : vector<256x128xf32>
    %37 = math.exp %36 : vector<256x128xf32>
    %cst_16 = arith.constant 1.000000e+00 : f32
    %38 = vector.broadcast %cst_16 : f32 to vector<256x128xf32>
    %39 = arith.addf %38, %37 : vector<256x128xf32>
    %40 = arith.divf %38, %39 : vector<256x128xf32>
    %41 = math.tanh %32 : vector<256x128xf32>
    %42 = arith.select %35, %40, %41 : vector<256x128xi1>, vector<256x128xf32>
    %43 = vector.extract_strided_slice %42 {offsets = [0, 0], sizes = [256, 32], strides = [1, 1]} : vector<256x128xf32> to vector<256x32xf32>
    %44 = vector.extract_strided_slice %42 {offsets = [0, 32], sizes = [256, 32], strides = [1, 1]} : vector<256x128xf32> to vector<256x32xf32>
    %45 = vector.extract_strided_slice %42 {offsets = [0, 64], sizes = [256, 32], strides = [1, 1]} : vector<256x128xf32> to vector<256x32xf32>
    %46 = vector.extract_strided_slice %42 {offsets = [0, 96], sizes = [256, 32], strides = [1, 1]} : vector<256x128xf32> to vector<256x32xf32>
    %c0_17 = arith.constant 0 : index
    %c0_18 = arith.constant 0 : index
    %47 = vector.load %arg9[%c0_17, %c0_18] : memref<256x32xf32, #tpu.memory_space<vmem>>, vector<256x32xf32>
    %48 = arith.mulf %44, %47 : vector<256x32xf32>
    %49 = arith.mulf %43, %46 : vector<256x32xf32>
    %50 = arith.addf %48, %49 : vector<256x32xf32>
    %51 = math.tanh %50 : vector<256x32xf32>
    %52 = arith.mulf %45, %51 : vector<256x32xf32>
    %c0_19 = arith.constant 0 : index
    %c0_20 = arith.constant 0 : index
    %53 = vector.load %arg9[%c0_19, %c0_20] : memref<256x32xf32, #tpu.memory_space<vmem>>, vector<256x32xf32>
    tpu.vector_store %arg9[%c0_19, %c0_20], %50 {strides = array<i32>} : memref<256x32xf32, #tpu.memory_space<vmem>>, vector<256x32xf32>,
    %54 = vector.shape_cast %52 : vector<256x32xf32> to vector<16x16x32xf32>
    %c0_21 = arith.constant 0 : index
    %c0_22 = arith.constant 0 : index
    %c0_23 = arith.constant 0 : index
    %55 = vector.load %arg8[%c0_21, %c0_22, %c0_23] : memref<16x16x32xf32, #tpu.memory_space<vmem>>, vector<16x16x32xf32>
    tpu.vector_store %arg8[%c0_21, %c0_22, %c0_23], %54 {strides = array<i32>} : memref<16x16x32xf32, #tpu.memory_space<vmem>>, vector<16x16x32xf32>,
    %c0_24 = arith.constant 0 : index
    %c0_25 = arith.constant 0 : index
    %c0_26 = arith.constant 0 : index
    %c0_27 = arith.constant 0 : index
    %56 = vector.load %arg5[%c0_24, %c0_25, %c0_26, %c0_27] : memref<1x1x256x32xf32, #tpu.memory_space<vmem>>, vector<1x1x256x32xf32>
    %57 = vector.shape_cast %56 : vector<1x1x256x32xf32> to vector<256x32xf32>
    %58 = vector.shape_cast %52 : vector<256x32xf32> to vector<1x1x256x32xf32>
    tpu.vector_store %arg5[%c0_24, %c0_25, %c0_26, %c0_27], %58 {strides = array<i32>} : memref<1x1x256x32xf32, #tpu.memory_space<vmem>>, vector<1x1x256x32xf32>,
    %c7_i32 = arith.constant 7 : i32
    %59 = arith.cmpi eq, %arg1, %c7_i32 : i32
    %60 = arith.extui %59 : i1 to i32
    %c0_i32_28 = arith.constant 0 : i32
    %61 = arith.cmpi ne, %60, %c0_i32_28 : i32
    scf.if %61 {
      %c0_29 = arith.constant 0 : index
      %c0_30 = arith.constant 0 : index
      %c0_31 = arith.constant 0 : index
      %62 = vector.load %arg6[%c0_29, %c0_30, %c0_31] : memref<1x256x32xf32, #tpu.memory_space<vmem>>, vector<1x256x32xf32>
      %63 = vector.shape_cast %62 : vector<1x256x32xf32> to vector<256x32xf32>
      %64 = vector.shape_cast %50 : vector<256x32xf32> to vector<1x256x32xf32>
      tpu.vector_store %arg6[%c0_29, %c0_30, %c0_31], %64 {strides = array<i32>} : memref<1x256x32xf32, #tpu.memory_space<vmem>>, vector<1x256x32xf32>,
    } else {
    }
    return
  }
  func.func @transform_0(%arg0: i32, %arg1: i32) -> (i32, i32, i32, i32, i32) {
    %c0_i32 = arith.constant 0 : i32
    %c0_i32_0 = arith.constant 0 : i32
    %c0_i32_1 = arith.constant 0 : i32
    %c0_i32_2 = arith.constant 0 : i32
    return %arg0, %arg1, %c0_i32, %c0_i32_0, %c0_i32_1 : i32, i32, i32, i32, i32
  }
  func.func @transform_1(%arg0: i32, %arg1: i32) -> (i32, i32) {
    %c0_i32 = arith.constant 0 : i32
    %c0_i32_0 = arith.constant 0 : i32
    %c0_i32_1 = arith.constant 0 : i32
    return %c0_i32, %c0_i32_0 : i32, i32
  }
  func.func @transform_2(%arg0: i32, %arg1: i32) -> (i32, i32) {
    %c0_i32 = arith.constant 0 : i32
    %c0_i32_0 = arith.constant 0 : i32
    %c0_i32_1 = arith.constant 0 : i32
    return %c0_i32, %c0_i32_0 : i32, i32
  }
  func.func @transform_3(%arg0: i32, %arg1: i32) -> (i32, i32, i32, i32) {
    %c0_i32 = arith.constant 0 : i32
    %c0_i32_0 = arith.constant 0 : i32
    %c0_i32_1 = arith.constant 0 : i32
    return %arg0, %arg1, %c0_i32, %c0_i32_0 : i32, i32, i32, i32
  }
  func.func @transform_4(%arg0: i32, %arg1: i32) -> (i32, i32, i32) {
    %c0_i32 = arith.constant 0 : i32
    %c0_i32_0 = arith.constant 0 : i32
    %c0_i32_1 = arith.constant 0 : i32
    return %arg0, %c0_i32, %c0_i32_0 : i32, i32, i32
  }
}

</mosaic_0001>

<llo_original>
// kernel: convlstm_forward.2
$region0: #{convlstm_forward.2}
  #allocation0 [shape = 'u32[]', space=smem, size = 0x4, offset = 0x4, fixed_abs, tag = 'smem constant byte address 0x4 - core index']
  #allocation1 [shape = 'u32[72,128]{1,0:T(1,128)}', space=vmem, size = 0x9000, scoped, tag = 'internal scratch']
  #allocation2 [shape = 'f32[18,25,36]{2,1,0:T(8,128)}', space=vmem, size = 0x48000, scoped, tag = 'scratch operand']
  #allocation3 [shape = 'f32[16,16,32]{2,1,0:T(8,128)}', space=vmem, size = 0x20000, scoped, tag = 'scratch operand']
  #allocation4 [shape = 'f32[256,32]{1,0:T(8,128)}', space=vmem, size = 0x20000, scoped, tag = 'scratch operand']
  %s0 = inlined_call_operand.vmem [shape: f32[2,8,16,16,4], index: 0, kind: input, shape index: {}]
  %s1 = inlined_call_operand.vmem [shape: f32[324,128], index: 1, kind: input, shape index: {}]
  %s2 = inlined_call_operand.vmem [shape: f32[1,128], index: 2, kind: input, shape index: {}]
  %s3 = inlined_call_operand.vmem [shape: f32[2,8,256,32], index: 3, kind: output, shape index: {0}]
  %s4 = inlined_call_operand.hbm [shape: f32[2,256,32], index: 4, kind: output, shape index: {1}]
  %5 = xla_tuple %s3, %s4
  %s6 = sld [smem:[#allocation0]]
  $region61: #{convlstm_forward.2} parent=0
    _
  %s8 = ssub.s32 1, %s6
  %s9 = scalar_select 0, %s8, %s6
  $region1: #{convlstm_forward.2} parent=0
    #allocation5 [shape = 'u8[262144]{0}', space=vmem, size = 0x40000, scoped, tag = 'output window, operand 1']
    #allocation6 [shape = 's32[2]{0}', space=sflag, size = 0x8, scoped, tag = 'scoped memory for convlstm_forward.2']
    %10 = vsyncpa [#allocation6], 0
    %s11 = scalar_lea.sflag [#allocation6], 1
    %12 = vsyncpa %s11, 0
    loop: start=0, step=1, limit=18
    $region2: #{convlstm_forward.2} parent=1 // loop_pre_header
      _
    $region3: #{convlstm_forward.2} parent=1 // loop_header
      %s14 = sphi 0, %s18
      %p15 = scmp.ge.s32.totalorder %s14, 18
      %s21 = sphi 0, %s33
      %s22 = sphi 0, %s29
      %s23 = sphi 0, %s21
      %s24 = sphi 0, %s22
      %s25 = sphi 0, %s23
      %s26 = sphi 0, %s24
      %s38 = sphi 0, %s40
      %s41 = sphi 0, %s38
      %s42 = sphi 0, %s41
      %s58 = sphi 0, %s42
      %s62 = sphi 0, %s62
      %s64 = sphi 0, %s62
      %s65 = sphi 0, %s64
      %s79 = sphi 0, %s65
      %s83 = sphi 0, %s83
      %s85 = sphi 0, %s83
      %s86 = sphi 0, %s85
      %s100 = sphi 0, %s86
      %s108 = sphi 0, %s110
      %s111 = sphi 0, %s108
      %s112 = sphi 0, %s111
      %s128 = sphi 0, %s112
      %s134 = sphi 0, %s136
      %s137 = sphi 0, %s134
      %s138 = sphi 0, %s137
      %s154 = sphi 0, %s138
    $region4: #{convlstm_forward.2} parent=1 // loop_header_branch
      %17 = sbr.rel (%p15) target = $region8
    $region5: #{convlstm_forward.2} parent=1 // loop_body
      %s19 = ssub.s32 %s14, 1
      %s20 = ssub.s32 %s14, 2
      %s27 = sadd.s32 1, %s22
      %p28 = scmp.ge.s32.totalorder %s27, 8
      %s29 = scalar_select %p28, 0, %s27
      %s30 = sadd.s32 1, %s21
      %s31 = scalar_select %p28, %s30, %s21
      %p32 = scmp.ge.s32.totalorder %s31, 2
      %s33 = scalar_select %p32, 0, %s31
      %s34 = ssub.s32 %s21, %s33
      %s35 = ssub.s32 %s22, %s29
      %s36 = sor.u32 %s34, %s35
      %p37 = scmp.eq.s32.totalorder %s36, 0
      %s39 = sadd.s32 %s38, 1
      %s40 = scalar_select %p37, %s38, %s39
      %p43 = pneg %p37
      %p44 = scmp.eq.s32.totalorder %s14, 15
      %p45 = por %p43, %p44
      %p46 = scmp.ne.s32.totalorder %s38, %s41
      %p47 = scmp.eq.s32.totalorder %s14, 0
      %p48 = por %p46, %p47
      %p49 = scmp.ne.s32.totalorder %s38, %s41
      %p50 = scmp.eq.s32.totalorder %s19, 15
      %p51 = por %p49, %p50
      %p52 = scmp.ne.s32.totalorder %s41, %s42
      %p53 = scmp.eq.s32.totalorder %s19, 0
      %p54 = por %p52, %p53
      %p55 = scmp.ne.s32.totalorder %s41, %s42
      %p56 = scmp.eq.s32.totalorder %s20, 15
      %p57 = por %p55, %p56
      %p59 = scmp.ne.s32.totalorder %s42, %s58
      %p60 = scmp.eq.s32.totalorder %s20, 0
      %p61 = por %p59, %p60
      %s63 = sadd.s32 %s62, 1
      %p66 = scmp.eq.s32.totalorder %s14, 15
      %p67 = scmp.ne.s32.totalorder %s62, %s64
      %p68 = scmp.eq.s32.totalorder %s14, 0
      %p69 = por %p67, %p68
      %p70 = scmp.ne.s32.totalorder %s62, %s64
      %p71 = scmp.eq.s32.totalorder %s19, 15
      %p72 = por %p70, %p71
      %p73 = scmp.ne.s32.totalorder %s64, %s65
      %p74 = scmp.eq.s32.totalorder %s19, 0
      %p75 = por %p73, %p74
      %p76 = scmp.ne.s32.totalorder %s64, %s65
      %p77 = scmp.eq.s32.totalorder %s20, 15
      %p78 = por %p76, %p77
      %p80 = scmp.ne.s32.totalorder %s65, %s79
      %p81 = scmp.eq.s32.totalorder %s20, 0
      %p82 = por %p80, %p81
      %s84 = sadd.s32 %s83, 1
      %p87 = scmp.eq.s32.totalorder %s14, 15
      %p88 = scmp.ne.s32.totalorder %s83, %s85
      %p89 = scmp.eq.s32.totalorder %s14, 0
      %p90 = por %p88, %p89
      %p91 = scmp.ne.s32.totalorder %s83, %s85
      %p92 = scmp.eq.s32.totalorder %s19, 15
      %p93 = por %p91, %p92
      %p94 = scmp.ne.s32.totalorder %s85, %s86
      %p95 = scmp.eq.s32.totalorder %s19, 0
      %p96 = por %p94, %p95
      %p97 = scmp.ne.s32.totalorder %s85, %s86
      %p98 = scmp.eq.s32.totalorder %s20, 15
      %p99 = por %p97, %p98
      %p101 = scmp.ne.s32.totalorder %s86, %s100
      %p102 = scmp.eq.s32.totalorder %s20, 0
      %p103 = por %p101, %p102
      %s104 = ssub.s32 %s21, %s33
      %s105 = ssub.s32 %s22, %s29
      %s106 = sor.u32 %s104, %s105
      %p107 = scmp.eq.s32.totalorder %s106, 0
      %s109 = sadd.s32 %s108, 1
      %s110 = scalar_select %p107, %s108, %s109
      %p113 = pneg %p107
      %p114 = scmp.eq.s32.totalorder %s14, 15
      %p115 = por %p113, %p114
      %p116 = scmp.ne.s32.totalorder %s108, %s111
      %p117 = scmp.eq.s32.totalorder %s14, 0
      %p118 = por %p116, %p117
      %p119 = scmp.ne.s32.totalorder %s108, %s111
      %p120 = scmp.eq.s32.totalorder %s19, 15
      %p121 = por %p119, %p120
      %p122 = scmp.ne.s32.totalorder %s111, %s112
      %p123 = scmp.eq.s32.totalorder %s19, 0
      %p124 = por %p122, %p123
      %p125 = scmp.ne.s32.totalorder %s111, %s112
      %p126 = scmp.eq.s32.totalorder %s20, 15
      %p127 = por %p125, %p126
      %p129 = scmp.ne.s32.totalorder %s112, %s128
      %p130 = scmp.eq.s32.totalorder %s20, 0
      %p131 = por %p129, %p130
      %s132 = ssub.s32 %s21, %s33
      %p133 = scmp.eq.s32.totalorder %s132, 0
      %s135 = sadd.s32 %s134, 1
      %s136 = scalar_select %p133, %s134, %s135
      %p139 = pneg %p133
      %p140 = scmp.eq.s32.totalorder %s14, 15
      %p141 = por %p139, %p140
      %p142 = scmp.ne.s32.totalorder %s134, %s137
      %p143 = scmp.eq.s32.totalorder %s14, 0
      %p144 = por %p142, %p143
      %p145 = scmp.ne.s32.totalorder %s134, %s137
      %p146 = scmp.eq.s32.totalorder %s19, 15
      %p147 = por %p145, %p146
      %p148 = scmp.ne.s32.totalorder %s137, %s138
      %p149 = scmp.eq.s32.totalorder %s19, 0
      %p150 = por %p148, %p149
      %p151 = scmp.ne.s32.totalorder %s137, %s138
      %p152 = scmp.eq.s32.totalorder %s20, 15
      %p153 = por %p151, %p152
      %p155 = scmp.ne.s32.totalorder %s138, %s154
      %p156 = scmp.eq.s32.totalorder %s20, 0
      %p157 = por %p155, %p156
      %p158 = scmp.le.s32.totalorder 1, %s14
      %p159 = scmp.lt.s32.totalorder %s14, 17
      %p160 = pnand %p158, %p159
      %p161 = pneg %p160
      // Predicated region
      $region9: #{convlstm_forward.2} parent=5 // pred_check
        _
      $region10: #{convlstm_forward.2} parent=5 // pred_check_branch
        %163 = sbr.rel (%p160) target = $region12
      $region11: #{convlstm_forward.2} parent=5 // pred_region
        %s164 = ssub.s32 %s14, 1
        // Predicated region
        $region13: #{convlstm_forward.2} parent=11 // pred_check
          %p165 = pneg %p75
        $region14: #{convlstm_forward.2} parent=11 // pred_check_branch
          %167 = sbr.rel (%p165) target = $region16
        $region15: #{convlstm_forward.2} parent=11 // pred_region
          _
        $region16: #{convlstm_forward.2} parent=11 // pred_fallthru
          _
        // Predicated region
        $region17: #{convlstm_forward.2} parent=11 // pred_check
          %p168 = pneg %p96
        $region18: #{convlstm_forward.2} parent=11 // pred_check_branch
          %170 = sbr.rel (%p168) target = $region20
        $region19: #{convlstm_forward.2} parent=11 // pred_region
          _
        $region20: #{convlstm_forward.2} parent=11 // pred_fallthru
          _
      $region12: #{convlstm_forward.2} parent=5 // pred_fallthru
        _
      %p171 = scmp.lt.s32.totalorder %s14, 16
      // Predicated region
      $region21: #{convlstm_forward.2} parent=5 // pred_check
        %p172 = pneg %p171
      $region22: #{convlstm_forward.2} parent=5 // pred_check_branch
        %174 = sbr.rel (%p172) target = $region24
      $region23: #{convlstm_forward.2} parent=5 // pred_region
        // Predicated region
        $region25: #{convlstm_forward.2} parent=23 // pred_check
          %p175 = pneg %p48
        $region26: #{convlstm_forward.2} parent=23 // pred_check_branch
          %177 = sbr.rel (%p175) target = $region28
        $region27: #{convlstm_forward.2} parent=23 // pred_region
          %p178 = scmp.lt.s32.totalorder %s21, 1
          %s179 = scalar_select %p178, %s21, 1
          %p180 = scmp.lt.s32.totalorder %s22, 7
          %s181 = scalar_select %p180, %s22, 7
          %s182 = smul.addr %s181, 32
          %s183 = smul.addr %s179, 256
          %s184 = sadd.s32 %s182, %s183
          %s185 = smul.addr %s184, 8
          %s186 = scalar_lea.vmem %s0, %s185
        $region28: #{convlstm_forward.2} parent=23 // pred_fallthru
          _
      $region24: #{convlstm_forward.2} parent=5 // pred_fallthru
        _
      %p187 = scmp.le.s32.totalorder 1, %s14
      %p188 = scmp.lt.s32.totalorder %s14, 17
      %p189 = pnand %p187, %p188
      %p190 = pneg %p189
      // Predicated region
      $region29: #{convlstm_forward.2} parent=5 // pred_check
        _
      $region30: #{convlstm_forward.2} parent=5 // pred_check_branch
        %192 = sbr.rel (%p189) target = $region32
      $region31: #{convlstm_forward.2} parent=5 // pred_region
        %s193 = ssub.s32 %s14, 1
        %p194 = scmp.lt.s32.totalorder %s23, 1
        %s195 = scalar_select %p194, %s23, 1
        %p196 = scmp.lt.s32.totalorder %s24, 7
        %s197 = scalar_select %p196, %s24, 7
        %s198 = smul.addr %s197, 32
        %s199 = smul.addr %s195, 256
        %s200 = sadd.s32 %s198, %s199
        %s201 = smul.addr %s200, 8
        %s202 = scalar_lea.vmem %s0, %s201
        %p203 = pneg %p54
        %p204 = pneg %p51
        %p205 = pneg %p75
        %p206 = pneg %p72
        %p207 = pneg %p96
        %p208 = pneg %p93
        %p209 = pneg %p124
        %p210 = pneg %p121
        %p211 = scmp.lt.s32.totalorder %s23, 1
        %s212 = scalar_select %p211, %s23, 1
        %p213 = scmp.lt.s32.totalorder %s24, 7
        %s214 = scalar_select %p213, %s24, 7
        %s215 = smul.addr %s214, 32
        %s216 = smul.addr %s212, 256
        %s217 = sadd.s32 %s215, %s216
        %s218 = smul.addr %s217, 8
        %s219 = scalar_lea.vmem %s3, %s218
        %p220 = pneg %p150
        %p221 = pneg %p147
        %s222 = sand.u32 %s137, 1
        %s223 = scalar_lea.sflag [#allocation6], %s222
        %s224 = sand.u32 %s137, 1
        %s225 = smul.addr %s224, 256
        %s226 = scalar_lea.vmem [#allocation5], %s225
        %p227 = scmp.lt.s32.totalorder %s23, 1
        %s228 = scalar_select %p227, %s23, 1
        %p229 = scmp.lt.s32.totalorder %s24, 7
        %s230 = scalar_select %p229, %s24, 7
        %s231 = smul.addr %s230, 32
        %s232 = smul.addr %s228, 256
        %s233 = sadd.s32 %s231, %s232
        %s234 = smul.addr %s233, 8
        %s235 = scalar_lea.vmem %s0, %s234
        %p236 = scmp.lt.s32.totalorder %s23, 1
        %s237 = scalar_select %p236, %s23, 1
        %p238 = scmp.lt.s32.totalorder %s24, 7
        %s239 = scalar_select %p238, %s24, 7
        %s240 = smul.addr %s239, 32
        %s241 = smul.addr %s237, 256
        %s242 = sadd.s32 %s240, %s241
        %s243 = smul.addr %s242, 8
        %s244 = scalar_lea.vmem %s3, %s243
        %p245 = scmp.eq.s32.totalorder %s24, 0
        // Predicated region
        $region33: #{convlstm_forward.2} parent=31 // pred_check
          %p246 = pneg %p245
        $region34: #{convlstm_forward.2} parent=31 // pred_check_branch
          %248 = sbr.rel (%p246) target = $region36
        $region35: #{convlstm_forward.2} parent=31 // pred_region
          %vm249 = vcmask 293888
          %250 = vst.msk [vmem:[#allocation2] sm:$0xff] %vm249, 0.0
          %251 = vst.msk [vmem:[#allocation2 + $0x8] sm:$0xff] %vm249, 0.0
          %252 = vst.msk [vmem:[#allocation2 + $0x10] sm:$0xff] %vm249, 0.0
          %vm253 = vcmask 286720
          %254 = vst.msk [vmem:[#allocation2 + $0x18] sm:$0x1] %vm253, 0.0
          %255 = vst.msk [vmem:[#allocation2 + $0x20] sm:$0xff] %vm249, 0.0
          %256 = vst.msk [vmem:[#allocation2 + $0x28] sm:$0xff] %vm249, 0.0
          %257 = vst.msk [vmem:[#allocation2 + $0x30] sm:$0xff] %vm249, 0.0
          %258 = vst.msk [vmem:[#allocation2 + $0x38] sm:$0x1] %vm253, 0.0
          %259 = vst.msk [vmem:[#allocation2 + $0x40] sm:$0xff] %vm249, 0.0
          %260 = vst.msk [vmem:[#allocation2 + $0x48] sm:$0xff] %vm249, 0.0
          %261 = vst.msk [vmem:[#allocation2 + $0x50] sm:$0xff] %vm249, 0.0
          %262 = vst.msk [vmem:[#allocation2 + $0x58] sm:$0x1] %vm253, 0.0
          %263 = vst.msk [vmem:[#allocation2 + $0x60] sm:$0xff] %vm249, 0.0
          %264 = vst.msk [vmem:[#allocation2 + $0x68] sm:$0xff] %vm249, 0.0
          %265 = vst.msk [vmem:[#allocation2 + $0x70] sm:$0xff] %vm249, 0.0
          %266 = vst.msk [vmem:[#allocation2 + $0x78] sm:$0x1] %vm253, 0.0
          %267 = vst.msk [vmem:[#allocation2 + $0x80] sm:$0xff] %vm249, 0.0
          %268 = vst.msk [vmem:[#allocation2 + $0x88] sm:$0xff] %vm249, 0.0
          %269 = vst.msk [vmem:[#allocation2 + $0x90] sm:$0xff] %vm249, 0.0
          %270 = vst.msk [vmem:[#allocation2 + $0x98] sm:$0x1] %vm253, 0.0
          %271 = vst.msk [vmem:[#allocation2 + $0xa0] sm:$0xff] %vm249, 0.0
          %272 = vst.msk [vmem:[#allocation2 + $0xa8] sm:$0xff] %vm249, 0.0
          %273 = vst.msk [vmem:[#allocation2 + $0xb0] sm:$0xff] %vm249, 0.0
          %274 = vst.msk [vmem:[#allocation2 + $0xb8] sm:$0x1] %vm253, 0.0
          %275 = vst.msk [vmem:[#allocation2 + $0xc0] sm:$0xff] %vm249, 0.0
          %276 = vst.msk [vmem:[#allocation2 + $0xc8] sm:$0xff] %vm249, 0.0
          %277 = vst.msk [vmem:[#allocation2 + $0xd0] sm:$0xff] %vm249, 0.0
          %278 = vst.msk [vmem:[#allocation2 + $0xd8] sm:$0x1] %vm253, 0.0
          %279 = vst.msk [vmem:[#allocation2 + $0xe0] sm:$0xff] %vm249, 0.0
          %280 = vst.msk [vmem:[#allocation2 + $0xe8] sm:$0xff] %vm249, 0.0
          %281 = vst.msk [vmem:[#allocation2 + $0xf0] sm:$0xff] %vm249, 0.0
          %282 = vst.msk [vmem:[#allocation2 + $0xf8] sm:$0x1] %vm253, 0.0
          %283 = vst.msk [vmem:[#allocation2 + $0x100] sm:$0xff] %vm249, 0.0
          %284 = vst.msk [vmem:[#allocation2 + $0x108] sm:$0xff] %vm249, 0.0
          %285 = vst.msk [vmem:[#allocation2 + $0x110] sm:$0xff] %vm249, 0.0
          %286 = vst.msk [vmem:[#allocation2 + $0x118] sm:$0x1] %vm253, 0.0
          %287 = vst.msk [vmem:[#allocation2 + $0x120] sm:$0xff] %vm249, 0.0
          %288 = vst.msk [vmem:[#allocation2 + $0x128] sm:$0xff] %vm249, 0.0
          %289 = vst.msk [vmem:[#allocation2 + $0x130] sm:$0xff] %vm249, 0.0
          %290 = vst.msk [vmem:[#allocation2 + $0x138] sm:$0x1] %vm253, 0.0
          %291 = vst.msk [vmem:[#allocation2 + $0x140] sm:$0xff] %vm249, 0.0
          %292 = vst.msk [vmem:[#allocation2 + $0x148] sm:$0xff] %vm249, 0.0
          %293 = vst.msk [vmem:[#allocation2 + $0x150] sm:$0xff] %vm249, 0.0
          %294 = vst.msk [vmem:[#allocation2 + $0x158] sm:$0x1] %vm253, 0.0
          %295 = vst.msk [vmem:[#allocation2 + $0x160] sm:$0xff] %vm249, 0.0
          %296 = vst.msk [vmem:[#allocation2 + $0x168] sm:$0xff] %vm249, 0.0
          %297 = vst.msk [vmem:[#allocation2 + $0x170] sm:$0xff] %vm249, 0.0
          %298 = vst.msk [vmem:[#allocation2 + $0x178] sm:$0x1] %vm253, 0.0
          %299 = vst.msk [vmem:[#allocation2 + $0x180] sm:$0xff] %vm249, 0.0
          %300 = vst.msk [vmem:[#allocation2 + $0x188] sm:$0xff] %vm249, 0.0
          %301 = vst.msk [vmem:[#allocation2 + $0x190] sm:$0xff] %vm249, 0.0
          %302 = vst.msk [vmem:[#allocation2 + $0x198] sm:$0x1] %vm253, 0.0
          %303 = vst.msk [vmem:[#allocation2 + $0x1a0] sm:$0xff] %vm249, 0.0
          %304 = vst.msk [vmem:[#allocation2 + $0x1a8] sm:$0xff] %vm249, 0.0
          %305 = vst.msk [vmem:[#allocation2 + $0x1b0] sm:$0xff] %vm249, 0.0
          %306 = vst.msk [vmem:[#allocation2 + $0x1b8] sm:$0x1] %vm253, 0.0
          %307 = vst.msk [vmem:[#allocation2 + $0x1c0] sm:$0xff] %vm249, 0.0
          %308 = vst.msk [vmem:[#allocation2 + $0x1c8] sm:$0xff] %vm249, 0.0
          %309 = vst.msk [vmem:[#allocation2 + $0x1d0] sm:$0xff] %vm249, 0.0
          %310 = vst.msk [vmem:[#allocation2 + $0x1d8] sm:$0x1] %vm253, 0.0
          %311 = vst.msk [vmem:[#allocation2 + $0x1e0] sm:$0xff] %vm249, 0.0
          %312 = vst.msk [vmem:[#allocation2 + $0x1e8] sm:$0xff] %vm249, 0.0
          %313 = vst.msk [vmem:[#allocation2 + $0x1f0] sm:$0xff] %vm249, 0.0
          %314 = vst.msk [vmem:[#allocation2 + $0x1f8] sm:$0x1] %vm253, 0.0
          %315 = vst.msk [vmem:[#allocation2 + $0x200] sm:$0xff] %vm249, 0.0
          %316 = vst.msk [vmem:[#allocation2 + $0x208] sm:$0xff] %vm249, 0.0
          %317 = vst.msk [vmem:[#allocation2 + $0x210] sm:$0xff] %vm249, 0.0
          %318 = vst.msk [vmem:[#allocation2 + $0x218] sm:$0x1] %vm253, 0.0
          %319 = vst.msk [vmem:[#allocation2 + $0x220] sm:$0xff] %vm249, 0.0
          %320 = vst.msk [vmem:[#allocation2 + $0x228] sm:$0xff] %vm249, 0.0
          %321 = vst.msk [vmem:[#allocation2 + $0x230] sm:$0xff] %vm249, 0.0
          %322 = vst.msk [vmem:[#allocation2 + $0x238] sm:$0x1] %vm253, 0.0
          %vm323 = vcmask 261120
          %324 = vst.msk [vmem:[#allocation3] sm:$0xff] %vm323, 0.0
          %325 = vst.msk [vmem:[#allocation3 + $0x8] sm:$0xff] %vm323, 0.0
          %326 = vst.msk [vmem:[#allocation3 + $0x10] sm:$0xff] %vm323, 0.0
          %327 = vst.msk [vmem:[#allocation3 + $0x18] sm:$0xff] %vm323, 0.0
          %328 = vst.msk [vmem:[#allocation3 + $0x20] sm:$0xff] %vm323, 0.0
          %329 = vst.msk [vmem:[#allocation3 + $0x28] sm:$0xff] %vm323, 0.0
          %330 = vst.msk [vmem:[#allocation3 + $0x30] sm:$0xff] %vm323, 0.0
          %331 = vst.msk [vmem:[#allocation3 + $0x38] sm:$0xff] %vm323, 0.0
          %332 = vst.msk [vmem:[#allocation3 + $0x40] sm:$0xff] %vm323, 0.0
          %333 = vst.msk [vmem:[#allocation3 + $0x48] sm:$0xff] %vm323, 0.0
          %334 = vst.msk [vmem:[#allocation3 + $0x50] sm:$0xff] %vm323, 0.0
          %335 = vst.msk [vmem:[#allocation3 + $0x58] sm:$0xff] %vm323, 0.0
          %336 = vst.msk [vmem:[#allocation3 + $0x60] sm:$0xff] %vm323, 0.0
          %337 = vst.msk [vmem:[#allocation3 + $0x68] sm:$0xff] %vm323, 0.0
          %338 = vst.msk [vmem:[#allocation3 + $0x70] sm:$0xff] %vm323, 0.0
          %339 = vst.msk [vmem:[#allocation3 + $0x78] sm:$0xff] %vm323, 0.0
          %340 = vst.msk [vmem:[#allocation3 + $0x80] sm:$0xff] %vm323, 0.0
          %341 = vst.msk [vmem:[#allocation3 + $0x88] sm:$0xff] %vm323, 0.0
          %342 = vst.msk [vmem:[#allocation3 + $0x90] sm:$0xff] %vm323, 0.0
          %343 = vst.msk [vmem:[#allocation3 + $0x98] sm:$0xff] %vm323, 0.0
          %344 = vst.msk [vmem:[#allocation3 + $0xa0] sm:$0xff] %vm323, 0.0
          %345 = vst.msk [vmem:[#allocation3 + $0xa8] sm:$0xff] %vm323, 0.0
          %346 = vst.msk [vmem:[#allocation3 + $0xb0] sm:$0xff] %vm323, 0.0
          %347 = vst.msk [vmem:[#allocation3 + $0xb8] sm:$0xff] %vm323, 0.0
          %348 = vst.msk [vmem:[#allocation3 + $0xc0] sm:$0xff] %vm323, 0.0
          %349 = vst.msk [vmem:[#allocation3 + $0xc8] sm:$0xff] %vm323, 0.0
          %350 = vst.msk [vmem:[#allocation3 + $0xd0] sm:$0xff] %vm323, 0.0
          %351 = vst.msk [vmem:[#allocation3 + $0xd8] sm:$0xff] %vm323, 0.0
          %352 = vst.msk [vmem:[#allocation3 + $0xe0] sm:$0xff] %vm323, 0.0
          %353 = vst.msk [vmem:[#allocation3 + $0xe8] sm:$0xff] %vm323, 0.0
          %354 = vst.msk [vmem:[#allocation3 + $0xf0] sm:$0xff] %vm323, 0.0
          %355 = vst.msk [vmem:[#allocation3 + $0xf8] sm:$0xff] %vm323, 0.0
          %356 = vst.msk [vmem:[#allocation4] sm:$0xff] %vm323, 0.0
          %357 = vst.msk [vmem:[#allocation4 + $0x8] sm:$0xff] %vm323, 0.0
          %358 = vst.msk [vmem:[#allocation4 + $0x10] sm:$0xff] %vm323, 0.0
          %359 = vst.msk [vmem:[#allocation4 + $0x18] sm:$0xff] %vm323, 0.0
          %360 = vst.msk [vmem:[#allocation4 + $0x20] sm:$0xff] %vm323, 0.0
          %361 = vst.msk [vmem:[#allocation4 + $0x28] sm:$0xff] %vm323, 0.0
          %362 = vst.msk [vmem:[#allocation4 + $0x30] sm:$0xff] %vm323, 0.0
          %363 = vst.msk [vmem:[#allocation4 + $0x38] sm:$0xff] %vm323, 0.0
          %364 = vst.msk [vmem:[#allocation4 + $0x40] sm:$0xff] %vm323, 0.0
          %365 = vst.msk [vmem:[#allocation4 + $0x48] sm:$0xff] %vm323, 0.0
          %366 = vst.msk [vmem:[#allocation4 + $0x50] sm:$0xff] %vm323, 0.0
          %367 = vst.msk [vmem:[#allocation4 + $0x58] sm:$0xff] %vm323, 0.0
          %368 = vst.msk [vmem:[#allocation4 + $0x60] sm:$0xff] %vm323, 0.0
          %369 = vst.msk [vmem:[#allocation4 + $0x68] sm:$0xff] %vm323, 0.0
          %370 = vst.msk [vmem:[#allocation4 + $0x70] sm:$0xff] %vm323, 0.0
          %371 = vst.msk [vmem:[#allocation4 + $0x78] sm:$0xff] %vm323, 0.0
          %372 = vst.msk [vmem:[#allocation4 + $0x80] sm:$0xff] %vm323, 0.0
          %373 = vst.msk [vmem:[#allocation4 + $0x88] sm:$0xff] %vm323, 0.0
          %374 = vst.msk [vmem:[#allocation4 + $0x90] sm:$0xff] %vm323, 0.0
          %375 = vst.msk [vmem:[#allocation4 + $0x98] sm:$0xff] %vm323, 0.0
          %376 = vst.msk [vmem:[#allocation4 + $0xa0] sm:$0xff] %vm323, 0.0
          %377 = vst.msk [vmem:[#allocation4 + $0xa8] sm:$0xff] %vm323, 0.0
          %378 = vst.msk [vmem:[#allocation4 + $0xb0] sm:$0xff] %vm323, 0.0
          %379 = vst.msk [vmem:[#allocation4 + $0xb8] sm:$0xff] %vm323, 0.0
          %380 = vst.msk [vmem:[#allocation4 + $0xc0] sm:$0xff] %vm323, 0.0
          %381 = vst.msk [vmem:[#allocation4 + $0xc8] sm:$0xff] %vm323, 0.0
          %382 = vst.msk [vmem:[#allocation4 + $0xd0] sm:$0xff] %vm323, 0.0
          %383 = vst.msk [vmem:[#allocation4 + $0xd8] sm:$0xff] %vm323, 0.0
          %384 = vst.msk [vmem:[#allocation4 + $0xe0] sm:$0xff] %vm323, 0.0
          %385 = vst.msk [vmem:[#allocation4 + $0xe8] sm:$0xff] %vm323, 0.0
          %386 = vst.msk [vmem:[#allocation4 + $0xf0] sm:$0xff] %vm323, 0.0
          %387 = vst.msk [vmem:[#allocation4 + $0xf8] sm:$0xff] %vm323, 0.0
        $region36: #{convlstm_forward.2} parent=31 // pred_fallthru
          _
        %v388 = vld [vmem:[%s235] sm:$0xff]
        %v389 = vld [vmem:[%s235 + $0x8] sm:$0xff]
        %v390 = vld [vmem:[%s235 + $0x10] sm:$0xff]
        %v391 = vld [vmem:[%s235 + $0x18] sm:$0xff]
        %v392 = vld [vmem:[%s235 + $0x20] sm:$0xff]
        %v393 = vld [vmem:[%s235 + $0x28] sm:$0xff]
        %v394 = vld [vmem:[%s235 + $0x30] sm:$0xff]
        %v395 = vld [vmem:[%s235 + $0x38] sm:$0xff]
        %v396 = vld [vmem:[%s235 + $0x40] sm:$0xff]
        %v397 = vld [vmem:[%s235 + $0x48] sm:$0xff]
        %v398 = vld [vmem:[%s235 + $0x50] sm:$0xff]
        %v399 = vld [vmem:[%s235 + $0x58] sm:$0xff]
        %v400 = vld [vmem:[%s235 + $0x60] sm:$0xff]
        %v401 = vld [vmem:[%s235 + $0x68] sm:$0xff]
        %v402 = vld [vmem:[%s235 + $0x70] sm:$0xff]
        %v403 = vld [vmem:[%s235 + $0x78] sm:$0xff]
        %v404 = vld [vmem:[%s235 + $0x80] sm:$0xff]
        %v405 = vld [vmem:[%s235 + $0x88] sm:$0xff]
        %v406 = vld [vmem:[%s235 + $0x90] sm:$0xff]
        %v407 = vld [vmem:[%s235 + $0x98] sm:$0xff]
        %v408 = vld [vmem:[%s235 + $0xa0] sm:$0xff]
        %v409 = vld [vmem:[%s235 + $0xa8] sm:$0xff]
        %v410 = vld [vmem:[%s235 + $0xb0] sm:$0xff]
        %v411 = vld [vmem:[%s235 + $0xb8] sm:$0xff]
        %v412 = vld [vmem:[%s235 + $0xc0] sm:$0xff]
        %v413 = vld [vmem:[%s235 + $0xc8] sm:$0xff]
        %v414 = vld [vmem:[%s235 + $0xd0] sm:$0xff]
        %v415 = vld [vmem:[%s235 + $0xd8] sm:$0xff]
        %v416 = vld [vmem:[%s235 + $0xe0] sm:$0xff]
        %v417 = vld [vmem:[%s235 + $0xe8] sm:$0xff]
        %v418 = vld [vmem:[%s235 + $0xf0] sm:$0xff]
        %v419 = vld [vmem:[%s235 + $0xf8] sm:$0xff]
        %v420 = vld [vmem:[#allocation3] sm:$0xff]
        %v421 = vld [vmem:[#allocation3 + $0x8] sm:$0xff]
        %v422 = vld [vmem:[#allocation3 + $0x10] sm:$0xff]
        %v423 = vld [vmem:[#allocation3 + $0x18] sm:$0xff]
        %v424 = vld [vmem:[#allocation3 + $0x20] sm:$0xff]
        %v425 = vld [vmem:[#allocation3 + $0x28] sm:$0xff]
        %v426 = vld [vmem:[#allocation3 + $0x30] sm:$0xff]
        %v427 = vld [vmem:[#allocation3 + $0x38] sm:$0xff]
        %v428 = vld [vmem:[#allocation3 + $0x40] sm:$0xff]
        %v429 = vld [vmem:[#allocation3 + $0x48] sm:$0xff]
        %v430 = vld [vmem:[#allocation3 + $0x50] sm:$0xff]
        %v431 = vld [vmem:[#allocation3 + $0x58] sm:$0xff]
        %v432 = vld [vmem:[#allocation3 + $0x60] sm:$0xff]
        %v433 = vld [vmem:[#allocation3 + $0x68] sm:$0xff]
        %v434 = vld [vmem:[#allocation3 + $0x70] sm:$0xff]
        %v435 = vld [vmem:[#allocation3 + $0x78] sm:$0xff]
        %v436 = vld [vmem:[#allocation3 + $0x80] sm:$0xff]
        %v437 = vld [vmem:[#allocation3 + $0x88] sm:$0xff]
        %v438 = vld [vmem:[#allocation3 + $0x90] sm:$0xff]
        %v439 = vld [vmem:[#allocation3 + $0x98] sm:$0xff]
        %v440 = vld [vmem:[#allocation3 + $0xa0] sm:$0xff]
        %v441 = vld [vmem:[#allocation3 + $0xa8] sm:$0xff]
        %v442 = vld [vmem:[#allocation3 + $0xb0] sm:$0xff]
        %v443 = vld [vmem:[#allocation3 + $0xb8] sm:$0xff]
        %v444 = vld [vmem:[#allocation3 + $0xc0] sm:$0xff]
        %v445 = vld [vmem:[#allocation3 + $0xc8] sm:$0xff]
        %v446 = vld [vmem:[#allocation3 + $0xd0] sm:$0xff]
        %v447 = vld [vmem:[#allocation3 + $0xd8] sm:$0xff]
        %v448 = vld [vmem:[#allocation3 + $0xe0] sm:$0xff]
        %v449 = vld [vmem:[#allocation3 + $0xe8] sm:$0xff]
        %v450 = vld [vmem:[#allocation3 + $0xf0] sm:$0xff]
        %v451 = vld [vmem:[#allocation3 + $0xf8] sm:$0xff]
        %484 = vrot.lane.b32.xlu0 %v420, 4
        %v485 = vpop.permute.xlu0 %484
        %486 = vrot.lane.b32.xlu0 %v421, 4
        %v487 = vpop.permute.xlu0 %486
        %488 = vrot.lane.b32.xlu0 %v422, 4
        %v489 = vpop.permute.xlu0 %488
        %490 = vrot.lane.b32.xlu0 %v423, 4
        %v491 = vpop.permute.xlu0 %490
        %492 = vrot.lane.b32.xlu0 %v424, 4
        %v493 = vpop.permute.xlu0 %492
        %494 = vrot.lane.b32.xlu0 %v425, 4
        %v495 = vpop.permute.xlu0 %494
        %496 = vrot.lane.b32.xlu0 %v426, 4
        %v497 = vpop.permute.xlu0 %496
        %498 = vrot.lane.b32.xlu0 %v427, 4
        %v499 = vpop.permute.xlu0 %498
        %500 = vrot.lane.b32.xlu0 %v428, 4
        %v501 = vpop.permute.xlu0 %500
        %502 = vrot.lane.b32.xlu0 %v429, 4
        %v503 = vpop.permute.xlu0 %502
        %504 = vrot.lane.b32.xlu0 %v430, 4
        %v505 = vpop.permute.xlu0 %504
        %506 = vrot.lane.b32.xlu0 %v431, 4
        %v507 = vpop.permute.xlu0 %506
        %508 = vrot.lane.b32.xlu0 %v432, 4
        %v509 = vpop.permute.xlu0 %508
        %510 = vrot.lane.b32.xlu0 %v433, 4
        %v511 = vpop.permute.xlu0 %510
        %512 = vrot.lane.b32.xlu0 %v434, 4
        %v513 = vpop.permute.xlu0 %512
        %514 = vrot.lane.b32.xlu0 %v435, 4
        %v515 = vpop.permute.xlu0 %514
        %516 = vrot.lane.b32.xlu0 %v436, 4
        %v517 = vpop.permute.xlu0 %516
        %518 = vrot.lane.b32.xlu0 %v437, 4
        %v519 = vpop.permute.xlu0 %518
        %520 = vrot.lane.b32.xlu0 %v438, 4
        %v521 = vpop.permute.xlu0 %520
        %522 = vrot.lane.b32.xlu0 %v439, 4
        %v523 = vpop.permute.xlu0 %522
        %524 = vrot.lane.b32.xlu0 %v440, 4
        %v525 = vpop.permute.xlu0 %524
        %526 = vrot.lane.b32.xlu0 %v441, 4
        %v527 = vpop.permute.xlu0 %526
        %528 = vrot.lane.b32.xlu0 %v442, 4
        %v529 = vpop.permute.xlu0 %528
        %530 = vrot.lane.b32.xlu0 %v443, 4
        %v531 = vpop.permute.xlu0 %530
        %532 = vrot.lane.b32.xlu0 %v444, 4
        %v533 = vpop.permute.xlu0 %532
        %534 = vrot.lane.b32.xlu0 %v445, 4
        %v535 = vpop.permute.xlu0 %534
        %536 = vrot.lane.b32.xlu0 %v446, 4
        %v537 = vpop.permute.xlu0 %536
        %538 = vrot.lane.b32.xlu0 %v447, 4
        %v539 = vpop.permute.xlu0 %538
        %540 = vrot.lane.b32.xlu0 %v448, 4
        %v541 = vpop.permute.xlu0 %540
        %542 = vrot.lane.b32.xlu0 %v449, 4
        %v543 = vpop.permute.xlu0 %542
        %544 = vrot.lane.b32.xlu0 %v450, 4
        %v545 = vpop.permute.xlu0 %544
        %546 = vrot.lane.b32.xlu0 %v451, 4
        %v547 = vpop.permute.xlu0 %546
        %vm580 = vcmask 31744
        %v581 = vsel %vm580, %v388, %v485
        %v582 = vsel %vm580, %v389, %v487
        %v583 = vsel %vm580, %v390, %v489
        %v584 = vsel %vm580, %v391, %v491
        %v585 = vsel %vm580, %v392, %v493
        %v586 = vsel %vm580, %v393, %v495
        %v587 = vsel %vm580, %v394, %v497
        %v588 = vsel %vm580, %v395, %v499
        %v589 = vsel %vm580, %v396, %v501
        %v590 = vsel %vm580, %v397, %v503
        %v591 = vsel %vm580, %v398, %v505
        %v592 = vsel %vm580, %v399, %v507
        %v593 = vsel %vm580, %v400, %v509
        %v594 = vsel %vm580, %v401, %v511
        %v595 = vsel %vm580, %v402, %v513
        %v596 = vsel %vm580, %v403, %v515
        %v597 = vsel %vm580, %v404, %v517
        %v598 = vsel %vm580, %v405, %v519
        %v599 = vsel %vm580, %v406, %v521
        %v600 = vsel %vm580, %v407, %v523
        %v601 = vsel %vm580, %v408, %v525
        %v602 = vsel %vm580, %v409, %v527
        %v603 = vsel %vm580, %v410, %v529
        %v604 = vsel %vm580, %v411, %v531
        %v605 = vsel %vm580, %v412, %v533
        %v606 = vsel %vm580, %v413, %v535
        %v607 = vsel %vm580, %v414, %v537
        %v608 = vsel %vm580, %v415, %v539
        %v609 = vsel %vm580, %v416, %v541
        %v610 = vsel %vm580, %v417, %v543
        %v611 = vsel %vm580, %v418, %v545
        %v612 = vsel %vm580, %v419, %v547
        %s613 = scalar_lea.vmem [#allocation2], 32
        %vm614 = vcmask 293888
        %615 = vst.msk [vmem:[%s613 + $0x8] sm:$0xff] %vm614, %v581
        %616 = vst.msk [vmem:[%s613 + $0x10] sm:$0xff] %vm614, %v582
        %617 = vst.msk [vmem:[%s613 + $0x28] sm:$0xff] %vm614, %v583
        %618 = vst.msk [vmem:[%s613 + $0x30] sm:$0xff] %vm614, %v584
        %619 = vst.msk [vmem:[%s613 + $0x48] sm:$0xff] %vm614, %v585
        %620 = vst.msk [vmem:[%s613 + $0x50] sm:$0xff] %vm614, %v586
        %621 = vst.msk [vmem:[%s613 + $0x68] sm:$0xff] %vm614, %v587
        %622 = vst.msk [vmem:[%s613 + $0x70] sm:$0xff] %vm614, %v588
        %623 = vst.msk [vmem:[%s613 + $0x88] sm:$0xff] %vm614, %v589
        %624 = vst.msk [vmem:[%s613 + $0x90] sm:$0xff] %vm614, %v590
        %625 = vst.msk [vmem:[%s613 + $0xa8] sm:$0xff] %vm614, %v591
        %626 = vst.msk [vmem:[%s613 + $0xb0] sm:$0xff] %vm614, %v592
        %627 = vst.msk [vmem:[%s613 + $0xc8] sm:$0xff] %vm614, %v593
        %628 = vst.msk [vmem:[%s613 + $0xd0] sm:$0xff] %vm614, %v594
        %629 = vst.msk [vmem:[%s613 + $0xe8] sm:$0xff] %vm614, %v595
        %630 = vst.msk [vmem:[%s613 + $0xf0] sm:$0xff] %vm614, %v596
        %631 = vst.msk [vmem:[%s613 + $0x108] sm:$0xff] %vm614, %v597
        %632 = vst.msk [vmem:[%s613 + $0x110] sm:$0xff] %vm614, %v598
        %633 = vst.msk [vmem:[%s613 + $0x128] sm:$0xff] %vm614, %v599
        %634 = vst.msk [vmem:[%s613 + $0x130] sm:$0xff] %vm614, %v600
        %635 = vst.msk [vmem:[%s613 + $0x148] sm:$0xff] %vm614, %v601
        %636 = vst.msk [vmem:[%s613 + $0x150] sm:$0xff] %vm614, %v602
        %637 = vst.msk [vmem:[%s613 + $0x168] sm:$0xff] %vm614, %v603
        %638 = vst.msk [vmem:[%s613 + $0x170] sm:$0xff] %vm614, %v604
        %639 = vst.msk [vmem:[%s613 + $0x188] sm:$0xff] %vm614, %v605
        %640 = vst.msk [vmem:[%s613 + $0x190] sm:$0xff] %vm614, %v606
        %641 = vst.msk [vmem:[%s613 + $0x1a8] sm:$0xff] %vm614, %v607
        %642 = vst.msk [vmem:[%s613 + $0x1b0] sm:$0xff] %vm614, %v608
        %643 = vst.msk [vmem:[%s613 + $0x1c8] sm:$0xff] %vm614, %v609
        %644 = vst.msk [vmem:[%s613 + $0x1d0] sm:$0xff] %vm614, %v610
        %645 = vst.msk [vmem:[%s613 + $0x1e8] sm:$0xff] %vm614, %v611
        %646 = vst.msk [vmem:[%s613 + $0x1f0] sm:$0xff] %vm614, %v612
        %v647 = vld [vmem:[#allocation2] sm:$0xff]
        %v648 = vld [vmem:[#allocation2 + $0x8] sm:$0xff]
        %v649 = vld [vmem:[#allocation2 + $0x10] sm:$0xff]
        %v650 = vld [vmem:[#allocation2 + $0x18] sm:$0x1]
        %v651 = vld [vmem:[#allocation2 + $0x20] sm:$0xff]
        %v652 = vld [vmem:[#allocation2 + $0x28] sm:$0xff]
        %v653 = vld [vmem:[#allocation2 + $0x30] sm:$0xff]
        %v654 = vld [vmem:[#allocation2 + $0x38] sm:$0x1]
        %v655 = vld [vmem:[#allocation2 + $0x40] sm:$0xff]
        %v656 = vld [vmem:[#allocation2 + $0x48] sm:$0xff]
        %v657 = vld [vmem:[#allocation2 + $0x50] sm:$0xff]
        %v658 = vld [vmem:[#allocation2 + $0x58] sm:$0x1]
        %v659 = vld [vmem:[#allocation2 + $0x60] sm:$0xff]
        %v660 = vld [vmem:[#allocation2 + $0x68] sm:$0xff]
        %v661 = vld [vmem:[#allocation2 + $0x70] sm:$0xff]
        %v662 = vld [vmem:[#allocation2 + $0x78] sm:$0x1]
        %v663 = vld [vmem:[#allocation2 + $0x80] sm:$0xff]
        %v664 = vld [vmem:[#allocation2 + $0x88] sm:$0xff]
        %v665 = vld [vmem:[#allocation2 + $0x90] sm:$0xff]
        %v666 = vld [vmem:[#allocation2 + $0x98] sm:$0x1]
        %v667 = vld [vmem:[#allocation2 + $0xa0] sm:$0xff]
        %v668 = vld [vmem:[#allocation2 + $0xa8] sm:$0xff]
        %v669 = vld [vmem:[#allocation2 + $0xb0] sm:$0xff]
        %v670 = vld [vmem:[#allocation2 + $0xb8] sm:$0x1]
        %v671 = vld [vmem:[#allocation2 + $0xc0] sm:$0xff]
        %v672 = vld [vmem:[#allocation2 + $0xc8] sm:$0xff]
        %v673 = vld [vmem:[#allocation2 + $0xd0] sm:$0xff]
        %v674 = vld [vmem:[#allocation2 + $0xd8] sm:$0x1]
        %v675 = vld [vmem:[#allocation2 + $0xe0] sm:$0xff]
        %v676 = vld [vmem:[#allocation2 + $0xe8] sm:$0xff]
        %v677 = vld [vmem:[#allocation2 + $0xf0] sm:$0xff]
        %v678 = vld [vmem:[#allocation2 + $0xf8] sm:$0x1]
        %v679 = vld [vmem:[#allocation2 + $0x100] sm:$0xff]
        %v680 = vld [vmem:[#allocation2 + $0x108] sm:$0xff]
        %v681 = vld [vmem:[#allocation2 + $0x110] sm:$0xff]
        %v682 = vld [vmem:[#allocation2 + $0x118] sm:$0x1]
        %v683 = vld [vmem:[#allocation2 + $0x120] sm:$0xff]
        %v684 = vld [vmem:[#allocation2 + $0x128] sm:$0xff]
        %v685 = vld [vmem:[#allocation2 + $0x130] sm:$0xff]
        %v686 = vld [vmem:[#allocation2 + $0x138] sm:$0x1]
        %v687 = vld [vmem:[#allocation2 + $0x140] sm:$0xff]
        %v688 = vld [vmem:[#allocation2 + $0x148] sm:$0xff]
        %v689 = vld [vmem:[#allocation2 + $0x150] sm:$0xff]
        %v690 = vld [vmem:[#allocation2 + $0x158] sm:$0x1]
        %v691 = vld [vmem:[#allocation2 + $0x160] sm:$0xff]
        %v692 = vld [vmem:[#allocation2 + $0x168] sm:$0xff]
        %v693 = vld [vmem:[#allocation2 + $0x170] sm:$0xff]
        %v694 = vld [vmem:[#allocation2 + $0x178] sm:$0x1]
        %v695 = vld [vmem:[#allocation2 + $0x180] sm:$0xff]
        %v696 = vld [vmem:[#allocation2 + $0x188] sm:$0xff]
        %v697 = vld [vmem:[#allocation2 + $0x190] sm:$0xff]
        %v698 = vld [vmem:[#allocation2 + $0x198] sm:$0x1]
        %v699 = vld [vmem:[#allocation2 + $0x1a0] sm:$0xff]
        %v700 = vld [vmem:[#allocation2 + $0x1a8] sm:$0xff]
        %v701 = vld [vmem:[#allocation2 + $0x1b0] sm:$0xff]
        %v702 = vld [vmem:[#allocation2 + $0x1b8] sm:$0x1]
        %v703 = vld [vmem:[#allocation2 + $0x1c0] sm:$0xff]
        %v704 = vld [vmem:[#allocation2 + $0x1c8] sm:$0xff]
        %v705 = vld [vmem:[#allocation2 + $0x1d0] sm:$0xff]
        %v706 = vld [vmem:[#allocation2 + $0x1d8] sm:$0x1]
        %v707 = vld [vmem:[#allocation2 + $0x1e0] sm:$0xff]
        %v708 = vld [vmem:[#allocation2 + $0x1e8] sm:$0xff]
        %v709 = vld [vmem:[#allocation2 + $0x1f0] sm:$0xff]
        %v710 = vld [vmem:[#allocation2 + $0x1f8] sm:$0x1]
        %v711 = vld [vmem:[#allocation2 + $0x200] sm:$0xff]
        %v712 = vld [vmem:[#allocation2 + $0x208] sm:$0xff]
        %v713 = vld [vmem:[#allocation2 + $0x210] sm:$0xff]
        %v714 = vld [vmem:[#allocation2 + $0x218] sm:$0x1]
        %v715 = vld [vmem:[#allocation2 + $0x220] sm:$0xff]
        %v716 = vld [vmem:[#allocation2 + $0x228] sm:$0xff]
        %v717 = vld [vmem:[#allocation2 + $0x230] sm:$0xff]
        %v718 = vld [vmem:[#allocation2 + $0x238] sm:$0x1]
        %vm767 = vcmask 1040384
        %v768 = vrot.slane %v647, 7
        %v769 = vrot.slane %v648, 7
        %v770 = vsel %vm767, %v768, %v769
        %v771 = vrot.slane %v649, 7
        %v772 = vsel %vm767, %v769, %v771
        %v773 = vrot.slane %v651, 7
        %v774 = vrot.slane %v652, 7
        %v775 = vsel %vm767, %v773, %v774
        %v776 = vrot.slane %v653, 7
        %v777 = vsel %vm767, %v774, %v776
        %v778 = vrot.slane %v655, 7
        %v779 = vrot.slane %v656, 7
        %v780 = vsel %vm767, %v778, %v779
        %v781 = vrot.slane %v657, 7
        %v782 = vsel %vm767, %v779, %v781
        %v783 = vrot.slane %v659, 7
        %v784 = vrot.slane %v660, 7
        %v785 = vsel %vm767, %v783, %v784
        %v786 = vrot.slane %v661, 7
        %v787 = vsel %vm767, %v784, %v786
        %v788 = vrot.slane %v663, 7
        %v789 = vrot.slane %v664, 7
        %v790 = vsel %vm767, %v788, %v789
        %v791 = vrot.slane %v665, 7
        %v792 = vsel %vm767, %v789, %v791
        %v793 = vrot.slane %v667, 7
        %v794 = vrot.slane %v668, 7
        %v795 = vsel %vm767, %v793, %v794
        %v796 = vrot.slane %v669, 7
        %v797 = vsel %vm767, %v794, %v796
        %v798 = vrot.slane %v671, 7
        %v799 = vrot.slane %v672, 7
        %v800 = vsel %vm767, %v798, %v799
        %v801 = vrot.slane %v673, 7
        %v802 = vsel %vm767, %v799, %v801
        %v803 = vrot.slane %v675, 7
        %v804 = vrot.slane %v676, 7
        %v805 = vsel %vm767, %v803, %v804
        %v806 = vrot.slane %v677, 7
        %v807 = vsel %vm767, %v804, %v806
        %v808 = vrot.slane %v679, 7
        %v809 = vrot.slane %v680, 7
        %v810 = vsel %vm767, %v808, %v809
        %v811 = vrot.slane %v681, 7
        %v812 = vsel %vm767, %v809, %v811
        %v813 = vrot.slane %v683, 7
        %v814 = vrot.slane %v684, 7
        %v815 = vsel %vm767, %v813, %v814
        %v816 = vrot.slane %v685, 7
        %v817 = vsel %vm767, %v814, %v816
        %v818 = vrot.slane %v687, 7
        %v819 = vrot.slane %v688, 7
        %v820 = vsel %vm767, %v818, %v819
        %v821 = vrot.slane %v689, 7
        %v822 = vsel %vm767, %v819, %v821
        %v823 = vrot.slane %v691, 7
        %v824 = vrot.slane %v692, 7
        %v825 = vsel %vm767, %v823, %v824
        %v826 = vrot.slane %v693, 7
        %v827 = vsel %vm767, %v824, %v826
        %v828 = vrot.slane %v695, 7
        %v829 = vrot.slane %v696, 7
        %v830 = vsel %vm767, %v828, %v829
        %v831 = vrot.slane %v697, 7
        %v832 = vsel %vm767, %v829, %v831
        %v833 = vrot.slane %v699, 7
        %v834 = vrot.slane %v700, 7
        %v835 = vsel %vm767, %v833, %v834
        %v836 = vrot.slane %v701, 7
        %v837 = vsel %vm767, %v834, %v836
        %v838 = vrot.slane %v703, 7
        %v839 = vrot.slane %v704, 7
        %v840 = vsel %vm767, %v838, %v839
        %v841 = vrot.slane %v705, 7
        %v842 = vsel %vm767, %v839, %v841
        %v843 = vrot.slane %v707, 7
        %v844 = vrot.slane %v708, 7
        %v845 = vsel %vm767, %v843, %v844
        %v846 = vrot.slane %v709, 7
        %v847 = vsel %vm767, %v844, %v846
        %vm896 = vcmask 1046528
        %v897 = vrot.slane %v648, 1
        %v898 = vrot.slane %v649, 1
        %v899 = vsel %vm896, %v897, %v898
        %v900 = vrot.slane %v650, 1
        %v901 = vsel %vm896, %v898, %v900
        %v902 = vrot.slane %v652, 1
        %v903 = vrot.slane %v653, 1
        %v904 = vsel %vm896, %v902, %v903
        %v905 = vrot.slane %v654, 1
        %v906 = vsel %vm896, %v903, %v905
        %v907 = vrot.slane %v656, 1
        %v908 = vrot.slane %v657, 1
        %v909 = vsel %vm896, %v907, %v908
        %v910 = vrot.slane %v658, 1
        %v911 = vsel %vm896, %v908, %v910
        %v912 = vrot.slane %v660, 1
        %v913 = vrot.slane %v661, 1
        %v914 = vsel %vm896, %v912, %v913
        %v915 = vrot.slane %v662, 1
        %v916 = vsel %vm896, %v913, %v915
        %v917 = vrot.slane %v664, 1
        %v918 = vrot.slane %v665, 1
        %v919 = vsel %vm896, %v917, %v918
        %v920 = vrot.slane %v666, 1
        %v921 = vsel %vm896, %v918, %v920
        %v922 = vrot.slane %v668, 1
        %v923 = vrot.slane %v669, 1
        %v924 = vsel %vm896, %v922, %v923
        %v925 = vrot.slane %v670, 1
        %v926 = vsel %vm896, %v923, %v925
        %v927 = vrot.slane %v672, 1
        %v928 = vrot.slane %v673, 1
        %v929 = vsel %vm896, %v927, %v928
        %v930 = vrot.slane %v674, 1
        %v931 = vsel %vm896, %v928, %v930
        %v932 = vrot.slane %v676, 1
        %v933 = vrot.slane %v677, 1
        %v934 = vsel %vm896, %v932, %v933
        %v935 = vrot.slane %v678, 1
        %v936 = vsel %vm896, %v933, %v935
        %v937 = vrot.slane %v680, 1
        %v938 = vrot.slane %v681, 1
        %v939 = vsel %vm896, %v937, %v938
        %v940 = vrot.slane %v682, 1
        %v941 = vsel %vm896, %v938, %v940
        %v942 = vrot.slane %v684, 1
        %v943 = vrot.slane %v685, 1
        %v944 = vsel %vm896, %v942, %v943
        %v945 = vrot.slane %v686, 1
        %v946 = vsel %vm896, %v943, %v945
        %v947 = vrot.slane %v688, 1
        %v948 = vrot.slane %v689, 1
        %v949 = vsel %vm896, %v947, %v948
        %v950 = vrot.slane %v690, 1
        %v951 = vsel %vm896, %v948, %v950
        %v952 = vrot.slane %v692, 1
        %v953 = vrot.slane %v693, 1
        %v954 = vsel %vm896, %v952, %v953
        %v955 = vrot.slane %v694, 1
        %v956 = vsel %vm896, %v953, %v955
        %v957 = vrot.slane %v696, 1
        %v958 = vrot.slane %v697, 1
        %v959 = vsel %vm896, %v957, %v958
        %v960 = vrot.slane %v698, 1
        %v961 = vsel %vm896, %v958, %v960
        %v962 = vrot.slane %v700, 1
        %v963 = vrot.slane %v701, 1
        %v964 = vsel %vm896, %v962, %v963
        %v965 = vrot.slane %v702, 1
        %v966 = vsel %vm896, %v963, %v965
        %v967 = vrot.slane %v704, 1
        %v968 = vrot.slane %v705, 1
        %v969 = vsel %vm896, %v967, %v968
        %v970 = vrot.slane %v706, 1
        %v971 = vsel %vm896, %v968, %v970
        %v972 = vrot.slane %v708, 1
        %v973 = vrot.slane %v709, 1
        %v974 = vsel %vm896, %v972, %v973
        %v975 = vrot.slane %v710, 1
        %v976 = vsel %vm896, %v973, %v975
        %v980 = vrot.slane %v711, 7
        %v981 = vrot.slane %v712, 7
        %v982 = vsel %vm767, %v980, %v981
        %v983 = vrot.slane %v713, 7
        %v984 = vsel %vm767, %v981, %v983
        %v986 = vrot.slane %v712, 1
        %v987 = vrot.slane %v713, 1
        %v988 = vsel %vm896, %v986, %v987
        %v989 = vrot.slane %v714, 1
        %v990 = vsel %vm896, %v987, %v989
        %v994 = vrot.slane %v715, 7
        %v995 = vrot.slane %v716, 7
        %v996 = vsel %vm767, %v994, %v995
        %v997 = vrot.slane %v717, 7
        %v998 = vsel %vm767, %v995, %v997
        %v1000 = vrot.slane %v716, 1
        %v1001 = vrot.slane %v717, 1
        %v1002 = vsel %vm896, %v1000, %v1001
        %v1003 = vrot.slane %v718, 1
        %v1004 = vsel %vm896, %v1001, %v1003
        %1005 = vrot.lane.b32.xlu0 %v648, 36
        %v1006 = vpop.permute.xlu0 %1005
        %1007 = vrot.lane.b32.xlu0 %v649, 36
        %v1008 = vpop.permute.xlu0 %1007
        %1009 = vrot.lane.b32.xlu0 %v652, 36
        %v1010 = vpop.permute.xlu0 %1009
        %1011 = vrot.lane.b32.xlu0 %v653, 36
        %v1012 = vpop.permute.xlu0 %1011
        %1013 = vrot.lane.b32.xlu0 %v656, 36
        %v1014 = vpop.permute.xlu0 %1013
        %1015 = vrot.lane.b32.xlu0 %v657, 36
        %v1016 = vpop.permute.xlu0 %1015
        %1017 = vrot.lane.b32.xlu0 %v660, 36
        %v1018 = vpop.permute.xlu0 %1017
        %1019 = vrot.lane.b32.xlu0 %v661, 36
        %v1020 = vpop.permute.xlu0 %1019
        %1021 = vrot.lane.b32.xlu0 %v664, 36
        %v1022 = vpop.permute.xlu0 %1021
        %1023 = vrot.lane.b32.xlu0 %v665, 36
        %v1024 = vpop.permute.xlu0 %1023
        %1025 = vrot.lane.b32.xlu0 %v668, 36
        %v1026 = vpop.permute.xlu0 %1025
        %1027 = vrot.lane.b32.xlu0 %v669, 36
        %v1028 = vpop.permute.xlu0 %1027
        %1029 = vrot.lane.b32.xlu0 %v672, 36
        %v1030 = vpop.permute.xlu0 %1029
        %1031 = vrot.lane.b32.xlu0 %v673, 36
        %v1032 = vpop.permute.xlu0 %1031
        %1033 = vrot.lane.b32.xlu0 %v676, 36
        %v1034 = vpop.permute.xlu0 %1033
        %1035 = vrot.lane.b32.xlu0 %v677, 36
        %v1036 = vpop.permute.xlu0 %1035
        %1037 = vrot.lane.b32.xlu0 %v680, 36
        %v1038 = vpop.permute.xlu0 %1037
        %1039 = vrot.lane.b32.xlu0 %v681, 36
        %v1040 = vpop.permute.xlu0 %1039
        %1041 = vrot.lane.b32.xlu0 %v684, 36
        %v1042 = vpop.permute.xlu0 %1041
        %1043 = vrot.lane.b32.xlu0 %v685, 36
        %v1044 = vpop.permute.xlu0 %1043
        %1045 = vrot.lane.b32.xlu0 %v688, 36
        %v1046 = vpop.permute.xlu0 %1045
        %1047 = vrot.lane.b32.xlu0 %v689, 36
        %v1048 = vpop.permute.xlu0 %1047
        %1049 = vrot.lane.b32.xlu0 %v692, 36
        %v1050 = vpop.permute.xlu0 %1049
        %1051 = vrot.lane.b32.xlu0 %v693, 36
        %v1052 = vpop.permute.xlu0 %1051
        %1053 = vrot.lane.b32.xlu0 %v696, 36
        %v1054 = vpop.permute.xlu0 %1053
        %1055 = vrot.lane.b32.xlu0 %v697, 36
        %v1056 = vpop.permute.xlu0 %1055
        %1057 = vrot.lane.b32.xlu0 %v700, 36
        %v1058 = vpop.permute.xlu0 %1057
        %1059 = vrot.lane.b32.xlu0 %v701, 36
        %v1060 = vpop.permute.xlu0 %1059
        %1061 = vrot.lane.b32.xlu0 %v704, 36
        %v1062 = vpop.permute.xlu0 %1061
        %1063 = vrot.lane.b32.xlu0 %v705, 36
        %v1064 = vpop.permute.xlu0 %1063
        %1065 = vrot.lane.b32.xlu0 %v708, 36
        %v1066 = vpop.permute.xlu0 %1065
        %1067 = vrot.lane.b32.xlu0 %v709, 36
        %v1068 = vpop.permute.xlu0 %1067
        %1101 = vrot.lane.b32.xlu0 %v899, 72
        %v1102 = vpop.permute.xlu0 %1101
        %1103 = vrot.lane.b32.xlu0 %v901, 72
        %v1104 = vpop.permute.xlu0 %1103
        %1105 = vrot.lane.b32.xlu0 %v904, 72
        %v1106 = vpop.permute.xlu0 %1105
        %1107 = vrot.lane.b32.xlu0 %v906, 72
        %v1108 = vpop.permute.xlu0 %1107
        %1109 = vrot.lane.b32.xlu0 %v909, 72
        %v1110 = vpop.permute.xlu0 %1109
        %1111 = vrot.lane.b32.xlu0 %v911, 72
        %v1112 = vpop.permute.xlu0 %1111
        %1113 = vrot.lane.b32.xlu0 %v914, 72
        %v1114 = vpop.permute.xlu0 %1113
        %1115 = vrot.lane.b32.xlu0 %v916, 72
        %v1116 = vpop.permute.xlu0 %1115
        %1117 = vrot.lane.b32.xlu0 %v919, 72
        %v1118 = vpop.permute.xlu0 %1117
        %1119 = vrot.lane.b32.xlu0 %v921, 72
        %v1120 = vpop.permute.xlu0 %1119
        %1121 = vrot.lane.b32.xlu0 %v924, 72
        %v1122 = vpop.permute.xlu0 %1121
        %1123 = vrot.lane.b32.xlu0 %v926, 72
        %v1124 = vpop.permute.xlu0 %1123
        %1125 = vrot.lane.b32.xlu0 %v929, 72
        %v1126 = vpop.permute.xlu0 %1125
        %1127 = vrot.lane.b32.xlu0 %v931, 72
        %v1128 = vpop.permute.xlu0 %1127
        %1129 = vrot.lane.b32.xlu0 %v934, 72
        %v1130 = vpop.permute.xlu0 %1129
        %1131 = vrot.lane.b32.xlu0 %v936, 72
        %v1132 = vpop.permute.xlu0 %1131
        %1133 = vrot.lane.b32.xlu0 %v939, 72
        %v1134 = vpop.permute.xlu0 %1133
        %1135 = vrot.lane.b32.xlu0 %v941, 72
        %v1136 = vpop.permute.xlu0 %1135
        %1137 = vrot.lane.b32.xlu0 %v944, 72
        %v1138 = vpop.permute.xlu0 %1137
        %1139 = vrot.lane.b32.xlu0 %v946, 72
        %v1140 = vpop.permute.xlu0 %1139
        %1141 = vrot.lane.b32.xlu0 %v949, 72
        %v1142 = vpop.permute.xlu0 %1141
        %1143 = vrot.lane.b32.xlu0 %v951, 72
        %v1144 = vpop.permute.xlu0 %1143
        %1145 = vrot.lane.b32.xlu0 %v954, 72
        %v1146 = vpop.permute.xlu0 %1145
        %1147 = vrot.lane.b32.xlu0 %v956, 72
        %v1148 = vpop.permute.xlu0 %1147
        %1149 = vrot.lane.b32.xlu0 %v959, 72
        %v1150 = vpop.permute.xlu0 %1149
        %1151 = vrot.lane.b32.xlu0 %v961, 72
        %v1152 = vpop.permute.xlu0 %1151
        %1153 = vrot.lane.b32.xlu0 %v964, 72
        %v1154 = vpop.permute.xlu0 %1153
        %1155 = vrot.lane.b32.xlu0 %v966, 72
        %v1156 = vpop.permute.xlu0 %1155
        %1157 = vrot.lane.b32.xlu0 %v969, 72
        %v1158 = vpop.permute.xlu0 %1157
        %1159 = vrot.lane.b32.xlu0 %v971, 72
        %v1160 = vpop.permute.xlu0 %1159
        %1161 = vrot.lane.b32.xlu0 %v974, 72
        %v1162 = vpop.permute.xlu0 %1161
        %1163 = vrot.lane.b32.xlu0 %v976, 72
        %v1164 = vpop.permute.xlu0 %1163
        %1197 = vrot.lane.b32.xlu0 %v775, 108
        %v1198 = vpop.permute.xlu0 %1197
        %1199 = vrot.lane.b32.xlu0 %v777, 108
        %v1200 = vpop.permute.xlu0 %1199
        %1201 = vrot.lane.b32.xlu0 %v780, 108
        %v1202 = vpop.permute.xlu0 %1201
        %1203 = vrot.lane.b32.xlu0 %v782, 108
        %v1204 = vpop.permute.xlu0 %1203
        %1205 = vrot.lane.b32.xlu0 %v785, 108
        %v1206 = vpop.permute.xlu0 %1205
        %1207 = vrot.lane.b32.xlu0 %v787, 108
        %v1208 = vpop.permute.xlu0 %1207
        %1209 = vrot.lane.b32.xlu0 %v790, 108
        %v1210 = vpop.permute.xlu0 %1209
        %1211 = vrot.lane.b32.xlu0 %v792, 108
        %v1212 = vpop.permute.xlu0 %1211
        %1213 = vrot.lane.b32.xlu0 %v795, 108
        %v1214 = vpop.permute.xlu0 %1213
        %1215 = vrot.lane.b32.xlu0 %v797, 108
        %v1216 = vpop.permute.xlu0 %1215
        %1217 = vrot.lane.b32.xlu0 %v800, 108
        %v1218 = vpop.permute.xlu0 %1217
        %1219 = vrot.lane.b32.xlu0 %v802, 108
        %v1220 = vpop.permute.xlu0 %1219
        %1221 = vrot.lane.b32.xlu0 %v805, 108
        %v1222 = vpop.permute.xlu0 %1221
        %1223 = vrot.lane.b32.xlu0 %v807, 108
        %v1224 = vpop.permute.xlu0 %1223
        %1225 = vrot.lane.b32.xlu0 %v810, 108
        %v1226 = vpop.permute.xlu0 %1225
        %1227 = vrot.lane.b32.xlu0 %v812, 108
        %v1228 = vpop.permute.xlu0 %1227
        %1229 = vrot.lane.b32.xlu0 %v815, 108
        %v1230 = vpop.permute.xlu0 %1229
        %1231 = vrot.lane.b32.xlu0 %v817, 108
        %v1232 = vpop.permute.xlu0 %1231
        %1233 = vrot.lane.b32.xlu0 %v820, 108
        %v1234 = vpop.permute.xlu0 %1233
        %1235 = vrot.lane.b32.xlu0 %v822, 108
        %v1236 = vpop.permute.xlu0 %1235
        %1237 = vrot.lane.b32.xlu0 %v825, 108
        %v1238 = vpop.permute.xlu0 %1237
        %1239 = vrot.lane.b32.xlu0 %v827, 108
        %v1240 = vpop.permute.xlu0 %1239
        %1241 = vrot.lane.b32.xlu0 %v830, 108
        %v1242 = vpop.permute.xlu0 %1241
        %1243 = vrot.lane.b32.xlu0 %v832, 108
        %v1244 = vpop.permute.xlu0 %1243
        %1245 = vrot.lane.b32.xlu0 %v835, 108
        %v1246 = vpop.permute.xlu0 %1245
        %1247 = vrot.lane.b32.xlu0 %v837, 108
        %v1248 = vpop.permute.xlu0 %1247
        %1249 = vrot.lane.b32.xlu0 %v840, 108
        %v1250 = vpop.permute.xlu0 %1249
        %1251 = vrot.lane.b32.xlu0 %v842, 108
        %v1252 = vpop.permute.xlu0 %1251
        %1253 = vrot.lane.b32.xlu0 %v845, 108
        %v1254 = vpop.permute.xlu0 %1253
        %1255 = vrot.lane.b32.xlu0 %v847, 108
        %v1256 = vpop.permute.xlu0 %1255
        %1257 = vrot.lane.b32.xlu0 %v982, 108
        %v1258 = vpop.permute.xlu0 %1257
        %1259 = vrot.lane.b32.xlu0 %v984, 108
        %v1260 = vpop.permute.xlu0 %1259
        %1293 = vrot.lane.b32.xlu0 %v652, 16
        %v1294 = vpop.permute.xlu0 %1293
        %1295 = vrot.lane.b32.xlu0 %v653, 16
        %v1296 = vpop.permute.xlu0 %1295
        %1297 = vrot.lane.b32.xlu0 %v656, 16
        %v1298 = vpop.permute.xlu0 %1297
        %1299 = vrot.lane.b32.xlu0 %v657, 16
        %v1300 = vpop.permute.xlu0 %1299
        %1301 = vrot.lane.b32.xlu0 %v660, 16
        %v1302 = vpop.permute.xlu0 %1301
        %1303 = vrot.lane.b32.xlu0 %v661, 16
        %v1304 = vpop.permute.xlu0 %1303
        %1305 = vrot.lane.b32.xlu0 %v664, 16
        %v1306 = vpop.permute.xlu0 %1305
        %1307 = vrot.lane.b32.xlu0 %v665, 16
        %v1308 = vpop.permute.xlu0 %1307
        %1309 = vrot.lane.b32.xlu0 %v668, 16
        %v1310 = vpop.permute.xlu0 %1309
        %1311 = vrot.lane.b32.xlu0 %v669, 16
        %v1312 = vpop.permute.xlu0 %1311
        %1313 = vrot.lane.b32.xlu0 %v672, 16
        %v1314 = vpop.permute.xlu0 %1313
        %1315 = vrot.lane.b32.xlu0 %v673, 16
        %v1316 = vpop.permute.xlu0 %1315
        %1317 = vrot.lane.b32.xlu0 %v676, 16
        %v1318 = vpop.permute.xlu0 %1317
        %1319 = vrot.lane.b32.xlu0 %v677, 16
        %v1320 = vpop.permute.xlu0 %1319
        %1321 = vrot.lane.b32.xlu0 %v680, 16
        %v1322 = vpop.permute.xlu0 %1321
        %1323 = vrot.lane.b32.xlu0 %v681, 16
        %v1324 = vpop.permute.xlu0 %1323
        %1325 = vrot.lane.b32.xlu0 %v684, 16
        %v1326 = vpop.permute.xlu0 %1325
        %1327 = vrot.lane.b32.xlu0 %v685, 16
        %v1328 = vpop.permute.xlu0 %1327
        %1329 = vrot.lane.b32.xlu0 %v688, 16
        %v1330 = vpop.permute.xlu0 %1329
        %1331 = vrot.lane.b32.xlu0 %v689, 16
        %v1332 = vpop.permute.xlu0 %1331
        %1333 = vrot.lane.b32.xlu0 %v692, 16
        %v1334 = vpop.permute.xlu0 %1333
        %1335 = vrot.lane.b32.xlu0 %v693, 16
        %v1336 = vpop.permute.xlu0 %1335
        %1337 = vrot.lane.b32.xlu0 %v696, 16
        %v1338 = vpop.permute.xlu0 %1337
        %1339 = vrot.lane.b32.xlu0 %v697, 16
        %v1340 = vpop.permute.xlu0 %1339
        %1341 = vrot.lane.b32.xlu0 %v700, 16
        %v1342 = vpop.permute.xlu0 %1341
        %1343 = vrot.lane.b32.xlu0 %v701, 16
        %v1344 = vpop.permute.xlu0 %1343
        %1345 = vrot.lane.b32.xlu0 %v704, 16
        %v1346 = vpop.permute.xlu0 %1345
        %1347 = vrot.lane.b32.xlu0 %v705, 16
        %v1348 = vpop.permute.xlu0 %1347
        %1349 = vrot.lane.b32.xlu0 %v708, 16
        %v1350 = vpop.permute.xlu0 %1349
        %1351 = vrot.lane.b32.xlu0 %v709, 16
        %v1352 = vpop.permute.xlu0 %1351
        %1353 = vrot.lane.b32.xlu0 %v712, 16
        %v1354 = vpop.permute.xlu0 %1353
        %1355 = vrot.lane.b32.xlu0 %v713, 16
        %v1356 = vpop.permute.xlu0 %1355
        %1389 = vrot.lane.b32.xlu0 %v904, 52
        %v1390 = vpop.permute.xlu0 %1389
        %1391 = vrot.lane.b32.xlu0 %v906, 52
        %v1392 = vpop.permute.xlu0 %1391
        %1393 = vrot.lane.b32.xlu0 %v909, 52
        %v1394 = vpop.permute.xlu0 %1393
        %1395 = vrot.lane.b32.xlu0 %v911, 52
        %v1396 = vpop.permute.xlu0 %1395
        %1397 = vrot.lane.b32.xlu0 %v914, 52
        %v1398 = vpop.permute.xlu0 %1397
        %1399 = vrot.lane.b32.xlu0 %v916, 52
        %v1400 = vpop.permute.xlu0 %1399
        %1401 = vrot.lane.b32.xlu0 %v919, 52
        %v1402 = vpop.permute.xlu0 %1401
        %1403 = vrot.lane.b32.xlu0 %v921, 52
        %v1404 = vpop.permute.xlu0 %1403
        %1405 = vrot.lane.b32.xlu0 %v924, 52
        %v1406 = vpop.permute.xlu0 %1405
        %1407 = vrot.lane.b32.xlu0 %v926, 52
        %v1408 = vpop.permute.xlu0 %1407
        %1409 = vrot.lane.b32.xlu0 %v929, 52
        %v1410 = vpop.permute.xlu0 %1409
        %1411 = vrot.lane.b32.xlu0 %v931, 52
        %v1412 = vpop.permute.xlu0 %1411
        %1413 = vrot.lane.b32.xlu0 %v934, 52
        %v1414 = vpop.permute.xlu0 %1413
        %1415 = vrot.lane.b32.xlu0 %v936, 52
        %v1416 = vpop.permute.xlu0 %1415
        %1417 = vrot.lane.b32.xlu0 %v939, 52
        %v1418 = vpop.permute.xlu0 %1417
        %1419 = vrot.lane.b32.xlu0 %v941, 52
        %v1420 = vpop.permute.xlu0 %1419
        %1421 = vrot.lane.b32.xlu0 %v944, 52
        %v1422 = vpop.permute.xlu0 %1421
        %1423 = vrot.lane.b32.xlu0 %v946, 52
        %v1424 = vpop.permute.xlu0 %1423
        %1425 = vrot.lane.b32.xlu0 %v949, 52
        %v1426 = vpop.permute.xlu0 %1425
        %1427 = vrot.lane.b32.xlu0 %v951, 52
        %v1428 = vpop.permute.xlu0 %1427
        %1429 = vrot.lane.b32.xlu0 %v954, 52
        %v1430 = vpop.permute.xlu0 %1429
        %1431 = vrot.lane.b32.xlu0 %v956, 52
        %v1432 = vpop.permute.xlu0 %1431
        %1433 = vrot.lane.b32.xlu0 %v959, 52
        %v1434 = vpop.permute.xlu0 %1433
        %1435 = vrot.lane.b32.xlu0 %v961, 52
        %v1436 = vpop.permute.xlu0 %1435
        %1437 = vrot.lane.b32.xlu0 %v964, 52
        %v1438 = vpop.permute.xlu0 %1437
        %1439 = vrot.lane.b32.xlu0 %v966, 52
        %v1440 = vpop.permute.xlu0 %1439
        %1441 = vrot.lane.b32.xlu0 %v969, 52
        %v1442 = vpop.permute.xlu0 %1441
        %1443 = vrot.lane.b32.xlu0 %v971, 52
        %v1444 = vpop.permute.xlu0 %1443
        %1445 = vrot.lane.b32.xlu0 %v974, 52
        %v1446 = vpop.permute.xlu0 %1445
        %1447 = vrot.lane.b32.xlu0 %v976, 52
        %v1448 = vpop.permute.xlu0 %1447
        %1449 = vrot.lane.b32.xlu0 %v988, 52
        %v1450 = vpop.permute.xlu0 %1449
        %1451 = vrot.lane.b32.xlu0 %v990, 52
        %v1452 = vpop.permute.xlu0 %1451
        %1485 = vrot.lane.b32.xlu0 %v780, 88
        %v1486 = vpop.permute.xlu0 %1485
        %1487 = vrot.lane.b32.xlu0 %v782, 88
        %v1488 = vpop.permute.xlu0 %1487
        %1489 = vrot.lane.b32.xlu0 %v785, 88
        %v1490 = vpop.permute.xlu0 %1489
        %1491 = vrot.lane.b32.xlu0 %v787, 88
        %v1492 = vpop.permute.xlu0 %1491
        %1493 = vrot.lane.b32.xlu0 %v790, 88
        %v1494 = vpop.permute.xlu0 %1493
        %1495 = vrot.lane.b32.xlu0 %v792, 88
        %v1496 = vpop.permute.xlu0 %1495
        %1497 = vrot.lane.b32.xlu0 %v795, 88
        %v1498 = vpop.permute.xlu0 %1497
        %1499 = vrot.lane.b32.xlu0 %v797, 88
        %v1500 = vpop.permute.xlu0 %1499
        %1501 = vrot.lane.b32.xlu0 %v800, 88
        %v1502 = vpop.permute.xlu0 %1501
        %1503 = vrot.lane.b32.xlu0 %v802, 88
        %v1504 = vpop.permute.xlu0 %1503
        %1505 = vrot.lane.b32.xlu0 %v805, 88
        %v1506 = vpop.permute.xlu0 %1505
        %1507 = vrot.lane.b32.xlu0 %v807, 88
        %v1508 = vpop.permute.xlu0 %1507
        %1509 = vrot.lane.b32.xlu0 %v810, 88
        %v1510 = vpop.permute.xlu0 %1509
        %1511 = vrot.lane.b32.xlu0 %v812, 88
        %v1512 = vpop.permute.xlu0 %1511
        %1513 = vrot.lane.b32.xlu0 %v815, 88
        %v1514 = vpop.permute.xlu0 %1513
        %1515 = vrot.lane.b32.xlu0 %v817, 88
        %v1516 = vpop.permute.xlu0 %1515
        %1517 = vrot.lane.b32.xlu0 %v820, 88
        %v1518 = vpop.permute.xlu0 %1517
        %1519 = vrot.lane.b32.xlu0 %v822, 88
        %v1520 = vpop.permute.xlu0 %1519
        %1521 = vrot.lane.b32.xlu0 %v825, 88
        %v1522 = vpop.permute.xlu0 %1521
        %1523 = vrot.lane.b32.xlu0 %v827, 88
        %v1524 = vpop.permute.xlu0 %1523
        %1525 = vrot.lane.b32.xlu0 %v830, 88
        %v1526 = vpop.permute.xlu0 %1525
        %1527 = vrot.lane.b32.xlu0 %v832, 88
        %v1528 = vpop.permute.xlu0 %1527
        %1529 = vrot.lane.b32.xlu0 %v835, 88
        %v1530 = vpop.permute.xlu0 %1529
        %1531 = vrot.lane.b32.xlu0 %v837, 88
        %v1532 = vpop.permute.xlu0 %1531
        %1533 = vrot.lane.b32.xlu0 %v840, 88
        %v1534 = vpop.permute.xlu0 %1533
        %1535 = vrot.lane.b32.xlu0 %v842, 88
        %v1536 = vpop.permute.xlu0 %1535
        %1537 = vrot.lane.b32.xlu0 %v845, 88
        %v1538 = vpop.permute.xlu0 %1537
        %1539 = vrot.lane.b32.xlu0 %v847, 88
        %v1540 = vpop.permute.xlu0 %1539
        %1541 = vrot.lane.b32.xlu0 %v982, 88
        %v1542 = vpop.permute.xlu0 %1541
        %1543 = vrot.lane.b32.xlu0 %v984, 88
        %v1544 = vpop.permute.xlu0 %1543
        %1545 = vrot.lane.b32.xlu0 %v996, 88
        %v1546 = vpop.permute.xlu0 %1545
        %1547 = vrot.lane.b32.xlu0 %v998, 88
        %v1548 = vpop.permute.xlu0 %1547
        %1581 = vrot.lane.b32.xlu0 %v656, 124
        %v1582 = vpop.permute.xlu0 %1581
        %1583 = vrot.lane.b32.xlu0 %v657, 124
        %v1584 = vpop.permute.xlu0 %1583
        %1585 = vrot.lane.b32.xlu0 %v660, 124
        %v1586 = vpop.permute.xlu0 %1585
        %1587 = vrot.lane.b32.xlu0 %v661, 124
        %v1588 = vpop.permute.xlu0 %1587
        %1589 = vrot.lane.b32.xlu0 %v664, 124
        %v1590 = vpop.permute.xlu0 %1589
        %1591 = vrot.lane.b32.xlu0 %v665, 124
        %v1592 = vpop.permute.xlu0 %1591
        %1593 = vrot.lane.b32.xlu0 %v668, 124
        %v1594 = vpop.permute.xlu0 %1593
        %1595 = vrot.lane.b32.xlu0 %v669, 124
        %v1596 = vpop.permute.xlu0 %1595
        %1597 = vrot.lane.b32.xlu0 %v672, 124
        %v1598 = vpop.permute.xlu0 %1597
        %1599 = vrot.lane.b32.xlu0 %v673, 124
        %v1600 = vpop.permute.xlu0 %1599
        %1601 = vrot.lane.b32.xlu0 %v676, 124
        %v1602 = vpop.permute.xlu0 %1601
        %1603 = vrot.lane.b32.xlu0 %v677, 124
        %v1604 = vpop.permute.xlu0 %1603
        %1605 = vrot.lane.b32.xlu0 %v680, 124
        %v1606 = vpop.permute.xlu0 %1605
        %1607 = vrot.lane.b32.xlu0 %v681, 124
        %v1608 = vpop.permute.xlu0 %1607
        %1609 = vrot.lane.b32.xlu0 %v684, 124
        %v1610 = vpop.permute.xlu0 %1609
        %1611 = vrot.lane.b32.xlu0 %v685, 124
        %v1612 = vpop.permute.xlu0 %1611
        %1613 = vrot.lane.b32.xlu0 %v688, 124
        %v1614 = vpop.permute.xlu0 %1613
        %1615 = vrot.lane.b32.xlu0 %v689, 124
        %v1616 = vpop.permute.xlu0 %1615
        %1617 = vrot.lane.b32.xlu0 %v692, 124
        %v1618 = vpop.permute.xlu0 %1617
        %1619 = vrot.lane.b32.xlu0 %v693, 124
        %v1620 = vpop.permute.xlu0 %1619
        %1621 = vrot.lane.b32.xlu0 %v696, 124
        %v1622 = vpop.permute.xlu0 %1621
        %1623 = vrot.lane.b32.xlu0 %v697, 124
        %v1624 = vpop.permute.xlu0 %1623
        %1625 = vrot.lane.b32.xlu0 %v700, 124
        %v1626 = vpop.permute.xlu0 %1625
        %1627 = vrot.lane.b32.xlu0 %v701, 124
        %v1628 = vpop.permute.xlu0 %1627
        %1629 = vrot.lane.b32.xlu0 %v704, 124
        %v1630 = vpop.permute.xlu0 %1629
        %1631 = vrot.lane.b32.xlu0 %v705, 124
        %v1632 = vpop.permute.xlu0 %1631
        %1633 = vrot.lane.b32.xlu0 %v708, 124
        %v1634 = vpop.permute.xlu0 %1633
        %1635 = vrot.lane.b32.xlu0 %v709, 124
        %v1636 = vpop.permute.xlu0 %1635
        %1637 = vrot.lane.b32.xlu0 %v712, 124
        %v1638 = vpop.permute.xlu0 %1637
        %1639 = vrot.lane.b32.xlu0 %v713, 124
        %v1640 = vpop.permute.xlu0 %1639
        %1641 = vrot.lane.b32.xlu0 %v716, 124
        %v1642 = vpop.permute.xlu0 %1641
        %1643 = vrot.lane.b32.xlu0 %v717, 124
        %v1644 = vpop.permute.xlu0 %1643
        %1677 = vrot.lane.b32.xlu0 %v909, 32
        %v1678 = vpop.permute.xlu0 %1677
        %1679 = vrot.lane.b32.xlu0 %v911, 32
        %v1680 = vpop.permute.xlu0 %1679
        %1681 = vrot.lane.b32.xlu0 %v914, 32
        %v1682 = vpop.permute.xlu0 %1681
        %1683 = vrot.lane.b32.xlu0 %v916, 32
        %v1684 = vpop.permute.xlu0 %1683
        %1685 = vrot.lane.b32.xlu0 %v919, 32
        %v1686 = vpop.permute.xlu0 %1685
        %1687 = vrot.lane.b32.xlu0 %v921, 32
        %v1688 = vpop.permute.xlu0 %1687
        %1689 = vrot.lane.b32.xlu0 %v924, 32
        %v1690 = vpop.permute.xlu0 %1689
        %1691 = vrot.lane.b32.xlu0 %v926, 32
        %v1692 = vpop.permute.xlu0 %1691
        %1693 = vrot.lane.b32.xlu0 %v929, 32
        %v1694 = vpop.permute.xlu0 %1693
        %1695 = vrot.lane.b32.xlu0 %v931, 32
        %v1696 = vpop.permute.xlu0 %1695
        %1697 = vrot.lane.b32.xlu0 %v934, 32
        %v1698 = vpop.permute.xlu0 %1697
        %1699 = vrot.lane.b32.xlu0 %v936, 32
        %v1700 = vpop.permute.xlu0 %1699
        %1701 = vrot.lane.b32.xlu0 %v939, 32
        %v1702 = vpop.permute.xlu0 %1701
        %1703 = vrot.lane.b32.xlu0 %v941, 32
        %v1704 = vpop.permute.xlu0 %1703
        %1705 = vrot.lane.b32.xlu0 %v944, 32
        %v1706 = vpop.permute.xlu0 %1705
        %1707 = vrot.lane.b32.xlu0 %v946, 32
        %v1708 = vpop.permute.xlu0 %1707
        %1709 = vrot.lane.b32.xlu0 %v949, 32
        %v1710 = vpop.permute.xlu0 %1709
        %1711 = vrot.lane.b32.xlu0 %v951, 32
        %v1712 = vpop.permute.xlu0 %1711
        %1713 = vrot.lane.b32.xlu0 %v954, 32
        %v1714 = vpop.permute.xlu0 %1713
        %1715 = vrot.lane.b32.xlu0 %v956, 32
        %v1716 = vpop.permute.xlu0 %1715
        %1717 = vrot.lane.b32.xlu0 %v959, 32
        %v1718 = vpop.permute.xlu0 %1717
        %1719 = vrot.lane.b32.xlu0 %v961, 32
        %v1720 = vpop.permute.xlu0 %1719
        %1721 = vrot.lane.b32.xlu0 %v964, 32
        %v1722 = vpop.permute.xlu0 %1721
        %1723 = vrot.lane.b32.xlu0 %v966, 32
        %v1724 = vpop.permute.xlu0 %1723
        %1725 = vrot.lane.b32.xlu0 %v969, 32
        %v1726 = vpop.permute.xlu0 %1725
        %1727 = vrot.lane.b32.xlu0 %v971, 32
        %v1728 = vpop.permute.xlu0 %1727
        %1729 = vrot.lane.b32.xlu0 %v974, 32
        %v1730 = vpop.permute.xlu0 %1729
        %1731 = vrot.lane.b32.xlu0 %v976, 32
        %v1732 = vpop.permute.xlu0 %1731
        %1733 = vrot.lane.b32.xlu0 %v988, 32
        %v1734 = vpop.permute.xlu0 %1733
        %1735 = vrot.lane.b32.xlu0 %v990, 32
        %v1736 = vpop.permute.xlu0 %1735
        %1737 = vrot.lane.b32.xlu0 %v1002, 32
        %v1738 = vpop.permute.xlu0 %1737
        %1739 = vrot.lane.b32.xlu0 %v1004, 32
        %v1740 = vpop.permute.xlu0 %1739
        %v1773 = vsel %vm614, %v770, %v1006
        %v1774 = vsel %vm614, %v772, %v1008
        %v1775 = vsel %vm614, %v775, %v1010
        %v1776 = vsel %vm614, %v777, %v1012
        %v1777 = vsel %vm614, %v780, %v1014
        %v1778 = vsel %vm614, %v782, %v1016
        %v1779 = vsel %vm614, %v785, %v1018
        %v1780 = vsel %vm614, %v787, %v1020
        %v1781 = vsel %vm614, %v790, %v1022
        %v1782 = vsel %vm614, %v792, %v1024
        %v1783 = vsel %vm614, %v795, %v1026
        %v1784 = vsel %vm614, %v797, %v1028
        %v1785 = vsel %vm614, %v800, %v1030
        %v1786 = vsel %vm614, %v802, %v1032
        %v1787 = vsel %vm614, %v805, %v1034
        %v1788 = vsel %vm614, %v807, %v1036
        %v1789 = vsel %vm614, %v810, %v1038
        %v1790 = vsel %vm614, %v812, %v1040
        %v1791 = vsel %vm614, %v815, %v1042
        %v1792 = vsel %vm614, %v817, %v1044
        %v1793 = vsel %vm614, %v820, %v1046
        %v1794 = vsel %vm614, %v822, %v1048
        %v1795 = vsel %vm614, %v825, %v1050
        %v1796 = vsel %vm614, %v827, %v1052
        %v1797 = vsel %vm614, %v830, %v1054
        %v1798 = vsel %vm614, %v832, %v1056
        %v1799 = vsel %vm614, %v835, %v1058
        %v1800 = vsel %vm614, %v837, %v1060
        %v1801 = vsel %vm614, %v840, %v1062
        %v1802 = vsel %vm614, %v842, %v1064
        %v1803 = vsel %vm614, %v845, %v1066
        %v1804 = vsel %vm614, %v847, %v1068
        %vm1805 = vcmask 588800
        %v1806 = vsel %vm1805, %v1773, %v1102
        %v1807 = vsel %vm1805, %v1774, %v1104
        %v1808 = vsel %vm1805, %v1775, %v1106
        %v1809 = vsel %vm1805, %v1776, %v1108
        %v1810 = vsel %vm1805, %v1777, %v1110
        %v1811 = vsel %vm1805, %v1778, %v1112
        %v1812 = vsel %vm1805, %v1779, %v1114
        %v1813 = vsel %vm1805, %v1780, %v1116
        %v1814 = vsel %vm1805, %v1781, %v1118
        %v1815 = vsel %vm1805, %v1782, %v1120
        %v1816 = vsel %vm1805, %v1783, %v1122
        %v1817 = vsel %vm1805, %v1784, %v1124
        %v1818 = vsel %vm1805, %v1785, %v1126
        %v1819 = vsel %vm1805, %v1786, %v1128
        %v1820 = vsel %vm1805, %v1787, %v1130
        %v1821 = vsel %vm1805, %v1788, %v1132
        %v1822 = vsel %vm1805, %v1789, %v1134
        %v1823 = vsel %vm1805, %v1790, %v1136
        %v1824 = vsel %vm1805, %v1791, %v1138
        %v1825 = vsel %vm1805, %v1792, %v1140
        %v1826 = vsel %vm1805, %v1793, %v1142
        %v1827 = vsel %vm1805, %v1794, %v1144
        %v1828 = vsel %vm1805, %v1795, %v1146
        %v1829 = vsel %vm1805, %v1796, %v1148
        %v1830 = vsel %vm1805, %v1797, %v1150
        %v1831 = vsel %vm1805, %v1798, %v1152
        %v1832 = vsel %vm1805, %v1799, %v1154
        %v1833 = vsel %vm1805, %v1800, %v1156
        %v1834 = vsel %vm1805, %v1801, %v1158
        %v1835 = vsel %vm1805, %v1802, %v1160
        %v1836 = vsel %vm1805, %v1803, %v1162
        %v1837 = vsel %vm1805, %v1804, %v1164
        %vm1838 = vcmask 883712
        %v1839 = vsel %vm1838, %v1806, %v1198
        %v1840 = vsel %vm1838, %v1807, %v1200
        %v1841 = vsel %vm1838, %v1808, %v1202
        %v1842 = vsel %vm1838, %v1809, %v1204
        %v1843 = vsel %vm1838, %v1810, %v1206
        %v1844 = vsel %vm1838, %v1811, %v1208
        %v1845 = vsel %vm1838, %v1812, %v1210
        %v1846 = vsel %vm1838, %v1813, %v1212
        %v1847 = vsel %vm1838, %v1814, %v1214
        %v1848 = vsel %vm1838, %v1815, %v1216
        %v1849 = vsel %vm1838, %v1816, %v1218
        %v1850 = vsel %vm1838, %v1817, %v1220
        %v1851 = vsel %vm1838, %v1818, %v1222
        %v1852 = vsel %vm1838, %v1819, %v1224
        %v1853 = vsel %vm1838, %v1820, %v1226
        %v1854 = vsel %vm1838, %v1821, %v1228
        %v1855 = vsel %vm1838, %v1822, %v1230
        %v1856 = vsel %vm1838, %v1823, %v1232
        %v1857 = vsel %vm1838, %v1824, %v1234
        %v1858 = vsel %vm1838, %v1825, %v1236
        %v1859 = vsel %vm1838, %v1826, %v1238
        %v1860 = vsel %vm1838, %v1827, %v1240
        %v1861 = vsel %vm1838, %v1828, %v1242
        %v1862 = vsel %vm1838, %v1829, %v1244
        %v1863 = vsel %vm1838, %v1830, %v1246
        %v1864 = vsel %vm1838, %v1831, %v1248
        %v1865 = vsel %vm1838, %v1832, %v1250
        %v1866 = vsel %vm1838, %v1833, %v1252
        %v1867 = vsel %vm1838, %v1834, %v1254
        %v1868 = vsel %vm1838, %v1835, %v1256
        %v1869 = vsel %vm1838, %v1836, %v1258
        %v1870 = vsel %vm1838, %v1837, %v1260
        %vm1871 = vcmask 130048
        %v1872 = vsel %vm1871, %v1198, %v1294
        %v1873 = vsel %vm1871, %v1200, %v1296
        %v1874 = vsel %vm1871, %v1202, %v1298
        %v1875 = vsel %vm1871, %v1204, %v1300
        %v1876 = vsel %vm1871, %v1206, %v1302
        %v1877 = vsel %vm1871, %v1208, %v1304
        %v1878 = vsel %vm1871, %v1210, %v1306
        %v1879 = vsel %vm1871, %v1212, %v1308
        %v1880 = vsel %vm1871, %v1214, %v1310
        %v1881 = vsel %vm1871, %v1216, %v1312
        %v1882 = vsel %vm1871, %v1218, %v1314
        %v1883 = vsel %vm1871, %v1220, %v1316
        %v1884 = vsel %vm1871, %v1222, %v1318
        %v1885 = vsel %vm1871, %v1224, %v1320
        %v1886 = vsel %vm1871, %v1226, %v1322
        %v1887 = vsel %vm1871, %v1228, %v1324
        %v1888 = vsel %vm1871, %v1230, %v1326
        %v1889 = vsel %vm1871, %v1232, %v1328
        %v1890 = vsel %vm1871, %v1234, %v1330
        %v1891 = vsel %vm1871, %v1236, %v1332
        %v1892 = vsel %vm1871, %v1238, %v1334
        %v1893 = vsel %vm1871, %v1240, %v1336
        %v1894 = vsel %vm1871, %v1242, %v1338
        %v1895 = vsel %vm1871, %v1244, %v1340
        %v1896 = vsel %vm1871, %v1246, %v1342
        %v1897 = vsel %vm1871, %v1248, %v1344
        %v1898 = vsel %vm1871, %v1250, %v1346
        %v1899 = vsel %vm1871, %v1252, %v1348
        %v1900 = vsel %vm1871, %v1254, %v1350
        %v1901 = vsel %vm1871, %v1256, %v1352
        %v1902 = vsel %vm1871, %v1258, %v1354
        %v1903 = vsel %vm1871, %v1260, %v1356
        %vm1904 = vcmask 424960
        %v1905 = vsel %vm1904, %v1872, %v1390
        %v1906 = vsel %vm1904, %v1873, %v1392
        %v1907 = vsel %vm1904, %v1874, %v1394
        %v1908 = vsel %vm1904, %v1875, %v1396
        %v1909 = vsel %vm1904, %v1876, %v1398
        %v1910 = vsel %vm1904, %v1877, %v1400
        %v1911 = vsel %vm1904, %v1878, %v1402
        %v1912 = vsel %vm1904, %v1879, %v1404
        %v1913 = vsel %vm1904, %v1880, %v1406
        %v1914 = vsel %vm1904, %v1881, %v1408
        %v1915 = vsel %vm1904, %v1882, %v1410
        %v1916 = vsel %vm1904, %v1883, %v1412
        %v1917 = vsel %vm1904, %v1884, %v1414
        %v1918 = vsel %vm1904, %v1885, %v1416
        %v1919 = vsel %vm1904, %v1886, %v1418
        %v1920 = vsel %vm1904, %v1887, %v1420
        %v1921 = vsel %vm1904, %v1888, %v1422
        %v1922 = vsel %vm1904, %v1889, %v1424
        %v1923 = vsel %vm1904, %v1890, %v1426
        %v1924 = vsel %vm1904, %v1891, %v1428
        %v1925 = vsel %vm1904, %v1892, %v1430
        %v1926 = vsel %vm1904, %v1893, %v1432
        %v1927 = vsel %vm1904, %v1894, %v1434
        %v1928 = vsel %vm1904, %v1895, %v1436
        %v1929 = vsel %vm1904, %v1896, %v1438
        %v1930 = vsel %vm1904, %v1897, %v1440
        %v1931 = vsel %vm1904, %v1898, %v1442
        %v1932 = vsel %vm1904, %v1899, %v1444
        %v1933 = vsel %vm1904, %v1900, %v1446
        %v1934 = vsel %vm1904, %v1901, %v1448
        %v1935 = vsel %vm1904, %v1902, %v1450
        %v1936 = vsel %vm1904, %v1903, %v1452
        %vm1937 = vcmask 719872
        %v1938 = vsel %vm1937, %v1905, %v1486
        %v1939 = vsel %vm1937, %v1906, %v1488
        %v1940 = vsel %vm1937, %v1907, %v1490
        %v1941 = vsel %vm1937, %v1908, %v1492
        %v1942 = vsel %vm1937, %v1909, %v1494
        %v1943 = vsel %vm1937, %v1910, %v1496
        %v1944 = vsel %vm1937, %v1911, %v1498
        %v1945 = vsel %vm1937, %v1912, %v1500
        %v1946 = vsel %vm1937, %v1913, %v1502
        %v1947 = vsel %vm1937, %v1914, %v1504
        %v1948 = vsel %vm1937, %v1915, %v1506
        %v1949 = vsel %vm1937, %v1916, %v1508
        %v1950 = vsel %vm1937, %v1917, %v1510
        %v1951 = vsel %vm1937, %v1918, %v1512
        %v1952 = vsel %vm1937, %v1919, %v1514
        %v1953 = vsel %vm1937, %v1920, %v1516
        %v1954 = vsel %vm1937, %v1921, %v1518
        %v1955 = vsel %vm1937, %v1922, %v1520
        %v1956 = vsel %vm1937, %v1923, %v1522
        %v1957 = vsel %vm1937, %v1924, %v1524
        %v1958 = vsel %vm1937, %v1925, %v1526
        %v1959 = vsel %vm1937, %v1926, %v1528
        %v1960 = vsel %vm1937, %v1927, %v1530
        %v1961 = vsel %vm1937, %v1928, %v1532
        %v1962 = vsel %vm1937, %v1929, %v1534
        %v1963 = vsel %vm1937, %v1930, %v1536
        %v1964 = vsel %vm1937, %v1931, %v1538
        %v1965 = vsel %vm1937, %v1932, %v1540
        %v1966 = vsel %vm1937, %v1933, %v1542
        %v1967 = vsel %vm1937, %v1934, %v1544
        %v1968 = vsel %vm1937, %v1935, %v1546
        %v1969 = vsel %vm1937, %v1936, %v1548
        %vm1970 = vcmask 1014784
        %v1971 = vsel %vm1970, %v1938, %v1582
        %v1972 = vsel %vm1970, %v1939, %v1584
        %v1973 = vsel %vm1970, %v1940, %v1586
        %v1974 = vsel %vm1970, %v1941, %v1588
        %v1975 = vsel %vm1970, %v1942, %v1590
        %v1976 = vsel %vm1970, %v1943, %v1592
        %v1977 = vsel %vm1970, %v1944, %v1594
        %v1978 = vsel %vm1970, %v1945, %v1596
        %v1979 = vsel %vm1970, %v1946, %v1598
        %v1980 = vsel %vm1970, %v1947, %v1600
        %v1981 = vsel %vm1970, %v1948, %v1602
        %v1982 = vsel %vm1970, %v1949, %v1604
        %v1983 = vsel %vm1970, %v1950, %v1606
        %v1984 = vsel %vm1970, %v1951, %v1608
        %v1985 = vsel %vm1970, %v1952, %v1610
        %v1986 = vsel %vm1970, %v1953, %v1612
        %v1987 = vsel %vm1970, %v1954, %v1614
        %v1988 = vsel %vm1970, %v1955, %v1616
        %v1989 = vsel %vm1970, %v1956, %v1618
        %v1990 = vsel %vm1970, %v1957, %v1620
        %v1991 = vsel %vm1970, %v1958, %v1622
        %v1992 = vsel %vm1970, %v1959, %v1624
        %v1993 = vsel %vm1970, %v1960, %v1626
        %v1994 = vsel %vm1970, %v1961, %v1628
        %v1995 = vsel %vm1970, %v1962, %v1630
        %v1996 = vsel %vm1970, %v1963, %v1632
        %v1997 = vsel %vm1970, %v1964, %v1634
        %v1998 = vsel %vm1970, %v1965, %v1636
        %v1999 = vsel %vm1970, %v1966, %v1638
        %v2000 = vsel %vm1970, %v1967, %v1640
        %v2001 = vsel %vm1970, %v1968, %v1642
        %v2002 = vsel %vm1970, %v1969, %v1644
        %vm2003 = vcmask 261120
        %v2004 = vsel %vm2003, %v1582, %v1678
        %v2005 = vsel %vm2003, %v1584, %v1680
        %v2006 = vsel %vm2003, %v1586, %v1682
        %v2007 = vsel %vm2003, %v1588, %v1684
        %v2008 = vsel %vm2003, %v1590, %v1686
        %v2009 = vsel %vm2003, %v1592, %v1688
        %v2010 = vsel %vm2003, %v1594, %v1690
        %v2011 = vsel %vm2003, %v1596, %v1692
        %v2012 = vsel %vm2003, %v1598, %v1694
        %v2013 = vsel %vm2003, %v1600, %v1696
        %v2014 = vsel %vm2003, %v1602, %v1698
        %v2015 = vsel %vm2003, %v1604, %v1700
        %v2016 = vsel %vm2003, %v1606, %v1702
        %v2017 = vsel %vm2003, %v1608, %v1704
        %v2018 = vsel %vm2003, %v1610, %v1706
        %v2019 = vsel %vm2003, %v1612, %v1708
        %v2020 = vsel %vm2003, %v1614, %v1710
        %v2021 = vsel %vm2003, %v1616, %v1712
        %v2022 = vsel %vm2003, %v1618, %v1714
        %v2023 = vsel %vm2003, %v1620, %v1716
        %v2024 = vsel %vm2003, %v1622, %v1718
        %v2025 = vsel %vm2003, %v1624, %v1720
        %v2026 = vsel %vm2003, %v1626, %v1722
        %v2027 = vsel %vm2003, %v1628, %v1724
        %v2028 = vsel %vm2003, %v1630, %v1726
        %v2029 = vsel %vm2003, %v1632, %v1728
        %v2030 = vsel %vm2003, %v1634, %v1730
        %v2031 = vsel %vm2003, %v1636, %v1732
        %v2032 = vsel %vm2003, %v1638, %v1734
        %v2033 = vsel %vm2003, %v1640, %v1736
        %v2034 = vsel %vm2003, %v1642, %v1738
        %v2035 = vsel %vm2003, %v1644, %v1740
        %v2036 = vld [vmem:[%s1] sm:$0xff]
        %v2037 = vld [vmem:[%s1 + $0x8] sm:$0xff]
        %v2038 = vld [vmem:[%s1 + $0x10] sm:$0xff]
        %v2039 = vld [vmem:[%s1 + $0x18] sm:$0xff]
        %v2040 = vld [vmem:[%s1 + $0x20] sm:$0xff]
        %v2041 = vld [vmem:[%s1 + $0x28] sm:$0xff]
        %v2042 = vld [vmem:[%s1 + $0x30] sm:$0xff]
        %v2043 = vld [vmem:[%s1 + $0x38] sm:$0xff]
        %v2044 = vld [vmem:[%s1 + $0x40] sm:$0xff]
        %v2045 = vld [vmem:[%s1 + $0x48] sm:$0xff]
        %v2046 = vld [vmem:[%s1 + $0x50] sm:$0xff]
        %v2047 = vld [vmem:[%s1 + $0x58] sm:$0xff]
        %v2048 = vld [vmem:[%s1 + $0x60] sm:$0xff]
        %v2049 = vld [vmem:[%s1 + $0x68] sm:$0xff]
        %v2050 = vld [vmem:[%s1 + $0x70] sm:$0xff]
        %v2051 = vld [vmem:[%s1 + $0x78] sm:$0xff]
        %v2052 = vld [vmem:[%s1 + $0x80] sm:$0xff]
        %v2053 = vld [vmem:[%s1 + $0x88] sm:$0xff]
        %v2054 = vld [vmem:[%s1 + $0x90] sm:$0xff]
        %v2055 = vld [vmem:[%s1 + $0x98] sm:$0xff]
        %v2056 = vld [vmem:[%s1 + $0xa0] sm:$0xff]
        %v2057 = vld [vmem:[%s1 + $0xa8] sm:$0xff]
        %v2058 = vld [vmem:[%s1 + $0xb0] sm:$0xff]
        %v2059 = vld [vmem:[%s1 + $0xb8] sm:$0xff]
        %v2060 = vld [vmem:[%s1 + $0xc0] sm:$0xff]
        %v2061 = vld [vmem:[%s1 + $0xc8] sm:$0xff]
        %v2062 = vld [vmem:[%s1 + $0xd0] sm:$0xff]
        %v2063 = vld [vmem:[%s1 + $0xd8] sm:$0xff]
        %v2064 = vld [vmem:[%s1 + $0xe0] sm:$0xff]
        %v2065 = vld [vmem:[%s1 + $0xe8] sm:$0xff]
        %v2066 = vld [vmem:[%s1 + $0xf0] sm:$0xff]
        %v2067 = vld [vmem:[%s1 + $0xf8] sm:$0xff]
        %v2068 = vld [vmem:[%s1 + $0x100] sm:$0xff]
        %v2069 = vld [vmem:[%s1 + $0x108] sm:$0xff]
        %v2070 = vld [vmem:[%s1 + $0x110] sm:$0xff]
        %v2071 = vld [vmem:[%s1 + $0x118] sm:$0xff]
        %v2072 = vld [vmem:[%s1 + $0x120] sm:$0xff]
        %v2073 = vld [vmem:[%s1 + $0x128] sm:$0xff]
        %v2074 = vld [vmem:[%s1 + $0x130] sm:$0xff]
        %v2075 = vld [vmem:[%s1 + $0x138] sm:$0xff]
        %v2076 = vld [vmem:[%s1 + $0x140] sm:$0xf]
        %v2077 = vld [vmem:[%s2] sm:$0x1]
        %v2079 = vperm.slane %v2077, 0
        %vm2081 = vcmask 556032
        %v2083 = vsel %vm2081, %v2004, 0
        %v2086 = vsel %vm2081, %v2005, 0
        %v2089 = vsel %vm2081, %v2006, 0
        %v2092 = vsel %vm2081, %v2007, 0
        %v2095 = vsel %vm2081, %v2008, 0
        %v2098 = vsel %vm2081, %v2009, 0
        %v2101 = vsel %vm2081, %v2010, 0
        %v2104 = vsel %vm2081, %v2011, 0
        %v2107 = vsel %vm2081, %v2012, 0
        %v2110 = vsel %vm2081, %v2013, 0
        %v2113 = vsel %vm2081, %v2014, 0
        %v2116 = vsel %vm2081, %v2015, 0
        %v2119 = vsel %vm2081, %v2016, 0
        %v2122 = vsel %vm2081, %v2017, 0
        %v2125 = vsel %vm2081, %v2018, 0
        %v2128 = vsel %vm2081, %v2019, 0
        %v2131 = vsel %vm2081, %v2020, 0
        %v2134 = vsel %vm2081, %v2021, 0
        %v2137 = vsel %vm2081, %v2022, 0
        %v2140 = vsel %vm2081, %v2023, 0
        %v2143 = vsel %vm2081, %v2024, 0
        %v2146 = vsel %vm2081, %v2025, 0
        %v2149 = vsel %vm2081, %v2026, 0
        %v2152 = vsel %vm2081, %v2027, 0
        %v2155 = vsel %vm2081, %v2028, 0
        %v2158 = vsel %vm2081, %v2029, 0
        %v2161 = vsel %vm2081, %v2030, 0
        %v2164 = vsel %vm2081, %v2031, 0
        %v2167 = vsel %vm2081, %v2032, 0
        %v2170 = vsel %vm2081, %v2033, 0
        %v2173 = vsel %vm2081, %v2034, 0
        %v2176 = vsel %vm2081, %v2035, 0
        %vm2178 = vcmask 1043456
        %v2180 = vsel %vm2178, %v2076, 0
        %2182 = vmatpush.msra.mxu0 %v2051
        %2183 = vmatpush.msra.mxu0 %v2050
        %2184 = vmatpush.msra.mxu0 %v2049
        %2185 = vmatpush.msra.mxu0 %v2048
        %2186 = vmatpush.msra.mxu0 %v2047
        %2187 = vmatpush.msra.mxu0 %v2046
        %2188 = vmatpush.msra.mxu0 %v2045
        %2189 = vmatpush.msra.mxu0 %v2044
        %2190 = vmatpush.msra.mxu0 %v2043
        %2191 = vmatpush.msra.mxu0 %v2042
        %2192 = vmatpush.msra.mxu0 %v2041
        %2193 = vmatpush.msra.mxu0 %v2040
        %2194 = vmatpush.msra.mxu0 %v2039
        %2195 = vmatpush.msra.mxu0 %v2038
        %2196 = vmatpush.msra.mxu0 %v2037
        %2197 = vmatpush.msra.mxu0 %v2036
        %2198 = vmatmul.f32.gmra.mxu0 %v1839
        %v2199 = vpop.f32.mrf.mxu0
        %v2200 = vadd.f32 %v2079, %v2199
        %2201 = vmatmul.f32.gmra.mxu0 %v1840
        %v2202 = vpop.f32.mrf.mxu0
        %v2203 = vadd.f32 %v2079, %v2202
        %2204 = vmatmul.f32.gmra.mxu0 %v1841
        %v2205 = vpop.f32.mrf.mxu0
        %v2206 = vadd.f32 %v2079, %v2205
        %2207 = vmatmul.f32.gmra.mxu0 %v1842
        %v2208 = vpop.f32.mrf.mxu0
        %v2209 = vadd.f32 %v2079, %v2208
        %2210 = vmatmul.f32.gmra.mxu0 %v1843
        %v2211 = vpop.f32.mrf.mxu0
        %v2212 = vadd.f32 %v2079, %v2211
        %2213 = vmatmul.f32.gmra.mxu0 %v1844
        %v2214 = vpop.f32.mrf.mxu0
        %v2215 = vadd.f32 %v2079, %v2214
        %2216 = vmatmul.f32.gmra.mxu0 %v1845
        %v2217 = vpop.f32.mrf.mxu0
        %v2218 = vadd.f32 %v2079, %v2217
        %2219 = vmatmul.f32.gmra.mxu0 %v1846
        %v2220 = vpop.f32.mrf.mxu0
        %v2221 = vadd.f32 %v2079, %v2220
        %2222 = vmatmul.f32.gmra.mxu0 %v1847
        %v2223 = vpop.f32.mrf.mxu0
        %v2224 = vadd.f32 %v2079, %v2223
        %2225 = vmatmul.f32.gmra.mxu0 %v1848
        %v2226 = vpop.f32.mrf.mxu0
        %v2227 = vadd.f32 %v2079, %v2226
        %2228 = vmatmul.f32.gmra.mxu0 %v1849
        %v2229 = vpop.f32.mrf.mxu0
        %v2230 = vadd.f32 %v2079, %v2229
        %2231 = vmatmul.f32.gmra.mxu0 %v1850
        %v2232 = vpop.f32.mrf.mxu0
        %v2233 = vadd.f32 %v2079, %v2232
        %2234 = vmatmul.f32.gmra.mxu0 %v1851
        %v2235 = vpop.f32.mrf.mxu0
        %v2236 = vadd.f32 %v2079, %v2235
        %2237 = vmatmul.f32.gmra.mxu0 %v1852
        %v2238 = vpop.f32.mrf.mxu0
        %v2239 = vadd.f32 %v2079, %v2238
        %2240 = vmatmul.f32.gmra.mxu0 %v1853
        %v2241 = vpop.f32.mrf.mxu0
        %v2242 = vadd.f32 %v2079, %v2241
        %2243 = vmatmul.f32.gmra.mxu0 %v1854
        %v2244 = vpop.f32.mrf.mxu0
        %v2245 = vadd.f32 %v2079, %v2244
        %2246 = vmatmul.f32.gmra.mxu0 %v1855
        %v2247 = vpop.f32.mrf.mxu0
        %v2248 = vadd.f32 %v2079, %v2247
        %2249 = vmatmul.f32.gmra.mxu0 %v1856
        %v2250 = vpop.f32.mrf.mxu0
        %v2251 = vadd.f32 %v2079, %v2250
        %2252 = vmatmul.f32.gmra.mxu0 %v1857
        %v2253 = vpop.f32.mrf.mxu0
        %v2254 = vadd.f32 %v2079, %v2253
        %2255 = vmatmul.f32.gmra.mxu0 %v1858
        %v2256 = vpop.f32.mrf.mxu0
        %v2257 = vadd.f32 %v2079, %v2256
        %2258 = vmatmul.f32.gmra.mxu0 %v1859
        %v2259 = vpop.f32.mrf.mxu0
        %v2260 = vadd.f32 %v2079, %v2259
        %2261 = vmatmul.f32.gmra.mxu0 %v1860
        %v2262 = vpop.f32.mrf.mxu0
        %v2263 = vadd.f32 %v2079, %v2262
        %2264 = vmatmul.f32.gmra.mxu0 %v1861
        %v2265 = vpop.f32.mrf.mxu0
        %v2266 = vadd.f32 %v2079, %v2265
        %2267 = vmatmul.f32.gmra.mxu0 %v1862
        %v2268 = vpop.f32.mrf.mxu0
        %v2269 = vadd.f32 %v2079, %v2268
        %2270 = vmatmul.f32.gmra.mxu0 %v1863
        %v2271 = vpop.f32.mrf.mxu0
        %v2272 = vadd.f32 %v2079, %v2271
        %2273 = vmatmul.f32.gmra.mxu0 %v1864
        %v2274 = vpop.f32.mrf.mxu0
        %v2275 = vadd.f32 %v2079, %v2274
        %2276 = vmatmul.f32.gmra.mxu0 %v1865
        %v2277 = vpop.f32.mrf.mxu0
        %v2278 = vadd.f32 %v2079, %v2277
        %2279 = vmatmul.f32.gmra.mxu0 %v1866
        %v2280 = vpop.f32.mrf.mxu0
        %v2281 = vadd.f32 %v2079, %v2280
        %2282 = vmatmul.f32.gmra.mxu0 %v1867
        %v2283 = vpop.f32.mrf.mxu0
        %v2284 = vadd.f32 %v2079, %v2283
        %2285 = vmatmul.f32.gmra.mxu0 %v1868
        %v2286 = vpop.f32.mrf.mxu0
        %v2287 = vadd.f32 %v2079, %v2286
        %2288 = vmatmul.f32.gmra.mxu0 %v1869
        %v2289 = vpop.f32.mrf.mxu0
        %v2290 = vadd.f32 %v2079, %v2289
        %2291 = vmatmul.f32.gmra.mxu0 %v1870
        %v2292 = vpop.f32.mrf.mxu0
        %v2293 = vadd.f32 %v2079, %v2292
        %2294 = vdwg.mxu0
        %2295 = vmatpush.msra.mxu0 %v2067
        %2296 = vmatpush.msra.mxu0 %v2066
        %2297 = vmatpush.msra.mxu0 %v2065
        %2298 = vmatpush.msra.mxu0 %v2064
        %2299 = vmatpush.msra.mxu0 %v2063
        %2300 = vmatpush.msra.mxu0 %v2062
        %2301 = vmatpush.msra.mxu0 %v2061
        %2302 = vmatpush.msra.mxu0 %v2060
        %2303 = vmatpush.msra.mxu0 %v2059
        %2304 = vmatpush.msra.mxu0 %v2058
        %2305 = vmatpush.msra.mxu0 %v2057
        %2306 = vmatpush.msra.mxu0 %v2056
        %2307 = vmatpush.msra.mxu0 %v2055
        %2308 = vmatpush.msra.mxu0 %v2054
        %2309 = vmatpush.msra.mxu0 %v2053
        %2310 = vmatpush.msra.mxu0 %v2052
        %2311 = vmatmul.f32.gmra.mxu0 %v1971
        %v2312 = vpop.f32.mrf.mxu0
        %v2313 = vadd.f32 %v2200, %v2312
        %2314 = vmatmul.f32.gmra.mxu0 %v1972
        %v2315 = vpop.f32.mrf.mxu0
        %v2316 = vadd.f32 %v2203, %v2315
        %2317 = vmatmul.f32.gmra.mxu0 %v1973
        %v2318 = vpop.f32.mrf.mxu0
        %v2319 = vadd.f32 %v2206, %v2318
        %2320 = vmatmul.f32.gmra.mxu0 %v1974
        %v2321 = vpop.f32.mrf.mxu0
        %v2322 = vadd.f32 %v2209, %v2321
        %2323 = vmatmul.f32.gmra.mxu0 %v1975
        %v2324 = vpop.f32.mrf.mxu0
        %v2325 = vadd.f32 %v2212, %v2324
        %2326 = vmatmul.f32.gmra.mxu0 %v1976
        %v2327 = vpop.f32.mrf.mxu0
        %v2328 = vadd.f32 %v2215, %v2327
        %2329 = vmatmul.f32.gmra.mxu0 %v1977
        %v2330 = vpop.f32.mrf.mxu0
        %v2331 = vadd.f32 %v2218, %v2330
        %2332 = vmatmul.f32.gmra.mxu0 %v1978
        %v2333 = vpop.f32.mrf.mxu0
        %v2334 = vadd.f32 %v2221, %v2333
        %2335 = vmatmul.f32.gmra.mxu0 %v1979
        %v2336 = vpop.f32.mrf.mxu0
        %v2337 = vadd.f32 %v2224, %v2336
        %2338 = vmatmul.f32.gmra.mxu0 %v1980
        %v2339 = vpop.f32.mrf.mxu0
        %v2340 = vadd.f32 %v2227, %v2339
        %2341 = vmatmul.f32.gmra.mxu0 %v1981
        %v2342 = vpop.f32.mrf.mxu0
        %v2343 = vadd.f32 %v2230, %v2342
        %2344 = vmatmul.f32.gmra.mxu0 %v1982
        %v2345 = vpop.f32.mrf.mxu0
        %v2346 = vadd.f32 %v2233, %v2345
        %2347 = vmatmul.f32.gmra.mxu0 %v1983
        %v2348 = vpop.f32.mrf.mxu0
        %v2349 = vadd.f32 %v2236, %v2348
        %2350 = vmatmul.f32.gmra.mxu0 %v1984
        %v2351 = vpop.f32.mrf.mxu0
        %v2352 = vadd.f32 %v2239, %v2351
        %2353 = vmatmul.f32.gmra.mxu0 %v1985
        %v2354 = vpop.f32.mrf.mxu0
        %v2355 = vadd.f32 %v2242, %v2354
        %2356 = vmatmul.f32.gmra.mxu0 %v1986
        %v2357 = vpop.f32.mrf.mxu0
        %v2358 = vadd.f32 %v2245, %v2357
        %2359 = vmatmul.f32.gmra.mxu0 %v1987
        %v2360 = vpop.f32.mrf.mxu0
        %v2361 = vadd.f32 %v2248, %v2360
        %2362 = vmatmul.f32.gmra.mxu0 %v1988
        %v2363 = vpop.f32.mrf.mxu0
        %v2364 = vadd.f32 %v2251, %v2363
        %2365 = vmatmul.f32.gmra.mxu0 %v1989
        %v2366 = vpop.f32.mrf.mxu0
        %v2367 = vadd.f32 %v2254, %v2366
        %2368 = vmatmul.f32.gmra.mxu0 %v1990
        %v2369 = vpop.f32.mrf.mxu0
        %v2370 = vadd.f32 %v2257, %v2369
        %2371 = vmatmul.f32.gmra.mxu0 %v1991
        %v2372 = vpop.f32.mrf.mxu0
        %v2373 = vadd.f32 %v2260, %v2372
        %2374 = vmatmul.f32.gmra.mxu0 %v1992
        %v2375 = vpop.f32.mrf.mxu0
        %v2376 = vadd.f32 %v2263, %v2375
        %2377 = vmatmul.f32.gmra.mxu0 %v1993
        %v2378 = vpop.f32.mrf.mxu0
        %v2379 = vadd.f32 %v2266, %v2378
        %2380 = vmatmul.f32.gmra.mxu0 %v1994
        %v2381 = vpop.f32.mrf.mxu0
        %v2382 = vadd.f32 %v2269, %v2381
        %2383 = vmatmul.f32.gmra.mxu0 %v1995
        %v2384 = vpop.f32.mrf.mxu0
        %v2385 = vadd.f32 %v2272, %v2384
        %2386 = vmatmul.f32.gmra.mxu0 %v1996
        %v2387 = vpop.f32.mrf.mxu0
        %v2388 = vadd.f32 %v2275, %v2387
        %2389 = vmatmul.f32.gmra.mxu0 %v1997
        %v2390 = vpop.f32.mrf.mxu0
        %v2391 = vadd.f32 %v2278, %v2390
        %2392 = vmatmul.f32.gmra.mxu0 %v1998
        %v2393 = vpop.f32.mrf.mxu0
        %v2394 = vadd.f32 %v2281, %v2393
        %2395 = vmatmul.f32.gmra.mxu0 %v1999
        %v2396 = vpop.f32.mrf.mxu0
        %v2397 = vadd.f32 %v2284, %v2396
        %2398 = vmatmul.f32.gmra.mxu0 %v2000
        %v2399 = vpop.f32.mrf.mxu0
        %v2400 = vadd.f32 %v2287, %v2399
        %2401 = vmatmul.f32.gmra.mxu0 %v2001
        %v2402 = vpop.f32.mrf.mxu0
        %v2403 = vadd.f32 %v2290, %v2402
        %2404 = vmatmul.f32.gmra.mxu0 %v2002
        %v2405 = vpop.f32.mrf.mxu0
        %v2406 = vadd.f32 %v2293, %v2405
        %2407 = vdwg.mxu0
        %2408 = vmatpush.msra.mxu0 0.0
        %2409 = vmatpush.msra.mxu0 0.0
        %2410 = vmatpush.msra.mxu0 0.0
        %2411 = vmatpush.msra.mxu0 0.0
        %2412 = vmatpush.msra.mxu0 0.0
        %2413 = vmatpush.msra.mxu0 0.0
        %2414 = vmatpush.msra.mxu0 0.0
        %2415 = vmatpush.msra.mxu0 %v2180
        %2416 = vmatpush.msra.mxu0 %v2075
        %2417 = vmatpush.msra.mxu0 %v2074
        %2418 = vmatpush.msra.mxu0 %v2073
        %2419 = vmatpush.msra.mxu0 %v2072
        %2420 = vmatpush.msra.mxu0 %v2071
        %2421 = vmatpush.msra.mxu0 %v2070
        %2422 = vmatpush.msra.mxu0 %v2069
        %2423 = vmatpush.msra.mxu0 %v2068
        %2424 = vmatmul.f32.gmra.mxu0 %v2083
        %v2425 = vpop.f32.mrf.mxu0
        %v2426 = vadd.f32 %v2313, %v2425
        %2427 = vmatmul.f32.gmra.mxu0 %v2086
        %v2428 = vpop.f32.mrf.mxu0
        %v2429 = vadd.f32 %v2316, %v2428
        %2430 = vmatmul.f32.gmra.mxu0 %v2089
        %v2431 = vpop.f32.mrf.mxu0
        %v2432 = vadd.f32 %v2319, %v2431
        %2433 = vmatmul.f32.gmra.mxu0 %v2092
        %v2434 = vpop.f32.mrf.mxu0
        %v2435 = vadd.f32 %v2322, %v2434
        %2436 = vmatmul.f32.gmra.mxu0 %v2095
        %v2437 = vpop.f32.mrf.mxu0
        %v2438 = vadd.f32 %v2325, %v2437
        %2439 = vmatmul.f32.gmra.mxu0 %v2098
        %v2440 = vpop.f32.mrf.mxu0
        %v2441 = vadd.f32 %v2328, %v2440
        %2442 = vmatmul.f32.gmra.mxu0 %v2101
        %v2443 = vpop.f32.mrf.mxu0
        %v2444 = vadd.f32 %v2331, %v2443
        %2445 = vmatmul.f32.gmra.mxu0 %v2104
        %v2446 = vpop.f32.mrf.mxu0
        %v2447 = vadd.f32 %v2334, %v2446
        %2448 = vmatmul.f32.gmra.mxu0 %v2107
        %v2449 = vpop.f32.mrf.mxu0
        %v2450 = vadd.f32 %v2337, %v2449
        %2451 = vmatmul.f32.gmra.mxu0 %v2110
        %v2452 = vpop.f32.mrf.mxu0
        %v2453 = vadd.f32 %v2340, %v2452
        %2454 = vmatmul.f32.gmra.mxu0 %v2113
        %v2455 = vpop.f32.mrf.mxu0
        %v2456 = vadd.f32 %v2343, %v2455
        %2457 = vmatmul.f32.gmra.mxu0 %v2116
        %v2458 = vpop.f32.mrf.mxu0
        %v2459 = vadd.f32 %v2346, %v2458
        %2460 = vmatmul.f32.gmra.mxu0 %v2119
        %v2461 = vpop.f32.mrf.mxu0
        %v2462 = vadd.f32 %v2349, %v2461
        %2463 = vmatmul.f32.gmra.mxu0 %v2122
        %v2464 = vpop.f32.mrf.mxu0
        %v2465 = vadd.f32 %v2352, %v2464
        %2466 = vmatmul.f32.gmra.mxu0 %v2125
        %v2467 = vpop.f32.mrf.mxu0
        %v2468 = vadd.f32 %v2355, %v2467
        %2469 = vmatmul.f32.gmra.mxu0 %v2128
        %v2470 = vpop.f32.mrf.mxu0
        %v2471 = vadd.f32 %v2358, %v2470
        %2472 = vmatmul.f32.gmra.mxu0 %v2131
        %v2473 = vpop.f32.mrf.mxu0
        %v2474 = vadd.f32 %v2361, %v2473
        %2475 = vmatmul.f32.gmra.mxu0 %v2134
        %v2476 = vpop.f32.mrf.mxu0
        %v2477 = vadd.f32 %v2364, %v2476
        %2478 = vmatmul.f32.gmra.mxu0 %v2137
        %v2479 = vpop.f32.mrf.mxu0
        %v2480 = vadd.f32 %v2367, %v2479
        %2481 = vmatmul.f32.gmra.mxu0 %v2140
        %v2482 = vpop.f32.mrf.mxu0
        %v2483 = vadd.f32 %v2370, %v2482
        %2484 = vmatmul.f32.gmra.mxu0 %v2143
        %v2485 = vpop.f32.mrf.mxu0
        %v2486 = vadd.f32 %v2373, %v2485
        %2487 = vmatmul.f32.gmra.mxu0 %v2146
        %v2488 = vpop.f32.mrf.mxu0
        %v2489 = vadd.f32 %v2376, %v2488
        %2490 = vmatmul.f32.gmra.mxu0 %v2149
        %v2491 = vpop.f32.mrf.mxu0
        %v2492 = vadd.f32 %v2379, %v2491
        %2493 = vmatmul.f32.gmra.mxu0 %v2152
        %v2494 = vpop.f32.mrf.mxu0
        %v2495 = vadd.f32 %v2382, %v2494
        %2496 = vmatmul.f32.gmra.mxu0 %v2155
        %v2497 = vpop.f32.mrf.mxu0
        %v2498 = vadd.f32 %v2385, %v2497
        %2499 = vmatmul.f32.gmra.mxu0 %v2158
        %v2500 = vpop.f32.mrf.mxu0
        %v2501 = vadd.f32 %v2388, %v2500
        %2502 = vmatmul.f32.gmra.mxu0 %v2161
        %v2503 = vpop.f32.mrf.mxu0
        %v2504 = vadd.f32 %v2391, %v2503
        %2505 = vmatmul.f32.gmra.mxu0 %v2164
        %v2506 = vpop.f32.mrf.mxu0
        %v2507 = vadd.f32 %v2394, %v2506
        %2508 = vmatmul.f32.gmra.mxu0 %v2167
        %v2509 = vpop.f32.mrf.mxu0
        %v2510 = vadd.f32 %v2397, %v2509
        %2511 = vmatmul.f32.gmra.mxu0 %v2170
        %v2512 = vpop.f32.mrf.mxu0
        %v2513 = vadd.f32 %v2400, %v2512
        %2514 = vmatmul.f32.gmra.mxu0 %v2173
        %v2515 = vpop.f32.mrf.mxu0
        %v2516 = vadd.f32 %v2403, %v2515
        %2517 = vmatmul.f32.gmra.mxu0 %v2176
        %v2518 = vpop.f32.mrf.mxu0
        %v2519 = vadd.f32 %v2406, %v2518
        %2520 = vdwg.mxu0
        %v2521 = vlaneseq
        %v2522 = vand.u32 %v2521, 127
        %vm2523 = vcmp.lt.s32.totalorder %v2522, 96
        %v2524 = vxor.u32 %v2426, 2147483648
        %v2525 = vxor.u32 %v2429, 2147483648
        %v2526 = vxor.u32 %v2432, 2147483648
        %v2527 = vxor.u32 %v2435, 2147483648
        %v2528 = vxor.u32 %v2438, 2147483648
        %v2529 = vxor.u32 %v2441, 2147483648
        %v2530 = vxor.u32 %v2444, 2147483648
        %v2531 = vxor.u32 %v2447, 2147483648
        %v2532 = vxor.u32 %v2450, 2147483648
        %v2533 = vxor.u32 %v2453, 2147483648
        %v2534 = vxor.u32 %v2456, 2147483648
        %v2535 = vxor.u32 %v2459, 2147483648
        %v2536 = vxor.u32 %v2462, 2147483648
        %v2537 = vxor.u32 %v2465, 2147483648
        %v2538 = vxor.u32 %v2468, 2147483648
        %v2539 = vxor.u32 %v2471, 2147483648
        %v2540 = vxor.u32 %v2474, 2147483648
        %v2541 = vxor.u32 %v2477, 2147483648
        %v2542 = vxor.u32 %v2480, 2147483648
        %v2543 = vxor.u32 %v2483, 2147483648
        %v2544 = vxor.u32 %v2486, 2147483648
        %v2545 = vxor.u32 %v2489, 2147483648
        %v2546 = vxor.u32 %v2492, 2147483648
        %v2547 = vxor.u32 %v2495, 2147483648
        %v2548 = vxor.u32 %v2498, 2147483648
        %v2549 = vxor.u32 %v2501, 2147483648
        %v2550 = vxor.u32 %v2504, 2147483648
        %v2551 = vxor.u32 %v2507, 2147483648
        %v2552 = vxor.u32 %v2510, 2147483648
        %v2553 = vxor.u32 %v2513, 2147483648
        %v2554 = vxor.u32 %v2516, 2147483648
        %v2555 = vxor.u32 %v2519, 2147483648
        %v2556 = vmul.f32 %v2524, 1.442695
        %v2557 = vpow.pop %v2556
        %v2558 = vmul.f32 %v2525, 1.442695
        %v2559 = vpow.pop %v2558
        %v2560 = vmul.f32 %v2526, 1.442695
        %v2561 = vpow.pop %v2560
        %v2562 = vmul.f32 %v2527, 1.442695
        %v2563 = vpow.pop %v2562
        %v2564 = vmul.f32 %v2528, 1.442695
        %v2565 = vpow.pop %v2564
        %v2566 = vmul.f32 %v2529, 1.442695
        %v2567 = vpow.pop %v2566
        %v2568 = vmul.f32 %v2530, 1.442695
        %v2569 = vpow.pop %v2568
        %v2570 = vmul.f32 %v2531, 1.442695
        %v2571 = vpow.pop %v2570
        %v2572 = vmul.f32 %v2532, 1.442695
        %v2573 = vpow.pop %v2572
        %v2574 = vmul.f32 %v2533, 1.442695
        %v2575 = vpow.pop %v2574
        %v2576 = vmul.f32 %v2534, 1.442695
        %v2577 = vpow.pop %v2576
        %v2578 = vmul.f32 %v2535, 1.442695
        %v2579 = vpow.pop %v2578
        %v2580 = vmul.f32 %v2536, 1.442695
        %v2581 = vpow.pop %v2580
        %v2582 = vmul.f32 %v2537, 1.442695
        %v2583 = vpow.pop %v2582
        %v2584 = vmul.f32 %v2538, 1.442695
        %v2585 = vpow.pop %v2584
        %v2586 = vmul.f32 %v2539, 1.442695
        %v2587 = vpow.pop %v2586
        %v2588 = vmul.f32 %v2540, 1.442695
        %v2589 = vpow.pop %v2588
        %v2590 = vmul.f32 %v2541, 1.442695
        %v2591 = vpow.pop %v2590
        %v2592 = vmul.f32 %v2542, 1.442695
        %v2593 = vpow.pop %v2592
        %v2594 = vmul.f32 %v2543, 1.442695
        %v2595 = vpow.pop %v2594
        %v2596 = vmul.f32 %v2544, 1.442695
        %v2597 = vpow.pop %v2596
        %v2598 = vmul.f32 %v2545, 1.442695
        %v2599 = vpow.pop %v2598
        %v2600 = vmul.f32 %v2546, 1.442695
        %v2601 = vpow.pop %v2600
        %v2602 = vmul.f32 %v2547, 1.442695
        %v2603 = vpow.pop %v2602
        %v2604 = vmul.f32 %v2548, 1.442695
        %v2605 = vpow.pop %v2604
        %v2606 = vmul.f32 %v2549, 1.442695
        %v2607 = vpow.pop %v2606
        %v2608 = vmul.f32 %v2550, 1.442695
        %v2609 = vpow.pop %v2608
        %v2610 = vmul.f32 %v2551, 1.442695
        %v2611 = vpow.pop %v2610
        %v2612 = vmul.f32 %v2552, 1.442695
        %v2613 = vpow.pop %v2612
        %v2614 = vmul.f32 %v2553, 1.442695
        %v2615 = vpow.pop %v2614
        %v2616 = vmul.f32 %v2554, 1.442695
        %v2617 = vpow.pop %v2616
        %v2618 = vmul.f32 %v2555, 1.442695
        %v2619 = vpow.pop %v2618
        %v2620 = vadd.f32 %v2557, 1.0
        %v2621 = vadd.f32 %v2559, 1.0
        %v2622 = vadd.f32 %v2561, 1.0
        %v2623 = vadd.f32 %v2563, 1.0
        %v2624 = vadd.f32 %v2565, 1.0
        %v2625 = vadd.f32 %v2567, 1.0
        %v2626 = vadd.f32 %v2569, 1.0
        %v2627 = vadd.f32 %v2571, 1.0
        %v2628 = vadd.f32 %v2573, 1.0
        %v2629 = vadd.f32 %v2575, 1.0
        %v2630 = vadd.f32 %v2577, 1.0
        %v2631 = vadd.f32 %v2579, 1.0
        %v2632 = vadd.f32 %v2581, 1.0
        %v2633 = vadd.f32 %v2583, 1.0
        %v2634 = vadd.f32 %v2585, 1.0
        %v2635 = vadd.f32 %v2587, 1.0
        %v2636 = vadd.f32 %v2589, 1.0
        %v2637 = vadd.f32 %v2591, 1.0
        %v2638 = vadd.f32 %v2593, 1.0
        %v2639 = vadd.f32 %v2595, 1.0
        %v2640 = vadd.f32 %v2597, 1.0
        %v2641 = vadd.f32 %v2599, 1.0
        %v2642 = vadd.f32 %v2601, 1.0
        %v2643 = vadd.f32 %v2603, 1.0
        %v2644 = vadd.f32 %v2605, 1.0
        %v2645 = vadd.f32 %v2607, 1.0
        %v2646 = vadd.f32 %v2609, 1.0
        %v2647 = vadd.f32 %v2611, 1.0
        %v2648 = vadd.f32 %v2613, 1.0
        %v2649 = vadd.f32 %v2615, 1.0
        %v2650 = vadd.f32 %v2617, 1.0
        %v2651 = vadd.f32 %v2619, 1.0
        %v2652 = vrcp.pop %v2620
        %v2653 = vmul.f32 %v2620, %v2652
        %v2654 = vsub.f32 1.0, %v2653
        %v2655 = vmul.f32 %v2652, %v2654
        %v2656 = vadd.f32 %v2652, %v2655
        %vm2657 = vweird.f32 %v2620
        %vm2658 = vweird.f32 %v2652
        %vm2659 = vmor %vm2657, %vm2658
        %v2660 = vsel %vm2659, %v2652, %v2656
        %v2661 = vand.u32 2147483647, %v2620
        %vm2662 = vcmp.eq.f32.partialorder %v2661, 8.507059e+37
        %v2663 = vand.u32 %v2620, 2147483648
        %v2664 = vor.u32 1.1754944e-38, %v2663
        %v2665 = vsel %vm2662, %v2664, %v2660
        %v2666 = vmul.f32 1.0, %v2665
        %v2667 = vrcp.pop %v2621
        %v2668 = vmul.f32 %v2621, %v2667
        %v2669 = vsub.f32 1.0, %v2668
        %v2670 = vmul.f32 %v2667, %v2669
        %v2671 = vadd.f32 %v2667, %v2670
        %vm2672 = vweird.f32 %v2621
        %vm2673 = vweird.f32 %v2667
        %vm2674 = vmor %vm2672, %vm2673
        %v2675 = vsel %vm2674, %v2667, %v2671
        %v2676 = vand.u32 2147483647, %v2621
        %vm2677 = vcmp.eq.f32.partialorder %v2676, 8.507059e+37
        %v2678 = vand.u32 %v2621, 2147483648
        %v2679 = vor.u32 1.1754944e-38, %v2678
        %v2680 = vsel %vm2677, %v2679, %v2675
        %v2681 = vmul.f32 1.0, %v2680
        %v2682 = vrcp.pop %v2622
        %v2683 = vmul.f32 %v2622, %v2682
        %v2684 = vsub.f32 1.0, %v2683
        %v2685 = vmul.f32 %v2682, %v2684
        %v2686 = vadd.f32 %v2682, %v2685
        %vm2687 = vweird.f32 %v2622
        %vm2688 = vweird.f32 %v2682
        %vm2689 = vmor %vm2687, %vm2688
        %v2690 = vsel %vm2689, %v2682, %v2686
        %v2691 = vand.u32 2147483647, %v2622
        %vm2692 = vcmp.eq.f32.partialorder %v2691, 8.507059e+37
        %v2693 = vand.u32 %v2622, 2147483648
        %v2694 = vor.u32 1.1754944e-38, %v2693
        %v2695 = vsel %vm2692, %v2694, %v2690
        %v2696 = vmul.f32 1.0, %v2695
        %v2697 = vrcp.pop %v2623
        %v2698 = vmul.f32 %v2623, %v2697
        %v2699 = vsub.f32 1.0, %v2698
        %v2700 = vmul.f32 %v2697, %v2699
        %v2701 = vadd.f32 %v2697, %v2700
        %vm2702 = vweird.f32 %v2623
        %vm2703 = vweird.f32 %v2697
        %vm2704 = vmor %vm2702, %vm2703
        %v2705 = vsel %vm2704, %v2697, %v2701
        %v2706 = vand.u32 2147483647, %v2623
        %vm2707 = vcmp.eq.f32.partialorder %v2706, 8.507059e+37
        %v2708 = vand.u32 %v2623, 2147483648
        %v2709 = vor.u32 1.1754944e-38, %v2708
        %v2710 = vsel %vm2707, %v2709, %v2705
        %v2711 = vmul.f32 1.0, %v2710
        %v2712 = vrcp.pop %v2624
        %v2713 = vmul.f32 %v2624, %v2712
        %v2714 = vsub.f32 1.0, %v2713
        %v2715 = vmul.f32 %v2712, %v2714
        %v2716 = vadd.f32 %v2712, %v2715
        %vm2717 = vweird.f32 %v2624
        %vm2718 = vweird.f32 %v2712
        %vm2719 = vmor %vm2717, %vm2718
        %v2720 = vsel %vm2719, %v2712, %v2716
        %v2721 = vand.u32 2147483647, %v2624
        %vm2722 = vcmp.eq.f32.partialorder %v2721, 8.507059e+37
        %v2723 = vand.u32 %v2624, 2147483648
        %v2724 = vor.u32 1.1754944e-38, %v2723
        %v2725 = vsel %vm2722, %v2724, %v2720
        %v2726 = vmul.f32 1.0, %v2725
        %v2727 = vrcp.pop %v2625
        %v2728 = vmul.f32 %v2625, %v2727
        %v2729 = vsub.f32 1.0, %v2728
        %v2730 = vmul.f32 %v2727, %v2729
        %v2731 = vadd.f32 %v2727, %v2730
        %vm2732 = vweird.f32 %v2625
        %vm2733 = vweird.f32 %v2727
        %vm2734 = vmor %vm2732, %vm2733
        %v2735 = vsel %vm2734, %v2727, %v2731
        %v2736 = vand.u32 2147483647, %v2625
        %vm2737 = vcmp.eq.f32.partialorder %v2736, 8.507059e+37
        %v2738 = vand.u32 %v2625, 2147483648
        %v2739 = vor.u32 1.1754944e-38, %v2738
        %v2740 = vsel %vm2737, %v2739, %v2735
        %v2741 = vmul.f32 1.0, %v2740
        %v2742 = vrcp.pop %v2626
        %v2743 = vmul.f32 %v2626, %v2742
        %v2744 = vsub.f32 1.0, %v2743
        %v2745 = vmul.f32 %v2742, %v2744
        %v2746 = vadd.f32 %v2742, %v2745
        %vm2747 = vweird.f32 %v2626
        %vm2748 = vweird.f32 %v2742
        %vm2749 = vmor %vm2747, %vm2748
        %v2750 = vsel %vm2749, %v2742, %v2746
        %v2751 = vand.u32 2147483647, %v2626
        %vm2752 = vcmp.eq.f32.partialorder %v2751, 8.507059e+37
        %v2753 = vand.u32 %v2626, 2147483648
        %v2754 = vor.u32 1.1754944e-38, %v2753
        %v2755 = vsel %vm2752, %v2754, %v2750
        %v2756 = vmul.f32 1.0, %v2755
        %v2757 = vrcp.pop %v2627
        %v2758 = vmul.f32 %v2627, %v2757
        %v2759 = vsub.f32 1.0, %v2758
        %v2760 = vmul.f32 %v2757, %v2759
        %v2761 = vadd.f32 %v2757, %v2760
        %vm2762 = vweird.f32 %v2627
        %vm2763 = vweird.f32 %v2757
        %vm2764 = vmor %vm2762, %vm2763
        %v2765 = vsel %vm2764, %v2757, %v2761
        %v2766 = vand.u32 2147483647, %v2627
        %vm2767 = vcmp.eq.f32.partialorder %v2766, 8.507059e+37
        %v2768 = vand.u32 %v2627, 2147483648
        %v2769 = vor.u32 1.1754944e-38, %v2768
        %v2770 = vsel %vm2767, %v2769, %v2765
        %v2771 = vmul.f32 1.0, %v2770
        %v2772 = vrcp.pop %v2628
        %v2773 = vmul.f32 %v2628, %v2772
        %v2774 = vsub.f32 1.0, %v2773
        %v2775 = vmul.f32 %v2772, %v2774
        %v2776 = vadd.f32 %v2772, %v2775
        %vm2777 = vweird.f32 %v2628
        %vm2778 = vweird.f32 %v2772
        %vm2779 = vmor %vm2777, %vm2778
        %v2780 = vsel %vm2779, %v2772, %v2776
        %v2781 = vand.u32 2147483647, %v2628
        %vm2782 = vcmp.eq.f32.partialorder %v2781, 8.507059e+37
        %v2783 = vand.u32 %v2628, 2147483648
        %v2784 = vor.u32 1.1754944e-38, %v2783
        %v2785 = vsel %vm2782, %v2784, %v2780
        %v2786 = vmul.f32 1.0, %v2785
        %v2787 = vrcp.pop %v2629
        %v2788 = vmul.f32 %v2629, %v2787
        %v2789 = vsub.f32 1.0, %v2788
        %v2790 = vmul.f32 %v2787, %v2789
        %v2791 = vadd.f32 %v2787, %v2790
        %vm2792 = vweird.f32 %v2629
        %vm2793 = vweird.f32 %v2787
        %vm2794 = vmor %vm2792, %vm2793
        %v2795 = vsel %vm2794, %v2787, %v2791
        %v2796 = vand.u32 2147483647, %v2629
        %vm2797 = vcmp.eq.f32.partialorder %v2796, 8.507059e+37
        %v2798 = vand.u32 %v2629, 2147483648
        %v2799 = vor.u32 1.1754944e-38, %v2798
        %v2800 = vsel %vm2797, %v2799, %v2795
        %v2801 = vmul.f32 1.0, %v2800
        %v2802 = vrcp.pop %v2630
        %v2803 = vmul.f32 %v2630, %v2802
        %v2804 = vsub.f32 1.0, %v2803
        %v2805 = vmul.f32 %v2802, %v2804
        %v2806 = vadd.f32 %v2802, %v2805
        %vm2807 = vweird.f32 %v2630
        %vm2808 = vweird.f32 %v2802
        %vm2809 = vmor %vm2807, %vm2808
        %v2810 = vsel %vm2809, %v2802, %v2806
        %v2811 = vand.u32 2147483647, %v2630
        %vm2812 = vcmp.eq.f32.partialorder %v2811, 8.507059e+37
        %v2813 = vand.u32 %v2630, 2147483648
        %v2814 = vor.u32 1.1754944e-38, %v2813
        %v2815 = vsel %vm2812, %v2814, %v2810
        %v2816 = vmul.f32 1.0, %v2815
        %v2817 = vrcp.pop %v2631
        %v2818 = vmul.f32 %v2631, %v2817
        %v2819 = vsub.f32 1.0, %v2818
        %v2820 = vmul.f32 %v2817, %v2819
        %v2821 = vadd.f32 %v2817, %v2820
        %vm2822 = vweird.f32 %v2631
        %vm2823 = vweird.f32 %v2817
        %vm2824 = vmor %vm2822, %vm2823
        %v2825 = vsel %vm2824, %v2817, %v2821
        %v2826 = vand.u32 2147483647, %v2631
        %vm2827 = vcmp.eq.f32.partialorder %v2826, 8.507059e+37
        %v2828 = vand.u32 %v2631, 2147483648
        %v2829 = vor.u32 1.1754944e-38, %v2828
        %v2830 = vsel %vm2827, %v2829, %v2825
        %v2831 = vmul.f32 1.0, %v2830
        %v2832 = vrcp.pop %v2632
        %v2833 = vmul.f32 %v2632, %v2832
        %v2834 = vsub.f32 1.0, %v2833
        %v2835 = vmul.f32 %v2832, %v2834
        %v2836 = vadd.f32 %v2832, %v2835
        %vm2837 = vweird.f32 %v2632
        %vm2838 = vweird.f32 %v2832
        %vm2839 = vmor %vm2837, %vm2838
        %v2840 = vsel %vm2839, %v2832, %v2836
        %v2841 = vand.u32 2147483647, %v2632
        %vm2842 = vcmp.eq.f32.partialorder %v2841, 8.507059e+37
        %v2843 = vand.u32 %v2632, 2147483648
        %v2844 = vor.u32 1.1754944e-38, %v2843
        %v2845 = vsel %vm2842, %v2844, %v2840
        %v2846 = vmul.f32 1.0, %v2845
        %v2847 = vrcp.pop %v2633
        %v2848 = vmul.f32 %v2633, %v2847
        %v2849 = vsub.f32 1.0, %v2848
        %v2850 = vmul.f32 %v2847, %v2849
        %v2851 = vadd.f32 %v2847, %v2850
        %vm2852 = vweird.f32 %v2633
        %vm2853 = vweird.f32 %v2847
        %vm2854 = vmor %vm2852, %vm2853
        %v2855 = vsel %vm2854, %v2847, %v2851
        %v2856 = vand.u32 2147483647, %v2633
        %vm2857 = vcmp.eq.f32.partialorder %v2856, 8.507059e+37
        %v2858 = vand.u32 %v2633, 2147483648
        %v2859 = vor.u32 1.1754944e-38, %v2858
        %v2860 = vsel %vm2857, %v2859, %v2855
        %v2861 = vmul.f32 1.0, %v2860
        %v2862 = vrcp.pop %v2634
        %v2863 = vmul.f32 %v2634, %v2862
        %v2864 = vsub.f32 1.0, %v2863
        %v2865 = vmul.f32 %v2862, %v2864
        %v2866 = vadd.f32 %v2862, %v2865
        %vm2867 = vweird.f32 %v2634
        %vm2868 = vweird.f32 %v2862
        %vm2869 = vmor %vm2867, %vm2868
        %v2870 = vsel %vm2869, %v2862, %v2866
        %v2871 = vand.u32 2147483647, %v2634
        %vm2872 = vcmp.eq.f32.partialorder %v2871, 8.507059e+37
        %v2873 = vand.u32 %v2634, 2147483648
        %v2874 = vor.u32 1.1754944e-38, %v2873
        %v2875 = vsel %vm2872, %v2874, %v2870
        %v2876 = vmul.f32 1.0, %v2875
        %v2877 = vrcp.pop %v2635
        %v2878 = vmul.f32 %v2635, %v2877
        %v2879 = vsub.f32 1.0, %v2878
        %v2880 = vmul.f32 %v2877, %v2879
        %v2881 = vadd.f32 %v2877, %v2880
        %vm2882 = vweird.f32 %v2635
        %vm2883 = vweird.f32 %v2877
        %vm2884 = vmor %vm2882, %vm2883
        %v2885 = vsel %vm2884, %v2877, %v2881
        %v2886 = vand.u32 2147483647, %v2635
        %vm2887 = vcmp.eq.f32.partialorder %v2886, 8.507059e+37
        %v2888 = vand.u32 %v2635, 2147483648
        %v2889 = vor.u32 1.1754944e-38, %v2888
        %v2890 = vsel %vm2887, %v2889, %v2885
        %v2891 = vmul.f32 1.0, %v2890
        %v2892 = vrcp.pop %v2636
        %v2893 = vmul.f32 %v2636, %v2892
        %v2894 = vsub.f32 1.0, %v2893
        %v2895 = vmul.f32 %v2892, %v2894
        %v2896 = vadd.f32 %v2892, %v2895
        %vm2897 = vweird.f32 %v2636
        %vm2898 = vweird.f32 %v2892
        %vm2899 = vmor %vm2897, %vm2898
        %v2900 = vsel %vm2899, %v2892, %v2896
        %v2901 = vand.u32 2147483647, %v2636
        %vm2902 = vcmp.eq.f32.partialorder %v2901, 8.507059e+37
        %v2903 = vand.u32 %v2636, 2147483648
        %v2904 = vor.u32 1.1754944e-38, %v2903
        %v2905 = vsel %vm2902, %v2904, %v2900
        %v2906 = vmul.f32 1.0, %v2905
        %v2907 = vrcp.pop %v2637
        %v2908 = vmul.f32 %v2637, %v2907
        %v2909 = vsub.f32 1.0, %v2908
        %v2910 = vmul.f32 %v2907, %v2909
        %v2911 = vadd.f32 %v2907, %v2910
        %vm2912 = vweird.f32 %v2637
        %vm2913 = vweird.f32 %v2907
        %vm2914 = vmor %vm2912, %vm2913
        %v2915 = vsel %vm2914, %v2907, %v2911
        %v2916 = vand.u32 2147483647, %v2637
        %vm2917 = vcmp.eq.f32.partialorder %v2916, 8.507059e+37
        %v2918 = vand.u32 %v2637, 2147483648
        %v2919 = vor.u32 1.1754944e-38, %v2918
        %v2920 = vsel %vm2917, %v2919, %v2915
        %v2921 = vmul.f32 1.0, %v2920
        %v2922 = vrcp.pop %v2638
        %v2923 = vmul.f32 %v2638, %v2922
        %v2924 = vsub.f32 1.0, %v2923
        %v2925 = vmul.f32 %v2922, %v2924
        %v2926 = vadd.f32 %v2922, %v2925
        %vm2927 = vweird.f32 %v2638
        %vm2928 = vweird.f32 %v2922
        %vm2929 = vmor %vm2927, %vm2928
        %v2930 = vsel %vm2929, %v2922, %v2926
        %v2931 = vand.u32 2147483647, %v2638
        %vm2932 = vcmp.eq.f32.partialorder %v2931, 8.507059e+37
        %v2933 = vand.u32 %v2638, 2147483648
        %v2934 = vor.u32 1.1754944e-38, %v2933
        %v2935 = vsel %vm2932, %v2934, %v2930
        %v2936 = vmul.f32 1.0, %v2935
        %v2937 = vrcp.pop %v2639
        %v2938 = vmul.f32 %v2639, %v2937
        %v2939 = vsub.f32 1.0, %v2938
        %v2940 = vmul.f32 %v2937, %v2939
        %v2941 = vadd.f32 %v2937, %v2940
        %vm2942 = vweird.f32 %v2639
        %vm2943 = vweird.f32 %v2937
        %vm2944 = vmor %vm2942, %vm2943
        %v2945 = vsel %vm2944, %v2937, %v2941
        %v2946 = vand.u32 2147483647, %v2639
        %vm2947 = vcmp.eq.f32.partialorder %v2946, 8.507059e+37
        %v2948 = vand.u32 %v2639, 2147483648
        %v2949 = vor.u32 1.1754944e-38, %v2948
        %v2950 = vsel %vm2947, %v2949, %v2945
        %v2951 = vmul.f32 1.0, %v2950
        %v2952 = vrcp.pop %v2640
        %v2953 = vmul.f32 %v2640, %v2952
        %v2954 = vsub.f32 1.0, %v2953
        %v2955 = vmul.f32 %v2952, %v2954
        %v2956 = vadd.f32 %v2952, %v2955
        %vm2957 = vweird.f32 %v2640
        %vm2958 = vweird.f32 %v2952
        %vm2959 = vmor %vm2957, %vm2958
        %v2960 = vsel %vm2959, %v2952, %v2956
        %v2961 = vand.u32 2147483647, %v2640
        %vm2962 = vcmp.eq.f32.partialorder %v2961, 8.507059e+37
        %v2963 = vand.u32 %v2640, 2147483648
        %v2964 = vor.u32 1.1754944e-38, %v2963
        %v2965 = vsel %vm2962, %v2964, %v2960
        %v2966 = vmul.f32 1.0, %v2965
        %v2967 = vrcp.pop %v2641
        %v2968 = vmul.f32 %v2641, %v2967
        %v2969 = vsub.f32 1.0, %v2968
        %v2970 = vmul.f32 %v2967, %v2969
        %v2971 = vadd.f32 %v2967, %v2970
        %vm2972 = vweird.f32 %v2641
        %vm2973 = vweird.f32 %v2967
        %vm2974 = vmor %vm2972, %vm2973
        %v2975 = vsel %vm2974, %v2967, %v2971
        %v2976 = vand.u32 2147483647, %v2641
        %vm2977 = vcmp.eq.f32.partialorder %v2976, 8.507059e+37
        %v2978 = vand.u32 %v2641, 2147483648
        %v2979 = vor.u32 1.1754944e-38, %v2978
        %v2980 = vsel %vm2977, %v2979, %v2975
        %v2981 = vmul.f32 1.0, %v2980
        %v2982 = vrcp.pop %v2642
        %v2983 = vmul.f32 %v2642, %v2982
        %v2984 = vsub.f32 1.0, %v2983
        %v2985 = vmul.f32 %v2982, %v2984
        %v2986 = vadd.f32 %v2982, %v2985
        %vm2987 = vweird.f32 %v2642
        %vm2988 = vweird.f32 %v2982
        %vm2989 = vmor %vm2987, %vm2988
        %v2990 = vsel %vm2989, %v2982, %v2986
        %v2991 = vand.u32 2147483647, %v2642
        %vm2992 = vcmp.eq.f32.partialorder %v2991, 8.507059e+37
        %v2993 = vand.u32 %v2642, 2147483648
        %v2994 = vor.u32 1.1754944e-38, %v2993
        %v2995 = vsel %vm2992, %v2994, %v2990
        %v2996 = vmul.f32 1.0, %v2995
        %v2997 = vrcp.pop %v2643
        %v2998 = vmul.f32 %v2643, %v2997
        %v2999 = vsub.f32 1.0, %v2998
        %v3000 = vmul.f32 %v2997, %v2999
        %v3001 = vadd.f32 %v2997, %v3000
        %vm3002 = vweird.f32 %v2643
        %vm3003 = vweird.f32 %v2997
        %vm3004 = vmor %vm3002, %vm3003
        %v3005 = vsel %vm3004, %v2997, %v3001
        %v3006 = vand.u32 2147483647, %v2643
        %vm3007 = vcmp.eq.f32.partialorder %v3006, 8.507059e+37
        %v3008 = vand.u32 %v2643, 2147483648
        %v3009 = vor.u32 1.1754944e-38, %v3008
        %v3010 = vsel %vm3007, %v3009, %v3005
        %v3011 = vmul.f32 1.0, %v3010
        %v3012 = vrcp.pop %v2644
        %v3013 = vmul.f32 %v2644, %v3012
        %v3014 = vsub.f32 1.0, %v3013
        %v3015 = vmul.f32 %v3012, %v3014
        %v3016 = vadd.f32 %v3012, %v3015
        %vm3017 = vweird.f32 %v2644
        %vm3018 = vweird.f32 %v3012
        %vm3019 = vmor %vm3017, %vm3018
        %v3020 = vsel %vm3019, %v3012, %v3016
        %v3021 = vand.u32 2147483647, %v2644
        %vm3022 = vcmp.eq.f32.partialorder %v3021, 8.507059e+37
        %v3023 = vand.u32 %v2644, 2147483648
        %v3024 = vor.u32 1.1754944e-38, %v3023
        %v3025 = vsel %vm3022, %v3024, %v3020
        %v3026 = vmul.f32 1.0, %v3025
        %v3027 = vrcp.pop %v2645
        %v3028 = vmul.f32 %v2645, %v3027
        %v3029 = vsub.f32 1.0, %v3028
        %v3030 = vmul.f32 %v3027, %v3029
        %v3031 = vadd.f32 %v3027, %v3030
        %vm3032 = vweird.f32 %v2645
        %vm3033 = vweird.f32 %v3027
        %vm3034 = vmor %vm3032, %vm3033
        %v3035 = vsel %vm3034, %v3027, %v3031
        %v3036 = vand.u32 2147483647, %v2645
        %vm3037 = vcmp.eq.f32.partialorder %v3036, 8.507059e+37
        %v3038 = vand.u32 %v2645, 2147483648
        %v3039 = vor.u32 1.1754944e-38, %v3038
        %v3040 = vsel %vm3037, %v3039, %v3035
        %v3041 = vmul.f32 1.0, %v3040
        %v3042 = vrcp.pop %v2646
        %v3043 = vmul.f32 %v2646, %v3042
        %v3044 = vsub.f32 1.0, %v3043
        %v3045 = vmul.f32 %v3042, %v3044
        %v3046 = vadd.f32 %v3042, %v3045
        %vm3047 = vweird.f32 %v2646
        %vm3048 = vweird.f32 %v3042
        %vm3049 = vmor %vm3047, %vm3048
        %v3050 = vsel %vm3049, %v3042, %v3046
        %v3051 = vand.u32 2147483647, %v2646
        %vm3052 = vcmp.eq.f32.partialorder %v3051, 8.507059e+37
        %v3053 = vand.u32 %v2646, 2147483648
        %v3054 = vor.u32 1.1754944e-38, %v3053
        %v3055 = vsel %vm3052, %v3054, %v3050
        %v3056 = vmul.f32 1.0, %v3055
        %v3057 = vrcp.pop %v2647
        %v3058 = vmul.f32 %v2647, %v3057
        %v3059 = vsub.f32 1.0, %v3058
        %v3060 = vmul.f32 %v3057, %v3059
        %v3061 = vadd.f32 %v3057, %v3060
        %vm3062 = vweird.f32 %v2647
        %vm3063 = vweird.f32 %v3057
        %vm3064 = vmor %vm3062, %vm3063
        %v3065 = vsel %vm3064, %v3057, %v3061
        %v3066 = vand.u32 2147483647, %v2647
        %vm3067 = vcmp.eq.f32.partialorder %v3066, 8.507059e+37
        %v3068 = vand.u32 %v2647, 2147483648
        %v3069 = vor.u32 1.1754944e-38, %v3068
        %v3070 = vsel %vm3067, %v3069, %v3065
        %v3071 = vmul.f32 1.0, %v3070
        %v3072 = vrcp.pop %v2648
        %v3073 = vmul.f32 %v2648, %v3072
        %v3074 = vsub.f32 1.0, %v3073
        %v3075 = vmul.f32 %v3072, %v3074
        %v3076 = vadd.f32 %v3072, %v3075
        %vm3077 = vweird.f32 %v2648
        %vm3078 = vweird.f32 %v3072
        %vm3079 = vmor %vm3077, %vm3078
        %v3080 = vsel %vm3079, %v3072, %v3076
        %v3081 = vand.u32 2147483647, %v2648
        %vm3082 = vcmp.eq.f32.partialorder %v3081, 8.507059e+37
        %v3083 = vand.u32 %v2648, 2147483648
        %v3084 = vor.u32 1.1754944e-38, %v3083
        %v3085 = vsel %vm3082, %v3084, %v3080
        %v3086 = vmul.f32 1.0, %v3085
        %v3087 = vrcp.pop %v2649
        %v3088 = vmul.f32 %v2649, %v3087
        %v3089 = vsub.f32 1.0, %v3088
        %v3090 = vmul.f32 %v3087, %v3089
        %v3091 = vadd.f32 %v3087, %v3090
        %vm3092 = vweird.f32 %v2649
        %vm3093 = vweird.f32 %v3087
        %vm3094 = vmor %vm3092, %vm3093
        %v3095 = vsel %vm3094, %v3087, %v3091
        %v3096 = vand.u32 2147483647, %v2649
        %vm3097 = vcmp.eq.f32.partialorder %v3096, 8.507059e+37
        %v3098 = vand.u32 %v2649, 2147483648
        %v3099 = vor.u32 1.1754944e-38, %v3098
        %v3100 = vsel %vm3097, %v3099, %v3095
        %v3101 = vmul.f32 1.0, %v3100
        %v3102 = vrcp.pop %v2650
        %v3103 = vmul.f32 %v2650, %v3102
        %v3104 = vsub.f32 1.0, %v3103
        %v3105 = vmul.f32 %v3102, %v3104
        %v3106 = vadd.f32 %v3102, %v3105
        %vm3107 = vweird.f32 %v2650
        %vm3108 = vweird.f32 %v3102
        %vm3109 = vmor %vm3107, %vm3108
        %v3110 = vsel %vm3109, %v3102, %v3106
        %v3111 = vand.u32 2147483647, %v2650
        %vm3112 = vcmp.eq.f32.partialorder %v3111, 8.507059e+37
        %v3113 = vand.u32 %v2650, 2147483648
        %v3114 = vor.u32 1.1754944e-38, %v3113
        %v3115 = vsel %vm3112, %v3114, %v3110
        %v3116 = vmul.f32 1.0, %v3115
        %v3117 = vrcp.pop %v2651
        %v3118 = vmul.f32 %v2651, %v3117
        %v3119 = vsub.f32 1.0, %v3118
        %v3120 = vmul.f32 %v3117, %v3119
        %v3121 = vadd.f32 %v3117, %v3120
        %vm3122 = vweird.f32 %v2651
        %vm3123 = vweird.f32 %v3117
        %vm3124 = vmor %vm3122, %vm3123
        %v3125 = vsel %vm3124, %v3117, %v3121
        %v3126 = vand.u32 2147483647, %v2651
        %vm3127 = vcmp.eq.f32.partialorder %v3126, 8.507059e+37
        %v3128 = vand.u32 %v2651, 2147483648
        %v3129 = vor.u32 1.1754944e-38, %v3128
        %v3130 = vsel %vm3127, %v3129, %v3125
        %v3131 = vmul.f32 1.0, %v3130
        %v3132 = vtanh.pop %v2426
        %v3133 = vtanh.pop %v2429
        %v3134 = vtanh.pop %v2432
        %v3135 = vtanh.pop %v2435
        %v3136 = vtanh.pop %v2438
        %v3137 = vtanh.pop %v2441
        %v3138 = vtanh.pop %v2444
        %v3139 = vtanh.pop %v2447
        %v3140 = vtanh.pop %v2450
        %v3141 = vtanh.pop %v2453
        %v3142 = vtanh.pop %v2456
        %v3143 = vtanh.pop %v2459
        %v3144 = vtanh.pop %v2462
        %v3145 = vtanh.pop %v2465
        %v3146 = vtanh.pop %v2468
        %v3147 = vtanh.pop %v2471
        %v3148 = vtanh.pop %v2474
        %v3149 = vtanh.pop %v2477
        %v3150 = vtanh.pop %v2480
        %v3151 = vtanh.pop %v2483
        %v3152 = vtanh.pop %v2486
        %v3153 = vtanh.pop %v2489
        %v3154 = vtanh.pop %v2492
        %v3155 = vtanh.pop %v2495
        %v3156 = vtanh.pop %v2498
        %v3157 = vtanh.pop %v2501
        %v3158 = vtanh.pop %v2504
        %v3159 = vtanh.pop %v2507
        %v3160 = vtanh.pop %v2510
        %v3161 = vtanh.pop %v2513
        %v3162 = vtanh.pop %v2516
        %v3163 = vtanh.pop %v2519
        %v3164 = vsel %vm2523, %v2666, %v3132
        %v3165 = vsel %vm2523, %v2681, %v3133
        %v3166 = vsel %vm2523, %v2696, %v3134
        %v3167 = vsel %vm2523, %v2711, %v3135
        %v3168 = vsel %vm2523, %v2726, %v3136
        %v3169 = vsel %vm2523, %v2741, %v3137
        %v3170 = vsel %vm2523, %v2756, %v3138
        %v3171 = vsel %vm2523, %v2771, %v3139
        %v3172 = vsel %vm2523, %v2786, %v3140
        %v3173 = vsel %vm2523, %v2801, %v3141
        %v3174 = vsel %vm2523, %v2816, %v3142
        %v3175 = vsel %vm2523, %v2831, %v3143
        %v3176 = vsel %vm2523, %v2846, %v3144
        %v3177 = vsel %vm2523, %v2861, %v3145
        %v3178 = vsel %vm2523, %v2876, %v3146
        %v3179 = vsel %vm2523, %v2891, %v3147
        %v3180 = vsel %vm2523, %v2906, %v3148
        %v3181 = vsel %vm2523, %v2921, %v3149
        %v3182 = vsel %vm2523, %v2936, %v3150
        %v3183 = vsel %vm2523, %v2951, %v3151
        %v3184 = vsel %vm2523, %v2966, %v3152
        %v3185 = vsel %vm2523, %v2981, %v3153
        %v3186 = vsel %vm2523, %v2996, %v3154
        %v3187 = vsel %vm2523, %v3011, %v3155
        %v3188 = vsel %vm2523, %v3026, %v3156
        %v3189 = vsel %vm2523, %v3041, %v3157
        %v3190 = vsel %vm2523, %v3056, %v3158
        %v3191 = vsel %vm2523, %v3071, %v3159
        %v3192 = vsel %vm2523, %v3086, %v3160
        %v3193 = vsel %vm2523, %v3101, %v3161
        %v3194 = vsel %vm2523, %v3116, %v3162
        %v3195 = vsel %vm2523, %v3131, %v3163
        %v3196 = vld [vmem:[#allocation4] sm:$0xff]
        %v3197 = vld [vmem:[#allocation4 + $0x8] sm:$0xff]
        %v3198 = vld [vmem:[#allocation4 + $0x10] sm:$0xff]
        %v3199 = vld [vmem:[#allocation4 + $0x18] sm:$0xff]
        %v3200 = vld [vmem:[#allocation4 + $0x20] sm:$0xff]
        %v3201 = vld [vmem:[#allocation4 + $0x28] sm:$0xff]
        %v3202 = vld [vmem:[#allocation4 + $0x30] sm:$0xff]
        %v3203 = vld [vmem:[#allocation4 + $0x38] sm:$0xff]
        %v3204 = vld [vmem:[#allocation4 + $0x40] sm:$0xff]
        %v3205 = vld [vmem:[#allocation4 + $0x48] sm:$0xff]
        %v3206 = vld [vmem:[#allocation4 + $0x50] sm:$0xff]
        %v3207 = vld [vmem:[#allocation4 + $0x58] sm:$0xff]
        %v3208 = vld [vmem:[#allocation4 + $0x60] sm:$0xff]
        %v3209 = vld [vmem:[#allocation4 + $0x68] sm:$0xff]
        %v3210 = vld [vmem:[#allocation4 + $0x70] sm:$0xff]
        %v3211 = vld [vmem:[#allocation4 + $0x78] sm:$0xff]
        %v3212 = vld [vmem:[#allocation4 + $0x80] sm:$0xff]
        %v3213 = vld [vmem:[#allocation4 + $0x88] sm:$0xff]
        %v3214 = vld [vmem:[#allocation4 + $0x90] sm:$0xff]
        %v3215 = vld [vmem:[#allocation4 + $0x98] sm:$0xff]
        %v3216 = vld [vmem:[#allocation4 + $0xa0] sm:$0xff]
        %v3217 = vld [vmem:[#allocation4 + $0xa8] sm:$0xff]
        %v3218 = vld [vmem:[#allocation4 + $0xb0] sm:$0xff]
        %v3219 = vld [vmem:[#allocation4 + $0xb8] sm:$0xff]
        %v3220 = vld [vmem:[#allocation4 + $0xc0] sm:$0xff]
        %v3221 = vld [vmem:[#allocation4 + $0xc8] sm:$0xff]
        %v3222 = vld [vmem:[#allocation4 + $0xd0] sm:$0xff]
        %v3223 = vld [vmem:[#allocation4 + $0xd8] sm:$0xff]
        %v3224 = vld [vmem:[#allocation4 + $0xe0] sm:$0xff]
        %v3225 = vld [vmem:[#allocation4 + $0xe8] sm:$0xff]
        %v3226 = vld [vmem:[#allocation4 + $0xf0] sm:$0xff]
        %v3227 = vld [vmem:[#allocation4 + $0xf8] sm:$0xff]
        %3260 = vrot.lane.b32.xlu0 %v3196, 32
        %v3261 = vpop.permute.xlu0 %3260
        %3262 = vrot.lane.b32.xlu0 %v3197, 32
        %v3263 = vpop.permute.xlu0 %3262
        %3264 = vrot.lane.b32.xlu0 %v3198, 32
        %v3265 = vpop.permute.xlu0 %3264
        %3266 = vrot.lane.b32.xlu0 %v3199, 32
        %v3267 = vpop.permute.xlu0 %3266
        %3268 = vrot.lane.b32.xlu0 %v3200, 32
        %v3269 = vpop.permute.xlu0 %3268
        %3270 = vrot.lane.b32.xlu0 %v3201, 32
        %v3271 = vpop.permute.xlu0 %3270
        %3272 = vrot.lane.b32.xlu0 %v3202, 32
        %v3273 = vpop.permute.xlu0 %3272
        %3274 = vrot.lane.b32.xlu0 %v3203, 32
        %v3275 = vpop.permute.xlu0 %3274
        %3276 = vrot.lane.b32.xlu0 %v3204, 32
        %v3277 = vpop.permute.xlu0 %3276
        %3278 = vrot.lane.b32.xlu0 %v3205, 32
        %v3279 = vpop.permute.xlu0 %3278
        %3280 = vrot.lane.b32.xlu0 %v3206, 32
        %v3281 = vpop.permute.xlu0 %3280
        %3282 = vrot.lane.b32.xlu0 %v3207, 32
        %v3283 = vpop.permute.xlu0 %3282
        %3284 = vrot.lane.b32.xlu0 %v3208, 32
        %v3285 = vpop.permute.xlu0 %3284
        %3286 = vrot.lane.b32.xlu0 %v3209, 32
        %v3287 = vpop.permute.xlu0 %3286
        %3288 = vrot.lane.b32.xlu0 %v3210, 32
        %v3289 = vpop.permute.xlu0 %3288
        %3290 = vrot.lane.b32.xlu0 %v3211, 32
        %v3291 = vpop.permute.xlu0 %3290
        %3292 = vrot.lane.b32.xlu0 %v3212, 32
        %v3293 = vpop.permute.xlu0 %3292
        %3294 = vrot.lane.b32.xlu0 %v3213, 32
        %v3295 = vpop.permute.xlu0 %3294
        %3296 = vrot.lane.b32.xlu0 %v3214, 32
        %v3297 = vpop.permute.xlu0 %3296
        %3298 = vrot.lane.b32.xlu0 %v3215, 32
        %v3299 = vpop.permute.xlu0 %3298
        %3300 = vrot.lane.b32.xlu0 %v3216, 32
        %v3301 = vpop.permute.xlu0 %3300
        %3302 = vrot.lane.b32.xlu0 %v3217, 32
        %v3303 = vpop.permute.xlu0 %3302
        %3304 = vrot.lane.b32.xlu0 %v3218, 32
        %v3305 = vpop.permute.xlu0 %3304
        %3306 = vrot.lane.b32.xlu0 %v3219, 32
        %v3307 = vpop.permute.xlu0 %3306
        %3308 = vrot.lane.b32.xlu0 %v3220, 32
        %v3309 = vpop.permute.xlu0 %3308
        %3310 = vrot.lane.b32.xlu0 %v3221, 32
        %v3311 = vpop.permute.xlu0 %3310
        %3312 = vrot.lane.b32.xlu0 %v3222, 32
        %v3313 = vpop.permute.xlu0 %3312
        %3314 = vrot.lane.b32.xlu0 %v3223, 32
        %v3315 = vpop.permute.xlu0 %3314
        %3316 = vrot.lane.b32.xlu0 %v3224, 32
        %v3317 = vpop.permute.xlu0 %3316
        %3318 = vrot.lane.b32.xlu0 %v3225, 32
        %v3319 = vpop.permute.xlu0 %3318
        %3320 = vrot.lane.b32.xlu0 %v3226, 32
        %v3321 = vpop.permute.xlu0 %3320
        %3322 = vrot.lane.b32.xlu0 %v3227, 32
        %v3323 = vpop.permute.xlu0 %3322
        %v3356 = vmul.f32 %v3164, %v3261
        %v3357 = vmul.f32 %v3165, %v3263
        %v3358 = vmul.f32 %v3166, %v3265
        %v3359 = vmul.f32 %v3167, %v3267
        %v3360 = vmul.f32 %v3168, %v3269
        %v3361 = vmul.f32 %v3169, %v3271
        %v3362 = vmul.f32 %v3170, %v3273
        %v3363 = vmul.f32 %v3171, %v3275
        %v3364 = vmul.f32 %v3172, %v3277
        %v3365 = vmul.f32 %v3173, %v3279
        %v3366 = vmul.f32 %v3174, %v3281
        %v3367 = vmul.f32 %v3175, %v3283
        %v3368 = vmul.f32 %v3176, %v3285
        %v3369 = vmul.f32 %v3177, %v3287
        %v3370 = vmul.f32 %v3178, %v3289
        %v3371 = vmul.f32 %v3179, %v3291
        %v3372 = vmul.f32 %v3180, %v3293
        %v3373 = vmul.f32 %v3181, %v3295
        %v3374 = vmul.f32 %v3182, %v3297
        %v3375 = vmul.f32 %v3183, %v3299
        %v3376 = vmul.f32 %v3184, %v3301
        %v3377 = vmul.f32 %v3185, %v3303
        %v3378 = vmul.f32 %v3186, %v3305
        %v3379 = vmul.f32 %v3187, %v3307
        %v3380 = vmul.f32 %v3188, %v3309
        %v3381 = vmul.f32 %v3189, %v3311
        %v3382 = vmul.f32 %v3190, %v3313
        %v3383 = vmul.f32 %v3191, %v3315
        %v3384 = vmul.f32 %v3192, %v3317
        %v3385 = vmul.f32 %v3193, %v3319
        %v3386 = vmul.f32 %v3194, %v3321
        %v3387 = vmul.f32 %v3195, %v3323
        %3420 = vrot.lane.b32.xlu0 %v3164, 32
        %v3421 = vpop.permute.xlu0 %3420
        %3422 = vrot.lane.b32.xlu0 %v3165, 32
        %v3423 = vpop.permute.xlu0 %3422
        %3424 = vrot.lane.b32.xlu0 %v3166, 32
        %v3425 = vpop.permute.xlu0 %3424
        %3426 = vrot.lane.b32.xlu0 %v3167, 32
        %v3427 = vpop.permute.xlu0 %3426
        %3428 = vrot.lane.b32.xlu0 %v3168, 32
        %v3429 = vpop.permute.xlu0 %3428
        %3430 = vrot.lane.b32.xlu0 %v3169, 32
        %v3431 = vpop.permute.xlu0 %3430
        %3432 = vrot.lane.b32.xlu0 %v3170, 32
        %v3433 = vpop.permute.xlu0 %3432
        %3434 = vrot.lane.b32.xlu0 %v3171, 32
        %v3435 = vpop.permute.xlu0 %3434
        %3436 = vrot.lane.b32.xlu0 %v3172, 32
        %v3437 = vpop.permute.xlu0 %3436
        %3438 = vrot.lane.b32.xlu0 %v3173, 32
        %v3439 = vpop.permute.xlu0 %3438
        %3440 = vrot.lane.b32.xlu0 %v3174, 32
        %v3441 = vpop.permute.xlu0 %3440
        %3442 = vrot.lane.b32.xlu0 %v3175, 32
        %v3443 = vpop.permute.xlu0 %3442
        %3444 = vrot.lane.b32.xlu0 %v3176, 32
        %v3445 = vpop.permute.xlu0 %3444
        %3446 = vrot.lane.b32.xlu0 %v3177, 32
        %v3447 = vpop.permute.xlu0 %3446
        %3448 = vrot.lane.b32.xlu0 %v3178, 32
        %v3449 = vpop.permute.xlu0 %3448
        %3450 = vrot.lane.b32.xlu0 %v3179, 32
        %v3451 = vpop.permute.xlu0 %3450
        %3452 = vrot.lane.b32.xlu0 %v3180, 32
        %v3453 = vpop.permute.xlu0 %3452
        %3454 = vrot.lane.b32.xlu0 %v3181, 32
        %v3455 = vpop.permute.xlu0 %3454
        %3456 = vrot.lane.b32.xlu0 %v3182, 32
        %v3457 = vpop.permute.xlu0 %3456
        %3458 = vrot.lane.b32.xlu0 %v3183, 32
        %v3459 = vpop.permute.xlu0 %3458
        %3460 = vrot.lane.b32.xlu0 %v3184, 32
        %v3461 = vpop.permute.xlu0 %3460
        %3462 = vrot.lane.b32.xlu0 %v3185, 32
        %v3463 = vpop.permute.xlu0 %3462
        %3464 = vrot.lane.b32.xlu0 %v3186, 32
        %v3465 = vpop.permute.xlu0 %3464
        %3466 = vrot.lane.b32.xlu0 %v3187, 32
        %v3467 = vpop.permute.xlu0 %3466
        %3468 = vrot.lane.b32.xlu0 %v3188, 32
        %v3469 = vpop.permute.xlu0 %3468
        %3470 = vrot.lane.b32.xlu0 %v3189, 32
        %v3471 = vpop.permute.xlu0 %3470
        %3472 = vrot.lane.b32.xlu0 %v3190, 32
        %v3473 = vpop.permute.xlu0 %3472
        %3474 = vrot.lane.b32.xlu0 %v3191, 32
        %v3475 = vpop.permute.xlu0 %3474
        %3476 = vrot.lane.b32.xlu0 %v3192, 32
        %v3477 = vpop.permute.xlu0 %3476
        %3478 = vrot.lane.b32.xlu0 %v3193, 32
        %v3479 = vpop.permute.xlu0 %3478
        %3480 = vrot.lane.b32.xlu0 %v3194, 32
        %v3481 = vpop.permute.xlu0 %3480
        %3482 = vrot.lane.b32.xlu0 %v3195, 32
        %v3483 = vpop.permute.xlu0 %3482
        %v3516 = vmul.f32 %v3164, %v3421
        %v3517 = vmul.f32 %v3165, %v3423
        %v3518 = vmul.f32 %v3166, %v3425
        %v3519 = vmul.f32 %v3167, %v3427
        %v3520 = vmul.f32 %v3168, %v3429
        %v3521 = vmul.f32 %v3169, %v3431
        %v3522 = vmul.f32 %v3170, %v3433
        %v3523 = vmul.f32 %v3171, %v3435
        %v3524 = vmul.f32 %v3172, %v3437
        %v3525 = vmul.f32 %v3173, %v3439
        %v3526 = vmul.f32 %v3174, %v3441
        %v3527 = vmul.f32 %v3175, %v3443
        %v3528 = vmul.f32 %v3176, %v3445
        %v3529 = vmul.f32 %v3177, %v3447
        %v3530 = vmul.f32 %v3178, %v3449
        %v3531 = vmul.f32 %v3179, %v3451
        %v3532 = vmul.f32 %v3180, %v3453
        %v3533 = vmul.f32 %v3181, %v3455
        %v3534 = vmul.f32 %v3182, %v3457
        %v3535 = vmul.f32 %v3183, %v3459
        %v3536 = vmul.f32 %v3184, %v3461
        %v3537 = vmul.f32 %v3185, %v3463
        %v3538 = vmul.f32 %v3186, %v3465
        %v3539 = vmul.f32 %v3187, %v3467
        %v3540 = vmul.f32 %v3188, %v3469
        %v3541 = vmul.f32 %v3189, %v3471
        %v3542 = vmul.f32 %v3190, %v3473
        %v3543 = vmul.f32 %v3191, %v3475
        %v3544 = vmul.f32 %v3192, %v3477
        %v3545 = vmul.f32 %v3193, %v3479
        %v3546 = vmul.f32 %v3194, %v3481
        %v3547 = vmul.f32 %v3195, %v3483
        %3580 = vrot.lane.b32.xlu0 %v3516, 32
        %v3581 = vpop.permute.xlu0 %3580
        %3582 = vrot.lane.b32.xlu0 %v3517, 32
        %v3583 = vpop.permute.xlu0 %3582
        %3584 = vrot.lane.b32.xlu0 %v3518, 32
        %v3585 = vpop.permute.xlu0 %3584
        %3586 = vrot.lane.b32.xlu0 %v3519, 32
        %v3587 = vpop.permute.xlu0 %3586
        %3588 = vrot.lane.b32.xlu0 %v3520, 32
        %v3589 = vpop.permute.xlu0 %3588
        %3590 = vrot.lane.b32.xlu0 %v3521, 32
        %v3591 = vpop.permute.xlu0 %3590
        %3592 = vrot.lane.b32.xlu0 %v3522, 32
        %v3593 = vpop.permute.xlu0 %3592
        %3594 = vrot.lane.b32.xlu0 %v3523, 32
        %v3595 = vpop.permute.xlu0 %3594
        %3596 = vrot.lane.b32.xlu0 %v3524, 32
        %v3597 = vpop.permute.xlu0 %3596
        %3598 = vrot.lane.b32.xlu0 %v3525, 32
        %v3599 = vpop.permute.xlu0 %3598
        %3600 = vrot.lane.b32.xlu0 %v3526, 32
        %v3601 = vpop.permute.xlu0 %3600
        %3602 = vrot.lane.b32.xlu0 %v3527, 32
        %v3603 = vpop.permute.xlu0 %3602
        %3604 = vrot.lane.b32.xlu0 %v3528, 32
        %v3605 = vpop.permute.xlu0 %3604
        %3606 = vrot.lane.b32.xlu0 %v3529, 32
        %v3607 = vpop.permute.xlu0 %3606
        %3608 = vrot.lane.b32.xlu0 %v3530, 32
        %v3609 = vpop.permute.xlu0 %3608
        %3610 = vrot.lane.b32.xlu0 %v3531, 32
        %v3611 = vpop.permute.xlu0 %3610
        %3612 = vrot.lane.b32.xlu0 %v3532, 32
        %v3613 = vpop.permute.xlu0 %3612
        %3614 = vrot.lane.b32.xlu0 %v3533, 32
        %v3615 = vpop.permute.xlu0 %3614
        %3616 = vrot.lane.b32.xlu0 %v3534, 32
        %v3617 = vpop.permute.xlu0 %3616
        %3618 = vrot.lane.b32.xlu0 %v3535, 32
        %v3619 = vpop.permute.xlu0 %3618
        %3620 = vrot.lane.b32.xlu0 %v3536, 32
        %v3621 = vpop.permute.xlu0 %3620
        %3622 = vrot.lane.b32.xlu0 %v3537, 32
        %v3623 = vpop.permute.xlu0 %3622
        %3624 = vrot.lane.b32.xlu0 %v3538, 32
        %v3625 = vpop.permute.xlu0 %3624
        %3626 = vrot.lane.b32.xlu0 %v3539, 32
        %v3627 = vpop.permute.xlu0 %3626
        %3628 = vrot.lane.b32.xlu0 %v3540, 32
        %v3629 = vpop.permute.xlu0 %3628
        %3630 = vrot.lane.b32.xlu0 %v3541, 32
        %v3631 = vpop.permute.xlu0 %3630
        %3632 = vrot.lane.b32.xlu0 %v3542, 32
        %v3633 = vpop.permute.xlu0 %3632
        %3634 = vrot.lane.b32.xlu0 %v3543, 32
        %v3635 = vpop.permute.xlu0 %3634
        %3636 = vrot.lane.b32.xlu0 %v3544, 32
        %v3637 = vpop.permute.xlu0 %3636
        %3638 = vrot.lane.b32.xlu0 %v3545, 32
        %v3639 = vpop.permute.xlu0 %3638
        %3640 = vrot.lane.b32.xlu0 %v3546, 32
        %v3641 = vpop.permute.xlu0 %3640
        %3642 = vrot.lane.b32.xlu0 %v3547, 32
        %v3643 = vpop.permute.xlu0 %3642
        %v3676 = vadd.f32 %v3356, %v3581
        %v3677 = vadd.f32 %v3357, %v3583
        %v3678 = vadd.f32 %v3358, %v3585
        %v3679 = vadd.f32 %v3359, %v3587
        %v3680 = vadd.f32 %v3360, %v3589
        %v3681 = vadd.f32 %v3361, %v3591
        %v3682 = vadd.f32 %v3362, %v3593
        %v3683 = vadd.f32 %v3363, %v3595
        %v3684 = vadd.f32 %v3364, %v3597
        %v3685 = vadd.f32 %v3365, %v3599
        %v3686 = vadd.f32 %v3366, %v3601
        %v3687 = vadd.f32 %v3367, %v3603
        %v3688 = vadd.f32 %v3368, %v3605
        %v3689 = vadd.f32 %v3369, %v3607
        %v3690 = vadd.f32 %v3370, %v3609
        %v3691 = vadd.f32 %v3371, %v3611
        %v3692 = vadd.f32 %v3372, %v3613
        %v3693 = vadd.f32 %v3373, %v3615
        %v3694 = vadd.f32 %v3374, %v3617
        %v3695 = vadd.f32 %v3375, %v3619
        %v3696 = vadd.f32 %v3376, %v3621
        %v3697 = vadd.f32 %v3377, %v3623
        %v3698 = vadd.f32 %v3378, %v3625
        %v3699 = vadd.f32 %v3379, %v3627
        %v3700 = vadd.f32 %v3380, %v3629
        %v3701 = vadd.f32 %v3381, %v3631
        %v3702 = vadd.f32 %v3382, %v3633
        %v3703 = vadd.f32 %v3383, %v3635
        %v3704 = vadd.f32 %v3384, %v3637
        %v3705 = vadd.f32 %v3385, %v3639
        %v3706 = vadd.f32 %v3386, %v3641
        %v3707 = vadd.f32 %v3387, %v3643
        %v3708 = vtanh.pop %v3676
        %v3709 = vtanh.pop %v3677
        %v3710 = vtanh.pop %v3678
        %v3711 = vtanh.pop %v3679
        %v3712 = vtanh.pop %v3680
        %v3713 = vtanh.pop %v3681
        %v3714 = vtanh.pop %v3682
        %v3715 = vtanh.pop %v3683
        %v3716 = vtanh.pop %v3684
        %v3717 = vtanh.pop %v3685
        %v3718 = vtanh.pop %v3686
        %v3719 = vtanh.pop %v3687
        %v3720 = vtanh.pop %v3688
        %v3721 = vtanh.pop %v3689
        %v3722 = vtanh.pop %v3690
        %v3723 = vtanh.pop %v3691
        %v3724 = vtanh.pop %v3692
        %v3725 = vtanh.pop %v3693
        %v3726 = vtanh.pop %v3694
        %v3727 = vtanh.pop %v3695
        %v3728 = vtanh.pop %v3696
        %v3729 = vtanh.pop %v3697
        %v3730 = vtanh.pop %v3698
        %v3731 = vtanh.pop %v3699
        %v3732 = vtanh.pop %v3700
        %v3733 = vtanh.pop %v3701
        %v3734 = vtanh.pop %v3702
        %v3735 = vtanh.pop %v3703
        %v3736 = vtanh.pop %v3704
        %v3737 = vtanh.pop %v3705
        %v3738 = vtanh.pop %v3706
        %v3739 = vtanh.pop %v3707
        %3772 = vrot.lane.b32.xlu0 %v3708, 32
        %v3773 = vpop.permute.xlu0 %3772
        %3774 = vrot.lane.b32.xlu0 %v3709, 32
        %v3775 = vpop.permute.xlu0 %3774
        %3776 = vrot.lane.b32.xlu0 %v3710, 32
        %v3777 = vpop.permute.xlu0 %3776
        %3778 = vrot.lane.b32.xlu0 %v3711, 32
        %v3779 = vpop.permute.xlu0 %3778
        %3780 = vrot.lane.b32.xlu0 %v3712, 32
        %v3781 = vpop.permute.xlu0 %3780
        %3782 = vrot.lane.b32.xlu0 %v3713, 32
        %v3783 = vpop.permute.xlu0 %3782
        %3784 = vrot.lane.b32.xlu0 %v3714, 32
        %v3785 = vpop.permute.xlu0 %3784
        %3786 = vrot.lane.b32.xlu0 %v3715, 32
        %v3787 = vpop.permute.xlu0 %3786
        %3788 = vrot.lane.b32.xlu0 %v3716, 32
        %v3789 = vpop.permute.xlu0 %3788
        %3790 = vrot.lane.b32.xlu0 %v3717, 32
        %v3791 = vpop.permute.xlu0 %3790
        %3792 = vrot.lane.b32.xlu0 %v3718, 32
        %v3793 = vpop.permute.xlu0 %3792
        %3794 = vrot.lane.b32.xlu0 %v3719, 32
        %v3795 = vpop.permute.xlu0 %3794
        %3796 = vrot.lane.b32.xlu0 %v3720, 32
        %v3797 = vpop.permute.xlu0 %3796
        %3798 = vrot.lane.b32.xlu0 %v3721, 32
        %v3799 = vpop.permute.xlu0 %3798
        %3800 = vrot.lane.b32.xlu0 %v3722, 32
        %v3801 = vpop.permute.xlu0 %3800
        %3802 = vrot.lane.b32.xlu0 %v3723, 32
        %v3803 = vpop.permute.xlu0 %3802
        %3804 = vrot.lane.b32.xlu0 %v3724, 32
        %v3805 = vpop.permute.xlu0 %3804
        %3806 = vrot.lane.b32.xlu0 %v3725, 32
        %v3807 = vpop.permute.xlu0 %3806
        %3808 = vrot.lane.b32.xlu0 %v3726, 32
        %v3809 = vpop.permute.xlu0 %3808
        %3810 = vrot.lane.b32.xlu0 %v3727, 32
        %v3811 = vpop.permute.xlu0 %3810
        %3812 = vrot.lane.b32.xlu0 %v3728, 32
        %v3813 = vpop.permute.xlu0 %3812
        %3814 = vrot.lane.b32.xlu0 %v3729, 32
        %v3815 = vpop.permute.xlu0 %3814
        %3816 = vrot.lane.b32.xlu0 %v3730, 32
        %v3817 = vpop.permute.xlu0 %3816
        %3818 = vrot.lane.b32.xlu0 %v3731, 32
        %v3819 = vpop.permute.xlu0 %3818
        %3820 = vrot.lane.b32.xlu0 %v3732, 32
        %v3821 = vpop.permute.xlu0 %3820
        %3822 = vrot.lane.b32.xlu0 %v3733, 32
        %v3823 = vpop.permute.xlu0 %3822
        %3824 = vrot.lane.b32.xlu0 %v3734, 32
        %v3825 = vpop.permute.xlu0 %3824
        %3826 = vrot.lane.b32.xlu0 %v3735, 32
        %v3827 = vpop.permute.xlu0 %3826
        %3828 = vrot.lane.b32.xlu0 %v3736, 32
        %v3829 = vpop.permute.xlu0 %3828
        %3830 = vrot.lane.b32.xlu0 %v3737, 32
        %v3831 = vpop.permute.xlu0 %3830
        %3832 = vrot.lane.b32.xlu0 %v3738, 32
        %v3833 = vpop.permute.xlu0 %3832
        %3834 = vrot.lane.b32.xlu0 %v3739, 32
        %v3835 = vpop.permute.xlu0 %3834
        %v3868 = vmul.f32 %v3164, %v3773
        %v3869 = vmul.f32 %v3165, %v3775
        %v3870 = vmul.f32 %v3166, %v3777
        %v3871 = vmul.f32 %v3167, %v3779
        %v3872 = vmul.f32 %v3168, %v3781
        %v3873 = vmul.f32 %v3169, %v3783
        %v3874 = vmul.f32 %v3170, %v3785
        %v3875 = vmul.f32 %v3171, %v3787
        %v3876 = vmul.f32 %v3172, %v3789
        %v3877 = vmul.f32 %v3173, %v3791
        %v3878 = vmul.f32 %v3174, %v3793
        %v3879 = vmul.f32 %v3175, %v3795
        %v3880 = vmul.f32 %v3176, %v3797
        %v3881 = vmul.f32 %v3177, %v3799
        %v3882 = vmul.f32 %v3178, %v3801
        %v3883 = vmul.f32 %v3179, %v3803
        %v3884 = vmul.f32 %v3180, %v3805
        %v3885 = vmul.f32 %v3181, %v3807
        %v3886 = vmul.f32 %v3182, %v3809
        %v3887 = vmul.f32 %v3183, %v3811
        %v3888 = vmul.f32 %v3184, %v3813
        %v3889 = vmul.f32 %v3185, %v3815
        %v3890 = vmul.f32 %v3186, %v3817
        %v3891 = vmul.f32 %v3187, %v3819
        %v3892 = vmul.f32 %v3188, %v3821
        %v3893 = vmul.f32 %v3189, %v3823
        %v3894 = vmul.f32 %v3190, %v3825
        %v3895 = vmul.f32 %v3191, %v3827
        %v3896 = vmul.f32 %v3192, %v3829
        %v3897 = vmul.f32 %v3193, %v3831
        %v3898 = vmul.f32 %v3194, %v3833
        %v3899 = vmul.f32 %v3195, %v3835
        %3932 = vrot.lane.b32.xlu0 %v3676, 96
        %v3933 = vpop.permute.xlu0 %3932
        %3934 = vrot.lane.b32.xlu0 %v3677, 96
        %v3935 = vpop.permute.xlu0 %3934
        %3936 = vrot.lane.b32.xlu0 %v3678, 96
        %v3937 = vpop.permute.xlu0 %3936
        %3938 = vrot.lane.b32.xlu0 %v3679, 96
        %v3939 = vpop.permute.xlu0 %3938
        %3940 = vrot.lane.b32.xlu0 %v3680, 96
        %v3941 = vpop.permute.xlu0 %3940
        %3942 = vrot.lane.b32.xlu0 %v3681, 96
        %v3943 = vpop.permute.xlu0 %3942
        %3944 = vrot.lane.b32.xlu0 %v3682, 96
        %v3945 = vpop.permute.xlu0 %3944
        %3946 = vrot.lane.b32.xlu0 %v3683, 96
        %v3947 = vpop.permute.xlu0 %3946
        %3948 = vrot.lane.b32.xlu0 %v3684, 96
        %v3949 = vpop.permute.xlu0 %3948
        %3950 = vrot.lane.b32.xlu0 %v3685, 96
        %v3951 = vpop.permute.xlu0 %3950
        %3952 = vrot.lane.b32.xlu0 %v3686, 96
        %v3953 = vpop.permute.xlu0 %3952
        %3954 = vrot.lane.b32.xlu0 %v3687, 96
        %v3955 = vpop.permute.xlu0 %3954
        %3956 = vrot.lane.b32.xlu0 %v3688, 96
        %v3957 = vpop.permute.xlu0 %3956
        %3958 = vrot.lane.b32.xlu0 %v3689, 96
        %v3959 = vpop.permute.xlu0 %3958
        %3960 = vrot.lane.b32.xlu0 %v3690, 96
        %v3961 = vpop.permute.xlu0 %3960
        %3962 = vrot.lane.b32.xlu0 %v3691, 96
        %v3963 = vpop.permute.xlu0 %3962
        %3964 = vrot.lane.b32.xlu0 %v3692, 96
        %v3965 = vpop.permute.xlu0 %3964
        %3966 = vrot.lane.b32.xlu0 %v3693, 96
        %v3967 = vpop.permute.xlu0 %3966
        %3968 = vrot.lane.b32.xlu0 %v3694, 96
        %v3969 = vpop.permute.xlu0 %3968
        %3970 = vrot.lane.b32.xlu0 %v3695, 96
        %v3971 = vpop.permute.xlu0 %3970
        %3972 = vrot.lane.b32.xlu0 %v3696, 96
        %v3973 = vpop.permute.xlu0 %3972
        %3974 = vrot.lane.b32.xlu0 %v3697, 96
        %v3975 = vpop.permute.xlu0 %3974
        %3976 = vrot.lane.b32.xlu0 %v3698, 96
        %v3977 = vpop.permute.xlu0 %3976
        %3978 = vrot.lane.b32.xlu0 %v3699, 96
        %v3979 = vpop.permute.xlu0 %3978
        %3980 = vrot.lane.b32.xlu0 %v3700, 96
        %v3981 = vpop.permute.xlu0 %3980
        %3982 = vrot.lane.b32.xlu0 %v3701, 96
        %v3983 = vpop.permute.xlu0 %3982
        %3984 = vrot.lane.b32.xlu0 %v3702, 96
        %v3985 = vpop.permute.xlu0 %3984
        %3986 = vrot.lane.b32.xlu0 %v3703, 96
        %v3987 = vpop.permute.xlu0 %3986
        %3988 = vrot.lane.b32.xlu0 %v3704, 96
        %v3989 = vpop.permute.xlu0 %3988
        %3990 = vrot.lane.b32.xlu0 %v3705, 96
        %v3991 = vpop.permute.xlu0 %3990
        %3992 = vrot.lane.b32.xlu0 %v3706, 96
        %v3993 = vpop.permute.xlu0 %3992
        %3994 = vrot.lane.b32.xlu0 %v3707, 96
        %v3995 = vpop.permute.xlu0 %3994
        %4028 = vst.msk [vmem:[#allocation4] sm:$0xff] %vm2003, %v3933
        %4029 = vst.msk [vmem:[#allocation4 + $0x8] sm:$0xff] %vm2003, %v3935
        %4030 = vst.msk [vmem:[#allocation4 + $0x10] sm:$0xff] %vm2003, %v3937
        %4031 = vst.msk [vmem:[#allocation4 + $0x18] sm:$0xff] %vm2003, %v3939
        %4032 = vst.msk [vmem:[#allocation4 + $0x20] sm:$0xff] %vm2003, %v3941
        %4033 = vst.msk [vmem:[#allocation4 + $0x28] sm:$0xff] %vm2003, %v3943
        %4034 = vst.msk [vmem:[#allocation4 + $0x30] sm:$0xff] %vm2003, %v3945
        %4035 = vst.msk [vmem:[#allocation4 + $0x38] sm:$0xff] %vm2003, %v3947
        %4036 = vst.msk [vmem:[#allocation4 + $0x40] sm:$0xff] %vm2003, %v3949
        %4037 = vst.msk [vmem:[#allocation4 + $0x48] sm:$0xff] %vm2003, %v3951
        %4038 = vst.msk [vmem:[#allocation4 + $0x50] sm:$0xff] %vm2003, %v3953
        %4039 = vst.msk [vmem:[#allocation4 + $0x58] sm:$0xff] %vm2003, %v3955
        %4040 = vst.msk [vmem:[#allocation4 + $0x60] sm:$0xff] %vm2003, %v3957
        %4041 = vst.msk [vmem:[#allocation4 + $0x68] sm:$0xff] %vm2003, %v3959
        %4042 = vst.msk [vmem:[#allocation4 + $0x70] sm:$0xff] %vm2003, %v3961
        %4043 = vst.msk [vmem:[#allocation4 + $0x78] sm:$0xff] %vm2003, %v3963
        %4044 = vst.msk [vmem:[#allocation4 + $0x80] sm:$0xff] %vm2003, %v3965
        %4045 = vst.msk [vmem:[#allocation4 + $0x88] sm:$0xff] %vm2003, %v3967
        %4046 = vst.msk [vmem:[#allocation4 + $0x90] sm:$0xff] %vm2003, %v3969
        %4047 = vst.msk [vmem:[#allocation4 + $0x98] sm:$0xff] %vm2003, %v3971
        %4048 = vst.msk [vmem:[#allocation4 + $0xa0] sm:$0xff] %vm2003, %v3973
        %4049 = vst.msk [vmem:[#allocation4 + $0xa8] sm:$0xff] %vm2003, %v3975
        %4050 = vst.msk [vmem:[#allocation4 + $0xb0] sm:$0xff] %vm2003, %v3977
        %4051 = vst.msk [vmem:[#allocation4 + $0xb8] sm:$0xff] %vm2003, %v3979
        %4052 = vst.msk [vmem:[#allocation4 + $0xc0] sm:$0xff] %vm2003, %v3981
        %4053 = vst.msk [vmem:[#allocation4 + $0xc8] sm:$0xff] %vm2003, %v3983
        %4054 = vst.msk [vmem:[#allocation4 + $0xd0] sm:$0xff] %vm2003, %v3985
        %4055 = vst.msk [vmem:[#allocation4 + $0xd8] sm:$0xff] %vm2003, %v3987
        %4056 = vst.msk [vmem:[#allocation4 + $0xe0] sm:$0xff] %vm2003, %v3989
        %4057 = vst.msk [vmem:[#allocation4 + $0xe8] sm:$0xff] %vm2003, %v3991
        %4058 = vst.msk [vmem:[#allocation4 + $0xf0] sm:$0xff] %vm2003, %v3993
        %4059 = vst.msk [vmem:[#allocation4 + $0xf8] sm:$0xff] %vm2003, %v3995
        %4092 = vrot.lane.b32.xlu0 %v3868, 64
        %v4093 = vpop.permute.xlu0 %4092
        %4094 = vrot.lane.b32.xlu0 %v3869, 64
        %v4095 = vpop.permute.xlu0 %4094
        %4096 = vrot.lane.b32.xlu0 %v3870, 64
        %v4097 = vpop.permute.xlu0 %4096
        %4098 = vrot.lane.b32.xlu0 %v3871, 64
        %v4099 = vpop.permute.xlu0 %4098
        %4100 = vrot.lane.b32.xlu0 %v3872, 64
        %v4101 = vpop.permute.xlu0 %4100
        %4102 = vrot.lane.b32.xlu0 %v3873, 64
        %v4103 = vpop.permute.xlu0 %4102
        %4104 = vrot.lane.b32.xlu0 %v3874, 64
        %v4105 = vpop.permute.xlu0 %4104
        %4106 = vrot.lane.b32.xlu0 %v3875, 64
        %v4107 = vpop.permute.xlu0 %4106
        %4108 = vrot.lane.b32.xlu0 %v3876, 64
        %v4109 = vpop.permute.xlu0 %4108
        %4110 = vrot.lane.b32.xlu0 %v3877, 64
        %v4111 = vpop.permute.xlu0 %4110
        %4112 = vrot.lane.b32.xlu0 %v3878, 64
        %v4113 = vpop.permute.xlu0 %4112
        %4114 = vrot.lane.b32.xlu0 %v3879, 64
        %v4115 = vpop.permute.xlu0 %4114
        %4116 = vrot.lane.b32.xlu0 %v3880, 64
        %v4117 = vpop.permute.xlu0 %4116
        %4118 = vrot.lane.b32.xlu0 %v3881, 64
        %v4119 = vpop.permute.xlu0 %4118
        %4120 = vrot.lane.b32.xlu0 %v3882, 64
        %v4121 = vpop.permute.xlu0 %4120
        %4122 = vrot.lane.b32.xlu0 %v3883, 64
        %v4123 = vpop.permute.xlu0 %4122
        %4124 = vrot.lane.b32.xlu0 %v3884, 64
        %v4125 = vpop.permute.xlu0 %4124
        %4126 = vrot.lane.b32.xlu0 %v3885, 64
        %v4127 = vpop.permute.xlu0 %4126
        %4128 = vrot.lane.b32.xlu0 %v3886, 64
        %v4129 = vpop.permute.xlu0 %4128
        %4130 = vrot.lane.b32.xlu0 %v3887, 64
        %v4131 = vpop.permute.xlu0 %4130
        %4132 = vrot.lane.b32.xlu0 %v3888, 64
        %v4133 = vpop.permute.xlu0 %4132
        %4134 = vrot.lane.b32.xlu0 %v3889, 64
        %v4135 = vpop.permute.xlu0 %4134
        %4136 = vrot.lane.b32.xlu0 %v3890, 64
        %v4137 = vpop.permute.xlu0 %4136
        %4138 = vrot.lane.b32.xlu0 %v3891, 64
        %v4139 = vpop.permute.xlu0 %4138
        %4140 = vrot.lane.b32.xlu0 %v3892, 64
        %v4141 = vpop.permute.xlu0 %4140
        %4142 = vrot.lane.b32.xlu0 %v3893, 64
        %v4143 = vpop.permute.xlu0 %4142
        %4144 = vrot.lane.b32.xlu0 %v3894, 64
        %v4145 = vpop.permute.xlu0 %4144
        %4146 = vrot.lane.b32.xlu0 %v3895, 64
        %v4147 = vpop.permute.xlu0 %4146
        %4148 = vrot.lane.b32.xlu0 %v3896, 64
        %v4149 = vpop.permute.xlu0 %4148
        %4150 = vrot.lane.b32.xlu0 %v3897, 64
        %v4151 = vpop.permute.xlu0 %4150
        %4152 = vrot.lane.b32.xlu0 %v3898, 64
        %v4153 = vpop.permute.xlu0 %4152
        %4154 = vrot.lane.b32.xlu0 %v3899, 64
        %v4155 = vpop.permute.xlu0 %4154
        %4188 = vst.msk [vmem:[#allocation3] sm:$0xff] %vm2003, %v4093
        %4189 = vst.msk [vmem:[#allocation3 + $0x8] sm:$0xff] %vm2003, %v4095
        %4190 = vst.msk [vmem:[#allocation3 + $0x10] sm:$0xff] %vm2003, %v4097
        %4191 = vst.msk [vmem:[#allocation3 + $0x18] sm:$0xff] %vm2003, %v4099
        %4192 = vst.msk [vmem:[#allocation3 + $0x20] sm:$0xff] %vm2003, %v4101
        %4193 = vst.msk [vmem:[#allocation3 + $0x28] sm:$0xff] %vm2003, %v4103
        %4194 = vst.msk [vmem:[#allocation3 + $0x30] sm:$0xff] %vm2003, %v4105
        %4195 = vst.msk [vmem:[#allocation3 + $0x38] sm:$0xff] %vm2003, %v4107
        %4196 = vst.msk [vmem:[#allocation3 + $0x40] sm:$0xff] %vm2003, %v4109
        %4197 = vst.msk [vmem:[#allocation3 + $0x48] sm:$0xff] %vm2003, %v4111
        %4198 = vst.msk [vmem:[#allocation3 + $0x50] sm:$0xff] %vm2003, %v4113
        %4199 = vst.msk [vmem:[#allocation3 + $0x58] sm:$0xff] %vm2003, %v4115
        %4200 = vst.msk [vmem:[#allocation3 + $0x60] sm:$0xff] %vm2003, %v4117
        %4201 = vst.msk [vmem:[#allocation3 + $0x68] sm:$0xff] %vm2003, %v4119
        %4202 = vst.msk [vmem:[#allocation3 + $0x70] sm:$0xff] %vm2003, %v4121
        %4203 = vst.msk [vmem:[#allocation3 + $0x78] sm:$0xff] %vm2003, %v4123
        %4204 = vst.msk [vmem:[#allocation3 + $0x80] sm:$0xff] %vm2003, %v4125
        %4205 = vst.msk [vmem:[#allocation3 + $0x88] sm:$0xff] %vm2003, %v4127
        %4206 = vst.msk [vmem:[#allocation3 + $0x90] sm:$0xff] %vm2003, %v4129
        %4207 = vst.msk [vmem:[#allocation3 + $0x98] sm:$0xff] %vm2003, %v4131
        %4208 = vst.msk [vmem:[#allocation3 + $0xa0] sm:$0xff] %vm2003, %v4133
        %4209 = vst.msk [vmem:[#allocation3 + $0xa8] sm:$0xff] %vm2003, %v4135
        %4210 = vst.msk [vmem:[#allocation3 + $0xb0] sm:$0xff] %vm2003, %v4137
        %4211 = vst.msk [vmem:[#allocation3 + $0xb8] sm:$0xff] %vm2003, %v4139
        %4212 = vst.msk [vmem:[#allocation3 + $0xc0] sm:$0xff] %vm2003, %v4141
        %4213 = vst.msk [vmem:[#allocation3 + $0xc8] sm:$0xff] %vm2003, %v4143
        %4214 = vst.msk [vmem:[#allocation3 + $0xd0] sm:$0xff] %vm2003, %v4145
        %4215 = vst.msk [vmem:[#allocation3 + $0xd8] sm:$0xff] %vm2003, %v4147
        %4216 = vst.msk [vmem:[#allocation3 + $0xe0] sm:$0xff] %vm2003, %v4149
        %4217 = vst.msk [vmem:[#allocation3 + $0xe8] sm:$0xff] %vm2003, %v4151
        %4218 = vst.msk [vmem:[#allocation3 + $0xf0] sm:$0xff] %vm2003, %v4153
        %4219 = vst.msk [vmem:[#allocation3 + $0xf8] sm:$0xff] %vm2003, %v4155
        %4220 = vst.msk [vmem:[%s244] sm:$0xff] %vm2003, %v4093
        %4221 = vst.msk [vmem:[%s244 + $0x8] sm:$0xff] %vm2003, %v4095
        %4222 = vst.msk [vmem:[%s244 + $0x10] sm:$0xff] %vm2003, %v4097
        %4223 = vst.msk [vmem:[%s244 + $0x18] sm:$0xff] %vm2003, %v4099
        %4224 = vst.msk [vmem:[%s244 + $0x20] sm:$0xff] %vm2003, %v4101
        %4225 = vst.msk [vmem:[%s244 + $0x28] sm:$0xff] %vm2003, %v4103
        %4226 = vst.msk [vmem:[%s244 + $0x30] sm:$0xff] %vm2003, %v4105
        %4227 = vst.msk [vmem:[%s244 + $0x38] sm:$0xff] %vm2003, %v4107
        %4228 = vst.msk [vmem:[%s244 + $0x40] sm:$0xff] %vm2003, %v4109
        %4229 = vst.msk [vmem:[%s244 + $0x48] sm:$0xff] %vm2003, %v4111
        %4230 = vst.msk [vmem:[%s244 + $0x50] sm:$0xff] %vm2003, %v4113
        %4231 = vst.msk [vmem:[%s244 + $0x58] sm:$0xff] %vm2003, %v4115
        %4232 = vst.msk [vmem:[%s244 + $0x60] sm:$0xff] %vm2003, %v4117
        %4233 = vst.msk [vmem:[%s244 + $0x68] sm:$0xff] %vm2003, %v4119
        %4234 = vst.msk [vmem:[%s244 + $0x70] sm:$0xff] %vm2003, %v4121
        %4235 = vst.msk [vmem:[%s244 + $0x78] sm:$0xff] %vm2003, %v4123
        %4236 = vst.msk [vmem:[%s244 + $0x80] sm:$0xff] %vm2003, %v4125
        %4237 = vst.msk [vmem:[%s244 + $0x88] sm:$0xff] %vm2003, %v4127
        %4238 = vst.msk [vmem:[%s244 + $0x90] sm:$0xff] %vm2003, %v4129
        %4239 = vst.msk [vmem:[%s244 + $0x98] sm:$0xff] %vm2003, %v4131
        %4240 = vst.msk [vmem:[%s244 + $0xa0] sm:$0xff] %vm2003, %v4133
        %4241 = vst.msk [vmem:[%s244 + $0xa8] sm:$0xff] %vm2003, %v4135
        %4242 = vst.msk [vmem:[%s244 + $0xb0] sm:$0xff] %vm2003, %v4137
        %4243 = vst.msk [vmem:[%s244 + $0xb8] sm:$0xff] %vm2003, %v4139
        %4244 = vst.msk [vmem:[%s244 + $0xc0] sm:$0xff] %vm2003, %v4141
        %4245 = vst.msk [vmem:[%s244 + $0xc8] sm:$0xff] %vm2003, %v4143
        %4246 = vst.msk [vmem:[%s244 + $0xd0] sm:$0xff] %vm2003, %v4145
        %4247 = vst.msk [vmem:[%s244 + $0xd8] sm:$0xff] %vm2003, %v4147
        %4248 = vst.msk [vmem:[%s244 + $0xe0] sm:$0xff] %vm2003, %v4149
        %4249 = vst.msk [vmem:[%s244 + $0xe8] sm:$0xff] %vm2003, %v4151
        %4250 = vst.msk [vmem:[%s244 + $0xf0] sm:$0xff] %vm2003, %v4153
        %4251 = vst.msk [vmem:[%s244 + $0xf8] sm:$0xff] %vm2003, %v4155
        %p4252 = scmp.eq.s32.totalorder %s24, 7
        // Predicated region
        $region37: #{convlstm_forward.2} parent=31 // pred_check
          %p4253 = pneg %p4252
        $region38: #{convlstm_forward.2} parent=31 // pred_check_branch
          %4255 = sbr.rel (%p4253) target = $region40
        $region39: #{convlstm_forward.2} parent=31 // pred_region
          %4256 = vst.msk [vmem:[%s226] sm:$0xff] %vm2003, %v3933
          %4257 = vst.msk [vmem:[%s226 + $0x8] sm:$0xff] %vm2003, %v3935
          %4258 = vst.msk [vmem:[%s226 + $0x10] sm:$0xff] %vm2003, %v3937
          %4259 = vst.msk [vmem:[%s226 + $0x18] sm:$0xff] %vm2003, %v3939
          %4260 = vst.msk [vmem:[%s226 + $0x20] sm:$0xff] %vm2003, %v3941
          %4261 = vst.msk [vmem:[%s226 + $0x28] sm:$0xff] %vm2003, %v3943
          %4262 = vst.msk [vmem:[%s226 + $0x30] sm:$0xff] %vm2003, %v3945
          %4263 = vst.msk [vmem:[%s226 + $0x38] sm:$0xff] %vm2003, %v3947
          %4264 = vst.msk [vmem:[%s226 + $0x40] sm:$0xff] %vm2003, %v3949
          %4265 = vst.msk [vmem:[%s226 + $0x48] sm:$0xff] %vm2003, %v3951
          %4266 = vst.msk [vmem:[%s226 + $0x50] sm:$0xff] %vm2003, %v3953
          %4267 = vst.msk [vmem:[%s226 + $0x58] sm:$0xff] %vm2003, %v3955
          %4268 = vst.msk [vmem:[%s226 + $0x60] sm:$0xff] %vm2003, %v3957
          %4269 = vst.msk [vmem:[%s226 + $0x68] sm:$0xff] %vm2003, %v3959
          %4270 = vst.msk [vmem:[%s226 + $0x70] sm:$0xff] %vm2003, %v3961
          %4271 = vst.msk [vmem:[%s226 + $0x78] sm:$0xff] %vm2003, %v3963
          %4272 = vst.msk [vmem:[%s226 + $0x80] sm:$0xff] %vm2003, %v3965
          %4273 = vst.msk [vmem:[%s226 + $0x88] sm:$0xff] %vm2003, %v3967
          %4274 = vst.msk [vmem:[%s226 + $0x90] sm:$0xff] %vm2003, %v3969
          %4275 = vst.msk [vmem:[%s226 + $0x98] sm:$0xff] %vm2003, %v3971
          %4276 = vst.msk [vmem:[%s226 + $0xa0] sm:$0xff] %vm2003, %v3973
          %4277 = vst.msk [vmem:[%s226 + $0xa8] sm:$0xff] %vm2003, %v3975
          %4278 = vst.msk [vmem:[%s226 + $0xb0] sm:$0xff] %vm2003, %v3977
          %4279 = vst.msk [vmem:[%s226 + $0xb8] sm:$0xff] %vm2003, %v3979
          %4280 = vst.msk [vmem:[%s226 + $0xc0] sm:$0xff] %vm2003, %v3981
          %4281 = vst.msk [vmem:[%s226 + $0xc8] sm:$0xff] %vm2003, %v3983
          %4282 = vst.msk [vmem:[%s226 + $0xd0] sm:$0xff] %vm2003, %v3985
          %4283 = vst.msk [vmem:[%s226 + $0xd8] sm:$0xff] %vm2003, %v3987
          %4284 = vst.msk [vmem:[%s226 + $0xe0] sm:$0xff] %vm2003, %v3989
          %4285 = vst.msk [vmem:[%s226 + $0xe8] sm:$0xff] %vm2003, %v3991
          %4286 = vst.msk [vmem:[%s226 + $0xf0] sm:$0xff] %vm2003, %v3993
          %4287 = vst.msk [vmem:[%s226 + $0xf8] sm:$0xff] %vm2003, %v3995
        $region40: #{convlstm_forward.2} parent=31 // pred_fallthru
          _
        %p4288 = scmp.lt.s32.totalorder %s23, 1
        %s4289 = scalar_select %p4288, %s23, 1
        %p4290 = scmp.lt.s32.totalorder %s24, 7
        %s4291 = scalar_select %p4290, %s24, 7
        %s4292 = smul.addr %s4291, 32
        %s4293 = smul.addr %s4289, 256
        %s4294 = sadd.s32 %s4292, %s4293
        %s4295 = smul.addr %s4294, 8
        %s4296 = scalar_lea.vmem %s3, %s4295
        %s4297 = sand.u32 %s137, 1
        %s4298 = scalar_lea.sflag [#allocation6], %s4297
        %s4299 = sand.u32 %s137, 1
        %s4300 = smul.addr %s4299, 256
        %s4301 = scalar_lea.vmem [#allocation5], %s4300
        // Predicated region
        $region41: #{convlstm_forward.2} parent=31 // pred_check
          %p4302 = pneg %p121
        $region42: #{convlstm_forward.2} parent=31 // pred_check_branch
          %4304 = sbr.rel (%p4302) target = $region44
        $region43: #{convlstm_forward.2} parent=31 // pred_region
          _
        $region44: #{convlstm_forward.2} parent=31 // pred_fallthru
          _
        // Predicated region
        $region45: #{convlstm_forward.2} parent=31 // pred_check
          %p4305 = pneg %p147
        $region46: #{convlstm_forward.2} parent=31 // pred_check_branch
          %4307 = sbr.rel (%p4305) target = $region48
        $region47: #{convlstm_forward.2} parent=31 // pred_region
          %4309 = vsyncadd %s4298, 0
          %s4310 = smul.addr %s23, 32
          %s4311 = smul.addr %s4310, 8
          %s4312 = scalar_lea.hbm %s4, %s4311
          %s4313 = sshll.u32 %s4301, 4
          %s4314 = int_to_ptr.vmem [resolvable:$true] %s4313
          %s4315 = sshll.u32 %s4312, 4
          %s4316 = int_to_ptr.hbm [resolvable:$true] %s4315
          %4321 = dma.vmem_to_hbm [thread:$0]  %s4314, 4096, %s4316, %s4298, 128, 128, 8
        $region48: #{convlstm_forward.2} parent=31 // pred_fallthru
          _
      $region32: #{convlstm_forward.2} parent=5 // pred_fallthru
        _
      %p4322 = scmp.le.s32.totalorder 2, %s14
      // Predicated region
      $region49: #{convlstm_forward.2} parent=5 // pred_check
        %p4323 = pneg %p4322
      $region50: #{convlstm_forward.2} parent=5 // pred_check_branch
        %4325 = sbr.rel (%p4323) target = $region52
      $region51: #{convlstm_forward.2} parent=5 // pred_region
        %s4326 = ssub.s32 %s14, 2
        // Predicated region
        $region53: #{convlstm_forward.2} parent=51 // pred_check
          %p4327 = pneg %p127
        $region54: #{convlstm_forward.2} parent=51 // pred_check_branch
          %4329 = sbr.rel (%p4327) target = $region56
        $region55: #{convlstm_forward.2} parent=51 // pred_region
          %p4330 = scmp.lt.s32.totalorder %s25, 1
          %s4331 = scalar_select %p4330, %s25, 1
          %p4332 = scmp.lt.s32.totalorder %s26, 7
          %s4333 = scalar_select %p4332, %s26, 7
          %s4334 = smul.addr %s4333, 32
          %s4335 = smul.addr %s4331, 256
          %s4336 = sadd.s32 %s4334, %s4335
          %s4337 = smul.addr %s4336, 8
          %s4338 = scalar_lea.vmem %s3, %s4337
        $region56: #{convlstm_forward.2} parent=51 // pred_fallthru
          _
        // Predicated region
        $region57: #{convlstm_forward.2} parent=51 // pred_check
          %p4339 = pneg %p153
        $region58: #{convlstm_forward.2} parent=51 // pred_check_branch
          %4341 = sbr.rel (%p4339) target = $region60
        $region59: #{convlstm_forward.2} parent=51 // pred_region
          %s4342 = sand.u32 %s138, 1
          %s4343 = scalar_lea.sflag [#allocation6], %s4342
          %s4344 = sand.u32 %s138, 1
          %s4345 = smul.addr %s4344, 256
          %s4346 = scalar_lea.vmem [#allocation5], %s4345
          %4348 = dma.done %s4343, 4096
        $region60: #{convlstm_forward.2} parent=51 // pred_fallthru
          _
      $region52: #{convlstm_forward.2} parent=5 // pred_fallthru
        _
    $region6: #{convlstm_forward.2} parent=1 // loop_footer
      %s18 = sadd.s32 1, %s14
    $region7: #{convlstm_forward.2} parent=1 // loop_footer_branch
      %13 = sbr.rel target = $region3
    $region8: #{convlstm_forward.2} parent=1 // loop_exit
      _
    %4349 = vsyncpa [#allocation6], 1
    %s4350 = scalar_lea.sflag [#allocation6], 1
    %4351 = vsyncpa %s4350, 1

// kernel: convlstm_forward.3
$region0: #{convlstm_forward.3}
  #allocation0 [shape = 'u32[]', space=smem, size = 0x4, offset = 0x4, fixed_abs, tag = 'smem constant byte address 0x4 - core index']
  #allocation1 [shape = 'u32[72,128]{1,0:T(1,128)}', space=vmem, size = 0x9000, scoped, tag = 'internal scratch']
  #allocation2 [shape = 'f32[18,25,64]{2,1,0:T(8,128)}', space=vmem, size = 0x48000, scoped, tag = 'scratch operand']
  #allocation3 [shape = 'f32[16,16,32]{2,1,0:T(8,128)}', space=vmem, size = 0x20000, scoped, tag = 'scratch operand']
  #allocation4 [shape = 'f32[256,32]{1,0:T(8,128)}', space=vmem, size = 0x20000, scoped, tag = 'scratch operand']
  %s0 = inlined_call_operand.vmem [shape: f32[2,8,16,16,32], index: 0, kind: input, shape index: {}]
  %s1 = inlined_call_operand.vmem [shape: f32[576,128], index: 1, kind: input, shape index: {}]
  %s2 = inlined_call_operand.vmem [shape: f32[1,128], index: 2, kind: input, shape index: {}]
  %s3 = inlined_call_operand.vmem [shape: f32[2,8,256,32], index: 3, kind: output, shape index: {0}]
  %s4 = inlined_call_operand.hbm [shape: f32[2,256,32], index: 4, kind: output, shape index: {1}]
  %5 = xla_tuple %s3, %s4
  %s6 = sld [smem:[#allocation0]]
  $region61: #{convlstm_forward.3} parent=0
    _
  %s8 = ssub.s32 1, %s6
  %s9 = scalar_select 0, %s8, %s6
  $region1: #{convlstm_forward.3} parent=0
    #allocation5 [shape = 'u8[262144]{0}', space=vmem, size = 0x40000, scoped, tag = 'output window, operand 1']
    #allocation6 [shape = 's32[2]{0}', space=sflag, size = 0x8, scoped, tag = 'scoped memory for convlstm_forward.3']
    %10 = vsyncpa [#allocation6], 0
    %s11 = scalar_lea.sflag [#allocation6], 1
    %12 = vsyncpa %s11, 0
    loop: start=0, step=1, limit=18
    $region2: #{convlstm_forward.3} parent=1 // loop_pre_header
      _
    $region3: #{convlstm_forward.3} parent=1 // loop_header
      %s14 = sphi 0, %s18
      %p15 = scmp.ge.s32.totalorder %s14, 18
      %s21 = sphi 0, %s33
      %s22 = sphi 0, %s29
      %s23 = sphi 0, %s21
      %s24 = sphi 0, %s22
      %s25 = sphi 0, %s23
      %s26 = sphi 0, %s24
      %s38 = sphi 0, %s40
      %s41 = sphi 0, %s38
      %s42 = sphi 0, %s41
      %s58 = sphi 0, %s42
      %s62 = sphi 0, %s62
      %s64 = sphi 0, %s62
      %s65 = sphi 0, %s64
      %s79 = sphi 0, %s65
      %s83 = sphi 0, %s83
      %s85 = sphi 0, %s83
      %s86 = sphi 0, %s85
      %s100 = sphi 0, %s86
      %s108 = sphi 0, %s110
      %s111 = sphi 0, %s108
      %s112 = sphi 0, %s111
      %s128 = sphi 0, %s112
      %s134 = sphi 0, %s136
      %s137 = sphi 0, %s134
      %s138 = sphi 0, %s137
      %s154 = sphi 0, %s138
    $region4: #{convlstm_forward.3} parent=1 // loop_header_branch
      %17 = sbr.rel (%p15) target = $region8
    $region5: #{convlstm_forward.3} parent=1 // loop_body
      %s19 = ssub.s32 %s14, 1
      %s20 = ssub.s32 %s14, 2
      %s27 = sadd.s32 1, %s22
      %p28 = scmp.ge.s32.totalorder %s27, 8
      %s29 = scalar_select %p28, 0, %s27
      %s30 = sadd.s32 1, %s21
      %s31 = scalar_select %p28, %s30, %s21
      %p32 = scmp.ge.s32.totalorder %s31, 2
      %s33 = scalar_select %p32, 0, %s31
      %s34 = ssub.s32 %s21, %s33
      %s35 = ssub.s32 %s22, %s29
      %s36 = sor.u32 %s34, %s35
      %p37 = scmp.eq.s32.totalorder %s36, 0
      %s39 = sadd.s32 %s38, 1
      %s40 = scalar_select %p37, %s38, %s39
      %p43 = pneg %p37
      %p44 = scmp.eq.s32.totalorder %s14, 15
      %p45 = por %p43, %p44
      %p46 = scmp.ne.s32.totalorder %s38, %s41
      %p47 = scmp.eq.s32.totalorder %s14, 0
      %p48 = por %p46, %p47
      %p49 = scmp.ne.s32.totalorder %s38, %s41
      %p50 = scmp.eq.s32.totalorder %s19, 15
      %p51 = por %p49, %p50
      %p52 = scmp.ne.s32.totalorder %s41, %s42
      %p53 = scmp.eq.s32.totalorder %s19, 0
      %p54 = por %p52, %p53
      %p55 = scmp.ne.s32.totalorder %s41, %s42
      %p56 = scmp.eq.s32.totalorder %s20, 15
      %p57 = por %p55, %p56
      %p59 = scmp.ne.s32.totalorder %s42, %s58
      %p60 = scmp.eq.s32.totalorder %s20, 0
      %p61 = por %p59, %p60
      %s63 = sadd.s32 %s62, 1
      %p66 = scmp.eq.s32.totalorder %s14, 15
      %p67 = scmp.ne.s32.totalorder %s62, %s64
      %p68 = scmp.eq.s32.totalorder %s14, 0
      %p69 = por %p67, %p68
      %p70 = scmp.ne.s32.totalorder %s62, %s64
      %p71 = scmp.eq.s32.totalorder %s19, 15
      %p72 = por %p70, %p71
      %p73 = scmp.ne.s32.totalorder %s64, %s65
      %p74 = scmp.eq.s32.totalorder %s19, 0
      %p75 = por %p73, %p74
      %p76 = scmp.ne.s32.totalorder %s64, %s65
      %p77 = scmp.eq.s32.totalorder %s20, 15
      %p78 = por %p76, %p77
      %p80 = scmp.ne.s32.totalorder %s65, %s79
      %p81 = scmp.eq.s32.totalorder %s20, 0
      %p82 = por %p80, %p81
      %s84 = sadd.s32 %s83, 1
      %p87 = scmp.eq.s32.totalorder %s14, 15
      %p88 = scmp.ne.s32.totalorder %s83, %s85
      %p89 = scmp.eq.s32.totalorder %s14, 0
      %p90 = por %p88, %p89
      %p91 = scmp.ne.s32.totalorder %s83, %s85
      %p92 = scmp.eq.s32.totalorder %s19, 15
      %p93 = por %p91, %p92
      %p94 = scmp.ne.s32.totalorder %s85, %s86
      %p95 = scmp.eq.s32.totalorder %s19, 0
      %p96 = por %p94, %p95
      %p97 = scmp.ne.s32.totalorder %s85, %s86
      %p98 = scmp.eq.s32.totalorder %s20, 15
      %p99 = por %p97, %p98
      %p101 = scmp.ne.s32.totalorder %s86, %s100
      %p102 = scmp.eq.s32.totalorder %s20, 0
      %p103 = por %p101, %p102
      %s104 = ssub.s32 %s21, %s33
      %s105 = ssub.s32 %s22, %s29
      %s106 = sor.u32 %s104, %s105
      %p107 = scmp.eq.s32.totalorder %s106, 0
      %s109 = sadd.s32 %s108, 1
      %s110 = scalar_select %p107, %s108, %s109
      %p113 = pneg %p107
      %p114 = scmp.eq.s32.totalorder %s14, 15
      %p115 = por %p113, %p114
      %p116 = scmp.ne.s32.totalorder %s108, %s111
      %p117 = scmp.eq.s32.totalorder %s14, 0
      %p118 = por %p116, %p117
      %p119 = scmp.ne.s32.totalorder %s108, %s111
      %p120 = scmp.eq.s32.totalorder %s19, 15
      %p121 = por %p119, %p120
      %p122 = scmp.ne.s32.totalorder %s111, %s112
      %p123 = scmp.eq.s32.totalorder %s19, 0
      %p124 = por %p122, %p123
      %p125 = scmp.ne.s32.totalorder %s111, %s112
      %p126 = scmp.eq.s32.totalorder %s20, 15
      %p127 = por %p125, %p126
      %p129 = scmp.ne.s32.totalorder %s112, %s128
      %p130 = scmp.eq.s32.totalorder %s20, 0
      %p131 = por %p129, %p130
      %s132 = ssub.s32 %s21, %s33
      %p133 = scmp.eq.s32.totalorder %s132, 0
      %s135 = sadd.s32 %s134, 1
      %s136 = scalar_select %p133, %s134, %s135
      %p139 = pneg %p133
      %p140 = scmp.eq.s32.totalorder %s14, 15
      %p141 = por %p139, %p140
      %p142 = scmp.ne.s32.totalorder %s134, %s137
      %p143 = scmp.eq.s32.totalorder %s14, 0
      %p144 = por %p142, %p143
      %p145 = scmp.ne.s32.totalorder %s134, %s137
      %p146 = scmp.eq.s32.totalorder %s19, 15
      %p147 = por %p145, %p146
      %p148 = scmp.ne.s32.totalorder %s137, %s138
      %p149 = scmp.eq.s32.totalorder %s19, 0
      %p150 = por %p148, %p149
      %p151 = scmp.ne.s32.totalorder %s137, %s138
      %p152 = scmp.eq.s32.totalorder %s20, 15
      %p153 = por %p151, %p152
      %p155 = scmp.ne.s32.totalorder %s138, %s154
      %p156 = scmp.eq.s32.totalorder %s20, 0
      %p157 = por %p155, %p156
      %p158 = scmp.le.s32.totalorder 1, %s14
      %p159 = scmp.lt.s32.totalorder %s14, 17
      %p160 = pnand %p158, %p159
      %p161 = pneg %p160
      // Predicated region
      $region9: #{convlstm_forward.3} parent=5 // pred_check
        _
      $region10: #{convlstm_forward.3} parent=5 // pred_check_branch
        %163 = sbr.rel (%p160) target = $region12
      $region11: #{convlstm_forward.3} parent=5 // pred_region
        %s164 = ssub.s32 %s14, 1
        // Predicated region
        $region13: #{convlstm_forward.3} parent=11 // pred_check
          %p165 = pneg %p75
        $region14: #{convlstm_forward.3} parent=11 // pred_check_branch
          %167 = sbr.rel (%p165) target = $region16
        $region15: #{convlstm_forward.3} parent=11 // pred_region
          _
        $region16: #{convlstm_forward.3} parent=11 // pred_fallthru
          _
        // Predicated region
        $region17: #{convlstm_forward.3} parent=11 // pred_check
          %p168 = pneg %p96
        $region18: #{convlstm_forward.3} parent=11 // pred_check_branch
          %170 = sbr.rel (%p168) target = $region20
        $region19: #{convlstm_forward.3} parent=11 // pred_region
          _
        $region20: #{convlstm_forward.3} parent=11 // pred_fallthru
          _
      $region12: #{convlstm_forward.3} parent=5 // pred_fallthru
        _
      %p171 = scmp.lt.s32.totalorder %s14, 16
      // Predicated region
      $region21: #{convlstm_forward.3} parent=5 // pred_check
        %p172 = pneg %p171
      $region22: #{convlstm_forward.3} parent=5 // pred_check_branch
        %174 = sbr.rel (%p172) target = $region24
      $region23: #{convlstm_forward.3} parent=5 // pred_region
        // Predicated region
        $region25: #{convlstm_forward.3} parent=23 // pred_check
          %p175 = pneg %p48
        $region26: #{convlstm_forward.3} parent=23 // pred_check_branch
          %177 = sbr.rel (%p175) target = $region28
        $region27: #{convlstm_forward.3} parent=23 // pred_region
          %p178 = scmp.lt.s32.totalorder %s21, 1
          %s179 = scalar_select %p178, %s21, 1
          %p180 = scmp.lt.s32.totalorder %s22, 7
          %s181 = scalar_select %p180, %s22, 7
          %s182 = smul.addr %s181, 32
          %s183 = smul.addr %s179, 256
          %s184 = sadd.s32 %s182, %s183
          %s185 = smul.addr %s184, 8
          %s186 = scalar_lea.vmem %s0, %s185
        $region28: #{convlstm_forward.3} parent=23 // pred_fallthru
          _
      $region24: #{convlstm_forward.3} parent=5 // pred_fallthru
        _
      %p187 = scmp.le.s32.totalorder 1, %s14
      %p188 = scmp.lt.s32.totalorder %s14, 17
      %p189 = pnand %p187, %p188
      %p190 = pneg %p189
      // Predicated region
      $region29: #{convlstm_forward.3} parent=5 // pred_check
        _
      $region30: #{convlstm_forward.3} parent=5 // pred_check_branch
        %192 = sbr.rel (%p189) target = $region32
      $region31: #{convlstm_forward.3} parent=5 // pred_region
        %s193 = ssub.s32 %s14, 1
        %p194 = scmp.lt.s32.totalorder %s23, 1
        %s195 = scalar_select %p194, %s23, 1
        %p196 = scmp.lt.s32.totalorder %s24, 7
        %s197 = scalar_select %p196, %s24, 7
        %s198 = smul.addr %s197, 32
        %s199 = smul.addr %s195, 256
        %s200 = sadd.s32 %s198, %s199
        %s201 = smul.addr %s200, 8
        %s202 = scalar_lea.vmem %s0, %s201
        %p203 = pneg %p54
        %p204 = pneg %p51
        %p205 = pneg %p75
        %p206 = pneg %p72
        %p207 = pneg %p96
        %p208 = pneg %p93
        %p209 = pneg %p124
        %p210 = pneg %p121
        %p211 = scmp.lt.s32.totalorder %s23, 1
        %s212 = scalar_select %p211, %s23, 1
        %p213 = scmp.lt.s32.totalorder %s24, 7
        %s214 = scalar_select %p213, %s24, 7
        %s215 = smul.addr %s214, 32
        %s216 = smul.addr %s212, 256
        %s217 = sadd.s32 %s215, %s216
        %s218 = smul.addr %s217, 8
        %s219 = scalar_lea.vmem %s3, %s218
        %p220 = pneg %p150
        %p221 = pneg %p147
        %s222 = sand.u32 %s137, 1
        %s223 = scalar_lea.sflag [#allocation6], %s222
        %s224 = sand.u32 %s137, 1
        %s225 = smul.addr %s224, 256
        %s226 = scalar_lea.vmem [#allocation5], %s225
        %p227 = scmp.lt.s32.totalorder %s23, 1
        %s228 = scalar_select %p227, %s23, 1
        %p229 = scmp.lt.s32.totalorder %s24, 7
        %s230 = scalar_select %p229, %s24, 7
        %s231 = smul.addr %s230, 32
        %s232 = smul.addr %s228, 256
        %s233 = sadd.s32 %s231, %s232
        %s234 = smul.addr %s233, 8
        %s235 = scalar_lea.vmem %s0, %s234
        %p236 = scmp.lt.s32.totalorder %s23, 1
        %s237 = scalar_select %p236, %s23, 1
        %p238 = scmp.lt.s32.totalorder %s24, 7
        %s239 = scalar_select %p238, %s24, 7
        %s240 = smul.addr %s239, 32
        %s241 = smul.addr %s237, 256
        %s242 = sadd.s32 %s240, %s241
        %s243 = smul.addr %s242, 8
        %s244 = scalar_lea.vmem %s3, %s243
        %p245 = scmp.eq.s32.totalorder %s24, 0
        // Predicated region
        $region33: #{convlstm_forward.3} parent=31 // pred_check
          %p246 = pneg %p245
        $region34: #{convlstm_forward.3} parent=31 // pred_check_branch
          %248 = sbr.rel (%p246) target = $region36
        $region35: #{convlstm_forward.3} parent=31 // pred_region
          %vm249 = vcmask 523264
          %250 = vst.msk [vmem:[#allocation2] sm:$0xff] %vm249, 0.0
          %251 = vst.msk [vmem:[#allocation2 + $0x8] sm:$0xff] %vm249, 0.0
          %252 = vst.msk [vmem:[#allocation2 + $0x10] sm:$0xff] %vm249, 0.0
          %vm253 = vcmask 516096
          %254 = vst.msk [vmem:[#allocation2 + $0x18] sm:$0x1] %vm253, 0.0
          %255 = vst.msk [vmem:[#allocation2 + $0x20] sm:$0xff] %vm249, 0.0
          %256 = vst.msk [vmem:[#allocation2 + $0x28] sm:$0xff] %vm249, 0.0
          %257 = vst.msk [vmem:[#allocation2 + $0x30] sm:$0xff] %vm249, 0.0
          %258 = vst.msk [vmem:[#allocation2 + $0x38] sm:$0x1] %vm253, 0.0
          %259 = vst.msk [vmem:[#allocation2 + $0x40] sm:$0xff] %vm249, 0.0
          %260 = vst.msk [vmem:[#allocation2 + $0x48] sm:$0xff] %vm249, 0.0
          %261 = vst.msk [vmem:[#allocation2 + $0x50] sm:$0xff] %vm249, 0.0
          %262 = vst.msk [vmem:[#allocation2 + $0x58] sm:$0x1] %vm253, 0.0
          %263 = vst.msk [vmem:[#allocation2 + $0x60] sm:$0xff] %vm249, 0.0
          %264 = vst.msk [vmem:[#allocation2 + $0x68] sm:$0xff] %vm249, 0.0
          %265 = vst.msk [vmem:[#allocation2 + $0x70] sm:$0xff] %vm249, 0.0
          %266 = vst.msk [vmem:[#allocation2 + $0x78] sm:$0x1] %vm253, 0.0
          %267 = vst.msk [vmem:[#allocation2 + $0x80] sm:$0xff] %vm249, 0.0
          %268 = vst.msk [vmem:[#allocation2 + $0x88] sm:$0xff] %vm249, 0.0
          %269 = vst.msk [vmem:[#allocation2 + $0x90] sm:$0xff] %vm249, 0.0
          %270 = vst.msk [vmem:[#allocation2 + $0x98] sm:$0x1] %vm253, 0.0
          %271 = vst.msk [vmem:[#allocation2 + $0xa0] sm:$0xff] %vm249, 0.0
          %272 = vst.msk [vmem:[#allocation2 + $0xa8] sm:$0xff] %vm249, 0.0
          %273 = vst.msk [vmem:[#allocation2 + $0xb0] sm:$0xff] %vm249, 0.0
          %274 = vst.msk [vmem:[#allocation2 + $0xb8] sm:$0x1] %vm253, 0.0
          %275 = vst.msk [vmem:[#allocation2 + $0xc0] sm:$0xff] %vm249, 0.0
          %276 = vst.msk [vmem:[#allocation2 + $0xc8] sm:$0xff] %vm249, 0.0
          %277 = vst.msk [vmem:[#allocation2 + $0xd0] sm:$0xff] %vm249, 0.0
          %278 = vst.msk [vmem:[#allocation2 + $0xd8] sm:$0x1] %vm253, 0.0
          %279 = vst.msk [vmem:[#allocation2 + $0xe0] sm:$0xff] %vm249, 0.0
          %280 = vst.msk [vmem:[#allocation2 + $0xe8] sm:$0xff] %vm249, 0.0
          %281 = vst.msk [vmem:[#allocation2 + $0xf0] sm:$0xff] %vm249, 0.0
          %282 = vst.msk [vmem:[#allocation2 + $0xf8] sm:$0x1] %vm253, 0.0
          %283 = vst.msk [vmem:[#allocation2 + $0x100] sm:$0xff] %vm249, 0.0
          %284 = vst.msk [vmem:[#allocation2 + $0x108] sm:$0xff] %vm249, 0.0
          %285 = vst.msk [vmem:[#allocation2 + $0x110] sm:$0xff] %vm249, 0.0
          %286 = vst.msk [vmem:[#allocation2 + $0x118] sm:$0x1] %vm253, 0.0
          %287 = vst.msk [vmem:[#allocation2 + $0x120] sm:$0xff] %vm249, 0.0
          %288 = vst.msk [vmem:[#allocation2 + $0x128] sm:$0xff] %vm249, 0.0
          %289 = vst.msk [vmem:[#allocation2 + $0x130] sm:$0xff] %vm249, 0.0
          %290 = vst.msk [vmem:[#allocation2 + $0x138] sm:$0x1] %vm253, 0.0
          %291 = vst.msk [vmem:[#allocation2 + $0x140] sm:$0xff] %vm249, 0.0
          %292 = vst.msk [vmem:[#allocation2 + $0x148] sm:$0xff] %vm249, 0.0
          %293 = vst.msk [vmem:[#allocation2 + $0x150] sm:$0xff] %vm249, 0.0
          %294 = vst.msk [vmem:[#allocation2 + $0x158] sm:$0x1] %vm253, 0.0
          %295 = vst.msk [vmem:[#allocation2 + $0x160] sm:$0xff] %vm249, 0.0
          %296 = vst.msk [vmem:[#allocation2 + $0x168] sm:$0xff] %vm249, 0.0
          %297 = vst.msk [vmem:[#allocation2 + $0x170] sm:$0xff] %vm249, 0.0
          %298 = vst.msk [vmem:[#allocation2 + $0x178] sm:$0x1] %vm253, 0.0
          %299 = vst.msk [vmem:[#allocation2 + $0x180] sm:$0xff] %vm249, 0.0
          %300 = vst.msk [vmem:[#allocation2 + $0x188] sm:$0xff] %vm249, 0.0
          %301 = vst.msk [vmem:[#allocation2 + $0x190] sm:$0xff] %vm249, 0.0
          %302 = vst.msk [vmem:[#allocation2 + $0x198] sm:$0x1] %vm253, 0.0
          %303 = vst.msk [vmem:[#allocation2 + $0x1a0] sm:$0xff] %vm249, 0.0
          %304 = vst.msk [vmem:[#allocation2 + $0x1a8] sm:$0xff] %vm249, 0.0
          %305 = vst.msk [vmem:[#allocation2 + $0x1b0] sm:$0xff] %vm249, 0.0
          %306 = vst.msk [vmem:[#allocation2 + $0x1b8] sm:$0x1] %vm253, 0.0
          %307 = vst.msk [vmem:[#allocation2 + $0x1c0] sm:$0xff] %vm249, 0.0
          %308 = vst.msk [vmem:[#allocation2 + $0x1c8] sm:$0xff] %vm249, 0.0
          %309 = vst.msk [vmem:[#allocation2 + $0x1d0] sm:$0xff] %vm249, 0.0
          %310 = vst.msk [vmem:[#allocation2 + $0x1d8] sm:$0x1] %vm253, 0.0
          %311 = vst.msk [vmem:[#allocation2 + $0x1e0] sm:$0xff] %vm249, 0.0
          %312 = vst.msk [vmem:[#allocation2 + $0x1e8] sm:$0xff] %vm249, 0.0
          %313 = vst.msk [vmem:[#allocation2 + $0x1f0] sm:$0xff] %vm249, 0.0
          %314 = vst.msk [vmem:[#allocation2 + $0x1f8] sm:$0x1] %vm253, 0.0
          %315 = vst.msk [vmem:[#allocation2 + $0x200] sm:$0xff] %vm249, 0.0
          %316 = vst.msk [vmem:[#allocation2 + $0x208] sm:$0xff] %vm249, 0.0
          %317 = vst.msk [vmem:[#allocation2 + $0x210] sm:$0xff] %vm249, 0.0
          %318 = vst.msk [vmem:[#allocation2 + $0x218] sm:$0x1] %vm253, 0.0
          %319 = vst.msk [vmem:[#allocation2 + $0x220] sm:$0xff] %vm249, 0.0
          %320 = vst.msk [vmem:[#allocation2 + $0x228] sm:$0xff] %vm249, 0.0
          %321 = vst.msk [vmem:[#allocation2 + $0x230] sm:$0xff] %vm249, 0.0
          %322 = vst.msk [vmem:[#allocation2 + $0x238] sm:$0x1] %vm253, 0.0
          %vm323 = vcmask 261120
          %324 = vst.msk [vmem:[#allocation3] sm:$0xff] %vm323, 0.0
          %325 = vst.msk [vmem:[#allocation3 + $0x8] sm:$0xff] %vm323, 0.0
          %326 = vst.msk [vmem:[#allocation3 + $0x10] sm:$0xff] %vm323, 0.0
          %327 = vst.msk [vmem:[#allocation3 + $0x18] sm:$0xff] %vm323, 0.0
          %328 = vst.msk [vmem:[#allocation3 + $0x20] sm:$0xff] %vm323, 0.0
          %329 = vst.msk [vmem:[#allocation3 + $0x28] sm:$0xff] %vm323, 0.0
          %330 = vst.msk [vmem:[#allocation3 + $0x30] sm:$0xff] %vm323, 0.0
          %331 = vst.msk [vmem:[#allocation3 + $0x38] sm:$0xff] %vm323, 0.0
          %332 = vst.msk [vmem:[#allocation3 + $0x40] sm:$0xff] %vm323, 0.0
          %333 = vst.msk [vmem:[#allocation3 + $0x48] sm:$0xff] %vm323, 0.0
          %334 = vst.msk [vmem:[#allocation3 + $0x50] sm:$0xff] %vm323, 0.0
          %335 = vst.msk [vmem:[#allocation3 + $0x58] sm:$0xff] %vm323, 0.0
          %336 = vst.msk [vmem:[#allocation3 + $0x60] sm:$0xff] %vm323, 0.0
          %337 = vst.msk [vmem:[#allocation3 + $0x68] sm:$0xff] %vm323, 0.0
          %338 = vst.msk [vmem:[#allocation3 + $0x70] sm:$0xff] %vm323, 0.0
          %339 = vst.msk [vmem:[#allocation3 + $0x78] sm:$0xff] %vm323, 0.0
          %340 = vst.msk [vmem:[#allocation3 + $0x80] sm:$0xff] %vm323, 0.0
          %341 = vst.msk [vmem:[#allocation3 + $0x88] sm:$0xff] %vm323, 0.0
          %342 = vst.msk [vmem:[#allocation3 + $0x90] sm:$0xff] %vm323, 0.0
          %343 = vst.msk [vmem:[#allocation3 + $0x98] sm:$0xff] %vm323, 0.0
          %344 = vst.msk [vmem:[#allocation3 + $0xa0] sm:$0xff] %vm323, 0.0
          %345 = vst.msk [vmem:[#allocation3 + $0xa8] sm:$0xff] %vm323, 0.0
          %346 = vst.msk [vmem:[#allocation3 + $0xb0] sm:$0xff] %vm323, 0.0
          %347 = vst.msk [vmem:[#allocation3 + $0xb8] sm:$0xff] %vm323, 0.0
          %348 = vst.msk [vmem:[#allocation3 + $0xc0] sm:$0xff] %vm323, 0.0
          %349 = vst.msk [vmem:[#allocation3 + $0xc8] sm:$0xff] %vm323, 0.0
          %350 = vst.msk [vmem:[#allocation3 + $0xd0] sm:$0xff] %vm323, 0.0
          %351 = vst.msk [vmem:[#allocation3 + $0xd8] sm:$0xff] %vm323, 0.0
          %352 = vst.msk [vmem:[#allocation3 + $0xe0] sm:$0xff] %vm323, 0.0
          %353 = vst.msk [vmem:[#allocation3 + $0xe8] sm:$0xff] %vm323, 0.0
          %354 = vst.msk [vmem:[#allocation3 + $0xf0] sm:$0xff] %vm323, 0.0
          %355 = vst.msk [vmem:[#allocation3 + $0xf8] sm:$0xff] %vm323, 0.0
          %356 = vst.msk [vmem:[#allocation4] sm:$0xff] %vm323, 0.0
          %357 = vst.msk [vmem:[#allocation4 + $0x8] sm:$0xff] %vm323, 0.0
          %358 = vst.msk [vmem:[#allocation4 + $0x10] sm:$0xff] %vm323, 0.0
          %359 = vst.msk [vmem:[#allocation4 + $0x18] sm:$0xff] %vm323, 0.0
          %360 = vst.msk [vmem:[#allocation4 + $0x20] sm:$0xff] %vm323, 0.0
          %361 = vst.msk [vmem:[#allocation4 + $0x28] sm:$0xff] %vm323, 0.0
          %362 = vst.msk [vmem:[#allocation4 + $0x30] sm:$0xff] %vm323, 0.0
          %363 = vst.msk [vmem:[#allocation4 + $0x38] sm:$0xff] %vm323, 0.0
          %364 = vst.msk [vmem:[#allocation4 + $0x40] sm:$0xff] %vm323, 0.0
          %365 = vst.msk [vmem:[#allocation4 + $0x48] sm:$0xff] %vm323, 0.0
          %366 = vst.msk [vmem:[#allocation4 + $0x50] sm:$0xff] %vm323, 0.0
          %367 = vst.msk [vmem:[#allocation4 + $0x58] sm:$0xff] %vm323, 0.0
          %368 = vst.msk [vmem:[#allocation4 + $0x60] sm:$0xff] %vm323, 0.0
          %369 = vst.msk [vmem:[#allocation4 + $0x68] sm:$0xff] %vm323, 0.0
          %370 = vst.msk [vmem:[#allocation4 + $0x70] sm:$0xff] %vm323, 0.0
          %371 = vst.msk [vmem:[#allocation4 + $0x78] sm:$0xff] %vm323, 0.0
          %372 = vst.msk [vmem:[#allocation4 + $0x80] sm:$0xff] %vm323, 0.0
          %373 = vst.msk [vmem:[#allocation4 + $0x88] sm:$0xff] %vm323, 0.0
          %374 = vst.msk [vmem:[#allocation4 + $0x90] sm:$0xff] %vm323, 0.0
          %375 = vst.msk [vmem:[#allocation4 + $0x98] sm:$0xff] %vm323, 0.0
          %376 = vst.msk [vmem:[#allocation4 + $0xa0] sm:$0xff] %vm323, 0.0
          %377 = vst.msk [vmem:[#allocation4 + $0xa8] sm:$0xff] %vm323, 0.0
          %378 = vst.msk [vmem:[#allocation4 + $0xb0] sm:$0xff] %vm323, 0.0
          %379 = vst.msk [vmem:[#allocation4 + $0xb8] sm:$0xff] %vm323, 0.0
          %380 = vst.msk [vmem:[#allocation4 + $0xc0] sm:$0xff] %vm323, 0.0
          %381 = vst.msk [vmem:[#allocation4 + $0xc8] sm:$0xff] %vm323, 0.0
          %382 = vst.msk [vmem:[#allocation4 + $0xd0] sm:$0xff] %vm323, 0.0
          %383 = vst.msk [vmem:[#allocation4 + $0xd8] sm:$0xff] %vm323, 0.0
          %384 = vst.msk [vmem:[#allocation4 + $0xe0] sm:$0xff] %vm323, 0.0
          %385 = vst.msk [vmem:[#allocation4 + $0xe8] sm:$0xff] %vm323, 0.0
          %386 = vst.msk [vmem:[#allocation4 + $0xf0] sm:$0xff] %vm323, 0.0
          %387 = vst.msk [vmem:[#allocation4 + $0xf8] sm:$0xff] %vm323, 0.0
        $region36: #{convlstm_forward.3} parent=31 // pred_fallthru
          _
        %v388 = vld [vmem:[%s235] sm:$0xff]
        %v389 = vld [vmem:[%s235 + $0x8] sm:$0xff]
        %v390 = vld [vmem:[%s235 + $0x10] sm:$0xff]
        %v391 = vld [vmem:[%s235 + $0x18] sm:$0xff]
        %v392 = vld [vmem:[%s235 + $0x20] sm:$0xff]
        %v393 = vld [vmem:[%s235 + $0x28] sm:$0xff]
        %v394 = vld [vmem:[%s235 + $0x30] sm:$0xff]
        %v395 = vld [vmem:[%s235 + $0x38] sm:$0xff]
        %v396 = vld [vmem:[%s235 + $0x40] sm:$0xff]
        %v397 = vld [vmem:[%s235 + $0x48] sm:$0xff]
        %v398 = vld [vmem:[%s235 + $0x50] sm:$0xff]
        %v399 = vld [vmem:[%s235 + $0x58] sm:$0xff]
        %v400 = vld [vmem:[%s235 + $0x60] sm:$0xff]
        %v401 = vld [vmem:[%s235 + $0x68] sm:$0xff]
        %v402 = vld [vmem:[%s235 + $0x70] sm:$0xff]
        %v403 = vld [vmem:[%s235 + $0x78] sm:$0xff]
        %v404 = vld [vmem:[%s235 + $0x80] sm:$0xff]
        %v405 = vld [vmem:[%s235 + $0x88] sm:$0xff]
        %v406 = vld [vmem:[%s235 + $0x90] sm:$0xff]
        %v407 = vld [vmem:[%s235 + $0x98] sm:$0xff]
        %v408 = vld [vmem:[%s235 + $0xa0] sm:$0xff]
        %v409 = vld [vmem:[%s235 + $0xa8] sm:$0xff]
        %v410 = vld [vmem:[%s235 + $0xb0] sm:$0xff]
        %v411 = vld [vmem:[%s235 + $0xb8] sm:$0xff]
        %v412 = vld [vmem:[%s235 + $0xc0] sm:$0xff]
        %v413 = vld [vmem:[%s235 + $0xc8] sm:$0xff]
        %v414 = vld [vmem:[%s235 + $0xd0] sm:$0xff]
        %v415 = vld [vmem:[%s235 + $0xd8] sm:$0xff]
        %v416 = vld [vmem:[%s235 + $0xe0] sm:$0xff]
        %v417 = vld [vmem:[%s235 + $0xe8] sm:$0xff]
        %v418 = vld [vmem:[%s235 + $0xf0] sm:$0xff]
        %v419 = vld [vmem:[%s235 + $0xf8] sm:$0xff]
        %v420 = vld [vmem:[#allocation3] sm:$0xff]
        %v421 = vld [vmem:[#allocation3 + $0x8] sm:$0xff]
        %v422 = vld [vmem:[#allocation3 + $0x10] sm:$0xff]
        %v423 = vld [vmem:[#allocation3 + $0x18] sm:$0xff]
        %v424 = vld [vmem:[#allocation3 + $0x20] sm:$0xff]
        %v425 = vld [vmem:[#allocation3 + $0x28] sm:$0xff]
        %v426 = vld [vmem:[#allocation3 + $0x30] sm:$0xff]
        %v427 = vld [vmem:[#allocation3 + $0x38] sm:$0xff]
        %v428 = vld [vmem:[#allocation3 + $0x40] sm:$0xff]
        %v429 = vld [vmem:[#allocation3 + $0x48] sm:$0xff]
        %v430 = vld [vmem:[#allocation3 + $0x50] sm:$0xff]
        %v431 = vld [vmem:[#allocation3 + $0x58] sm:$0xff]
        %v432 = vld [vmem:[#allocation3 + $0x60] sm:$0xff]
        %v433 = vld [vmem:[#allocation3 + $0x68] sm:$0xff]
        %v434 = vld [vmem:[#allocation3 + $0x70] sm:$0xff]
        %v435 = vld [vmem:[#allocation3 + $0x78] sm:$0xff]
        %v436 = vld [vmem:[#allocation3 + $0x80] sm:$0xff]
        %v437 = vld [vmem:[#allocation3 + $0x88] sm:$0xff]
        %v438 = vld [vmem:[#allocation3 + $0x90] sm:$0xff]
        %v439 = vld [vmem:[#allocation3 + $0x98] sm:$0xff]
        %v440 = vld [vmem:[#allocation3 + $0xa0] sm:$0xff]
        %v441 = vld [vmem:[#allocation3 + $0xa8] sm:$0xff]
        %v442 = vld [vmem:[#allocation3 + $0xb0] sm:$0xff]
        %v443 = vld [vmem:[#allocation3 + $0xb8] sm:$0xff]
        %v444 = vld [vmem:[#allocation3 + $0xc0] sm:$0xff]
        %v445 = vld [vmem:[#allocation3 + $0xc8] sm:$0xff]
        %v446 = vld [vmem:[#allocation3 + $0xd0] sm:$0xff]
        %v447 = vld [vmem:[#allocation3 + $0xd8] sm:$0xff]
        %v448 = vld [vmem:[#allocation3 + $0xe0] sm:$0xff]
        %v449 = vld [vmem:[#allocation3 + $0xe8] sm:$0xff]
        %v450 = vld [vmem:[#allocation3 + $0xf0] sm:$0xff]
        %v451 = vld [vmem:[#allocation3 + $0xf8] sm:$0xff]
        %484 = vrot.lane.b32.xlu0 %v420, 32
        %v485 = vpop.permute.xlu0 %484
        %486 = vrot.lane.b32.xlu0 %v421, 32
        %v487 = vpop.permute.xlu0 %486
        %488 = vrot.lane.b32.xlu0 %v422, 32
        %v489 = vpop.permute.xlu0 %488
        %490 = vrot.lane.b32.xlu0 %v423, 32
        %v491 = vpop.permute.xlu0 %490
        %492 = vrot.lane.b32.xlu0 %v424, 32
        %v493 = vpop.permute.xlu0 %492
        %494 = vrot.lane.b32.xlu0 %v425, 32
        %v495 = vpop.permute.xlu0 %494
        %496 = vrot.lane.b32.xlu0 %v426, 32
        %v497 = vpop.permute.xlu0 %496
        %498 = vrot.lane.b32.xlu0 %v427, 32
        %v499 = vpop.permute.xlu0 %498
        %500 = vrot.lane.b32.xlu0 %v428, 32
        %v501 = vpop.permute.xlu0 %500
        %502 = vrot.lane.b32.xlu0 %v429, 32
        %v503 = vpop.permute.xlu0 %502
        %504 = vrot.lane.b32.xlu0 %v430, 32
        %v505 = vpop.permute.xlu0 %504
        %506 = vrot.lane.b32.xlu0 %v431, 32
        %v507 = vpop.permute.xlu0 %506
        %508 = vrot.lane.b32.xlu0 %v432, 32
        %v509 = vpop.permute.xlu0 %508
        %510 = vrot.lane.b32.xlu0 %v433, 32
        %v511 = vpop.permute.xlu0 %510
        %512 = vrot.lane.b32.xlu0 %v434, 32
        %v513 = vpop.permute.xlu0 %512
        %514 = vrot.lane.b32.xlu0 %v435, 32
        %v515 = vpop.permute.xlu0 %514
        %516 = vrot.lane.b32.xlu0 %v436, 32
        %v517 = vpop.permute.xlu0 %516
        %518 = vrot.lane.b32.xlu0 %v437, 32
        %v519 = vpop.permute.xlu0 %518
        %520 = vrot.lane.b32.xlu0 %v438, 32
        %v521 = vpop.permute.xlu0 %520
        %522 = vrot.lane.b32.xlu0 %v439, 32
        %v523 = vpop.permute.xlu0 %522
        %524 = vrot.lane.b32.xlu0 %v440, 32
        %v525 = vpop.permute.xlu0 %524
        %526 = vrot.lane.b32.xlu0 %v441, 32
        %v527 = vpop.permute.xlu0 %526
        %528 = vrot.lane.b32.xlu0 %v442, 32
        %v529 = vpop.permute.xlu0 %528
        %530 = vrot.lane.b32.xlu0 %v443, 32
        %v531 = vpop.permute.xlu0 %530
        %532 = vrot.lane.b32.xlu0 %v444, 32
        %v533 = vpop.permute.xlu0 %532
        %534 = vrot.lane.b32.xlu0 %v445, 32
        %v535 = vpop.permute.xlu0 %534
        %536 = vrot.lane.b32.xlu0 %v446, 32
        %v537 = vpop.permute.xlu0 %536
        %538 = vrot.lane.b32.xlu0 %v447, 32
        %v539 = vpop.permute.xlu0 %538
        %540 = vrot.lane.b32.xlu0 %v448, 32
        %v541 = vpop.permute.xlu0 %540
        %542 = vrot.lane.b32.xlu0 %v449, 32
        %v543 = vpop.permute.xlu0 %542
        %544 = vrot.lane.b32.xlu0 %v450, 32
        %v545 = vpop.permute.xlu0 %544
        %546 = vrot.lane.b32.xlu0 %v451, 32
        %v547 = vpop.permute.xlu0 %546
        %vm580 = vcmask 261120
        %v581 = vsel %vm580, %v388, %v485
        %v582 = vsel %vm580, %v389, %v487
        %v583 = vsel %vm580, %v390, %v489
        %v584 = vsel %vm580, %v391, %v491
        %v585 = vsel %vm580, %v392, %v493
        %v586 = vsel %vm580, %v393, %v495
        %v587 = vsel %vm580, %v394, %v497
        %v588 = vsel %vm580, %v395, %v499
        %v589 = vsel %vm580, %v396, %v501
        %v590 = vsel %vm580, %v397, %v503
        %v591 = vsel %vm580, %v398, %v505
        %v592 = vsel %vm580, %v399, %v507
        %v593 = vsel %vm580, %v400, %v509
        %v594 = vsel %vm580, %v401, %v511
        %v595 = vsel %vm580, %v402, %v513
        %v596 = vsel %vm580, %v403, %v515
        %v597 = vsel %vm580, %v404, %v517
        %v598 = vsel %vm580, %v405, %v519
        %v599 = vsel %vm580, %v406, %v521
        %v600 = vsel %vm580, %v407, %v523
        %v601 = vsel %vm580, %v408, %v525
        %v602 = vsel %vm580, %v409, %v527
        %v603 = vsel %vm580, %v410, %v529
        %v604 = vsel %vm580, %v411, %v531
        %v605 = vsel %vm580, %v412, %v533
        %v606 = vsel %vm580, %v413, %v535
        %v607 = vsel %vm580, %v414, %v537
        %v608 = vsel %vm580, %v415, %v539
        %v609 = vsel %vm580, %v416, %v541
        %v610 = vsel %vm580, %v417, %v543
        %v611 = vsel %vm580, %v418, %v545
        %v612 = vsel %vm580, %v419, %v547
        %s613 = scalar_lea.vmem [#allocation2], 32
        %vm614 = vcmask 523264
        %615 = vst.msk [vmem:[%s613 + $0x8] sm:$0xff] %vm614, %v581
        %616 = vst.msk [vmem:[%s613 + $0x10] sm:$0xff] %vm614, %v582
        %617 = vst.msk [vmem:[%s613 + $0x28] sm:$0xff] %vm614, %v583
        %618 = vst.msk [vmem:[%s613 + $0x30] sm:$0xff] %vm614, %v584
        %619 = vst.msk [vmem:[%s613 + $0x48] sm:$0xff] %vm614, %v585
        %620 = vst.msk [vmem:[%s613 + $0x50] sm:$0xff] %vm614, %v586
        %621 = vst.msk [vmem:[%s613 + $0x68] sm:$0xff] %vm614, %v587
        %622 = vst.msk [vmem:[%s613 + $0x70] sm:$0xff] %vm614, %v588
        %623 = vst.msk [vmem:[%s613 + $0x88] sm:$0xff] %vm614, %v589
        %624 = vst.msk [vmem:[%s613 + $0x90] sm:$0xff] %vm614, %v590
        %625 = vst.msk [vmem:[%s613 + $0xa8] sm:$0xff] %vm614, %v591
        %626 = vst.msk [vmem:[%s613 + $0xb0] sm:$0xff] %vm614, %v592
        %627 = vst.msk [vmem:[%s613 + $0xc8] sm:$0xff] %vm614, %v593
        %628 = vst.msk [vmem:[%s613 + $0xd0] sm:$0xff] %vm614, %v594
        %629 = vst.msk [vmem:[%s613 + $0xe8] sm:$0xff] %vm614, %v595
        %630 = vst.msk [vmem:[%s613 + $0xf0] sm:$0xff] %vm614, %v596
        %631 = vst.msk [vmem:[%s613 + $0x108] sm:$0xff] %vm614, %v597
        %632 = vst.msk [vmem:[%s613 + $0x110] sm:$0xff] %vm614, %v598
        %633 = vst.msk [vmem:[%s613 + $0x128] sm:$0xff] %vm614, %v599
        %634 = vst.msk [vmem:[%s613 + $0x130] sm:$0xff] %vm614, %v600
        %635 = vst.msk [vmem:[%s613 + $0x148] sm:$0xff] %vm614, %v601
        %636 = vst.msk [vmem:[%s613 + $0x150] sm:$0xff] %vm614, %v602
        %637 = vst.msk [vmem:[%s613 + $0x168] sm:$0xff] %vm614, %v603
        %638 = vst.msk [vmem:[%s613 + $0x170] sm:$0xff] %vm614, %v604
        %639 = vst.msk [vmem:[%s613 + $0x188] sm:$0xff] %vm614, %v605
        %640 = vst.msk [vmem:[%s613 + $0x190] sm:$0xff] %vm614, %v606
        %641 = vst.msk [vmem:[%s613 + $0x1a8] sm:$0xff] %vm614, %v607
        %642 = vst.msk [vmem:[%s613 + $0x1b0] sm:$0xff] %vm614, %v608
        %643 = vst.msk [vmem:[%s613 + $0x1c8] sm:$0xff] %vm614, %v609
        %644 = vst.msk [vmem:[%s613 + $0x1d0] sm:$0xff] %vm614, %v610
        %645 = vst.msk [vmem:[%s613 + $0x1e8] sm:$0xff] %vm614, %v611
        %646 = vst.msk [vmem:[%s613 + $0x1f0] sm:$0xff] %vm614, %v612
        %v647 = vld [vmem:[#allocation2] sm:$0xff]
        %v648 = vld [vmem:[#allocation2 + $0x8] sm:$0xff]
        %v649 = vld [vmem:[#allocation2 + $0x10] sm:$0xff]
        %v650 = vld [vmem:[#allocation2 + $0x18] sm:$0x1]
        %v651 = vld [vmem:[#allocation2 + $0x20] sm:$0xff]
        %v652 = vld [vmem:[#allocation2 + $0x28] sm:$0xff]
        %v653 = vld [vmem:[#allocation2 + $0x30] sm:$0xff]
        %v654 = vld [vmem:[#allocation2 + $0x38] sm:$0x1]
        %v655 = vld [vmem:[#allocation2 + $0x40] sm:$0xff]
        %v656 = vld [vmem:[#allocation2 + $0x48] sm:$0xff]
        %v657 = vld [vmem:[#allocation2 + $0x50] sm:$0xff]
        %v658 = vld [vmem:[#allocation2 + $0x58] sm:$0x1]
        %v659 = vld [vmem:[#allocation2 + $0x60] sm:$0xff]
        %v660 = vld [vmem:[#allocation2 + $0x68] sm:$0xff]
        %v661 = vld [vmem:[#allocation2 + $0x70] sm:$0xff]
        %v662 = vld [vmem:[#allocation2 + $0x78] sm:$0x1]
        %v663 = vld [vmem:[#allocation2 + $0x80] sm:$0xff]
        %v664 = vld [vmem:[#allocation2 + $0x88] sm:$0xff]
        %v665 = vld [vmem:[#allocation2 + $0x90] sm:$0xff]
        %v666 = vld [vmem:[#allocation2 + $0x98] sm:$0x1]
        %v667 = vld [vmem:[#allocation2 + $0xa0] sm:$0xff]
        %v668 = vld [vmem:[#allocation2 + $0xa8] sm:$0xff]
        %v669 = vld [vmem:[#allocation2 + $0xb0] sm:$0xff]
        %v670 = vld [vmem:[#allocation2 + $0xb8] sm:$0x1]
        %v671 = vld [vmem:[#allocation2 + $0xc0] sm:$0xff]
        %v672 = vld [vmem:[#allocation2 + $0xc8] sm:$0xff]
        %v673 = vld [vmem:[#allocation2 + $0xd0] sm:$0xff]
        %v674 = vld [vmem:[#allocation2 + $0xd8] sm:$0x1]
        %v675 = vld [vmem:[#allocation2 + $0xe0] sm:$0xff]
        %v676 = vld [vmem:[#allocation2 + $0xe8] sm:$0xff]
        %v677 = vld [vmem:[#allocation2 + $0xf0] sm:$0xff]
        %v678 = vld [vmem:[#allocation2 + $0xf8] sm:$0x1]
        %v679 = vld [vmem:[#allocation2 + $0x100] sm:$0xff]
        %v680 = vld [vmem:[#allocation2 + $0x108] sm:$0xff]
        %v681 = vld [vmem:[#allocation2 + $0x110] sm:$0xff]
        %v682 = vld [vmem:[#allocation2 + $0x118] sm:$0x1]
        %v683 = vld [vmem:[#allocation2 + $0x120] sm:$0xff]
        %v684 = vld [vmem:[#allocation2 + $0x128] sm:$0xff]
        %v685 = vld [vmem:[#allocation2 + $0x130] sm:$0xff]
        %v686 = vld [vmem:[#allocation2 + $0x138] sm:$0x1]
        %v687 = vld [vmem:[#allocation2 + $0x140] sm:$0xff]
        %v688 = vld [vmem:[#allocation2 + $0x148] sm:$0xff]
        %v689 = vld [vmem:[#allocation2 + $0x150] sm:$0xff]
        %v690 = vld [vmem:[#allocation2 + $0x158] sm:$0x1]
        %v691 = vld [vmem:[#allocation2 + $0x160] sm:$0xff]
        %v692 = vld [vmem:[#allocation2 + $0x168] sm:$0xff]
        %v693 = vld [vmem:[#allocation2 + $0x170] sm:$0xff]
        %v694 = vld [vmem:[#allocation2 + $0x178] sm:$0x1]
        %v695 = vld [vmem:[#allocation2 + $0x180] sm:$0xff]
        %v696 = vld [vmem:[#allocation2 + $0x188] sm:$0xff]
        %v697 = vld [vmem:[#allocation2 + $0x190] sm:$0xff]
        %v698 = vld [vmem:[#allocation2 + $0x198] sm:$0x1]
        %v699 = vld [vmem:[#allocation2 + $0x1a0] sm:$0xff]
        %v700 = vld [vmem:[#allocation2 + $0x1a8] sm:$0xff]
        %v701 = vld [vmem:[#allocation2 + $0x1b0] sm:$0xff]
        %v702 = vld [vmem:[#allocation2 + $0x1b8] sm:$0x1]
        %v703 = vld [vmem:[#allocation2 + $0x1c0] sm:$0xff]
        %v704 = vld [vmem:[#allocation2 + $0x1c8] sm:$0xff]
        %v705 = vld [vmem:[#allocation2 + $0x1d0] sm:$0xff]
        %v706 = vld [vmem:[#allocation2 + $0x1d8] sm:$0x1]
        %v707 = vld [vmem:[#allocation2 + $0x1e0] sm:$0xff]
        %v708 = vld [vmem:[#allocation2 + $0x1e8] sm:$0xff]
        %v709 = vld [vmem:[#allocation2 + $0x1f0] sm:$0xff]
        %v710 = vld [vmem:[#allocation2 + $0x1f8] sm:$0x1]
        %v711 = vld [vmem:[#allocation2 + $0x200] sm:$0xff]
        %v712 = vld [vmem:[#allocation2 + $0x208] sm:$0xff]
        %v713 = vld [vmem:[#allocation2 + $0x210] sm:$0xff]
        %v714 = vld [vmem:[#allocation2 + $0x218] sm:$0x1]
        %v715 = vld [vmem:[#allocation2 + $0x220] sm:$0xff]
        %v716 = vld [vmem:[#allocation2 + $0x228] sm:$0xff]
        %v717 = vld [vmem:[#allocation2 + $0x230] sm:$0xff]
        %v718 = vld [vmem:[#allocation2 + $0x238] sm:$0x1]
        %vm767 = vcmask 1040384
        %v768 = vrot.slane %v647, 7
        %v769 = vrot.slane %v648, 7
        %v770 = vsel %vm767, %v768, %v769
        %v771 = vrot.slane %v649, 7
        %v772 = vsel %vm767, %v769, %v771
        %v773 = vrot.slane %v651, 7
        %v774 = vrot.slane %v652, 7
        %v775 = vsel %vm767, %v773, %v774
        %v776 = vrot.slane %v653, 7
        %v777 = vsel %vm767, %v774, %v776
        %v778 = vrot.slane %v655, 7
        %v779 = vrot.slane %v656, 7
        %v780 = vsel %vm767, %v778, %v779
        %v781 = vrot.slane %v657, 7
        %v782 = vsel %vm767, %v779, %v781
        %v783 = vrot.slane %v659, 7
        %v784 = vrot.slane %v660, 7
        %v785 = vsel %vm767, %v783, %v784
        %v786 = vrot.slane %v661, 7
        %v787 = vsel %vm767, %v784, %v786
        %v788 = vrot.slane %v663, 7
        %v789 = vrot.slane %v664, 7
        %v790 = vsel %vm767, %v788, %v789
        %v791 = vrot.slane %v665, 7
        %v792 = vsel %vm767, %v789, %v791
        %v793 = vrot.slane %v667, 7
        %v794 = vrot.slane %v668, 7
        %v795 = vsel %vm767, %v793, %v794
        %v796 = vrot.slane %v669, 7
        %v797 = vsel %vm767, %v794, %v796
        %v798 = vrot.slane %v671, 7
        %v799 = vrot.slane %v672, 7
        %v800 = vsel %vm767, %v798, %v799
        %v801 = vrot.slane %v673, 7
        %v802 = vsel %vm767, %v799, %v801
        %v803 = vrot.slane %v675, 7
        %v804 = vrot.slane %v676, 7
        %v805 = vsel %vm767, %v803, %v804
        %v806 = vrot.slane %v677, 7
        %v807 = vsel %vm767, %v804, %v806
        %v808 = vrot.slane %v679, 7
        %v809 = vrot.slane %v680, 7
        %v810 = vsel %vm767, %v808, %v809
        %v811 = vrot.slane %v681, 7
        %v812 = vsel %vm767, %v809, %v811
        %v813 = vrot.slane %v683, 7
        %v814 = vrot.slane %v684, 7
        %v815 = vsel %vm767, %v813, %v814
        %v816 = vrot.slane %v685, 7
        %v817 = vsel %vm767, %v814, %v816
        %v818 = vrot.slane %v687, 7
        %v819 = vrot.slane %v688, 7
        %v820 = vsel %vm767, %v818, %v819
        %v821 = vrot.slane %v689, 7
        %v822 = vsel %vm767, %v819, %v821
        %v823 = vrot.slane %v691, 7
        %v824 = vrot.slane %v692, 7
        %v825 = vsel %vm767, %v823, %v824
        %v826 = vrot.slane %v693, 7
        %v827 = vsel %vm767, %v824, %v826
        %v828 = vrot.slane %v695, 7
        %v829 = vrot.slane %v696, 7
        %v830 = vsel %vm767, %v828, %v829
        %v831 = vrot.slane %v697, 7
        %v832 = vsel %vm767, %v829, %v831
        %v833 = vrot.slane %v699, 7
        %v834 = vrot.slane %v700, 7
        %v835 = vsel %vm767, %v833, %v834
        %v836 = vrot.slane %v701, 7
        %v837 = vsel %vm767, %v834, %v836
        %v838 = vrot.slane %v703, 7
        %v839 = vrot.slane %v704, 7
        %v840 = vsel %vm767, %v838, %v839
        %v841 = vrot.slane %v705, 7
        %v842 = vsel %vm767, %v839, %v841
        %v843 = vrot.slane %v707, 7
        %v844 = vrot.slane %v708, 7
        %v845 = vsel %vm767, %v843, %v844
        %v846 = vrot.slane %v709, 7
        %v847 = vsel %vm767, %v844, %v846
        %vm896 = vcmask 1046528
        %v897 = vrot.slane %v648, 1
        %v898 = vrot.slane %v649, 1
        %v899 = vsel %vm896, %v897, %v898
        %v900 = vrot.slane %v650, 1
        %v901 = vsel %vm896, %v898, %v900
        %v902 = vrot.slane %v652, 1
        %v903 = vrot.slane %v653, 1
        %v904 = vsel %vm896, %v902, %v903
        %v905 = vrot.slane %v654, 1
        %v906 = vsel %vm896, %v903, %v905
        %v907 = vrot.slane %v656, 1
        %v908 = vrot.slane %v657, 1
        %v909 = vsel %vm896, %v907, %v908
        %v910 = vrot.slane %v658, 1
        %v911 = vsel %vm896, %v908, %v910
        %v912 = vrot.slane %v660, 1
        %v913 = vrot.slane %v661, 1
        %v914 = vsel %vm896, %v912, %v913
        %v915 = vrot.slane %v662, 1
        %v916 = vsel %vm896, %v913, %v915
        %v917 = vrot.slane %v664, 1
        %v918 = vrot.slane %v665, 1
        %v919 = vsel %vm896, %v917, %v918
        %v920 = vrot.slane %v666, 1
        %v921 = vsel %vm896, %v918, %v920
        %v922 = vrot.slane %v668, 1
        %v923 = vrot.slane %v669, 1
        %v924 = vsel %vm896, %v922, %v923
        %v925 = vrot.slane %v670, 1
        %v926 = vsel %vm896, %v923, %v925
        %v927 = vrot.slane %v672, 1
        %v928 = vrot.slane %v673, 1
        %v929 = vsel %vm896, %v927, %v928
        %v930 = vrot.slane %v674, 1
        %v931 = vsel %vm896, %v928, %v930
        %v932 = vrot.slane %v676, 1
        %v933 = vrot.slane %v677, 1
        %v934 = vsel %vm896, %v932, %v933
        %v935 = vrot.slane %v678, 1
        %v936 = vsel %vm896, %v933, %v935
        %v937 = vrot.slane %v680, 1
        %v938 = vrot.slane %v681, 1
        %v939 = vsel %vm896, %v937, %v938
        %v940 = vrot.slane %v682, 1
        %v941 = vsel %vm896, %v938, %v940
        %v942 = vrot.slane %v684, 1
        %v943 = vrot.slane %v685, 1
        %v944 = vsel %vm896, %v942, %v943
        %v945 = vrot.slane %v686, 1
        %v946 = vsel %vm896, %v943, %v945
        %v947 = vrot.slane %v688, 1
        %v948 = vrot.slane %v689, 1
        %v949 = vsel %vm896, %v947, %v948
        %v950 = vrot.slane %v690, 1
        %v951 = vsel %vm896, %v948, %v950
        %v952 = vrot.slane %v692, 1
        %v953 = vrot.slane %v693, 1
        %v954 = vsel %vm896, %v952, %v953
        %v955 = vrot.slane %v694, 1
        %v956 = vsel %vm896, %v953, %v955
        %v957 = vrot.slane %v696, 1
        %v958 = vrot.slane %v697, 1
        %v959 = vsel %vm896, %v957, %v958
        %v960 = vrot.slane %v698, 1
        %v961 = vsel %vm896, %v958, %v960
        %v962 = vrot.slane %v700, 1
        %v963 = vrot.slane %v701, 1
        %v964 = vsel %vm896, %v962, %v963
        %v965 = vrot.slane %v702, 1
        %v966 = vsel %vm896, %v963, %v965
        %v967 = vrot.slane %v704, 1
        %v968 = vrot.slane %v705, 1
        %v969 = vsel %vm896, %v967, %v968
        %v970 = vrot.slane %v706, 1
        %v971 = vsel %vm896, %v968, %v970
        %v972 = vrot.slane %v708, 1
        %v973 = vrot.slane %v709, 1
        %v974 = vsel %vm896, %v972, %v973
        %v975 = vrot.slane %v710, 1
        %v976 = vsel %vm896, %v973, %v975
        %v1012 = vrot.slane %v711, 7
        %v1013 = vrot.slane %v712, 7
        %v1014 = vsel %vm767, %v1012, %v1013
        %v1015 = vrot.slane %v713, 7
        %v1016 = vsel %vm767, %v1013, %v1015
        %v1018 = vrot.slane %v712, 1
        %v1019 = vrot.slane %v713, 1
        %v1020 = vsel %vm896, %v1018, %v1019
        %v1021 = vrot.slane %v714, 1
        %v1022 = vsel %vm896, %v1019, %v1021
        %v1026 = vrot.slane %v715, 7
        %v1027 = vrot.slane %v716, 7
        %v1028 = vsel %vm767, %v1026, %v1027
        %v1029 = vrot.slane %v717, 7
        %v1030 = vsel %vm767, %v1027, %v1029
        %v1036 = vrot.slane %v716, 1
        %v1037 = vrot.slane %v717, 1
        %v1038 = vsel %vm896, %v1036, %v1037
        %v1039 = vrot.slane %v718, 1
        %v1040 = vsel %vm896, %v1037, %v1039
        %1041 = vrot.lane.b32.xlu0 %v648, 64
        %v1042 = vpop.permute.xlu0 %1041
        %1043 = vrot.lane.b32.xlu0 %v649, 64
        %v1044 = vpop.permute.xlu0 %1043
        %1045 = vrot.lane.b32.xlu0 %v652, 64
        %v1046 = vpop.permute.xlu0 %1045
        %1047 = vrot.lane.b32.xlu0 %v653, 64
        %v1048 = vpop.permute.xlu0 %1047
        %1049 = vrot.lane.b32.xlu0 %v656, 64
        %v1050 = vpop.permute.xlu0 %1049
        %1051 = vrot.lane.b32.xlu0 %v657, 64
        %v1052 = vpop.permute.xlu0 %1051
        %1053 = vrot.lane.b32.xlu0 %v660, 64
        %v1054 = vpop.permute.xlu0 %1053
        %1055 = vrot.lane.b32.xlu0 %v661, 64
        %v1056 = vpop.permute.xlu0 %1055
        %1057 = vrot.lane.b32.xlu0 %v664, 64
        %v1058 = vpop.permute.xlu0 %1057
        %1059 = vrot.lane.b32.xlu0 %v665, 64
        %v1060 = vpop.permute.xlu0 %1059
        %1061 = vrot.lane.b32.xlu0 %v668, 64
        %v1062 = vpop.permute.xlu0 %1061
        %1063 = vrot.lane.b32.xlu0 %v669, 64
        %v1064 = vpop.permute.xlu0 %1063
        %1065 = vrot.lane.b32.xlu0 %v672, 64
        %v1066 = vpop.permute.xlu0 %1065
        %1067 = vrot.lane.b32.xlu0 %v673, 64
        %v1068 = vpop.permute.xlu0 %1067
        %1069 = vrot.lane.b32.xlu0 %v676, 64
        %v1070 = vpop.permute.xlu0 %1069
        %1071 = vrot.lane.b32.xlu0 %v677, 64
        %v1072 = vpop.permute.xlu0 %1071
        %1073 = vrot.lane.b32.xlu0 %v680, 64
        %v1074 = vpop.permute.xlu0 %1073
        %1075 = vrot.lane.b32.xlu0 %v681, 64
        %v1076 = vpop.permute.xlu0 %1075
        %1077 = vrot.lane.b32.xlu0 %v684, 64
        %v1078 = vpop.permute.xlu0 %1077
        %1079 = vrot.lane.b32.xlu0 %v685, 64
        %v1080 = vpop.permute.xlu0 %1079
        %1081 = vrot.lane.b32.xlu0 %v688, 64
        %v1082 = vpop.permute.xlu0 %1081
        %1083 = vrot.lane.b32.xlu0 %v689, 64
        %v1084 = vpop.permute.xlu0 %1083
        %1085 = vrot.lane.b32.xlu0 %v692, 64
        %v1086 = vpop.permute.xlu0 %1085
        %1087 = vrot.lane.b32.xlu0 %v693, 64
        %v1088 = vpop.permute.xlu0 %1087
        %1089 = vrot.lane.b32.xlu0 %v696, 64
        %v1090 = vpop.permute.xlu0 %1089
        %1091 = vrot.lane.b32.xlu0 %v697, 64
        %v1092 = vpop.permute.xlu0 %1091
        %1093 = vrot.lane.b32.xlu0 %v700, 64
        %v1094 = vpop.permute.xlu0 %1093
        %1095 = vrot.lane.b32.xlu0 %v701, 64
        %v1096 = vpop.permute.xlu0 %1095
        %1097 = vrot.lane.b32.xlu0 %v704, 64
        %v1098 = vpop.permute.xlu0 %1097
        %1099 = vrot.lane.b32.xlu0 %v705, 64
        %v1100 = vpop.permute.xlu0 %1099
        %1101 = vrot.lane.b32.xlu0 %v708, 64
        %v1102 = vpop.permute.xlu0 %1101
        %1103 = vrot.lane.b32.xlu0 %v709, 64
        %v1104 = vpop.permute.xlu0 %1103
        %1137 = vrot.lane.b32.xlu0 %v775, 64
        %v1138 = vpop.permute.xlu0 %1137
        %1139 = vrot.lane.b32.xlu0 %v777, 64
        %v1140 = vpop.permute.xlu0 %1139
        %1141 = vrot.lane.b32.xlu0 %v780, 64
        %v1142 = vpop.permute.xlu0 %1141
        %1143 = vrot.lane.b32.xlu0 %v782, 64
        %v1144 = vpop.permute.xlu0 %1143
        %1145 = vrot.lane.b32.xlu0 %v785, 64
        %v1146 = vpop.permute.xlu0 %1145
        %1147 = vrot.lane.b32.xlu0 %v787, 64
        %v1148 = vpop.permute.xlu0 %1147
        %1149 = vrot.lane.b32.xlu0 %v790, 64
        %v1150 = vpop.permute.xlu0 %1149
        %1151 = vrot.lane.b32.xlu0 %v792, 64
        %v1152 = vpop.permute.xlu0 %1151
        %1153 = vrot.lane.b32.xlu0 %v795, 64
        %v1154 = vpop.permute.xlu0 %1153
        %1155 = vrot.lane.b32.xlu0 %v797, 64
        %v1156 = vpop.permute.xlu0 %1155
        %1157 = vrot.lane.b32.xlu0 %v800, 64
        %v1158 = vpop.permute.xlu0 %1157
        %1159 = vrot.lane.b32.xlu0 %v802, 64
        %v1160 = vpop.permute.xlu0 %1159
        %1161 = vrot.lane.b32.xlu0 %v805, 64
        %v1162 = vpop.permute.xlu0 %1161
        %1163 = vrot.lane.b32.xlu0 %v807, 64
        %v1164 = vpop.permute.xlu0 %1163
        %1165 = vrot.lane.b32.xlu0 %v810, 64
        %v1166 = vpop.permute.xlu0 %1165
        %1167 = vrot.lane.b32.xlu0 %v812, 64
        %v1168 = vpop.permute.xlu0 %1167
        %1169 = vrot.lane.b32.xlu0 %v815, 64
        %v1170 = vpop.permute.xlu0 %1169
        %1171 = vrot.lane.b32.xlu0 %v817, 64
        %v1172 = vpop.permute.xlu0 %1171
        %1173 = vrot.lane.b32.xlu0 %v820, 64
        %v1174 = vpop.permute.xlu0 %1173
        %1175 = vrot.lane.b32.xlu0 %v822, 64
        %v1176 = vpop.permute.xlu0 %1175
        %1177 = vrot.lane.b32.xlu0 %v825, 64
        %v1178 = vpop.permute.xlu0 %1177
        %1179 = vrot.lane.b32.xlu0 %v827, 64
        %v1180 = vpop.permute.xlu0 %1179
        %1181 = vrot.lane.b32.xlu0 %v830, 64
        %v1182 = vpop.permute.xlu0 %1181
        %1183 = vrot.lane.b32.xlu0 %v832, 64
        %v1184 = vpop.permute.xlu0 %1183
        %1185 = vrot.lane.b32.xlu0 %v835, 64
        %v1186 = vpop.permute.xlu0 %1185
        %1187 = vrot.lane.b32.xlu0 %v837, 64
        %v1188 = vpop.permute.xlu0 %1187
        %1189 = vrot.lane.b32.xlu0 %v840, 64
        %v1190 = vpop.permute.xlu0 %1189
        %1191 = vrot.lane.b32.xlu0 %v842, 64
        %v1192 = vpop.permute.xlu0 %1191
        %1193 = vrot.lane.b32.xlu0 %v845, 64
        %v1194 = vpop.permute.xlu0 %1193
        %1195 = vrot.lane.b32.xlu0 %v847, 64
        %v1196 = vpop.permute.xlu0 %1195
        %1197 = vrot.lane.b32.xlu0 %v1014, 64
        %v1198 = vpop.permute.xlu0 %1197
        %1199 = vrot.lane.b32.xlu0 %v1016, 64
        %v1200 = vpop.permute.xlu0 %1199
        %1233 = vrot.lane.b32.xlu0 %v904, 64
        %v1234 = vpop.permute.xlu0 %1233
        %1235 = vrot.lane.b32.xlu0 %v906, 64
        %v1236 = vpop.permute.xlu0 %1235
        %1237 = vrot.lane.b32.xlu0 %v909, 64
        %v1238 = vpop.permute.xlu0 %1237
        %1239 = vrot.lane.b32.xlu0 %v911, 64
        %v1240 = vpop.permute.xlu0 %1239
        %1241 = vrot.lane.b32.xlu0 %v914, 64
        %v1242 = vpop.permute.xlu0 %1241
        %1243 = vrot.lane.b32.xlu0 %v916, 64
        %v1244 = vpop.permute.xlu0 %1243
        %1245 = vrot.lane.b32.xlu0 %v919, 64
        %v1246 = vpop.permute.xlu0 %1245
        %1247 = vrot.lane.b32.xlu0 %v921, 64
        %v1248 = vpop.permute.xlu0 %1247
        %1249 = vrot.lane.b32.xlu0 %v924, 64
        %v1250 = vpop.permute.xlu0 %1249
        %1251 = vrot.lane.b32.xlu0 %v926, 64
        %v1252 = vpop.permute.xlu0 %1251
        %1253 = vrot.lane.b32.xlu0 %v929, 64
        %v1254 = vpop.permute.xlu0 %1253
        %1255 = vrot.lane.b32.xlu0 %v931, 64
        %v1256 = vpop.permute.xlu0 %1255
        %1257 = vrot.lane.b32.xlu0 %v934, 64
        %v1258 = vpop.permute.xlu0 %1257
        %1259 = vrot.lane.b32.xlu0 %v936, 64
        %v1260 = vpop.permute.xlu0 %1259
        %1261 = vrot.lane.b32.xlu0 %v939, 64
        %v1262 = vpop.permute.xlu0 %1261
        %1263 = vrot.lane.b32.xlu0 %v941, 64
        %v1264 = vpop.permute.xlu0 %1263
        %1265 = vrot.lane.b32.xlu0 %v944, 64
        %v1266 = vpop.permute.xlu0 %1265
        %1267 = vrot.lane.b32.xlu0 %v946, 64
        %v1268 = vpop.permute.xlu0 %1267
        %1269 = vrot.lane.b32.xlu0 %v949, 64
        %v1270 = vpop.permute.xlu0 %1269
        %1271 = vrot.lane.b32.xlu0 %v951, 64
        %v1272 = vpop.permute.xlu0 %1271
        %1273 = vrot.lane.b32.xlu0 %v954, 64
        %v1274 = vpop.permute.xlu0 %1273
        %1275 = vrot.lane.b32.xlu0 %v956, 64
        %v1276 = vpop.permute.xlu0 %1275
        %1277 = vrot.lane.b32.xlu0 %v959, 64
        %v1278 = vpop.permute.xlu0 %1277
        %1279 = vrot.lane.b32.xlu0 %v961, 64
        %v1280 = vpop.permute.xlu0 %1279
        %1281 = vrot.lane.b32.xlu0 %v964, 64
        %v1282 = vpop.permute.xlu0 %1281
        %1283 = vrot.lane.b32.xlu0 %v966, 64
        %v1284 = vpop.permute.xlu0 %1283
        %1285 = vrot.lane.b32.xlu0 %v969, 64
        %v1286 = vpop.permute.xlu0 %1285
        %1287 = vrot.lane.b32.xlu0 %v971, 64
        %v1288 = vpop.permute.xlu0 %1287
        %1289 = vrot.lane.b32.xlu0 %v974, 64
        %v1290 = vpop.permute.xlu0 %1289
        %1291 = vrot.lane.b32.xlu0 %v976, 64
        %v1292 = vpop.permute.xlu0 %1291
        %1293 = vrot.lane.b32.xlu0 %v1020, 64
        %v1294 = vpop.permute.xlu0 %1293
        %1295 = vrot.lane.b32.xlu0 %v1022, 64
        %v1296 = vpop.permute.xlu0 %1295
        %1329 = vrot.lane.b32.xlu0 %v712, 64
        %v1330 = vpop.permute.xlu0 %1329
        %1331 = vrot.lane.b32.xlu0 %v713, 64
        %v1332 = vpop.permute.xlu0 %1331
        %1333 = vrot.lane.b32.xlu0 %v716, 64
        %v1334 = vpop.permute.xlu0 %1333
        %1335 = vrot.lane.b32.xlu0 %v717, 64
        %v1336 = vpop.permute.xlu0 %1335
        %v1341 = vsel %vm614, %v770, %v1042
        %v1342 = vsel %vm614, %v772, %v1044
        %v1343 = vsel %vm614, %v775, %v1046
        %v1344 = vsel %vm614, %v777, %v1048
        %v1345 = vsel %vm614, %v780, %v1050
        %v1346 = vsel %vm614, %v782, %v1052
        %v1347 = vsel %vm614, %v785, %v1054
        %v1348 = vsel %vm614, %v787, %v1056
        %v1349 = vsel %vm614, %v790, %v1058
        %v1350 = vsel %vm614, %v792, %v1060
        %v1351 = vsel %vm614, %v795, %v1062
        %v1352 = vsel %vm614, %v797, %v1064
        %v1353 = vsel %vm614, %v800, %v1066
        %v1354 = vsel %vm614, %v802, %v1068
        %v1355 = vsel %vm614, %v805, %v1070
        %v1356 = vsel %vm614, %v807, %v1072
        %v1357 = vsel %vm614, %v810, %v1074
        %v1358 = vsel %vm614, %v812, %v1076
        %v1359 = vsel %vm614, %v815, %v1078
        %v1360 = vsel %vm614, %v817, %v1080
        %v1361 = vsel %vm614, %v820, %v1082
        %v1362 = vsel %vm614, %v822, %v1084
        %v1363 = vsel %vm614, %v825, %v1086
        %v1364 = vsel %vm614, %v827, %v1088
        %v1365 = vsel %vm614, %v830, %v1090
        %v1366 = vsel %vm614, %v832, %v1092
        %v1367 = vsel %vm614, %v835, %v1094
        %v1368 = vsel %vm614, %v837, %v1096
        %v1369 = vsel %vm614, %v840, %v1098
        %v1370 = vsel %vm614, %v842, %v1100
        %v1371 = vsel %vm614, %v845, %v1102
        %v1372 = vsel %vm614, %v847, %v1104
        %v1373 = vsel %vm614, %v899, %v1138
        %v1374 = vsel %vm614, %v901, %v1140
        %v1375 = vsel %vm614, %v904, %v1142
        %v1376 = vsel %vm614, %v906, %v1144
        %v1377 = vsel %vm614, %v909, %v1146
        %v1378 = vsel %vm614, %v911, %v1148
        %v1379 = vsel %vm614, %v914, %v1150
        %v1380 = vsel %vm614, %v916, %v1152
        %v1381 = vsel %vm614, %v919, %v1154
        %v1382 = vsel %vm614, %v921, %v1156
        %v1383 = vsel %vm614, %v924, %v1158
        %v1384 = vsel %vm614, %v926, %v1160
        %v1385 = vsel %vm614, %v929, %v1162
        %v1386 = vsel %vm614, %v931, %v1164
        %v1387 = vsel %vm614, %v934, %v1166
        %v1388 = vsel %vm614, %v936, %v1168
        %v1389 = vsel %vm614, %v939, %v1170
        %v1390 = vsel %vm614, %v941, %v1172
        %v1391 = vsel %vm614, %v944, %v1174
        %v1392 = vsel %vm614, %v946, %v1176
        %v1393 = vsel %vm614, %v949, %v1178
        %v1394 = vsel %vm614, %v951, %v1180
        %v1395 = vsel %vm614, %v954, %v1182
        %v1396 = vsel %vm614, %v956, %v1184
        %v1397 = vsel %vm614, %v959, %v1186
        %v1398 = vsel %vm614, %v961, %v1188
        %v1399 = vsel %vm614, %v964, %v1190
        %v1400 = vsel %vm614, %v966, %v1192
        %v1401 = vsel %vm614, %v969, %v1194
        %v1402 = vsel %vm614, %v971, %v1196
        %v1403 = vsel %vm614, %v974, %v1198
        %v1404 = vsel %vm614, %v976, %v1200
        %v1405 = vsel %vm614, %v652, %v1234
        %v1406 = vsel %vm614, %v653, %v1236
        %v1407 = vsel %vm614, %v656, %v1238
        %v1408 = vsel %vm614, %v657, %v1240
        %v1409 = vsel %vm614, %v660, %v1242
        %v1410 = vsel %vm614, %v661, %v1244
        %v1411 = vsel %vm614, %v664, %v1246
        %v1412 = vsel %vm614, %v665, %v1248
        %v1413 = vsel %vm614, %v668, %v1250
        %v1414 = vsel %vm614, %v669, %v1252
        %v1415 = vsel %vm614, %v672, %v1254
        %v1416 = vsel %vm614, %v673, %v1256
        %v1417 = vsel %vm614, %v676, %v1258
        %v1418 = vsel %vm614, %v677, %v1260
        %v1419 = vsel %vm614, %v680, %v1262
        %v1420 = vsel %vm614, %v681, %v1264
        %v1421 = vsel %vm614, %v684, %v1266
        %v1422 = vsel %vm614, %v685, %v1268
        %v1423 = vsel %vm614, %v688, %v1270
        %v1424 = vsel %vm614, %v689, %v1272
        %v1425 = vsel %vm614, %v692, %v1274
        %v1426 = vsel %vm614, %v693, %v1276
        %v1427 = vsel %vm614, %v696, %v1278
        %v1428 = vsel %vm614, %v697, %v1280
        %v1429 = vsel %vm614, %v700, %v1282
        %v1430 = vsel %vm614, %v701, %v1284
        %v1431 = vsel %vm614, %v704, %v1286
        %v1432 = vsel %vm614, %v705, %v1288
        %v1433 = vsel %vm614, %v708, %v1290
        %v1434 = vsel %vm614, %v709, %v1292
        %v1435 = vsel %vm614, %v712, %v1294
        %v1436 = vsel %vm614, %v713, %v1296
        %v1437 = vsel %vm614, %v1014, %v1330
        %v1438 = vsel %vm614, %v1016, %v1332
        %v1439 = vsel %vm614, %v1028, %v1334
        %v1440 = vsel %vm614, %v1030, %v1336
        %v1441 = vld [vmem:[%s1] sm:$0xff]
        %v1442 = vld [vmem:[%s1 + $0x8] sm:$0xff]
        %v1443 = vld [vmem:[%s1 + $0x10] sm:$0xff]
        %v1444 = vld [vmem:[%s1 + $0x18] sm:$0xff]
        %v1445 = vld [vmem:[%s1 + $0x20] sm:$0xff]
        %v1446 = vld [vmem:[%s1 + $0x28] sm:$0xff]
        %v1447 = vld [vmem:[%s1 + $0x30] sm:$0xff]
        %v1448 = vld [vmem:[%s1 + $0x38] sm:$0xff]
        %v1449 = vld [vmem:[%s1 + $0x40] sm:$0xff]
        %v1450 = vld [vmem:[%s1 + $0x48] sm:$0xff]
        %v1451 = vld [vmem:[%s1 + $0x50] sm:$0xff]
        %v1452 = vld [vmem:[%s1 + $0x58] sm:$0xff]
        %v1453 = vld [vmem:[%s1 + $0x60] sm:$0xff]
        %v1454 = vld [vmem:[%s1 + $0x68] sm:$0xff]
        %v1455 = vld [vmem:[%s1 + $0x70] sm:$0xff]
        %v1456 = vld [vmem:[%s1 + $0x78] sm:$0xff]
        %v1457 = vld [vmem:[%s1 + $0x80] sm:$0xff]
        %v1458 = vld [vmem:[%s1 + $0x88] sm:$0xff]
        %v1459 = vld [vmem:[%s1 + $0x90] sm:$0xff]
        %v1460 = vld [vmem:[%s1 + $0x98] sm:$0xff]
        %v1461 = vld [vmem:[%s1 + $0xa0] sm:$0xff]
        %v1462 = vld [vmem:[%s1 + $0xa8] sm:$0xff]
        %v1463 = vld [vmem:[%s1 + $0xb0] sm:$0xff]
        %v1464 = vld [vmem:[%s1 + $0xb8] sm:$0xff]
        %v1465 = vld [vmem:[%s1 + $0xc0] sm:$0xff]
        %v1466 = vld [vmem:[%s1 + $0xc8] sm:$0xff]
        %v1467 = vld [vmem:[%s1 + $0xd0] sm:$0xff]
        %v1468 = vld [vmem:[%s1 + $0xd8] sm:$0xff]
        %v1469 = vld [vmem:[%s1 + $0xe0] sm:$0xff]
        %v1470 = vld [vmem:[%s1 + $0xe8] sm:$0xff]
        %v1471 = vld [vmem:[%s1 + $0xf0] sm:$0xff]
        %v1472 = vld [vmem:[%s1 + $0xf8] sm:$0xff]
        %v1473 = vld [vmem:[%s1 + $0x100] sm:$0xff]
        %v1474 = vld [vmem:[%s1 + $0x108] sm:$0xff]
        %v1475 = vld [vmem:[%s1 + $0x110] sm:$0xff]
        %v1476 = vld [vmem:[%s1 + $0x118] sm:$0xff]
        %v1477 = vld [vmem:[%s1 + $0x120] sm:$0xff]
        %v1478 = vld [vmem:[%s1 + $0x128] sm:$0xff]
        %v1479 = vld [vmem:[%s1 + $0x130] sm:$0xff]
        %v1480 = vld [vmem:[%s1 + $0x138] sm:$0xff]
        %v1481 = vld [vmem:[%s1 + $0x140] sm:$0xff]
        %v1482 = vld [vmem:[%s1 + $0x148] sm:$0xff]
        %v1483 = vld [vmem:[%s1 + $0x150] sm:$0xff]
        %v1484 = vld [vmem:[%s1 + $0x158] sm:$0xff]
        %v1485 = vld [vmem:[%s1 + $0x160] sm:$0xff]
        %v1486 = vld [vmem:[%s1 + $0x168] sm:$0xff]
        %v1487 = vld [vmem:[%s1 + $0x170] sm:$0xff]
        %v1488 = vld [vmem:[%s1 + $0x178] sm:$0xff]
        %v1489 = vld [vmem:[%s1 + $0x180] sm:$0xff]
        %v1490 = vld [vmem:[%s1 + $0x188] sm:$0xff]
        %v1491 = vld [vmem:[%s1 + $0x190] sm:$0xff]
        %v1492 = vld [vmem:[%s1 + $0x198] sm:$0xff]
        %v1493 = vld [vmem:[%s1 + $0x1a0] sm:$0xff]
        %v1494 = vld [vmem:[%s1 + $0x1a8] sm:$0xff]
        %v1495 = vld [vmem:[%s1 + $0x1b0] sm:$0xff]
        %v1496 = vld [vmem:[%s1 + $0x1b8] sm:$0xff]
        %v1497 = vld [vmem:[%s1 + $0x1c0] sm:$0xff]
        %v1498 = vld [vmem:[%s1 + $0x1c8] sm:$0xff]
        %v1499 = vld [vmem:[%s1 + $0x1d0] sm:$0xff]
        %v1500 = vld [vmem:[%s1 + $0x1d8] sm:$0xff]
        %v1501 = vld [vmem:[%s1 + $0x1e0] sm:$0xff]
        %v1502 = vld [vmem:[%s1 + $0x1e8] sm:$0xff]
        %v1503 = vld [vmem:[%s1 + $0x1f0] sm:$0xff]
        %v1504 = vld [vmem:[%s1 + $0x1f8] sm:$0xff]
        %v1505 = vld [vmem:[%s1 + $0x200] sm:$0xff]
        %v1506 = vld [vmem:[%s1 + $0x208] sm:$0xff]
        %v1507 = vld [vmem:[%s1 + $0x210] sm:$0xff]
        %v1508 = vld [vmem:[%s1 + $0x218] sm:$0xff]
        %v1509 = vld [vmem:[%s1 + $0x220] sm:$0xff]
        %v1510 = vld [vmem:[%s1 + $0x228] sm:$0xff]
        %v1511 = vld [vmem:[%s1 + $0x230] sm:$0xff]
        %v1512 = vld [vmem:[%s1 + $0x238] sm:$0xff]
        %v1513 = vld [vmem:[%s2] sm:$0x1]
        %v1515 = vperm.slane %v1513, 0
        %v1517 = vsel %vm614, %v909, 0
        %v1519 = vsel %vm614, %v911, 0
        %v1521 = vsel %vm614, %v914, 0
        %v1523 = vsel %vm614, %v916, 0
        %v1525 = vsel %vm614, %v919, 0
        %v1527 = vsel %vm614, %v921, 0
        %v1529 = vsel %vm614, %v924, 0
        %v1531 = vsel %vm614, %v926, 0
        %v1533 = vsel %vm614, %v929, 0
        %v1535 = vsel %vm614, %v931, 0
        %v1537 = vsel %vm614, %v934, 0
        %v1539 = vsel %vm614, %v936, 0
        %v1541 = vsel %vm614, %v939, 0
        %v1543 = vsel %vm614, %v941, 0
        %v1545 = vsel %vm614, %v944, 0
        %v1547 = vsel %vm614, %v946, 0
        %v1549 = vsel %vm614, %v949, 0
        %v1551 = vsel %vm614, %v951, 0
        %v1553 = vsel %vm614, %v954, 0
        %v1555 = vsel %vm614, %v956, 0
        %v1557 = vsel %vm614, %v959, 0
        %v1559 = vsel %vm614, %v961, 0
        %v1561 = vsel %vm614, %v964, 0
        %v1563 = vsel %vm614, %v966, 0
        %v1565 = vsel %vm614, %v969, 0
        %v1567 = vsel %vm614, %v971, 0
        %v1569 = vsel %vm614, %v974, 0
        %v1571 = vsel %vm614, %v976, 0
        %v1573 = vsel %vm614, %v1020, 0
        %v1575 = vsel %vm614, %v1022, 0
        %v1577 = vsel %vm614, %v1038, 0
        %v1579 = vsel %vm614, %v1040, 0
        %1581 = vmatpush.msra.mxu0 %v1456
        %1582 = vmatpush.msra.mxu0 %v1455
        %1583 = vmatpush.msra.mxu0 %v1454
        %1584 = vmatpush.msra.mxu0 %v1453
        %1585 = vmatpush.msra.mxu0 %v1452
        %1586 = vmatpush.msra.mxu0 %v1451
        %1587 = vmatpush.msra.mxu0 %v1450
        %1588 = vmatpush.msra.mxu0 %v1449
        %1589 = vmatpush.msra.mxu0 %v1448
        %1590 = vmatpush.msra.mxu0 %v1447
        %1591 = vmatpush.msra.mxu0 %v1446
        %1592 = vmatpush.msra.mxu0 %v1445
        %1593 = vmatpush.msra.mxu0 %v1444
        %1594 = vmatpush.msra.mxu0 %v1443
        %1595 = vmatpush.msra.mxu0 %v1442
        %1596 = vmatpush.msra.mxu0 %v1441
        %1597 = vmatmul.f32.gmra.mxu0 %v1341
        %v1598 = vpop.f32.mrf.mxu0
        %v1599 = vadd.f32 %v1515, %v1598
        %1600 = vmatmul.f32.gmra.mxu0 %v1342
        %v1601 = vpop.f32.mrf.mxu0
        %v1602 = vadd.f32 %v1515, %v1601
        %1603 = vmatmul.f32.gmra.mxu0 %v1343
        %v1604 = vpop.f32.mrf.mxu0
        %v1605 = vadd.f32 %v1515, %v1604
        %1606 = vmatmul.f32.gmra.mxu0 %v1344
        %v1607 = vpop.f32.mrf.mxu0
        %v1608 = vadd.f32 %v1515, %v1607
        %1609 = vmatmul.f32.gmra.mxu0 %v1345
        %v1610 = vpop.f32.mrf.mxu0
        %v1611 = vadd.f32 %v1515, %v1610
        %1612 = vmatmul.f32.gmra.mxu0 %v1346
        %v1613 = vpop.f32.mrf.mxu0
        %v1614 = vadd.f32 %v1515, %v1613
        %1615 = vmatmul.f32.gmra.mxu0 %v1347
        %v1616 = vpop.f32.mrf.mxu0
        %v1617 = vadd.f32 %v1515, %v1616
        %1618 = vmatmul.f32.gmra.mxu0 %v1348
        %v1619 = vpop.f32.mrf.mxu0
        %v1620 = vadd.f32 %v1515, %v1619
        %1621 = vmatmul.f32.gmra.mxu0 %v1349
        %v1622 = vpop.f32.mrf.mxu0
        %v1623 = vadd.f32 %v1515, %v1622
        %1624 = vmatmul.f32.gmra.mxu0 %v1350
        %v1625 = vpop.f32.mrf.mxu0
        %v1626 = vadd.f32 %v1515, %v1625
        %1627 = vmatmul.f32.gmra.mxu0 %v1351
        %v1628 = vpop.f32.mrf.mxu0
        %v1629 = vadd.f32 %v1515, %v1628
        %1630 = vmatmul.f32.gmra.mxu0 %v1352
        %v1631 = vpop.f32.mrf.mxu0
        %v1632 = vadd.f32 %v1515, %v1631
        %1633 = vmatmul.f32.gmra.mxu0 %v1353
        %v1634 = vpop.f32.mrf.mxu0
        %v1635 = vadd.f32 %v1515, %v1634
        %1636 = vmatmul.f32.gmra.mxu0 %v1354
        %v1637 = vpop.f32.mrf.mxu0
        %v1638 = vadd.f32 %v1515, %v1637
        %1639 = vmatmul.f32.gmra.mxu0 %v1355
        %v1640 = vpop.f32.mrf.mxu0
        %v1641 = vadd.f32 %v1515, %v1640
        %1642 = vmatmul.f32.gmra.mxu0 %v1356
        %v1643 = vpop.f32.mrf.mxu0
        %v1644 = vadd.f32 %v1515, %v1643
        %1645 = vmatmul.f32.gmra.mxu0 %v1357
        %v1646 = vpop.f32.mrf.mxu0
        %v1647 = vadd.f32 %v1515, %v1646
        %1648 = vmatmul.f32.gmra.mxu0 %v1358
        %v1649 = vpop.f32.mrf.mxu0
        %v1650 = vadd.f32 %v1515, %v1649
        %1651 = vmatmul.f32.gmra.mxu0 %v1359
        %v1652 = vpop.f32.mrf.mxu0
        %v1653 = vadd.f32 %v1515, %v1652
        %1654 = vmatmul.f32.gmra.mxu0 %v1360
        %v1655 = vpop.f32.mrf.mxu0
        %v1656 = vadd.f32 %v1515, %v1655
        %1657 = vmatmul.f32.gmra.mxu0 %v1361
        %v1658 = vpop.f32.mrf.mxu0
        %v1659 = vadd.f32 %v1515, %v1658
        %1660 = vmatmul.f32.gmra.mxu0 %v1362
        %v1661 = vpop.f32.mrf.mxu0
        %v1662 = vadd.f32 %v1515, %v1661
        %1663 = vmatmul.f32.gmra.mxu0 %v1363
        %v1664 = vpop.f32.mrf.mxu0
        %v1665 = vadd.f32 %v1515, %v1664
        %1666 = vmatmul.f32.gmra.mxu0 %v1364
        %v1667 = vpop.f32.mrf.mxu0
        %v1668 = vadd.f32 %v1515, %v1667
        %1669 = vmatmul.f32.gmra.mxu0 %v1365
        %v1670 = vpop.f32.mrf.mxu0
        %v1671 = vadd.f32 %v1515, %v1670
        %1672 = vmatmul.f32.gmra.mxu0 %v1366
        %v1673 = vpop.f32.mrf.mxu0
        %v1674 = vadd.f32 %v1515, %v1673
        %1675 = vmatmul.f32.gmra.mxu0 %v1367
        %v1676 = vpop.f32.mrf.mxu0
        %v1677 = vadd.f32 %v1515, %v1676
        %1678 = vmatmul.f32.gmra.mxu0 %v1368
        %v1679 = vpop.f32.mrf.mxu0
        %v1680 = vadd.f32 %v1515, %v1679
        %1681 = vmatmul.f32.gmra.mxu0 %v1369
        %v1682 = vpop.f32.mrf.mxu0
        %v1683 = vadd.f32 %v1515, %v1682
        %1684 = vmatmul.f32.gmra.mxu0 %v1370
        %v1685 = vpop.f32.mrf.mxu0
        %v1686 = vadd.f32 %v1515, %v1685
        %1687 = vmatmul.f32.gmra.mxu0 %v1371
        %v1688 = vpop.f32.mrf.mxu0
        %v1689 = vadd.f32 %v1515, %v1688
        %1690 = vmatmul.f32.gmra.mxu0 %v1372
        %v1691 = vpop.f32.mrf.mxu0
        %v1692 = vadd.f32 %v1515, %v1691
        %1693 = vdwg.mxu0
        %1694 = vmatpush.msra.mxu0 %v1472
        %1695 = vmatpush.msra.mxu0 %v1471
        %1696 = vmatpush.msra.mxu0 %v1470
        %1697 = vmatpush.msra.mxu0 %v1469
        %1698 = vmatpush.msra.mxu0 %v1468
        %1699 = vmatpush.msra.mxu0 %v1467
        %1700 = vmatpush.msra.mxu0 %v1466
        %1701 = vmatpush.msra.mxu0 %v1465
        %1702 = vmatpush.msra.mxu0 %v1464
        %1703 = vmatpush.msra.mxu0 %v1463
        %1704 = vmatpush.msra.mxu0 %v1462
        %1705 = vmatpush.msra.mxu0 %v1461
        %1706 = vmatpush.msra.mxu0 %v1460
        %1707 = vmatpush.msra.mxu0 %v1459
        %1708 = vmatpush.msra.mxu0 %v1458
        %1709 = vmatpush.msra.mxu0 %v1457
        %1710 = vmatmul.f32.gmra.mxu0 %v1373
        %v1711 = vpop.f32.mrf.mxu0
        %v1712 = vadd.f32 %v1599, %v1711
        %1713 = vmatmul.f32.gmra.mxu0 %v1374
        %v1714 = vpop.f32.mrf.mxu0
        %v1715 = vadd.f32 %v1602, %v1714
        %1716 = vmatmul.f32.gmra.mxu0 %v1375
        %v1717 = vpop.f32.mrf.mxu0
        %v1718 = vadd.f32 %v1605, %v1717
        %1719 = vmatmul.f32.gmra.mxu0 %v1376
        %v1720 = vpop.f32.mrf.mxu0
        %v1721 = vadd.f32 %v1608, %v1720
        %1722 = vmatmul.f32.gmra.mxu0 %v1377
        %v1723 = vpop.f32.mrf.mxu0
        %v1724 = vadd.f32 %v1611, %v1723
        %1725 = vmatmul.f32.gmra.mxu0 %v1378
        %v1726 = vpop.f32.mrf.mxu0
        %v1727 = vadd.f32 %v1614, %v1726
        %1728 = vmatmul.f32.gmra.mxu0 %v1379
        %v1729 = vpop.f32.mrf.mxu0
        %v1730 = vadd.f32 %v1617, %v1729
        %1731 = vmatmul.f32.gmra.mxu0 %v1380
        %v1732 = vpop.f32.mrf.mxu0
        %v1733 = vadd.f32 %v1620, %v1732
        %1734 = vmatmul.f32.gmra.mxu0 %v1381
        %v1735 = vpop.f32.mrf.mxu0
        %v1736 = vadd.f32 %v1623, %v1735
        %1737 = vmatmul.f32.gmra.mxu0 %v1382
        %v1738 = vpop.f32.mrf.mxu0
        %v1739 = vadd.f32 %v1626, %v1738
        %1740 = vmatmul.f32.gmra.mxu0 %v1383
        %v1741 = vpop.f32.mrf.mxu0
        %v1742 = vadd.f32 %v1629, %v1741
        %1743 = vmatmul.f32.gmra.mxu0 %v1384
        %v1744 = vpop.f32.mrf.mxu0
        %v1745 = vadd.f32 %v1632, %v1744
        %1746 = vmatmul.f32.gmra.mxu0 %v1385
        %v1747 = vpop.f32.mrf.mxu0
        %v1748 = vadd.f32 %v1635, %v1747
        %1749 = vmatmul.f32.gmra.mxu0 %v1386
        %v1750 = vpop.f32.mrf.mxu0
        %v1751 = vadd.f32 %v1638, %v1750
        %1752 = vmatmul.f32.gmra.mxu0 %v1387
        %v1753 = vpop.f32.mrf.mxu0
        %v1754 = vadd.f32 %v1641, %v1753
        %1755 = vmatmul.f32.gmra.mxu0 %v1388
        %v1756 = vpop.f32.mrf.mxu0
        %v1757 = vadd.f32 %v1644, %v1756
        %1758 = vmatmul.f32.gmra.mxu0 %v1389
        %v1759 = vpop.f32.mrf.mxu0
        %v1760 = vadd.f32 %v1647, %v1759
        %1761 = vmatmul.f32.gmra.mxu0 %v1390
        %v1762 = vpop.f32.mrf.mxu0
        %v1763 = vadd.f32 %v1650, %v1762
        %1764 = vmatmul.f32.gmra.mxu0 %v1391
        %v1765 = vpop.f32.mrf.mxu0
        %v1766 = vadd.f32 %v1653, %v1765
        %1767 = vmatmul.f32.gmra.mxu0 %v1392
        %v1768 = vpop.f32.mrf.mxu0
        %v1769 = vadd.f32 %v1656, %v1768
        %1770 = vmatmul.f32.gmra.mxu0 %v1393
        %v1771 = vpop.f32.mrf.mxu0
        %v1772 = vadd.f32 %v1659, %v1771
        %1773 = vmatmul.f32.gmra.mxu0 %v1394
        %v1774 = vpop.f32.mrf.mxu0
        %v1775 = vadd.f32 %v1662, %v1774
        %1776 = vmatmul.f32.gmra.mxu0 %v1395
        %v1777 = vpop.f32.mrf.mxu0
        %v1778 = vadd.f32 %v1665, %v1777
        %1779 = vmatmul.f32.gmra.mxu0 %v1396
        %v1780 = vpop.f32.mrf.mxu0
        %v1781 = vadd.f32 %v1668, %v1780
        %1782 = vmatmul.f32.gmra.mxu0 %v1397
        %v1783 = vpop.f32.mrf.mxu0
        %v1784 = vadd.f32 %v1671, %v1783
        %1785 = vmatmul.f32.gmra.mxu0 %v1398
        %v1786 = vpop.f32.mrf.mxu0
        %v1787 = vadd.f32 %v1674, %v1786
        %1788 = vmatmul.f32.gmra.mxu0 %v1399
        %v1789 = vpop.f32.mrf.mxu0
        %v1790 = vadd.f32 %v1677, %v1789
        %1791 = vmatmul.f32.gmra.mxu0 %v1400
        %v1792 = vpop.f32.mrf.mxu0
        %v1793 = vadd.f32 %v1680, %v1792
        %1794 = vmatmul.f32.gmra.mxu0 %v1401
        %v1795 = vpop.f32.mrf.mxu0
        %v1796 = vadd.f32 %v1683, %v1795
        %1797 = vmatmul.f32.gmra.mxu0 %v1402
        %v1798 = vpop.f32.mrf.mxu0
        %v1799 = vadd.f32 %v1686, %v1798
        %1800 = vmatmul.f32.gmra.mxu0 %v1403
        %v1801 = vpop.f32.mrf.mxu0
        %v1802 = vadd.f32 %v1689, %v1801
        %1803 = vmatmul.f32.gmra.mxu0 %v1404
        %v1804 = vpop.f32.mrf.mxu0
        %v1805 = vadd.f32 %v1692, %v1804
        %1806 = vdwg.mxu0
        %1807 = vmatpush.msra.mxu0 %v1488
        %1808 = vmatpush.msra.mxu0 %v1487
        %1809 = vmatpush.msra.mxu0 %v1486
        %1810 = vmatpush.msra.mxu0 %v1485
        %1811 = vmatpush.msra.mxu0 %v1484
        %1812 = vmatpush.msra.mxu0 %v1483
        %1813 = vmatpush.msra.mxu0 %v1482
        %1814 = vmatpush.msra.mxu0 %v1481
        %1815 = vmatpush.msra.mxu0 %v1480
        %1816 = vmatpush.msra.mxu0 %v1479
        %1817 = vmatpush.msra.mxu0 %v1478
        %1818 = vmatpush.msra.mxu0 %v1477
        %1819 = vmatpush.msra.mxu0 %v1476
        %1820 = vmatpush.msra.mxu0 %v1475
        %1821 = vmatpush.msra.mxu0 %v1474
        %1822 = vmatpush.msra.mxu0 %v1473
        %1823 = vmatmul.f32.gmra.mxu0 %v1405
        %v1824 = vpop.f32.mrf.mxu0
        %v1825 = vadd.f32 %v1712, %v1824
        %1826 = vmatmul.f32.gmra.mxu0 %v1406
        %v1827 = vpop.f32.mrf.mxu0
        %v1828 = vadd.f32 %v1715, %v1827
        %1829 = vmatmul.f32.gmra.mxu0 %v1407
        %v1830 = vpop.f32.mrf.mxu0
        %v1831 = vadd.f32 %v1718, %v1830
        %1832 = vmatmul.f32.gmra.mxu0 %v1408
        %v1833 = vpop.f32.mrf.mxu0
        %v1834 = vadd.f32 %v1721, %v1833
        %1835 = vmatmul.f32.gmra.mxu0 %v1409
        %v1836 = vpop.f32.mrf.mxu0
        %v1837 = vadd.f32 %v1724, %v1836
        %1838 = vmatmul.f32.gmra.mxu0 %v1410
        %v1839 = vpop.f32.mrf.mxu0
        %v1840 = vadd.f32 %v1727, %v1839
        %1841 = vmatmul.f32.gmra.mxu0 %v1411
        %v1842 = vpop.f32.mrf.mxu0
        %v1843 = vadd.f32 %v1730, %v1842
        %1844 = vmatmul.f32.gmra.mxu0 %v1412
        %v1845 = vpop.f32.mrf.mxu0
        %v1846 = vadd.f32 %v1733, %v1845
        %1847 = vmatmul.f32.gmra.mxu0 %v1413
        %v1848 = vpop.f32.mrf.mxu0
        %v1849 = vadd.f32 %v1736, %v1848
        %1850 = vmatmul.f32.gmra.mxu0 %v1414
        %v1851 = vpop.f32.mrf.mxu0
        %v1852 = vadd.f32 %v1739, %v1851
        %1853 = vmatmul.f32.gmra.mxu0 %v1415
        %v1854 = vpop.f32.mrf.mxu0
        %v1855 = vadd.f32 %v1742, %v1854
        %1856 = vmatmul.f32.gmra.mxu0 %v1416
        %v1857 = vpop.f32.mrf.mxu0
        %v1858 = vadd.f32 %v1745, %v1857
        %1859 = vmatmul.f32.gmra.mxu0 %v1417
        %v1860 = vpop.f32.mrf.mxu0
        %v1861 = vadd.f32 %v1748, %v1860
        %1862 = vmatmul.f32.gmra.mxu0 %v1418
        %v1863 = vpop.f32.mrf.mxu0
        %v1864 = vadd.f32 %v1751, %v1863
        %1865 = vmatmul.f32.gmra.mxu0 %v1419
        %v1866 = vpop.f32.mrf.mxu0
        %v1867 = vadd.f32 %v1754, %v1866
        %1868 = vmatmul.f32.gmra.mxu0 %v1420
        %v1869 = vpop.f32.mrf.mxu0
        %v1870 = vadd.f32 %v1757, %v1869
        %1871 = vmatmul.f32.gmra.mxu0 %v1421
        %v1872 = vpop.f32.mrf.mxu0
        %v1873 = vadd.f32 %v1760, %v1872
        %1874 = vmatmul.f32.gmra.mxu0 %v1422
        %v1875 = vpop.f32.mrf.mxu0
        %v1876 = vadd.f32 %v1763, %v1875
        %1877 = vmatmul.f32.gmra.mxu0 %v1423
        %v1878 = vpop.f32.mrf.mxu0
        %v1879 = vadd.f32 %v1766, %v1878
        %1880 = vmatmul.f32.gmra.mxu0 %v1424
        %v1881 = vpop.f32.mrf.mxu0
        %v1882 = vadd.f32 %v1769, %v1881
        %1883 = vmatmul.f32.gmra.mxu0 %v1425
        %v1884 = vpop.f32.mrf.mxu0
        %v1885 = vadd.f32 %v1772, %v1884
        %1886 = vmatmul.f32.gmra.mxu0 %v1426
        %v1887 = vpop.f32.mrf.mxu0
        %v1888 = vadd.f32 %v1775, %v1887
        %1889 = vmatmul.f32.gmra.mxu0 %v1427
        %v1890 = vpop.f32.mrf.mxu0
        %v1891 = vadd.f32 %v1778, %v1890
        %1892 = vmatmul.f32.gmra.mxu0 %v1428
        %v1893 = vpop.f32.mrf.mxu0
        %v1894 = vadd.f32 %v1781, %v1893
        %1895 = vmatmul.f32.gmra.mxu0 %v1429
        %v1896 = vpop.f32.mrf.mxu0
        %v1897 = vadd.f32 %v1784, %v1896
        %1898 = vmatmul.f32.gmra.mxu0 %v1430
        %v1899 = vpop.f32.mrf.mxu0
        %v1900 = vadd.f32 %v1787, %v1899
        %1901 = vmatmul.f32.gmra.mxu0 %v1431
        %v1902 = vpop.f32.mrf.mxu0
        %v1903 = vadd.f32 %v1790, %v1902
        %1904 = vmatmul.f32.gmra.mxu0 %v1432
        %v1905 = vpop.f32.mrf.mxu0
        %v1906 = vadd.f32 %v1793, %v1905
        %1907 = vmatmul.f32.gmra.mxu0 %v1433
        %v1908 = vpop.f32.mrf.mxu0
        %v1909 = vadd.f32 %v1796, %v1908
        %1910 = vmatmul.f32.gmra.mxu0 %v1434
        %v1911 = vpop.f32.mrf.mxu0
        %v1912 = vadd.f32 %v1799, %v1911
        %1913 = vmatmul.f32.gmra.mxu0 %v1435
        %v1914 = vpop.f32.mrf.mxu0
        %v1915 = vadd.f32 %v1802, %v1914
        %1916 = vmatmul.f32.gmra.mxu0 %v1436
        %v1917 = vpop.f32.mrf.mxu0
        %v1918 = vadd.f32 %v1805, %v1917
        %1919 = vdwg.mxu0
        %1920 = vmatpush.msra.mxu0 %v1504
        %1921 = vmatpush.msra.mxu0 %v1503
        %1922 = vmatpush.msra.mxu0 %v1502
        %1923 = vmatpush.msra.mxu0 %v1501
        %1924 = vmatpush.msra.mxu0 %v1500
        %1925 = vmatpush.msra.mxu0 %v1499
        %1926 = vmatpush.msra.mxu0 %v1498
        %1927 = vmatpush.msra.mxu0 %v1497
        %1928 = vmatpush.msra.mxu0 %v1496
        %1929 = vmatpush.msra.mxu0 %v1495
        %1930 = vmatpush.msra.mxu0 %v1494
        %1931 = vmatpush.msra.mxu0 %v1493
        %1932 = vmatpush.msra.mxu0 %v1492
        %1933 = vmatpush.msra.mxu0 %v1491
        %1934 = vmatpush.msra.mxu0 %v1490
        %1935 = vmatpush.msra.mxu0 %v1489
        %1936 = vmatmul.f32.gmra.mxu0 %v1345
        %v1937 = vpop.f32.mrf.mxu0
        %v1938 = vadd.f32 %v1825, %v1937
        %1939 = vmatmul.f32.gmra.mxu0 %v1346
        %v1940 = vpop.f32.mrf.mxu0
        %v1941 = vadd.f32 %v1828, %v1940
        %1942 = vmatmul.f32.gmra.mxu0 %v1347
        %v1943 = vpop.f32.mrf.mxu0
        %v1944 = vadd.f32 %v1831, %v1943
        %1945 = vmatmul.f32.gmra.mxu0 %v1348
        %v1946 = vpop.f32.mrf.mxu0
        %v1947 = vadd.f32 %v1834, %v1946
        %1948 = vmatmul.f32.gmra.mxu0 %v1349
        %v1949 = vpop.f32.mrf.mxu0
        %v1950 = vadd.f32 %v1837, %v1949
        %1951 = vmatmul.f32.gmra.mxu0 %v1350
        %v1952 = vpop.f32.mrf.mxu0
        %v1953 = vadd.f32 %v1840, %v1952
        %1954 = vmatmul.f32.gmra.mxu0 %v1351
        %v1955 = vpop.f32.mrf.mxu0
        %v1956 = vadd.f32 %v1843, %v1955
        %1957 = vmatmul.f32.gmra.mxu0 %v1352
        %v1958 = vpop.f32.mrf.mxu0
        %v1959 = vadd.f32 %v1846, %v1958
        %1960 = vmatmul.f32.gmra.mxu0 %v1353
        %v1961 = vpop.f32.mrf.mxu0
        %v1962 = vadd.f32 %v1849, %v1961
        %1963 = vmatmul.f32.gmra.mxu0 %v1354
        %v1964 = vpop.f32.mrf.mxu0
        %v1965 = vadd.f32 %v1852, %v1964
        %1966 = vmatmul.f32.gmra.mxu0 %v1355
        %v1967 = vpop.f32.mrf.mxu0
        %v1968 = vadd.f32 %v1855, %v1967
        %1969 = vmatmul.f32.gmra.mxu0 %v1356
        %v1970 = vpop.f32.mrf.mxu0
        %v1971 = vadd.f32 %v1858, %v1970
        %1972 = vmatmul.f32.gmra.mxu0 %v1357
        %v1973 = vpop.f32.mrf.mxu0
        %v1974 = vadd.f32 %v1861, %v1973
        %1975 = vmatmul.f32.gmra.mxu0 %v1358
        %v1976 = vpop.f32.mrf.mxu0
        %v1977 = vadd.f32 %v1864, %v1976
        %1978 = vmatmul.f32.gmra.mxu0 %v1359
        %v1979 = vpop.f32.mrf.mxu0
        %v1980 = vadd.f32 %v1867, %v1979
        %1981 = vmatmul.f32.gmra.mxu0 %v1360
        %v1982 = vpop.f32.mrf.mxu0
        %v1983 = vadd.f32 %v1870, %v1982
        %1984 = vmatmul.f32.gmra.mxu0 %v1361
        %v1985 = vpop.f32.mrf.mxu0
        %v1986 = vadd.f32 %v1873, %v1985
        %1987 = vmatmul.f32.gmra.mxu0 %v1362
        %v1988 = vpop.f32.mrf.mxu0
        %v1989 = vadd.f32 %v1876, %v1988
        %1990 = vmatmul.f32.gmra.mxu0 %v1363
        %v1991 = vpop.f32.mrf.mxu0
        %v1992 = vadd.f32 %v1879, %v1991
        %1993 = vmatmul.f32.gmra.mxu0 %v1364
        %v1994 = vpop.f32.mrf.mxu0
        %v1995 = vadd.f32 %v1882, %v1994
        %1996 = vmatmul.f32.gmra.mxu0 %v1365
        %v1997 = vpop.f32.mrf.mxu0
        %v1998 = vadd.f32 %v1885, %v1997
        %1999 = vmatmul.f32.gmra.mxu0 %v1366
        %v2000 = vpop.f32.mrf.mxu0
        %v2001 = vadd.f32 %v1888, %v2000
        %2002 = vmatmul.f32.gmra.mxu0 %v1367
        %v2003 = vpop.f32.mrf.mxu0
        %v2004 = vadd.f32 %v1891, %v2003
        %2005 = vmatmul.f32.gmra.mxu0 %v1368
        %v2006 = vpop.f32.mrf.mxu0
        %v2007 = vadd.f32 %v1894, %v2006
        %2008 = vmatmul.f32.gmra.mxu0 %v1369
        %v2009 = vpop.f32.mrf.mxu0
        %v2010 = vadd.f32 %v1897, %v2009
        %2011 = vmatmul.f32.gmra.mxu0 %v1370
        %v2012 = vpop.f32.mrf.mxu0
        %v2013 = vadd.f32 %v1900, %v2012
        %2014 = vmatmul.f32.gmra.mxu0 %v1371
        %v2015 = vpop.f32.mrf.mxu0
        %v2016 = vadd.f32 %v1903, %v2015
        %2017 = vmatmul.f32.gmra.mxu0 %v1372
        %v2018 = vpop.f32.mrf.mxu0
        %v2019 = vadd.f32 %v1906, %v2018
        %2020 = vmatmul.f32.gmra.mxu0 %v1437
        %v2021 = vpop.f32.mrf.mxu0
        %v2022 = vadd.f32 %v1909, %v2021
        %2023 = vmatmul.f32.gmra.mxu0 %v1438
        %v2024 = vpop.f32.mrf.mxu0
        %v2025 = vadd.f32 %v1912, %v2024
        %2026 = vmatmul.f32.gmra.mxu0 %v1439
        %v2027 = vpop.f32.mrf.mxu0
        %v2028 = vadd.f32 %v1915, %v2027
        %2029 = vmatmul.f32.gmra.mxu0 %v1440
        %v2030 = vpop.f32.mrf.mxu0
        %v2031 = vadd.f32 %v1918, %v2030
        %2032 = vdwg.mxu0
        %2033 = vmatpush.msra.mxu0 0.0
        %2034 = vmatpush.msra.mxu0 0.0
        %2035 = vmatpush.msra.mxu0 0.0
        %2036 = vmatpush.msra.mxu0 0.0
        %2037 = vmatpush.msra.mxu0 0.0
        %2038 = vmatpush.msra.mxu0 0.0
        %2039 = vmatpush.msra.mxu0 0.0
        %2040 = vmatpush.msra.mxu0 0.0
        %2041 = vmatpush.msra.mxu0 %v1512
        %2042 = vmatpush.msra.mxu0 %v1511
        %2043 = vmatpush.msra.mxu0 %v1510
        %2044 = vmatpush.msra.mxu0 %v1509
        %2045 = vmatpush.msra.mxu0 %v1508
        %2046 = vmatpush.msra.mxu0 %v1507
        %2047 = vmatpush.msra.mxu0 %v1506
        %2048 = vmatpush.msra.mxu0 %v1505
        %2049 = vmatmul.f32.gmra.mxu0 %v1517
        %v2050 = vpop.f32.mrf.mxu0
        %v2051 = vadd.f32 %v1938, %v2050
        %2052 = vmatmul.f32.gmra.mxu0 %v1519
        %v2053 = vpop.f32.mrf.mxu0
        %v2054 = vadd.f32 %v1941, %v2053
        %2055 = vmatmul.f32.gmra.mxu0 %v1521
        %v2056 = vpop.f32.mrf.mxu0
        %v2057 = vadd.f32 %v1944, %v2056
        %2058 = vmatmul.f32.gmra.mxu0 %v1523
        %v2059 = vpop.f32.mrf.mxu0
        %v2060 = vadd.f32 %v1947, %v2059
        %2061 = vmatmul.f32.gmra.mxu0 %v1525
        %v2062 = vpop.f32.mrf.mxu0
        %v2063 = vadd.f32 %v1950, %v2062
        %2064 = vmatmul.f32.gmra.mxu0 %v1527
        %v2065 = vpop.f32.mrf.mxu0
        %v2066 = vadd.f32 %v1953, %v2065
        %2067 = vmatmul.f32.gmra.mxu0 %v1529
        %v2068 = vpop.f32.mrf.mxu0
        %v2069 = vadd.f32 %v1956, %v2068
        %2070 = vmatmul.f32.gmra.mxu0 %v1531
        %v2071 = vpop.f32.mrf.mxu0
        %v2072 = vadd.f32 %v1959, %v2071
        %2073 = vmatmul.f32.gmra.mxu0 %v1533
        %v2074 = vpop.f32.mrf.mxu0
        %v2075 = vadd.f32 %v1962, %v2074
        %2076 = vmatmul.f32.gmra.mxu0 %v1535
        %v2077 = vpop.f32.mrf.mxu0
        %v2078 = vadd.f32 %v1965, %v2077
        %2079 = vmatmul.f32.gmra.mxu0 %v1537
        %v2080 = vpop.f32.mrf.mxu0
        %v2081 = vadd.f32 %v1968, %v2080
        %2082 = vmatmul.f32.gmra.mxu0 %v1539
        %v2083 = vpop.f32.mrf.mxu0
        %v2084 = vadd.f32 %v1971, %v2083
        %2085 = vmatmul.f32.gmra.mxu0 %v1541
        %v2086 = vpop.f32.mrf.mxu0
        %v2087 = vadd.f32 %v1974, %v2086
        %2088 = vmatmul.f32.gmra.mxu0 %v1543
        %v2089 = vpop.f32.mrf.mxu0
        %v2090 = vadd.f32 %v1977, %v2089
        %2091 = vmatmul.f32.gmra.mxu0 %v1545
        %v2092 = vpop.f32.mrf.mxu0
        %v2093 = vadd.f32 %v1980, %v2092
        %2094 = vmatmul.f32.gmra.mxu0 %v1547
        %v2095 = vpop.f32.mrf.mxu0
        %v2096 = vadd.f32 %v1983, %v2095
        %2097 = vmatmul.f32.gmra.mxu0 %v1549
        %v2098 = vpop.f32.mrf.mxu0
        %v2099 = vadd.f32 %v1986, %v2098
        %2100 = vmatmul.f32.gmra.mxu0 %v1551
        %v2101 = vpop.f32.mrf.mxu0
        %v2102 = vadd.f32 %v1989, %v2101
        %2103 = vmatmul.f32.gmra.mxu0 %v1553
        %v2104 = vpop.f32.mrf.mxu0
        %v2105 = vadd.f32 %v1992, %v2104
        %2106 = vmatmul.f32.gmra.mxu0 %v1555
        %v2107 = vpop.f32.mrf.mxu0
        %v2108 = vadd.f32 %v1995, %v2107
        %2109 = vmatmul.f32.gmra.mxu0 %v1557
        %v2110 = vpop.f32.mrf.mxu0
        %v2111 = vadd.f32 %v1998, %v2110
        %2112 = vmatmul.f32.gmra.mxu0 %v1559
        %v2113 = vpop.f32.mrf.mxu0
        %v2114 = vadd.f32 %v2001, %v2113
        %2115 = vmatmul.f32.gmra.mxu0 %v1561
        %v2116 = vpop.f32.mrf.mxu0
        %v2117 = vadd.f32 %v2004, %v2116
        %2118 = vmatmul.f32.gmra.mxu0 %v1563
        %v2119 = vpop.f32.mrf.mxu0
        %v2120 = vadd.f32 %v2007, %v2119
        %2121 = vmatmul.f32.gmra.mxu0 %v1565
        %v2122 = vpop.f32.mrf.mxu0
        %v2123 = vadd.f32 %v2010, %v2122
        %2124 = vmatmul.f32.gmra.mxu0 %v1567
        %v2125 = vpop.f32.mrf.mxu0
        %v2126 = vadd.f32 %v2013, %v2125
        %2127 = vmatmul.f32.gmra.mxu0 %v1569
        %v2128 = vpop.f32.mrf.mxu0
        %v2129 = vadd.f32 %v2016, %v2128
        %2130 = vmatmul.f32.gmra.mxu0 %v1571
        %v2131 = vpop.f32.mrf.mxu0
        %v2132 = vadd.f32 %v2019, %v2131
        %2133 = vmatmul.f32.gmra.mxu0 %v1573
        %v2134 = vpop.f32.mrf.mxu0
        %v2135 = vadd.f32 %v2022, %v2134
        %2136 = vmatmul.f32.gmra.mxu0 %v1575
        %v2137 = vpop.f32.mrf.mxu0
        %v2138 = vadd.f32 %v2025, %v2137
        %2139 = vmatmul.f32.gmra.mxu0 %v1577
        %v2140 = vpop.f32.mrf.mxu0
        %v2141 = vadd.f32 %v2028, %v2140
        %2142 = vmatmul.f32.gmra.mxu0 %v1579
        %v2143 = vpop.f32.mrf.mxu0
        %v2144 = vadd.f32 %v2031, %v2143
        %2145 = vdwg.mxu0
        %v2146 = vlaneseq
        %v2147 = vand.u32 %v2146, 127
        %vm2148 = vcmp.lt.s32.totalorder %v2147, 96
        %v2149 = vxor.u32 %v2051, 2147483648
        %v2150 = vxor.u32 %v2054, 2147483648
        %v2151 = vxor.u32 %v2057, 2147483648
        %v2152 = vxor.u32 %v2060, 2147483648
        %v2153 = vxor.u32 %v2063, 2147483648
        %v2154 = vxor.u32 %v2066, 2147483648
        %v2155 = vxor.u32 %v2069, 2147483648
        %v2156 = vxor.u32 %v2072, 2147483648
        %v2157 = vxor.u32 %v2075, 2147483648
        %v2158 = vxor.u32 %v2078, 2147483648
        %v2159 = vxor.u32 %v2081, 2147483648
        %v2160 = vxor.u32 %v2084, 2147483648
        %v2161 = vxor.u32 %v2087, 2147483648
        %v2162 = vxor.u32 %v2090, 2147483648
        %v2163 = vxor.u32 %v2093, 2147483648
        %v2164 = vxor.u32 %v2096, 2147483648
        %v2165 = vxor.u32 %v2099, 2147483648
        %v2166 = vxor.u32 %v2102, 2147483648
        %v2167 = vxor.u32 %v2105, 2147483648
        %v2168 = vxor.u32 %v2108, 2147483648
        %v2169 = vxor.u32 %v2111, 2147483648
        %v2170 = vxor.u32 %v2114, 2147483648
        %v2171 = vxor.u32 %v2117, 2147483648
        %v2172 = vxor.u32 %v2120, 2147483648
        %v2173 = vxor.u32 %v2123, 2147483648
        %v2174 = vxor.u32 %v2126, 2147483648
        %v2175 = vxor.u32 %v2129, 2147483648
        %v2176 = vxor.u32 %v2132, 2147483648
        %v2177 = vxor.u32 %v2135, 2147483648
        %v2178 = vxor.u32 %v2138, 2147483648
        %v2179 = vxor.u32 %v2141, 2147483648
        %v2180 = vxor.u32 %v2144, 2147483648
        %v2181 = vmul.f32 %v2149, 1.442695
        %v2182 = vpow.pop %v2181
        %v2183 = vmul.f32 %v2150, 1.442695
        %v2184 = vpow.pop %v2183
        %v2185 = vmul.f32 %v2151, 1.442695
        %v2186 = vpow.pop %v2185
        %v2187 = vmul.f32 %v2152, 1.442695
        %v2188 = vpow.pop %v2187
        %v2189 = vmul.f32 %v2153, 1.442695
        %v2190 = vpow.pop %v2189
        %v2191 = vmul.f32 %v2154, 1.442695
        %v2192 = vpow.pop %v2191
        %v2193 = vmul.f32 %v2155, 1.442695
        %v2194 = vpow.pop %v2193
        %v2195 = vmul.f32 %v2156, 1.442695
        %v2196 = vpow.pop %v2195
        %v2197 = vmul.f32 %v2157, 1.442695
        %v2198 = vpow.pop %v2197
        %v2199 = vmul.f32 %v2158, 1.442695
        %v2200 = vpow.pop %v2199
        %v2201 = vmul.f32 %v2159, 1.442695
        %v2202 = vpow.pop %v2201
        %v2203 = vmul.f32 %v2160, 1.442695
        %v2204 = vpow.pop %v2203
        %v2205 = vmul.f32 %v2161, 1.442695
        %v2206 = vpow.pop %v2205
        %v2207 = vmul.f32 %v2162, 1.442695
        %v2208 = vpow.pop %v2207
        %v2209 = vmul.f32 %v2163, 1.442695
        %v2210 = vpow.pop %v2209
        %v2211 = vmul.f32 %v2164, 1.442695
        %v2212 = vpow.pop %v2211
        %v2213 = vmul.f32 %v2165, 1.442695
        %v2214 = vpow.pop %v2213
        %v2215 = vmul.f32 %v2166, 1.442695
        %v2216 = vpow.pop %v2215
        %v2217 = vmul.f32 %v2167, 1.442695
        %v2218 = vpow.pop %v2217
        %v2219 = vmul.f32 %v2168, 1.442695
        %v2220 = vpow.pop %v2219
        %v2221 = vmul.f32 %v2169, 1.442695
        %v2222 = vpow.pop %v2221
        %v2223 = vmul.f32 %v2170, 1.442695
        %v2224 = vpow.pop %v2223
        %v2225 = vmul.f32 %v2171, 1.442695
        %v2226 = vpow.pop %v2225
        %v2227 = vmul.f32 %v2172, 1.442695
        %v2228 = vpow.pop %v2227
        %v2229 = vmul.f32 %v2173, 1.442695
        %v2230 = vpow.pop %v2229
        %v2231 = vmul.f32 %v2174, 1.442695
        %v2232 = vpow.pop %v2231
        %v2233 = vmul.f32 %v2175, 1.442695
        %v2234 = vpow.pop %v2233
        %v2235 = vmul.f32 %v2176, 1.442695
        %v2236 = vpow.pop %v2235
        %v2237 = vmul.f32 %v2177, 1.442695
        %v2238 = vpow.pop %v2237
        %v2239 = vmul.f32 %v2178, 1.442695
        %v2240 = vpow.pop %v2239
        %v2241 = vmul.f32 %v2179, 1.442695
        %v2242 = vpow.pop %v2241
        %v2243 = vmul.f32 %v2180, 1.442695
        %v2244 = vpow.pop %v2243
        %v2245 = vadd.f32 %v2182, 1.0
        %v2246 = vadd.f32 %v2184, 1.0
        %v2247 = vadd.f32 %v2186, 1.0
        %v2248 = vadd.f32 %v2188, 1.0
        %v2249 = vadd.f32 %v2190, 1.0
        %v2250 = vadd.f32 %v2192, 1.0
        %v2251 = vadd.f32 %v2194, 1.0
        %v2252 = vadd.f32 %v2196, 1.0
        %v2253 = vadd.f32 %v2198, 1.0
        %v2254 = vadd.f32 %v2200, 1.0
        %v2255 = vadd.f32 %v2202, 1.0
        %v2256 = vadd.f32 %v2204, 1.0
        %v2257 = vadd.f32 %v2206, 1.0
        %v2258 = vadd.f32 %v2208, 1.0
        %v2259 = vadd.f32 %v2210, 1.0
        %v2260 = vadd.f32 %v2212, 1.0
        %v2261 = vadd.f32 %v2214, 1.0
        %v2262 = vadd.f32 %v2216, 1.0
        %v2263 = vadd.f32 %v2218, 1.0
        %v2264 = vadd.f32 %v2220, 1.0
        %v2265 = vadd.f32 %v2222, 1.0
        %v2266 = vadd.f32 %v2224, 1.0
        %v2267 = vadd.f32 %v2226, 1.0
        %v2268 = vadd.f32 %v2228, 1.0
        %v2269 = vadd.f32 %v2230, 1.0
        %v2270 = vadd.f32 %v2232, 1.0
        %v2271 = vadd.f32 %v2234, 1.0
        %v2272 = vadd.f32 %v2236, 1.0
        %v2273 = vadd.f32 %v2238, 1.0
        %v2274 = vadd.f32 %v2240, 1.0
        %v2275 = vadd.f32 %v2242, 1.0
        %v2276 = vadd.f32 %v2244, 1.0
        %v2277 = vrcp.pop %v2245
        %v2278 = vmul.f32 %v2245, %v2277
        %v2279 = vsub.f32 1.0, %v2278
        %v2280 = vmul.f32 %v2277, %v2279
        %v2281 = vadd.f32 %v2277, %v2280
        %vm2282 = vweird.f32 %v2245
        %vm2283 = vweird.f32 %v2277
        %vm2284 = vmor %vm2282, %vm2283
        %v2285 = vsel %vm2284, %v2277, %v2281
        %v2286 = vand.u32 2147483647, %v2245
        %vm2287 = vcmp.eq.f32.partialorder %v2286, 8.507059e+37
        %v2288 = vand.u32 %v2245, 2147483648
        %v2289 = vor.u32 1.1754944e-38, %v2288
        %v2290 = vsel %vm2287, %v2289, %v2285
        %v2291 = vmul.f32 1.0, %v2290
        %v2292 = vrcp.pop %v2246
        %v2293 = vmul.f32 %v2246, %v2292
        %v2294 = vsub.f32 1.0, %v2293
        %v2295 = vmul.f32 %v2292, %v2294
        %v2296 = vadd.f32 %v2292, %v2295
        %vm2297 = vweird.f32 %v2246
        %vm2298 = vweird.f32 %v2292
        %vm2299 = vmor %vm2297, %vm2298
        %v2300 = vsel %vm2299, %v2292, %v2296
        %v2301 = vand.u32 2147483647, %v2246
        %vm2302 = vcmp.eq.f32.partialorder %v2301, 8.507059e+37
        %v2303 = vand.u32 %v2246, 2147483648
        %v2304 = vor.u32 1.1754944e-38, %v2303
        %v2305 = vsel %vm2302, %v2304, %v2300
        %v2306 = vmul.f32 1.0, %v2305
        %v2307 = vrcp.pop %v2247
        %v2308 = vmul.f32 %v2247, %v2307
        %v2309 = vsub.f32 1.0, %v2308
        %v2310 = vmul.f32 %v2307, %v2309
        %v2311 = vadd.f32 %v2307, %v2310
        %vm2312 = vweird.f32 %v2247
        %vm2313 = vweird.f32 %v2307
        %vm2314 = vmor %vm2312, %vm2313
        %v2315 = vsel %vm2314, %v2307, %v2311
        %v2316 = vand.u32 2147483647, %v2247
        %vm2317 = vcmp.eq.f32.partialorder %v2316, 8.507059e+37
        %v2318 = vand.u32 %v2247, 2147483648
        %v2319 = vor.u32 1.1754944e-38, %v2318
        %v2320 = vsel %vm2317, %v2319, %v2315
        %v2321 = vmul.f32 1.0, %v2320
        %v2322 = vrcp.pop %v2248
        %v2323 = vmul.f32 %v2248, %v2322
        %v2324 = vsub.f32 1.0, %v2323
        %v2325 = vmul.f32 %v2322, %v2324
        %v2326 = vadd.f32 %v2322, %v2325
        %vm2327 = vweird.f32 %v2248
        %vm2328 = vweird.f32 %v2322
        %vm2329 = vmor %vm2327, %vm2328
        %v2330 = vsel %vm2329, %v2322, %v2326
        %v2331 = vand.u32 2147483647, %v2248
        %vm2332 = vcmp.eq.f32.partialorder %v2331, 8.507059e+37
        %v2333 = vand.u32 %v2248, 2147483648
        %v2334 = vor.u32 1.1754944e-38, %v2333
        %v2335 = vsel %vm2332, %v2334, %v2330
        %v2336 = vmul.f32 1.0, %v2335
        %v2337 = vrcp.pop %v2249
        %v2338 = vmul.f32 %v2249, %v2337
        %v2339 = vsub.f32 1.0, %v2338
        %v2340 = vmul.f32 %v2337, %v2339
        %v2341 = vadd.f32 %v2337, %v2340
        %vm2342 = vweird.f32 %v2249
        %vm2343 = vweird.f32 %v2337
        %vm2344 = vmor %vm2342, %vm2343
        %v2345 = vsel %vm2344, %v2337, %v2341
        %v2346 = vand.u32 2147483647, %v2249
        %vm2347 = vcmp.eq.f32.partialorder %v2346, 8.507059e+37
        %v2348 = vand.u32 %v2249, 2147483648
        %v2349 = vor.u32 1.1754944e-38, %v2348
        %v2350 = vsel %vm2347, %v2349, %v2345
        %v2351 = vmul.f32 1.0, %v2350
        %v2352 = vrcp.pop %v2250
        %v2353 = vmul.f32 %v2250, %v2352
        %v2354 = vsub.f32 1.0, %v2353
        %v2355 = vmul.f32 %v2352, %v2354
        %v2356 = vadd.f32 %v2352, %v2355
        %vm2357 = vweird.f32 %v2250
        %vm2358 = vweird.f32 %v2352
        %vm2359 = vmor %vm2357, %vm2358
        %v2360 = vsel %vm2359, %v2352, %v2356
        %v2361 = vand.u32 2147483647, %v2250
        %vm2362 = vcmp.eq.f32.partialorder %v2361, 8.507059e+37
        %v2363 = vand.u32 %v2250, 2147483648
        %v2364 = vor.u32 1.1754944e-38, %v2363
        %v2365 = vsel %vm2362, %v2364, %v2360
        %v2366 = vmul.f32 1.0, %v2365
        %v2367 = vrcp.pop %v2251
        %v2368 = vmul.f32 %v2251, %v2367
        %v2369 = vsub.f32 1.0, %v2368
        %v2370 = vmul.f32 %v2367, %v2369
        %v2371 = vadd.f32 %v2367, %v2370
        %vm2372 = vweird.f32 %v2251
        %vm2373 = vweird.f32 %v2367
        %vm2374 = vmor %vm2372, %vm2373
        %v2375 = vsel %vm2374, %v2367, %v2371
        %v2376 = vand.u32 2147483647, %v2251
        %vm2377 = vcmp.eq.f32.partialorder %v2376, 8.507059e+37
        %v2378 = vand.u32 %v2251, 2147483648
        %v2379 = vor.u32 1.1754944e-38, %v2378
        %v2380 = vsel %vm2377, %v2379, %v2375
        %v2381 = vmul.f32 1.0, %v2380
        %v2382 = vrcp.pop %v2252
        %v2383 = vmul.f32 %v2252, %v2382
        %v2384 = vsub.f32 1.0, %v2383
        %v2385 = vmul.f32 %v2382, %v2384
        %v2386 = vadd.f32 %v2382, %v2385
        %vm2387 = vweird.f32 %v2252
        %vm2388 = vweird.f32 %v2382
        %vm2389 = vmor %vm2387, %vm2388
        %v2390 = vsel %vm2389, %v2382, %v2386
        %v2391 = vand.u32 2147483647, %v2252
        %vm2392 = vcmp.eq.f32.partialorder %v2391, 8.507059e+37
        %v2393 = vand.u32 %v2252, 2147483648
        %v2394 = vor.u32 1.1754944e-38, %v2393
        %v2395 = vsel %vm2392, %v2394, %v2390
        %v2396 = vmul.f32 1.0, %v2395
        %v2397 = vrcp.pop %v2253
        %v2398 = vmul.f32 %v2253, %v2397
        %v2399 = vsub.f32 1.0, %v2398
        %v2400 = vmul.f32 %v2397, %v2399
        %v2401 = vadd.f32 %v2397, %v2400
        %vm2402 = vweird.f32 %v2253
        %vm2403 = vweird.f32 %v2397
        %vm2404 = vmor %vm2402, %vm2403
        %v2405 = vsel %vm2404, %v2397, %v2401
        %v2406 = vand.u32 2147483647, %v2253
        %vm2407 = vcmp.eq.f32.partialorder %v2406, 8.507059e+37
        %v2408 = vand.u32 %v2253, 2147483648
        %v2409 = vor.u32 1.1754944e-38, %v2408
        %v2410 = vsel %vm2407, %v2409, %v2405
        %v2411 = vmul.f32 1.0, %v2410
        %v2412 = vrcp.pop %v2254
        %v2413 = vmul.f32 %v2254, %v2412
        %v2414 = vsub.f32 1.0, %v2413
        %v2415 = vmul.f32 %v2412, %v2414
        %v2416 = vadd.f32 %v2412, %v2415
        %vm2417 = vweird.f32 %v2254
        %vm2418 = vweird.f32 %v2412
        %vm2419 = vmor %vm2417, %vm2418
        %v2420 = vsel %vm2419, %v2412, %v2416
        %v2421 = vand.u32 2147483647, %v2254
        %vm2422 = vcmp.eq.f32.partialorder %v2421, 8.507059e+37
        %v2423 = vand.u32 %v2254, 2147483648
        %v2424 = vor.u32 1.1754944e-38, %v2423
        %v2425 = vsel %vm2422, %v2424, %v2420
        %v2426 = vmul.f32 1.0, %v2425
        %v2427 = vrcp.pop %v2255
        %v2428 = vmul.f32 %v2255, %v2427
        %v2429 = vsub.f32 1.0, %v2428
        %v2430 = vmul.f32 %v2427, %v2429
        %v2431 = vadd.f32 %v2427, %v2430
        %vm2432 = vweird.f32 %v2255
        %vm2433 = vweird.f32 %v2427
        %vm2434 = vmor %vm2432, %vm2433
        %v2435 = vsel %vm2434, %v2427, %v2431
        %v2436 = vand.u32 2147483647, %v2255
        %vm2437 = vcmp.eq.f32.partialorder %v2436, 8.507059e+37
        %v2438 = vand.u32 %v2255, 2147483648
        %v2439 = vor.u32 1.1754944e-38, %v2438
        %v2440 = vsel %vm2437, %v2439, %v2435
        %v2441 = vmul.f32 1.0, %v2440
        %v2442 = vrcp.pop %v2256
        %v2443 = vmul.f32 %v2256, %v2442
        %v2444 = vsub.f32 1.0, %v2443
        %v2445 = vmul.f32 %v2442, %v2444
        %v2446 = vadd.f32 %v2442, %v2445
        %vm2447 = vweird.f32 %v2256
        %vm2448 = vweird.f32 %v2442
        %vm2449 = vmor %vm2447, %vm2448
        %v2450 = vsel %vm2449, %v2442, %v2446
        %v2451 = vand.u32 2147483647, %v2256
        %vm2452 = vcmp.eq.f32.partialorder %v2451, 8.507059e+37
        %v2453 = vand.u32 %v2256, 2147483648
        %v2454 = vor.u32 1.1754944e-38, %v2453
        %v2455 = vsel %vm2452, %v2454, %v2450
        %v2456 = vmul.f32 1.0, %v2455
        %v2457 = vrcp.pop %v2257
        %v2458 = vmul.f32 %v2257, %v2457
        %v2459 = vsub.f32 1.0, %v2458
        %v2460 = vmul.f32 %v2457, %v2459
        %v2461 = vadd.f32 %v2457, %v2460
        %vm2462 = vweird.f32 %v2257
        %vm2463 = vweird.f32 %v2457
        %vm2464 = vmor %vm2462, %vm2463
        %v2465 = vsel %vm2464, %v2457, %v2461
        %v2466 = vand.u32 2147483647, %v2257
        %vm2467 = vcmp.eq.f32.partialorder %v2466, 8.507059e+37
        %v2468 = vand.u32 %v2257, 2147483648
        %v2469 = vor.u32 1.1754944e-38, %v2468
        %v2470 = vsel %vm2467, %v2469, %v2465
        %v2471 = vmul.f32 1.0, %v2470
        %v2472 = vrcp.pop %v2258
        %v2473 = vmul.f32 %v2258, %v2472
        %v2474 = vsub.f32 1.0, %v2473
        %v2475 = vmul.f32 %v2472, %v2474
        %v2476 = vadd.f32 %v2472, %v2475
        %vm2477 = vweird.f32 %v2258
        %vm2478 = vweird.f32 %v2472
        %vm2479 = vmor %vm2477, %vm2478
        %v2480 = vsel %vm2479, %v2472, %v2476
        %v2481 = vand.u32 2147483647, %v2258
        %vm2482 = vcmp.eq.f32.partialorder %v2481, 8.507059e+37
        %v2483 = vand.u32 %v2258, 2147483648
        %v2484 = vor.u32 1.1754944e-38, %v2483
        %v2485 = vsel %vm2482, %v2484, %v2480
        %v2486 = vmul.f32 1.0, %v2485
        %v2487 = vrcp.pop %v2259
        %v2488 = vmul.f32 %v2259, %v2487
        %v2489 = vsub.f32 1.0, %v2488
        %v2490 = vmul.f32 %v2487, %v2489
        %v2491 = vadd.f32 %v2487, %v2490
        %vm2492 = vweird.f32 %v2259
        %vm2493 = vweird.f32 %v2487
        %vm2494 = vmor %vm2492, %vm2493
        %v2495 = vsel %vm2494, %v2487, %v2491
        %v2496 = vand.u32 2147483647, %v2259
        %vm2497 = vcmp.eq.f32.partialorder %v2496, 8.507059e+37
        %v2498 = vand.u32 %v2259, 2147483648
        %v2499 = vor.u32 1.1754944e-38, %v2498
        %v2500 = vsel %vm2497, %v2499, %v2495
        %v2501 = vmul.f32 1.0, %v2500
        %v2502 = vrcp.pop %v2260
        %v2503 = vmul.f32 %v2260, %v2502
        %v2504 = vsub.f32 1.0, %v2503
        %v2505 = vmul.f32 %v2502, %v2504
        %v2506 = vadd.f32 %v2502, %v2505
        %vm2507 = vweird.f32 %v2260
        %vm2508 = vweird.f32 %v2502
        %vm2509 = vmor %vm2507, %vm2508
        %v2510 = vsel %vm2509, %v2502, %v2506
        %v2511 = vand.u32 2147483647, %v2260
        %vm2512 = vcmp.eq.f32.partialorder %v2511, 8.507059e+37
        %v2513 = vand.u32 %v2260, 2147483648
        %v2514 = vor.u32 1.1754944e-38, %v2513
        %v2515 = vsel %vm2512, %v2514, %v2510
        %v2516 = vmul.f32 1.0, %v2515
        %v2517 = vrcp.pop %v2261
        %v2518 = vmul.f32 %v2261, %v2517
        %v2519 = vsub.f32 1.0, %v2518
        %v2520 = vmul.f32 %v2517, %v2519
        %v2521 = vadd.f32 %v2517, %v2520
        %vm2522 = vweird.f32 %v2261
        %vm2523 = vweird.f32 %v2517
        %vm2524 = vmor %vm2522, %vm2523
        %v2525 = vsel %vm2524, %v2517, %v2521
        %v2526 = vand.u32 2147483647, %v2261
        %vm2527 = vcmp.eq.f32.partialorder %v2526, 8.507059e+37
        %v2528 = vand.u32 %v2261, 2147483648
        %v2529 = vor.u32 1.1754944e-38, %v2528
        %v2530 = vsel %vm2527, %v2529, %v2525
        %v2531 = vmul.f32 1.0, %v2530
        %v2532 = vrcp.pop %v2262
        %v2533 = vmul.f32 %v2262, %v2532
        %v2534 = vsub.f32 1.0, %v2533
        %v2535 = vmul.f32 %v2532, %v2534
        %v2536 = vadd.f32 %v2532, %v2535
        %vm2537 = vweird.f32 %v2262
        %vm2538 = vweird.f32 %v2532
        %vm2539 = vmor %vm2537, %vm2538
        %v2540 = vsel %vm2539, %v2532, %v2536
        %v2541 = vand.u32 2147483647, %v2262
        %vm2542 = vcmp.eq.f32.partialorder %v2541, 8.507059e+37
        %v2543 = vand.u32 %v2262, 2147483648
        %v2544 = vor.u32 1.1754944e-38, %v2543
        %v2545 = vsel %vm2542, %v2544, %v2540
        %v2546 = vmul.f32 1.0, %v2545
        %v2547 = vrcp.pop %v2263
        %v2548 = vmul.f32 %v2263, %v2547
        %v2549 = vsub.f32 1.0, %v2548
        %v2550 = vmul.f32 %v2547, %v2549
        %v2551 = vadd.f32 %v2547, %v2550
        %vm2552 = vweird.f32 %v2263
        %vm2553 = vweird.f32 %v2547
        %vm2554 = vmor %vm2552, %vm2553
        %v2555 = vsel %vm2554, %v2547, %v2551
        %v2556 = vand.u32 2147483647, %v2263
        %vm2557 = vcmp.eq.f32.partialorder %v2556, 8.507059e+37
        %v2558 = vand.u32 %v2263, 2147483648
        %v2559 = vor.u32 1.1754944e-38, %v2558
        %v2560 = vsel %vm2557, %v2559, %v2555
        %v2561 = vmul.f32 1.0, %v2560
        %v2562 = vrcp.pop %v2264
        %v2563 = vmul.f32 %v2264, %v2562
        %v2564 = vsub.f32 1.0, %v2563
        %v2565 = vmul.f32 %v2562, %v2564
        %v2566 = vadd.f32 %v2562, %v2565
        %vm2567 = vweird.f32 %v2264
        %vm2568 = vweird.f32 %v2562
        %vm2569 = vmor %vm2567, %vm2568
        %v2570 = vsel %vm2569, %v2562, %v2566
        %v2571 = vand.u32 2147483647, %v2264
        %vm2572 = vcmp.eq.f32.partialorder %v2571, 8.507059e+37
        %v2573 = vand.u32 %v2264, 2147483648
        %v2574 = vor.u32 1.1754944e-38, %v2573
        %v2575 = vsel %vm2572, %v2574, %v2570
        %v2576 = vmul.f32 1.0, %v2575
        %v2577 = vrcp.pop %v2265
        %v2578 = vmul.f32 %v2265, %v2577
        %v2579 = vsub.f32 1.0, %v2578
        %v2580 = vmul.f32 %v2577, %v2579
        %v2581 = vadd.f32 %v2577, %v2580
        %vm2582 = vweird.f32 %v2265
        %vm2583 = vweird.f32 %v2577
        %vm2584 = vmor %vm2582, %vm2583
        %v2585 = vsel %vm2584, %v2577, %v2581
        %v2586 = vand.u32 2147483647, %v2265
        %vm2587 = vcmp.eq.f32.partialorder %v2586, 8.507059e+37
        %v2588 = vand.u32 %v2265, 2147483648
        %v2589 = vor.u32 1.1754944e-38, %v2588
        %v2590 = vsel %vm2587, %v2589, %v2585
        %v2591 = vmul.f32 1.0, %v2590
        %v2592 = vrcp.pop %v2266
        %v2593 = vmul.f32 %v2266, %v2592
        %v2594 = vsub.f32 1.0, %v2593
        %v2595 = vmul.f32 %v2592, %v2594
        %v2596 = vadd.f32 %v2592, %v2595
        %vm2597 = vweird.f32 %v2266
        %vm2598 = vweird.f32 %v2592
        %vm2599 = vmor %vm2597, %vm2598
        %v2600 = vsel %vm2599, %v2592, %v2596
        %v2601 = vand.u32 2147483647, %v2266
        %vm2602 = vcmp.eq.f32.partialorder %v2601, 8.507059e+37
        %v2603 = vand.u32 %v2266, 2147483648
        %v2604 = vor.u32 1.1754944e-38, %v2603
        %v2605 = vsel %vm2602, %v2604, %v2600
        %v2606 = vmul.f32 1.0, %v2605
        %v2607 = vrcp.pop %v2267
        %v2608 = vmul.f32 %v2267, %v2607
        %v2609 = vsub.f32 1.0, %v2608
        %v2610 = vmul.f32 %v2607, %v2609
        %v2611 = vadd.f32 %v2607, %v2610
        %vm2612 = vweird.f32 %v2267
        %vm2613 = vweird.f32 %v2607
        %vm2614 = vmor %vm2612, %vm2613
        %v2615 = vsel %vm2614, %v2607, %v2611
        %v2616 = vand.u32 2147483647, %v2267
        %vm2617 = vcmp.eq.f32.partialorder %v2616, 8.507059e+37
        %v2618 = vand.u32 %v2267, 2147483648
        %v2619 = vor.u32 1.1754944e-38, %v2618
        %v2620 = vsel %vm2617, %v2619, %v2615
        %v2621 = vmul.f32 1.0, %v2620
        %v2622 = vrcp.pop %v2268
        %v2623 = vmul.f32 %v2268, %v2622
        %v2624 = vsub.f32 1.0, %v2623
        %v2625 = vmul.f32 %v2622, %v2624
        %v2626 = vadd.f32 %v2622, %v2625
        %vm2627 = vweird.f32 %v2268
        %vm2628 = vweird.f32 %v2622
        %vm2629 = vmor %vm2627, %vm2628
        %v2630 = vsel %vm2629, %v2622, %v2626
        %v2631 = vand.u32 2147483647, %v2268
        %vm2632 = vcmp.eq.f32.partialorder %v2631, 8.507059e+37
        %v2633 = vand.u32 %v2268, 2147483648
        %v2634 = vor.u32 1.1754944e-38, %v2633
        %v2635 = vsel %vm2632, %v2634, %v2630
        %v2636 = vmul.f32 1.0, %v2635
        %v2637 = vrcp.pop %v2269
        %v2638 = vmul.f32 %v2269, %v2637
        %v2639 = vsub.f32 1.0, %v2638
        %v2640 = vmul.f32 %v2637, %v2639
        %v2641 = vadd.f32 %v2637, %v2640
        %vm2642 = vweird.f32 %v2269
        %vm2643 = vweird.f32 %v2637
        %vm2644 = vmor %vm2642, %vm2643
        %v2645 = vsel %vm2644, %v2637, %v2641
        %v2646 = vand.u32 2147483647, %v2269
        %vm2647 = vcmp.eq.f32.partialorder %v2646, 8.507059e+37
        %v2648 = vand.u32 %v2269, 2147483648
        %v2649 = vor.u32 1.1754944e-38, %v2648
        %v2650 = vsel %vm2647, %v2649, %v2645
        %v2651 = vmul.f32 1.0, %v2650
        %v2652 = vrcp.pop %v2270
        %v2653 = vmul.f32 %v2270, %v2652
        %v2654 = vsub.f32 1.0, %v2653
        %v2655 = vmul.f32 %v2652, %v2654
        %v2656 = vadd.f32 %v2652, %v2655
        %vm2657 = vweird.f32 %v2270
        %vm2658 = vweird.f32 %v2652
        %vm2659 = vmor %vm2657, %vm2658
        %v2660 = vsel %vm2659, %v2652, %v2656
        %v2661 = vand.u32 2147483647, %v2270
        %vm2662 = vcmp.eq.f32.partialorder %v2661, 8.507059e+37
        %v2663 = vand.u32 %v2270, 2147483648
        %v2664 = vor.u32 1.1754944e-38, %v2663
        %v2665 = vsel %vm2662, %v2664, %v2660
        %v2666 = vmul.f32 1.0, %v2665
        %v2667 = vrcp.pop %v2271
        %v2668 = vmul.f32 %v2271, %v2667
        %v2669 = vsub.f32 1.0, %v2668
        %v2670 = vmul.f32 %v2667, %v2669
        %v2671 = vadd.f32 %v2667, %v2670
        %vm2672 = vweird.f32 %v2271
        %vm2673 = vweird.f32 %v2667
        %vm2674 = vmor %vm2672, %vm2673
        %v2675 = vsel %vm2674, %v2667, %v2671
        %v2676 = vand.u32 2147483647, %v2271
        %vm2677 = vcmp.eq.f32.partialorder %v2676, 8.507059e+37
        %v2678 = vand.u32 %v2271, 2147483648
        %v2679 = vor.u32 1.1754944e-38, %v2678
        %v2680 = vsel %vm2677, %v2679, %v2675
        %v2681 = vmul.f32 1.0, %v2680
        %v2682 = vrcp.pop %v2272
        %v2683 = vmul.f32 %v2272, %v2682
        %v2684 = vsub.f32 1.0, %v2683
        %v2685 = vmul.f32 %v2682, %v2684
        %v2686 = vadd.f32 %v2682, %v2685
        %vm2687 = vweird.f32 %v2272
        %vm2688 = vweird.f32 %v2682
        %vm2689 = vmor %vm2687, %vm2688
        %v2690 = vsel %vm2689, %v2682, %v2686
        %v2691 = vand.u32 2147483647, %v2272
        %vm2692 = vcmp.eq.f32.partialorder %v2691, 8.507059e+37
        %v2693 = vand.u32 %v2272, 2147483648
        %v2694 = vor.u32 1.1754944e-38, %v2693
        %v2695 = vsel %vm2692, %v2694, %v2690
        %v2696 = vmul.f32 1.0, %v2695
        %v2697 = vrcp.pop %v2273
        %v2698 = vmul.f32 %v2273, %v2697
        %v2699 = vsub.f32 1.0, %v2698
        %v2700 = vmul.f32 %v2697, %v2699
        %v2701 = vadd.f32 %v2697, %v2700
        %vm2702 = vweird.f32 %v2273
        %vm2703 = vweird.f32 %v2697
        %vm2704 = vmor %vm2702, %vm2703
        %v2705 = vsel %vm2704, %v2697, %v2701
        %v2706 = vand.u32 2147483647, %v2273
        %vm2707 = vcmp.eq.f32.partialorder %v2706, 8.507059e+37
        %v2708 = vand.u32 %v2273, 2147483648
        %v2709 = vor.u32 1.1754944e-38, %v2708
        %v2710 = vsel %vm2707, %v2709, %v2705
        %v2711 = vmul.f32 1.0, %v2710
        %v2712 = vrcp.pop %v2274
        %v2713 = vmul.f32 %v2274, %v2712
        %v2714 = vsub.f32 1.0, %v2713
        %v2715 = vmul.f32 %v2712, %v2714
        %v2716 = vadd.f32 %v2712, %v2715
        %vm2717 = vweird.f32 %v2274
        %vm2718 = vweird.f32 %v2712
        %vm2719 = vmor %vm2717, %vm2718
        %v2720 = vsel %vm2719, %v2712, %v2716
        %v2721 = vand.u32 2147483647, %v2274
        %vm2722 = vcmp.eq.f32.partialorder %v2721, 8.507059e+37
        %v2723 = vand.u32 %v2274, 2147483648
        %v2724 = vor.u32 1.1754944e-38, %v2723
        %v2725 = vsel %vm2722, %v2724, %v2720
        %v2726 = vmul.f32 1.0, %v2725
        %v2727 = vrcp.pop %v2275
        %v2728 = vmul.f32 %v2275, %v2727
        %v2729 = vsub.f32 1.0, %v2728
        %v2730 = vmul.f32 %v2727, %v2729
        %v2731 = vadd.f32 %v2727, %v2730
        %vm2732 = vweird.f32 %v2275
        %vm2733 = vweird.f32 %v2727
        %vm2734 = vmor %vm2732, %vm2733
        %v2735 = vsel %vm2734, %v2727, %v2731
        %v2736 = vand.u32 2147483647, %v2275
        %vm2737 = vcmp.eq.f32.partialorder %v2736, 8.507059e+37
        %v2738 = vand.u32 %v2275, 2147483648
        %v2739 = vor.u32 1.1754944e-38, %v2738
        %v2740 = vsel %vm2737, %v2739, %v2735
        %v2741 = vmul.f32 1.0, %v2740
        %v2742 = vrcp.pop %v2276
        %v2743 = vmul.f32 %v2276, %v2742
        %v2744 = vsub.f32 1.0, %v2743
        %v2745 = vmul.f32 %v2742, %v2744
        %v2746 = vadd.f32 %v2742, %v2745
        %vm2747 = vweird.f32 %v2276
        %vm2748 = vweird.f32 %v2742
        %vm2749 = vmor %vm2747, %vm2748
        %v2750 = vsel %vm2749, %v2742, %v2746
        %v2751 = vand.u32 2147483647, %v2276
        %vm2752 = vcmp.eq.f32.partialorder %v2751, 8.507059e+37
        %v2753 = vand.u32 %v2276, 2147483648
        %v2754 = vor.u32 1.1754944e-38, %v2753
        %v2755 = vsel %vm2752, %v2754, %v2750
        %v2756 = vmul.f32 1.0, %v2755
        %v2757 = vtanh.pop %v2051
        %v2758 = vtanh.pop %v2054
        %v2759 = vtanh.pop %v2057
        %v2760 = vtanh.pop %v2060
        %v2761 = vtanh.pop %v2063
        %v2762 = vtanh.pop %v2066
        %v2763 = vtanh.pop %v2069
        %v2764 = vtanh.pop %v2072
        %v2765 = vtanh.pop %v2075
        %v2766 = vtanh.pop %v2078
        %v2767 = vtanh.pop %v2081
        %v2768 = vtanh.pop %v2084
        %v2769 = vtanh.pop %v2087
        %v2770 = vtanh.pop %v2090
        %v2771 = vtanh.pop %v2093
        %v2772 = vtanh.pop %v2096
        %v2773 = vtanh.pop %v2099
        %v2774 = vtanh.pop %v2102
        %v2775 = vtanh.pop %v2105
        %v2776 = vtanh.pop %v2108
        %v2777 = vtanh.pop %v2111
        %v2778 = vtanh.pop %v2114
        %v2779 = vtanh.pop %v2117
        %v2780 = vtanh.pop %v2120
        %v2781 = vtanh.pop %v2123
        %v2782 = vtanh.pop %v2126
        %v2783 = vtanh.pop %v2129
        %v2784 = vtanh.pop %v2132
        %v2785 = vtanh.pop %v2135
        %v2786 = vtanh.pop %v2138
        %v2787 = vtanh.pop %v2141
        %v2788 = vtanh.pop %v2144
        %v2789 = vsel %vm2148, %v2291, %v2757
        %v2790 = vsel %vm2148, %v2306, %v2758
        %v2791 = vsel %vm2148, %v2321, %v2759
        %v2792 = vsel %vm2148, %v2336, %v2760
        %v2793 = vsel %vm2148, %v2351, %v2761
        %v2794 = vsel %vm2148, %v2366, %v2762
        %v2795 = vsel %vm2148, %v2381, %v2763
        %v2796 = vsel %vm2148, %v2396, %v2764
        %v2797 = vsel %vm2148, %v2411, %v2765
        %v2798 = vsel %vm2148, %v2426, %v2766
        %v2799 = vsel %vm2148, %v2441, %v2767
        %v2800 = vsel %vm2148, %v2456, %v2768
        %v2801 = vsel %vm2148, %v2471, %v2769
        %v2802 = vsel %vm2148, %v2486, %v2770
        %v2803 = vsel %vm2148, %v2501, %v2771
        %v2804 = vsel %vm2148, %v2516, %v2772
        %v2805 = vsel %vm2148, %v2531, %v2773
        %v2806 = vsel %vm2148, %v2546, %v2774
        %v2807 = vsel %vm2148, %v2561, %v2775
        %v2808 = vsel %vm2148, %v2576, %v2776
        %v2809 = vsel %vm2148, %v2591, %v2777
        %v2810 = vsel %vm2148, %v2606, %v2778
        %v2811 = vsel %vm2148, %v2621, %v2779
        %v2812 = vsel %vm2148, %v2636, %v2780
        %v2813 = vsel %vm2148, %v2651, %v2781
        %v2814 = vsel %vm2148, %v2666, %v2782
        %v2815 = vsel %vm2148, %v2681, %v2783
        %v2816 = vsel %vm2148, %v2696, %v2784
        %v2817 = vsel %vm2148, %v2711, %v2785
        %v2818 = vsel %vm2148, %v2726, %v2786
        %v2819 = vsel %vm2148, %v2741, %v2787
        %v2820 = vsel %vm2148, %v2756, %v2788
        %v2821 = vld [vmem:[#allocation4] sm:$0xff]
        %v2822 = vld [vmem:[#allocation4 + $0x8] sm:$0xff]
        %v2823 = vld [vmem:[#allocation4 + $0x10] sm:$0xff]
        %v2824 = vld [vmem:[#allocation4 + $0x18] sm:$0xff]
        %v2825 = vld [vmem:[#allocation4 + $0x20] sm:$0xff]
        %v2826 = vld [vmem:[#allocation4 + $0x28] sm:$0xff]
        %v2827 = vld [vmem:[#allocation4 + $0x30] sm:$0xff]
        %v2828 = vld [vmem:[#allocation4 + $0x38] sm:$0xff]
        %v2829 = vld [vmem:[#allocation4 + $0x40] sm:$0xff]
        %v2830 = vld [vmem:[#allocation4 + $0x48] sm:$0xff]
        %v2831 = vld [vmem:[#allocation4 + $0x50] sm:$0xff]
        %v2832 = vld [vmem:[#allocation4 + $0x58] sm:$0xff]
        %v2833 = vld [vmem:[#allocation4 + $0x60] sm:$0xff]
        %v2834 = vld [vmem:[#allocation4 + $0x68] sm:$0xff]
        %v2835 = vld [vmem:[#allocation4 + $0x70] sm:$0xff]
        %v2836 = vld [vmem:[#allocation4 + $0x78] sm:$0xff]
        %v2837 = vld [vmem:[#allocation4 + $0x80] sm:$0xff]
        %v2838 = vld [vmem:[#allocation4 + $0x88] sm:$0xff]
        %v2839 = vld [vmem:[#allocation4 + $0x90] sm:$0xff]
        %v2840 = vld [vmem:[#allocation4 + $0x98] sm:$0xff]
        %v2841 = vld [vmem:[#allocation4 + $0xa0] sm:$0xff]
        %v2842 = vld [vmem:[#allocation4 + $0xa8] sm:$0xff]
        %v2843 = vld [vmem:[#allocation4 + $0xb0] sm:$0xff]
        %v2844 = vld [vmem:[#allocation4 + $0xb8] sm:$0xff]
        %v2845 = vld [vmem:[#allocation4 + $0xc0] sm:$0xff]
        %v2846 = vld [vmem:[#allocation4 + $0xc8] sm:$0xff]
        %v2847 = vld [vmem:[#allocation4 + $0xd0] sm:$0xff]
        %v2848 = vld [vmem:[#allocation4 + $0xd8] sm:$0xff]
        %v2849 = vld [vmem:[#allocation4 + $0xe0] sm:$0xff]
        %v2850 = vld [vmem:[#allocation4 + $0xe8] sm:$0xff]
        %v2851 = vld [vmem:[#allocation4 + $0xf0] sm:$0xff]
        %v2852 = vld [vmem:[#allocation4 + $0xf8] sm:$0xff]
        %2885 = vrot.lane.b32.xlu0 %v2821, 32
        %v2886 = vpop.permute.xlu0 %2885
        %2887 = vrot.lane.b32.xlu0 %v2822, 32
        %v2888 = vpop.permute.xlu0 %2887
        %2889 = vrot.lane.b32.xlu0 %v2823, 32
        %v2890 = vpop.permute.xlu0 %2889
        %2891 = vrot.lane.b32.xlu0 %v2824, 32
        %v2892 = vpop.permute.xlu0 %2891
        %2893 = vrot.lane.b32.xlu0 %v2825, 32
        %v2894 = vpop.permute.xlu0 %2893
        %2895 = vrot.lane.b32.xlu0 %v2826, 32
        %v2896 = vpop.permute.xlu0 %2895
        %2897 = vrot.lane.b32.xlu0 %v2827, 32
        %v2898 = vpop.permute.xlu0 %2897
        %2899 = vrot.lane.b32.xlu0 %v2828, 32
        %v2900 = vpop.permute.xlu0 %2899
        %2901 = vrot.lane.b32.xlu0 %v2829, 32
        %v2902 = vpop.permute.xlu0 %2901
        %2903 = vrot.lane.b32.xlu0 %v2830, 32
        %v2904 = vpop.permute.xlu0 %2903
        %2905 = vrot.lane.b32.xlu0 %v2831, 32
        %v2906 = vpop.permute.xlu0 %2905
        %2907 = vrot.lane.b32.xlu0 %v2832, 32
        %v2908 = vpop.permute.xlu0 %2907
        %2909 = vrot.lane.b32.xlu0 %v2833, 32
        %v2910 = vpop.permute.xlu0 %2909
        %2911 = vrot.lane.b32.xlu0 %v2834, 32
        %v2912 = vpop.permute.xlu0 %2911
        %2913 = vrot.lane.b32.xlu0 %v2835, 32
        %v2914 = vpop.permute.xlu0 %2913
        %2915 = vrot.lane.b32.xlu0 %v2836, 32
        %v2916 = vpop.permute.xlu0 %2915
        %2917 = vrot.lane.b32.xlu0 %v2837, 32
        %v2918 = vpop.permute.xlu0 %2917
        %2919 = vrot.lane.b32.xlu0 %v2838, 32
        %v2920 = vpop.permute.xlu0 %2919
        %2921 = vrot.lane.b32.xlu0 %v2839, 32
        %v2922 = vpop.permute.xlu0 %2921
        %2923 = vrot.lane.b32.xlu0 %v2840, 32
        %v2924 = vpop.permute.xlu0 %2923
        %2925 = vrot.lane.b32.xlu0 %v2841, 32
        %v2926 = vpop.permute.xlu0 %2925
        %2927 = vrot.lane.b32.xlu0 %v2842, 32
        %v2928 = vpop.permute.xlu0 %2927
        %2929 = vrot.lane.b32.xlu0 %v2843, 32
        %v2930 = vpop.permute.xlu0 %2929
        %2931 = vrot.lane.b32.xlu0 %v2844, 32
        %v2932 = vpop.permute.xlu0 %2931
        %2933 = vrot.lane.b32.xlu0 %v2845, 32
        %v2934 = vpop.permute.xlu0 %2933
        %2935 = vrot.lane.b32.xlu0 %v2846, 32
        %v2936 = vpop.permute.xlu0 %2935
        %2937 = vrot.lane.b32.xlu0 %v2847, 32
        %v2938 = vpop.permute.xlu0 %2937
        %2939 = vrot.lane.b32.xlu0 %v2848, 32
        %v2940 = vpop.permute.xlu0 %2939
        %2941 = vrot.lane.b32.xlu0 %v2849, 32
        %v2942 = vpop.permute.xlu0 %2941
        %2943 = vrot.lane.b32.xlu0 %v2850, 32
        %v2944 = vpop.permute.xlu0 %2943
        %2945 = vrot.lane.b32.xlu0 %v2851, 32
        %v2946 = vpop.permute.xlu0 %2945
        %2947 = vrot.lane.b32.xlu0 %v2852, 32
        %v2948 = vpop.permute.xlu0 %2947
        %v2981 = vmul.f32 %v2789, %v2886
        %v2982 = vmul.f32 %v2790, %v2888
        %v2983 = vmul.f32 %v2791, %v2890
        %v2984 = vmul.f32 %v2792, %v2892
        %v2985 = vmul.f32 %v2793, %v2894
        %v2986 = vmul.f32 %v2794, %v2896
        %v2987 = vmul.f32 %v2795, %v2898
        %v2988 = vmul.f32 %v2796, %v2900
        %v2989 = vmul.f32 %v2797, %v2902
        %v2990 = vmul.f32 %v2798, %v2904
        %v2991 = vmul.f32 %v2799, %v2906
        %v2992 = vmul.f32 %v2800, %v2908
        %v2993 = vmul.f32 %v2801, %v2910
        %v2994 = vmul.f32 %v2802, %v2912
        %v2995 = vmul.f32 %v2803, %v2914
        %v2996 = vmul.f32 %v2804, %v2916
        %v2997 = vmul.f32 %v2805, %v2918
        %v2998 = vmul.f32 %v2806, %v2920
        %v2999 = vmul.f32 %v2807, %v2922
        %v3000 = vmul.f32 %v2808, %v2924
        %v3001 = vmul.f32 %v2809, %v2926
        %v3002 = vmul.f32 %v2810, %v2928
        %v3003 = vmul.f32 %v2811, %v2930
        %v3004 = vmul.f32 %v2812, %v2932
        %v3005 = vmul.f32 %v2813, %v2934
        %v3006 = vmul.f32 %v2814, %v2936
        %v3007 = vmul.f32 %v2815, %v2938
        %v3008 = vmul.f32 %v2816, %v2940
        %v3009 = vmul.f32 %v2817, %v2942
        %v3010 = vmul.f32 %v2818, %v2944
        %v3011 = vmul.f32 %v2819, %v2946
        %v3012 = vmul.f32 %v2820, %v2948
        %3045 = vrot.lane.b32.xlu0 %v2789, 32
        %v3046 = vpop.permute.xlu0 %3045
        %3047 = vrot.lane.b32.xlu0 %v2790, 32
        %v3048 = vpop.permute.xlu0 %3047
        %3049 = vrot.lane.b32.xlu0 %v2791, 32
        %v3050 = vpop.permute.xlu0 %3049
        %3051 = vrot.lane.b32.xlu0 %v2792, 32
        %v3052 = vpop.permute.xlu0 %3051
        %3053 = vrot.lane.b32.xlu0 %v2793, 32
        %v3054 = vpop.permute.xlu0 %3053
        %3055 = vrot.lane.b32.xlu0 %v2794, 32
        %v3056 = vpop.permute.xlu0 %3055
        %3057 = vrot.lane.b32.xlu0 %v2795, 32
        %v3058 = vpop.permute.xlu0 %3057
        %3059 = vrot.lane.b32.xlu0 %v2796, 32
        %v3060 = vpop.permute.xlu0 %3059
        %3061 = vrot.lane.b32.xlu0 %v2797, 32
        %v3062 = vpop.permute.xlu0 %3061
        %3063 = vrot.lane.b32.xlu0 %v2798, 32
        %v3064 = vpop.permute.xlu0 %3063
        %3065 = vrot.lane.b32.xlu0 %v2799, 32
        %v3066 = vpop.permute.xlu0 %3065
        %3067 = vrot.lane.b32.xlu0 %v2800, 32
        %v3068 = vpop.permute.xlu0 %3067
        %3069 = vrot.lane.b32.xlu0 %v2801, 32
        %v3070 = vpop.permute.xlu0 %3069
        %3071 = vrot.lane.b32.xlu0 %v2802, 32
        %v3072 = vpop.permute.xlu0 %3071
        %3073 = vrot.lane.b32.xlu0 %v2803, 32
        %v3074 = vpop.permute.xlu0 %3073
        %3075 = vrot.lane.b32.xlu0 %v2804, 32
        %v3076 = vpop.permute.xlu0 %3075
        %3077 = vrot.lane.b32.xlu0 %v2805, 32
        %v3078 = vpop.permute.xlu0 %3077
        %3079 = vrot.lane.b32.xlu0 %v2806, 32
        %v3080 = vpop.permute.xlu0 %3079
        %3081 = vrot.lane.b32.xlu0 %v2807, 32
        %v3082 = vpop.permute.xlu0 %3081
        %3083 = vrot.lane.b32.xlu0 %v2808, 32
        %v3084 = vpop.permute.xlu0 %3083
        %3085 = vrot.lane.b32.xlu0 %v2809, 32
        %v3086 = vpop.permute.xlu0 %3085
        %3087 = vrot.lane.b32.xlu0 %v2810, 32
        %v3088 = vpop.permute.xlu0 %3087
        %3089 = vrot.lane.b32.xlu0 %v2811, 32
        %v3090 = vpop.permute.xlu0 %3089
        %3091 = vrot.lane.b32.xlu0 %v2812, 32
        %v3092 = vpop.permute.xlu0 %3091
        %3093 = vrot.lane.b32.xlu0 %v2813, 32
        %v3094 = vpop.permute.xlu0 %3093
        %3095 = vrot.lane.b32.xlu0 %v2814, 32
        %v3096 = vpop.permute.xlu0 %3095
        %3097 = vrot.lane.b32.xlu0 %v2815, 32
        %v3098 = vpop.permute.xlu0 %3097
        %3099 = vrot.lane.b32.xlu0 %v2816, 32
        %v3100 = vpop.permute.xlu0 %3099
        %3101 = vrot.lane.b32.xlu0 %v2817, 32
        %v3102 = vpop.permute.xlu0 %3101
        %3103 = vrot.lane.b32.xlu0 %v2818, 32
        %v3104 = vpop.permute.xlu0 %3103
        %3105 = vrot.lane.b32.xlu0 %v2819, 32
        %v3106 = vpop.permute.xlu0 %3105
        %3107 = vrot.lane.b32.xlu0 %v2820, 32
        %v3108 = vpop.permute.xlu0 %3107
        %v3141 = vmul.f32 %v2789, %v3046
        %v3142 = vmul.f32 %v2790, %v3048
        %v3143 = vmul.f32 %v2791, %v3050
        %v3144 = vmul.f32 %v2792, %v3052
        %v3145 = vmul.f32 %v2793, %v3054
        %v3146 = vmul.f32 %v2794, %v3056
        %v3147 = vmul.f32 %v2795, %v3058
        %v3148 = vmul.f32 %v2796, %v3060
        %v3149 = vmul.f32 %v2797, %v3062
        %v3150 = vmul.f32 %v2798, %v3064
        %v3151 = vmul.f32 %v2799, %v3066
        %v3152 = vmul.f32 %v2800, %v3068
        %v3153 = vmul.f32 %v2801, %v3070
        %v3154 = vmul.f32 %v2802, %v3072
        %v3155 = vmul.f32 %v2803, %v3074
        %v3156 = vmul.f32 %v2804, %v3076
        %v3157 = vmul.f32 %v2805, %v3078
        %v3158 = vmul.f32 %v2806, %v3080
        %v3159 = vmul.f32 %v2807, %v3082
        %v3160 = vmul.f32 %v2808, %v3084
        %v3161 = vmul.f32 %v2809, %v3086
        %v3162 = vmul.f32 %v2810, %v3088
        %v3163 = vmul.f32 %v2811, %v3090
        %v3164 = vmul.f32 %v2812, %v3092
        %v3165 = vmul.f32 %v2813, %v3094
        %v3166 = vmul.f32 %v2814, %v3096
        %v3167 = vmul.f32 %v2815, %v3098
        %v3168 = vmul.f32 %v2816, %v3100
        %v3169 = vmul.f32 %v2817, %v3102
        %v3170 = vmul.f32 %v2818, %v3104
        %v3171 = vmul.f32 %v2819, %v3106
        %v3172 = vmul.f32 %v2820, %v3108
        %3205 = vrot.lane.b32.xlu0 %v3141, 32
        %v3206 = vpop.permute.xlu0 %3205
        %3207 = vrot.lane.b32.xlu0 %v3142, 32
        %v3208 = vpop.permute.xlu0 %3207
        %3209 = vrot.lane.b32.xlu0 %v3143, 32
        %v3210 = vpop.permute.xlu0 %3209
        %3211 = vrot.lane.b32.xlu0 %v3144, 32
        %v3212 = vpop.permute.xlu0 %3211
        %3213 = vrot.lane.b32.xlu0 %v3145, 32
        %v3214 = vpop.permute.xlu0 %3213
        %3215 = vrot.lane.b32.xlu0 %v3146, 32
        %v3216 = vpop.permute.xlu0 %3215
        %3217 = vrot.lane.b32.xlu0 %v3147, 32
        %v3218 = vpop.permute.xlu0 %3217
        %3219 = vrot.lane.b32.xlu0 %v3148, 32
        %v3220 = vpop.permute.xlu0 %3219
        %3221 = vrot.lane.b32.xlu0 %v3149, 32
        %v3222 = vpop.permute.xlu0 %3221
        %3223 = vrot.lane.b32.xlu0 %v3150, 32
        %v3224 = vpop.permute.xlu0 %3223
        %3225 = vrot.lane.b32.xlu0 %v3151, 32
        %v3226 = vpop.permute.xlu0 %3225
        %3227 = vrot.lane.b32.xlu0 %v3152, 32
        %v3228 = vpop.permute.xlu0 %3227
        %3229 = vrot.lane.b32.xlu0 %v3153, 32
        %v3230 = vpop.permute.xlu0 %3229
        %3231 = vrot.lane.b32.xlu0 %v3154, 32
        %v3232 = vpop.permute.xlu0 %3231
        %3233 = vrot.lane.b32.xlu0 %v3155, 32
        %v3234 = vpop.permute.xlu0 %3233
        %3235 = vrot.lane.b32.xlu0 %v3156, 32
        %v3236 = vpop.permute.xlu0 %3235
        %3237 = vrot.lane.b32.xlu0 %v3157, 32
        %v3238 = vpop.permute.xlu0 %3237
        %3239 = vrot.lane.b32.xlu0 %v3158, 32
        %v3240 = vpop.permute.xlu0 %3239
        %3241 = vrot.lane.b32.xlu0 %v3159, 32
        %v3242 = vpop.permute.xlu0 %3241
        %3243 = vrot.lane.b32.xlu0 %v3160, 32
        %v3244 = vpop.permute.xlu0 %3243
        %3245 = vrot.lane.b32.xlu0 %v3161, 32
        %v3246 = vpop.permute.xlu0 %3245
        %3247 = vrot.lane.b32.xlu0 %v3162, 32
        %v3248 = vpop.permute.xlu0 %3247
        %3249 = vrot.lane.b32.xlu0 %v3163, 32
        %v3250 = vpop.permute.xlu0 %3249
        %3251 = vrot.lane.b32.xlu0 %v3164, 32
        %v3252 = vpop.permute.xlu0 %3251
        %3253 = vrot.lane.b32.xlu0 %v3165, 32
        %v3254 = vpop.permute.xlu0 %3253
        %3255 = vrot.lane.b32.xlu0 %v3166, 32
        %v3256 = vpop.permute.xlu0 %3255
        %3257 = vrot.lane.b32.xlu0 %v3167, 32
        %v3258 = vpop.permute.xlu0 %3257
        %3259 = vrot.lane.b32.xlu0 %v3168, 32
        %v3260 = vpop.permute.xlu0 %3259
        %3261 = vrot.lane.b32.xlu0 %v3169, 32
        %v3262 = vpop.permute.xlu0 %3261
        %3263 = vrot.lane.b32.xlu0 %v3170, 32
        %v3264 = vpop.permute.xlu0 %3263
        %3265 = vrot.lane.b32.xlu0 %v3171, 32
        %v3266 = vpop.permute.xlu0 %3265
        %3267 = vrot.lane.b32.xlu0 %v3172, 32
        %v3268 = vpop.permute.xlu0 %3267
        %v3301 = vadd.f32 %v2981, %v3206
        %v3302 = vadd.f32 %v2982, %v3208
        %v3303 = vadd.f32 %v2983, %v3210
        %v3304 = vadd.f32 %v2984, %v3212
        %v3305 = vadd.f32 %v2985, %v3214
        %v3306 = vadd.f32 %v2986, %v3216
        %v3307 = vadd.f32 %v2987, %v3218
        %v3308 = vadd.f32 %v2988, %v3220
        %v3309 = vadd.f32 %v2989, %v3222
        %v3310 = vadd.f32 %v2990, %v3224
        %v3311 = vadd.f32 %v2991, %v3226
        %v3312 = vadd.f32 %v2992, %v3228
        %v3313 = vadd.f32 %v2993, %v3230
        %v3314 = vadd.f32 %v2994, %v3232
        %v3315 = vadd.f32 %v2995, %v3234
        %v3316 = vadd.f32 %v2996, %v3236
        %v3317 = vadd.f32 %v2997, %v3238
        %v3318 = vadd.f32 %v2998, %v3240
        %v3319 = vadd.f32 %v2999, %v3242
        %v3320 = vadd.f32 %v3000, %v3244
        %v3321 = vadd.f32 %v3001, %v3246
        %v3322 = vadd.f32 %v3002, %v3248
        %v3323 = vadd.f32 %v3003, %v3250
        %v3324 = vadd.f32 %v3004, %v3252
        %v3325 = vadd.f32 %v3005, %v3254
        %v3326 = vadd.f32 %v3006, %v3256
        %v3327 = vadd.f32 %v3007, %v3258
        %v3328 = vadd.f32 %v3008, %v3260
        %v3329 = vadd.f32 %v3009, %v3262
        %v3330 = vadd.f32 %v3010, %v3264
        %v3331 = vadd.f32 %v3011, %v3266
        %v3332 = vadd.f32 %v3012, %v3268
        %v3333 = vtanh.pop %v3301
        %v3334 = vtanh.pop %v3302
        %v3335 = vtanh.pop %v3303
        %v3336 = vtanh.pop %v3304
        %v3337 = vtanh.pop %v3305
        %v3338 = vtanh.pop %v3306
        %v3339 = vtanh.pop %v3307
        %v3340 = vtanh.pop %v3308
        %v3341 = vtanh.pop %v3309
        %v3342 = vtanh.pop %v3310
        %v3343 = vtanh.pop %v3311
        %v3344 = vtanh.pop %v3312
        %v3345 = vtanh.pop %v3313
        %v3346 = vtanh.pop %v3314
        %v3347 = vtanh.pop %v3315
        %v3348 = vtanh.pop %v3316
        %v3349 = vtanh.pop %v3317
        %v3350 = vtanh.pop %v3318
        %v3351 = vtanh.pop %v3319
        %v3352 = vtanh.pop %v3320
        %v3353 = vtanh.pop %v3321
        %v3354 = vtanh.pop %v3322
        %v3355 = vtanh.pop %v3323
        %v3356 = vtanh.pop %v3324
        %v3357 = vtanh.pop %v3325
        %v3358 = vtanh.pop %v3326
        %v3359 = vtanh.pop %v3327
        %v3360 = vtanh.pop %v3328
        %v3361 = vtanh.pop %v3329
        %v3362 = vtanh.pop %v3330
        %v3363 = vtanh.pop %v3331
        %v3364 = vtanh.pop %v3332
        %3397 = vrot.lane.b32.xlu0 %v3333, 32
        %v3398 = vpop.permute.xlu0 %3397
        %3399 = vrot.lane.b32.xlu0 %v3334, 32
        %v3400 = vpop.permute.xlu0 %3399
        %3401 = vrot.lane.b32.xlu0 %v3335, 32
        %v3402 = vpop.permute.xlu0 %3401
        %3403 = vrot.lane.b32.xlu0 %v3336, 32
        %v3404 = vpop.permute.xlu0 %3403
        %3405 = vrot.lane.b32.xlu0 %v3337, 32
        %v3406 = vpop.permute.xlu0 %3405
        %3407 = vrot.lane.b32.xlu0 %v3338, 32
        %v3408 = vpop.permute.xlu0 %3407
        %3409 = vrot.lane.b32.xlu0 %v3339, 32
        %v3410 = vpop.permute.xlu0 %3409
        %3411 = vrot.lane.b32.xlu0 %v3340, 32
        %v3412 = vpop.permute.xlu0 %3411
        %3413 = vrot.lane.b32.xlu0 %v3341, 32
        %v3414 = vpop.permute.xlu0 %3413
        %3415 = vrot.lane.b32.xlu0 %v3342, 32
        %v3416 = vpop.permute.xlu0 %3415
        %3417 = vrot.lane.b32.xlu0 %v3343, 32
        %v3418 = vpop.permute.xlu0 %3417
        %3419 = vrot.lane.b32.xlu0 %v3344, 32
        %v3420 = vpop.permute.xlu0 %3419
        %3421 = vrot.lane.b32.xlu0 %v3345, 32
        %v3422 = vpop.permute.xlu0 %3421
        %3423 = vrot.lane.b32.xlu0 %v3346, 32
        %v3424 = vpop.permute.xlu0 %3423
        %3425 = vrot.lane.b32.xlu0 %v3347, 32
        %v3426 = vpop.permute.xlu0 %3425
        %3427 = vrot.lane.b32.xlu0 %v3348, 32
        %v3428 = vpop.permute.xlu0 %3427
        %3429 = vrot.lane.b32.xlu0 %v3349, 32
        %v3430 = vpop.permute.xlu0 %3429
        %3431 = vrot.lane.b32.xlu0 %v3350, 32
        %v3432 = vpop.permute.xlu0 %3431
        %3433 = vrot.lane.b32.xlu0 %v3351, 32
        %v3434 = vpop.permute.xlu0 %3433
        %3435 = vrot.lane.b32.xlu0 %v3352, 32
        %v3436 = vpop.permute.xlu0 %3435
        %3437 = vrot.lane.b32.xlu0 %v3353, 32
        %v3438 = vpop.permute.xlu0 %3437
        %3439 = vrot.lane.b32.xlu0 %v3354, 32
        %v3440 = vpop.permute.xlu0 %3439
        %3441 = vrot.lane.b32.xlu0 %v3355, 32
        %v3442 = vpop.permute.xlu0 %3441
        %3443 = vrot.lane.b32.xlu0 %v3356, 32
        %v3444 = vpop.permute.xlu0 %3443
        %3445 = vrot.lane.b32.xlu0 %v3357, 32
        %v3446 = vpop.permute.xlu0 %3445
        %3447 = vrot.lane.b32.xlu0 %v3358, 32
        %v3448 = vpop.permute.xlu0 %3447
        %3449 = vrot.lane.b32.xlu0 %v3359, 32
        %v3450 = vpop.permute.xlu0 %3449
        %3451 = vrot.lane.b32.xlu0 %v3360, 32
        %v3452 = vpop.permute.xlu0 %3451
        %3453 = vrot.lane.b32.xlu0 %v3361, 32
        %v3454 = vpop.permute.xlu0 %3453
        %3455 = vrot.lane.b32.xlu0 %v3362, 32
        %v3456 = vpop.permute.xlu0 %3455
        %3457 = vrot.lane.b32.xlu0 %v3363, 32
        %v3458 = vpop.permute.xlu0 %3457
        %3459 = vrot.lane.b32.xlu0 %v3364, 32
        %v3460 = vpop.permute.xlu0 %3459
        %v3493 = vmul.f32 %v2789, %v3398
        %v3494 = vmul.f32 %v2790, %v3400
        %v3495 = vmul.f32 %v2791, %v3402
        %v3496 = vmul.f32 %v2792, %v3404
        %v3497 = vmul.f32 %v2793, %v3406
        %v3498 = vmul.f32 %v2794, %v3408
        %v3499 = vmul.f32 %v2795, %v3410
        %v3500 = vmul.f32 %v2796, %v3412
        %v3501 = vmul.f32 %v2797, %v3414
        %v3502 = vmul.f32 %v2798, %v3416
        %v3503 = vmul.f32 %v2799, %v3418
        %v3504 = vmul.f32 %v2800, %v3420
        %v3505 = vmul.f32 %v2801, %v3422
        %v3506 = vmul.f32 %v2802, %v3424
        %v3507 = vmul.f32 %v2803, %v3426
        %v3508 = vmul.f32 %v2804, %v3428
        %v3509 = vmul.f32 %v2805, %v3430
        %v3510 = vmul.f32 %v2806, %v3432
        %v3511 = vmul.f32 %v2807, %v3434
        %v3512 = vmul.f32 %v2808, %v3436
        %v3513 = vmul.f32 %v2809, %v3438
        %v3514 = vmul.f32 %v2810, %v3440
        %v3515 = vmul.f32 %v2811, %v3442
        %v3516 = vmul.f32 %v2812, %v3444
        %v3517 = vmul.f32 %v2813, %v3446
        %v3518 = vmul.f32 %v2814, %v3448
        %v3519 = vmul.f32 %v2815, %v3450
        %v3520 = vmul.f32 %v2816, %v3452
        %v3521 = vmul.f32 %v2817, %v3454
        %v3522 = vmul.f32 %v2818, %v3456
        %v3523 = vmul.f32 %v2819, %v3458
        %v3524 = vmul.f32 %v2820, %v3460
        %3557 = vrot.lane.b32.xlu0 %v3301, 96
        %v3558 = vpop.permute.xlu0 %3557
        %3559 = vrot.lane.b32.xlu0 %v3302, 96
        %v3560 = vpop.permute.xlu0 %3559
        %3561 = vrot.lane.b32.xlu0 %v3303, 96
        %v3562 = vpop.permute.xlu0 %3561
        %3563 = vrot.lane.b32.xlu0 %v3304, 96
        %v3564 = vpop.permute.xlu0 %3563
        %3565 = vrot.lane.b32.xlu0 %v3305, 96
        %v3566 = vpop.permute.xlu0 %3565
        %3567 = vrot.lane.b32.xlu0 %v3306, 96
        %v3568 = vpop.permute.xlu0 %3567
        %3569 = vrot.lane.b32.xlu0 %v3307, 96
        %v3570 = vpop.permute.xlu0 %3569
        %3571 = vrot.lane.b32.xlu0 %v3308, 96
        %v3572 = vpop.permute.xlu0 %3571
        %3573 = vrot.lane.b32.xlu0 %v3309, 96
        %v3574 = vpop.permute.xlu0 %3573
        %3575 = vrot.lane.b32.xlu0 %v3310, 96
        %v3576 = vpop.permute.xlu0 %3575
        %3577 = vrot.lane.b32.xlu0 %v3311, 96
        %v3578 = vpop.permute.xlu0 %3577
        %3579 = vrot.lane.b32.xlu0 %v3312, 96
        %v3580 = vpop.permute.xlu0 %3579
        %3581 = vrot.lane.b32.xlu0 %v3313, 96
        %v3582 = vpop.permute.xlu0 %3581
        %3583 = vrot.lane.b32.xlu0 %v3314, 96
        %v3584 = vpop.permute.xlu0 %3583
        %3585 = vrot.lane.b32.xlu0 %v3315, 96
        %v3586 = vpop.permute.xlu0 %3585
        %3587 = vrot.lane.b32.xlu0 %v3316, 96
        %v3588 = vpop.permute.xlu0 %3587
        %3589 = vrot.lane.b32.xlu0 %v3317, 96
        %v3590 = vpop.permute.xlu0 %3589
        %3591 = vrot.lane.b32.xlu0 %v3318, 96
        %v3592 = vpop.permute.xlu0 %3591
        %3593 = vrot.lane.b32.xlu0 %v3319, 96
        %v3594 = vpop.permute.xlu0 %3593
        %3595 = vrot.lane.b32.xlu0 %v3320, 96
        %v3596 = vpop.permute.xlu0 %3595
        %3597 = vrot.lane.b32.xlu0 %v3321, 96
        %v3598 = vpop.permute.xlu0 %3597
        %3599 = vrot.lane.b32.xlu0 %v3322, 96
        %v3600 = vpop.permute.xlu0 %3599
        %3601 = vrot.lane.b32.xlu0 %v3323, 96
        %v3602 = vpop.permute.xlu0 %3601
        %3603 = vrot.lane.b32.xlu0 %v3324, 96
        %v3604 = vpop.permute.xlu0 %3603
        %3605 = vrot.lane.b32.xlu0 %v3325, 96
        %v3606 = vpop.permute.xlu0 %3605
        %3607 = vrot.lane.b32.xlu0 %v3326, 96
        %v3608 = vpop.permute.xlu0 %3607
        %3609 = vrot.lane.b32.xlu0 %v3327, 96
        %v3610 = vpop.permute.xlu0 %3609
        %3611 = vrot.lane.b32.xlu0 %v3328, 96
        %v3612 = vpop.permute.xlu0 %3611
        %3613 = vrot.lane.b32.xlu0 %v3329, 96
        %v3614 = vpop.permute.xlu0 %3613
        %3615 = vrot.lane.b32.xlu0 %v3330, 96
        %v3616 = vpop.permute.xlu0 %3615
        %3617 = vrot.lane.b32.xlu0 %v3331, 96
        %v3618 = vpop.permute.xlu0 %3617
        %3619 = vrot.lane.b32.xlu0 %v3332, 96
        %v3620 = vpop.permute.xlu0 %3619
        %3653 = vst.msk [vmem:[#allocation4] sm:$0xff] %vm580, %v3558
        %3654 = vst.msk [vmem:[#allocation4 + $0x8] sm:$0xff] %vm580, %v3560
        %3655 = vst.msk [vmem:[#allocation4 + $0x10] sm:$0xff] %vm580, %v3562
        %3656 = vst.msk [vmem:[#allocation4 + $0x18] sm:$0xff] %vm580, %v3564
        %3657 = vst.msk [vmem:[#allocation4 + $0x20] sm:$0xff] %vm580, %v3566
        %3658 = vst.msk [vmem:[#allocation4 + $0x28] sm:$0xff] %vm580, %v3568
        %3659 = vst.msk [vmem:[#allocation4 + $0x30] sm:$0xff] %vm580, %v3570
        %3660 = vst.msk [vmem:[#allocation4 + $0x38] sm:$0xff] %vm580, %v3572
        %3661 = vst.msk [vmem:[#allocation4 + $0x40] sm:$0xff] %vm580, %v3574
        %3662 = vst.msk [vmem:[#allocation4 + $0x48] sm:$0xff] %vm580, %v3576
        %3663 = vst.msk [vmem:[#allocation4 + $0x50] sm:$0xff] %vm580, %v3578
        %3664 = vst.msk [vmem:[#allocation4 + $0x58] sm:$0xff] %vm580, %v3580
        %3665 = vst.msk [vmem:[#allocation4 + $0x60] sm:$0xff] %vm580, %v3582
        %3666 = vst.msk [vmem:[#allocation4 + $0x68] sm:$0xff] %vm580, %v3584
        %3667 = vst.msk [vmem:[#allocation4 + $0x70] sm:$0xff] %vm580, %v3586
        %3668 = vst.msk [vmem:[#allocation4 + $0x78] sm:$0xff] %vm580, %v3588
        %3669 = vst.msk [vmem:[#allocation4 + $0x80] sm:$0xff] %vm580, %v3590
        %3670 = vst.msk [vmem:[#allocation4 + $0x88] sm:$0xff] %vm580, %v3592
        %3671 = vst.msk [vmem:[#allocation4 + $0x90] sm:$0xff] %vm580, %v3594
        %3672 = vst.msk [vmem:[#allocation4 + $0x98] sm:$0xff] %vm580, %v3596
        %3673 = vst.msk [vmem:[#allocation4 + $0xa0] sm:$0xff] %vm580, %v3598
        %3674 = vst.msk [vmem:[#allocation4 + $0xa8] sm:$0xff] %vm580, %v3600
        %3675 = vst.msk [vmem:[#allocation4 + $0xb0] sm:$0xff] %vm580, %v3602
        %3676 = vst.msk [vmem:[#allocation4 + $0xb8] sm:$0xff] %vm580, %v3604
        %3677 = vst.msk [vmem:[#allocation4 + $0xc0] sm:$0xff] %vm580, %v3606
        %3678 = vst.msk [vmem:[#allocation4 + $0xc8] sm:$0xff] %vm580, %v3608
        %3679 = vst.msk [vmem:[#allocation4 + $0xd0] sm:$0xff] %vm580, %v3610
        %3680 = vst.msk [vmem:[#allocation4 + $0xd8] sm:$0xff] %vm580, %v3612
        %3681 = vst.msk [vmem:[#allocation4 + $0xe0] sm:$0xff] %vm580, %v3614
        %3682 = vst.msk [vmem:[#allocation4 + $0xe8] sm:$0xff] %vm580, %v3616
        %3683 = vst.msk [vmem:[#allocation4 + $0xf0] sm:$0xff] %vm580, %v3618
        %3684 = vst.msk [vmem:[#allocation4 + $0xf8] sm:$0xff] %vm580, %v3620
        %3717 = vrot.lane.b32.xlu0 %v3493, 64
        %v3718 = vpop.permute.xlu0 %3717
        %3719 = vrot.lane.b32.xlu0 %v3494, 64
        %v3720 = vpop.permute.xlu0 %3719
        %3721 = vrot.lane.b32.xlu0 %v3495, 64
        %v3722 = vpop.permute.xlu0 %3721
        %3723 = vrot.lane.b32.xlu0 %v3496, 64
        %v3724 = vpop.permute.xlu0 %3723
        %3725 = vrot.lane.b32.xlu0 %v3497, 64
        %v3726 = vpop.permute.xlu0 %3725
        %3727 = vrot.lane.b32.xlu0 %v3498, 64
        %v3728 = vpop.permute.xlu0 %3727
        %3729 = vrot.lane.b32.xlu0 %v3499, 64
        %v3730 = vpop.permute.xlu0 %3729
        %3731 = vrot.lane.b32.xlu0 %v3500, 64
        %v3732 = vpop.permute.xlu0 %3731
        %3733 = vrot.lane.b32.xlu0 %v3501, 64
        %v3734 = vpop.permute.xlu0 %3733
        %3735 = vrot.lane.b32.xlu0 %v3502, 64
        %v3736 = vpop.permute.xlu0 %3735
        %3737 = vrot.lane.b32.xlu0 %v3503, 64
        %v3738 = vpop.permute.xlu0 %3737
        %3739 = vrot.lane.b32.xlu0 %v3504, 64
        %v3740 = vpop.permute.xlu0 %3739
        %3741 = vrot.lane.b32.xlu0 %v3505, 64
        %v3742 = vpop.permute.xlu0 %3741
        %3743 = vrot.lane.b32.xlu0 %v3506, 64
        %v3744 = vpop.permute.xlu0 %3743
        %3745 = vrot.lane.b32.xlu0 %v3507, 64
        %v3746 = vpop.permute.xlu0 %3745
        %3747 = vrot.lane.b32.xlu0 %v3508, 64
        %v3748 = vpop.permute.xlu0 %3747
        %3749 = vrot.lane.b32.xlu0 %v3509, 64
        %v3750 = vpop.permute.xlu0 %3749
        %3751 = vrot.lane.b32.xlu0 %v3510, 64
        %v3752 = vpop.permute.xlu0 %3751
        %3753 = vrot.lane.b32.xlu0 %v3511, 64
        %v3754 = vpop.permute.xlu0 %3753
        %3755 = vrot.lane.b32.xlu0 %v3512, 64
        %v3756 = vpop.permute.xlu0 %3755
        %3757 = vrot.lane.b32.xlu0 %v3513, 64
        %v3758 = vpop.permute.xlu0 %3757
        %3759 = vrot.lane.b32.xlu0 %v3514, 64
        %v3760 = vpop.permute.xlu0 %3759
        %3761 = vrot.lane.b32.xlu0 %v3515, 64
        %v3762 = vpop.permute.xlu0 %3761
        %3763 = vrot.lane.b32.xlu0 %v3516, 64
        %v3764 = vpop.permute.xlu0 %3763
        %3765 = vrot.lane.b32.xlu0 %v3517, 64
        %v3766 = vpop.permute.xlu0 %3765
        %3767 = vrot.lane.b32.xlu0 %v3518, 64
        %v3768 = vpop.permute.xlu0 %3767
        %3769 = vrot.lane.b32.xlu0 %v3519, 64
        %v3770 = vpop.permute.xlu0 %3769
        %3771 = vrot.lane.b32.xlu0 %v3520, 64
        %v3772 = vpop.permute.xlu0 %3771
        %3773 = vrot.lane.b32.xlu0 %v3521, 64
        %v3774 = vpop.permute.xlu0 %3773
        %3775 = vrot.lane.b32.xlu0 %v3522, 64
        %v3776 = vpop.permute.xlu0 %3775
        %3777 = vrot.lane.b32.xlu0 %v3523, 64
        %v3778 = vpop.permute.xlu0 %3777
        %3779 = vrot.lane.b32.xlu0 %v3524, 64
        %v3780 = vpop.permute.xlu0 %3779
        %3813 = vst.msk [vmem:[#allocation3] sm:$0xff] %vm580, %v3718
        %3814 = vst.msk [vmem:[#allocation3 + $0x8] sm:$0xff] %vm580, %v3720
        %3815 = vst.msk [vmem:[#allocation3 + $0x10] sm:$0xff] %vm580, %v3722
        %3816 = vst.msk [vmem:[#allocation3 + $0x18] sm:$0xff] %vm580, %v3724
        %3817 = vst.msk [vmem:[#allocation3 + $0x20] sm:$0xff] %vm580, %v3726
        %3818 = vst.msk [vmem:[#allocation3 + $0x28] sm:$0xff] %vm580, %v3728
        %3819 = vst.msk [vmem:[#allocation3 + $0x30] sm:$0xff] %vm580, %v3730
        %3820 = vst.msk [vmem:[#allocation3 + $0x38] sm:$0xff] %vm580, %v3732
        %3821 = vst.msk [vmem:[#allocation3 + $0x40] sm:$0xff] %vm580, %v3734
        %3822 = vst.msk [vmem:[#allocation3 + $0x48] sm:$0xff] %vm580, %v3736
        %3823 = vst.msk [vmem:[#allocation3 + $0x50] sm:$0xff] %vm580, %v3738
        %3824 = vst.msk [vmem:[#allocation3 + $0x58] sm:$0xff] %vm580, %v3740
        %3825 = vst.msk [vmem:[#allocation3 + $0x60] sm:$0xff] %vm580, %v3742
        %3826 = vst.msk [vmem:[#allocation3 + $0x68] sm:$0xff] %vm580, %v3744
        %3827 = vst.msk [vmem:[#allocation3 + $0x70] sm:$0xff] %vm580, %v3746
        %3828 = vst.msk [vmem:[#allocation3 + $0x78] sm:$0xff] %vm580, %v3748
        %3829 = vst.msk [vmem:[#allocation3 + $0x80] sm:$0xff] %vm580, %v3750
        %3830 = vst.msk [vmem:[#allocation3 + $0x88] sm:$0xff] %vm580, %v3752
        %3831 = vst.msk [vmem:[#allocation3 + $0x90] sm:$0xff] %vm580, %v3754
        %3832 = vst.msk [vmem:[#allocation3 + $0x98] sm:$0xff] %vm580, %v3756
        %3833 = vst.msk [vmem:[#allocation3 + $0xa0] sm:$0xff] %vm580, %v3758
        %3834 = vst.msk [vmem:[#allocation3 + $0xa8] sm:$0xff] %vm580, %v3760
        %3835 = vst.msk [vmem:[#allocation3 + $0xb0] sm:$0xff] %vm580, %v3762
        %3836 = vst.msk [vmem:[#allocation3 + $0xb8] sm:$0xff] %vm580, %v3764
        %3837 = vst.msk [vmem:[#allocation3 + $0xc0] sm:$0xff] %vm580, %v3766
        %3838 = vst.msk [vmem:[#allocation3 + $0xc8] sm:$0xff] %vm580, %v3768
        %3839 = vst.msk [vmem:[#allocation3 + $0xd0] sm:$0xff] %vm580, %v3770
        %3840 = vst.msk [vmem:[#allocation3 + $0xd8] sm:$0xff] %vm580, %v3772
        %3841 = vst.msk [vmem:[#allocation3 + $0xe0] sm:$0xff] %vm580, %v3774
        %3842 = vst.msk [vmem:[#allocation3 + $0xe8] sm:$0xff] %vm580, %v3776
        %3843 = vst.msk [vmem:[#allocation3 + $0xf0] sm:$0xff] %vm580, %v3778
        %3844 = vst.msk [vmem:[#allocation3 + $0xf8] sm:$0xff] %vm580, %v3780
        %3845 = vst.msk [vmem:[%s244] sm:$0xff] %vm580, %v3718
        %3846 = vst.msk [vmem:[%s244 + $0x8] sm:$0xff] %vm580, %v3720
        %3847 = vst.msk [vmem:[%s244 + $0x10] sm:$0xff] %vm580, %v3722
        %3848 = vst.msk [vmem:[%s244 + $0x18] sm:$0xff] %vm580, %v3724
        %3849 = vst.msk [vmem:[%s244 + $0x20] sm:$0xff] %vm580, %v3726
        %3850 = vst.msk [vmem:[%s244 + $0x28] sm:$0xff] %vm580, %v3728
        %3851 = vst.msk [vmem:[%s244 + $0x30] sm:$0xff] %vm580, %v3730
        %3852 = vst.msk [vmem:[%s244 + $0x38] sm:$0xff] %vm580, %v3732
        %3853 = vst.msk [vmem:[%s244 + $0x40] sm:$0xff] %vm580, %v3734
        %3854 = vst.msk [vmem:[%s244 + $0x48] sm:$0xff] %vm580, %v3736
        %3855 = vst.msk [vmem:[%s244 + $0x50] sm:$0xff] %vm580, %v3738
        %3856 = vst.msk [vmem:[%s244 + $0x58] sm:$0xff] %vm580, %v3740
        %3857 = vst.msk [vmem:[%s244 + $0x60] sm:$0xff] %vm580, %v3742
        %3858 = vst.msk [vmem:[%s244 + $0x68] sm:$0xff] %vm580, %v3744
        %3859 = vst.msk [vmem:[%s244 + $0x70] sm:$0xff] %vm580, %v3746
        %3860 = vst.msk [vmem:[%s244 + $0x78] sm:$0xff] %vm580, %v3748
        %3861 = vst.msk [vmem:[%s244 + $0x80] sm:$0xff] %vm580, %v3750
        %3862 = vst.msk [vmem:[%s244 + $0x88] sm:$0xff] %vm580, %v3752
        %3863 = vst.msk [vmem:[%s244 + $0x90] sm:$0xff] %vm580, %v3754
        %3864 = vst.msk [vmem:[%s244 + $0x98] sm:$0xff] %vm580, %v3756
        %3865 = vst.msk [vmem:[%s244 + $0xa0] sm:$0xff] %vm580, %v3758
        %3866 = vst.msk [vmem:[%s244 + $0xa8] sm:$0xff] %vm580, %v3760
        %3867 = vst.msk [vmem:[%s244 + $0xb0] sm:$0xff] %vm580, %v3762
        %3868 = vst.msk [vmem:[%s244 + $0xb8] sm:$0xff] %vm580, %v3764
        %3869 = vst.msk [vmem:[%s244 + $0xc0] sm:$0xff] %vm580, %v3766
        %3870 = vst.msk [vmem:[%s244 + $0xc8] sm:$0xff] %vm580, %v3768
        %3871 = vst.msk [vmem:[%s244 + $0xd0] sm:$0xff] %vm580, %v3770
        %3872 = vst.msk [vmem:[%s244 + $0xd8] sm:$0xff] %vm580, %v3772
        %3873 = vst.msk [vmem:[%s244 + $0xe0] sm:$0xff] %vm580, %v3774
        %3874 = vst.msk [vmem:[%s244 + $0xe8] sm:$0xff] %vm580, %v3776
        %3875 = vst.msk [vmem:[%s244 + $0xf0] sm:$0xff] %vm580, %v3778
        %3876 = vst.msk [vmem:[%s244 + $0xf8] sm:$0xff] %vm580, %v3780
        %p3877 = scmp.eq.s32.totalorder %s24, 7
        // Predicated region
        $region37: #{convlstm_forward.3} parent=31 // pred_check
          %p3878 = pneg %p3877
        $region38: #{convlstm_forward.3} parent=31 // pred_check_branch
          %3880 = sbr.rel (%p3878) target = $region40
        $region39: #{convlstm_forward.3} parent=31 // pred_region
          %3881 = vst.msk [vmem:[%s226] sm:$0xff] %vm580, %v3558
          %3882 = vst.msk [vmem:[%s226 + $0x8] sm:$0xff] %vm580, %v3560
          %3883 = vst.msk [vmem:[%s226 + $0x10] sm:$0xff] %vm580, %v3562
          %3884 = vst.msk [vmem:[%s226 + $0x18] sm:$0xff] %vm580, %v3564
          %3885 = vst.msk [vmem:[%s226 + $0x20] sm:$0xff] %vm580, %v3566
          %3886 = vst.msk [vmem:[%s226 + $0x28] sm:$0xff] %vm580, %v3568
          %3887 = vst.msk [vmem:[%s226 + $0x30] sm:$0xff] %vm580, %v3570
          %3888 = vst.msk [vmem:[%s226 + $0x38] sm:$0xff] %vm580, %v3572
          %3889 = vst.msk [vmem:[%s226 + $0x40] sm:$0xff] %vm580, %v3574
          %3890 = vst.msk [vmem:[%s226 + $0x48] sm:$0xff] %vm580, %v3576
          %3891 = vst.msk [vmem:[%s226 + $0x50] sm:$0xff] %vm580, %v3578
          %3892 = vst.msk [vmem:[%s226 + $0x58] sm:$0xff] %vm580, %v3580
          %3893 = vst.msk [vmem:[%s226 + $0x60] sm:$0xff] %vm580, %v3582
          %3894 = vst.msk [vmem:[%s226 + $0x68] sm:$0xff] %vm580, %v3584
          %3895 = vst.msk [vmem:[%s226 + $0x70] sm:$0xff] %vm580, %v3586
          %3896 = vst.msk [vmem:[%s226 + $0x78] sm:$0xff] %vm580, %v3588
          %3897 = vst.msk [vmem:[%s226 + $0x80] sm:$0xff] %vm580, %v3590
          %3898 = vst.msk [vmem:[%s226 + $0x88] sm:$0xff] %vm580, %v3592
          %3899 = vst.msk [vmem:[%s226 + $0x90] sm:$0xff] %vm580, %v3594
          %3900 = vst.msk [vmem:[%s226 + $0x98] sm:$0xff] %vm580, %v3596
          %3901 = vst.msk [vmem:[%s226 + $0xa0] sm:$0xff] %vm580, %v3598
          %3902 = vst.msk [vmem:[%s226 + $0xa8] sm:$0xff] %vm580, %v3600
          %3903 = vst.msk [vmem:[%s226 + $0xb0] sm:$0xff] %vm580, %v3602
          %3904 = vst.msk [vmem:[%s226 + $0xb8] sm:$0xff] %vm580, %v3604
          %3905 = vst.msk [vmem:[%s226 + $0xc0] sm:$0xff] %vm580, %v3606
          %3906 = vst.msk [vmem:[%s226 + $0xc8] sm:$0xff] %vm580, %v3608
          %3907 = vst.msk [vmem:[%s226 + $0xd0] sm:$0xff] %vm580, %v3610
          %3908 = vst.msk [vmem:[%s226 + $0xd8] sm:$0xff] %vm580, %v3612
          %3909 = vst.msk [vmem:[%s226 + $0xe0] sm:$0xff] %vm580, %v3614
          %3910 = vst.msk [vmem:[%s226 + $0xe8] sm:$0xff] %vm580, %v3616
          %3911 = vst.msk [vmem:[%s226 + $0xf0] sm:$0xff] %vm580, %v3618
          %3912 = vst.msk [vmem:[%s226 + $0xf8] sm:$0xff] %vm580, %v3620
        $region40: #{convlstm_forward.3} parent=31 // pred_fallthru
          _
        %p3913 = scmp.lt.s32.totalorder %s23, 1
        %s3914 = scalar_select %p3913, %s23, 1
        %p3915 = scmp.lt.s32.totalorder %s24, 7
        %s3916 = scalar_select %p3915, %s24, 7
        %s3917 = smul.addr %s3916, 32
        %s3918 = smul.addr %s3914, 256
        %s3919 = sadd.s32 %s3917, %s3918
        %s3920 = smul.addr %s3919, 8
        %s3921 = scalar_lea.vmem %s3, %s3920
        %s3922 = sand.u32 %s137, 1
        %s3923 = scalar_lea.sflag [#allocation6], %s3922
        %s3924 = sand.u32 %s137, 1
        %s3925 = smul.addr %s3924, 256
        %s3926 = scalar_lea.vmem [#allocation5], %s3925
        // Predicated region
        $region41: #{convlstm_forward.3} parent=31 // pred_check
          %p3927 = pneg %p121
        $region42: #{convlstm_forward.3} parent=31 // pred_check_branch
          %3929 = sbr.rel (%p3927) target = $region44
        $region43: #{convlstm_forward.3} parent=31 // pred_region
          _
        $region44: #{convlstm_forward.3} parent=31 // pred_fallthru
          _
        // Predicated region
        $region45: #{convlstm_forward.3} parent=31 // pred_check
          %p3930 = pneg %p147
        $region46: #{convlstm_forward.3} parent=31 // pred_check_branch
          %3932 = sbr.rel (%p3930) target = $region48
        $region47: #{convlstm_forward.3} parent=31 // pred_region
          %3934 = vsyncadd %s3923, 0
          %s3935 = smul.addr %s23, 32
          %s3936 = smul.addr %s3935, 8
          %s3937 = scalar_lea.hbm %s4, %s3936
          %s3938 = sshll.u32 %s3926, 4
          %s3939 = int_to_ptr.vmem [resolvable:$true] %s3938
          %s3940 = sshll.u32 %s3937, 4
          %s3941 = int_to_ptr.hbm [resolvable:$true] %s3940
          %3946 = dma.vmem_to_hbm [thread:$0]  %s3939, 4096, %s3941, %s3923, 128, 128, 8
        $region48: #{convlstm_forward.3} parent=31 // pred_fallthru
          _
      $region32: #{convlstm_forward.3} parent=5 // pred_fallthru
        _
      %p3947 = scmp.le.s32.totalorder 2, %s14
      // Predicated region
      $region49: #{convlstm_forward.3} parent=5 // pred_check
        %p3948 = pneg %p3947
      $region50: #{convlstm_forward.3} parent=5 // pred_check_branch
        %3950 = sbr.rel (%p3948) target = $region52
      $region51: #{convlstm_forward.3} parent=5 // pred_region
        %s3951 = ssub.s32 %s14, 2
        // Predicated region
        $region53: #{convlstm_forward.3} parent=51 // pred_check
          %p3952 = pneg %p127
        $region54: #{convlstm_forward.3} parent=51 // pred_check_branch
          %3954 = sbr.rel (%p3952) target = $region56
        $region55: #{convlstm_forward.3} parent=51 // pred_region
          %p3955 = scmp.lt.s32.totalorder %s25, 1
          %s3956 = scalar_select %p3955, %s25, 1
          %p3957 = scmp.lt.s32.totalorder %s26, 7
          %s3958 = scalar_select %p3957, %s26, 7
          %s3959 = smul.addr %s3958, 32
          %s3960 = smul.addr %s3956, 256
          %s3961 = sadd.s32 %s3959, %s3960
          %s3962 = smul.addr %s3961, 8
          %s3963 = scalar_lea.vmem %s3, %s3962
        $region56: #{convlstm_forward.3} parent=51 // pred_fallthru
          _
        // Predicated region
        $region57: #{convlstm_forward.3} parent=51 // pred_check
          %p3964 = pneg %p153
        $region58: #{convlstm_forward.3} parent=51 // pred_check_branch
          %3966 = sbr.rel (%p3964) target = $region60
        $region59: #{convlstm_forward.3} parent=51 // pred_region
          %s3967 = sand.u32 %s138, 1
          %s3968 = scalar_lea.sflag [#allocation6], %s3967
          %s3969 = sand.u32 %s138, 1
          %s3970 = smul.addr %s3969, 256
          %s3971 = scalar_lea.vmem [#allocation5], %s3970
          %3973 = dma.done %s3968, 4096
        $region60: #{convlstm_forward.3} parent=51 // pred_fallthru
          _
      $region52: #{convlstm_forward.3} parent=5 // pred_fallthru
        _
    $region6: #{convlstm_forward.3} parent=1 // loop_footer
      %s18 = sadd.s32 1, %s14
    $region7: #{convlstm_forward.3} parent=1 // loop_footer_branch
      %13 = sbr.rel target = $region3
    $region8: #{convlstm_forward.3} parent=1 // loop_exit
      _
    %3974 = vsyncpa [#allocation6], 1
    %s3975 = scalar_lea.sflag [#allocation6], 1
    %3976 = vsyncpa %s3975, 1

</llo_original>
